<compile_context>
chip_gen: v7x
topology: tpu7x:2x2x1
jax: 0.10.0
libtpu: 0.0.40
codegen_flags: <defaults>
</compile_context>

<pallas_src>
import functools

import jax
import jax.numpy as jnp
from jax.experimental import pallas as pl
from jax.experimental.pallas import tpu as pltpu

EMBED_DIM = 160
NUM_HEADS = 4
HEAD_DIM = EMBED_DIM // NUM_HEADS
FF_DIM = 2048
LN_EPS = 1e-5

_WEIGHT_ORDER = (
    "mask_w1", "mask_b1", "mask_w2", "mask_b2",
    "rob_w1", "rob_b1", "rob_w2", "rob_b2",
    "ts_w1", "ts_b1", "ts_w2", "ts_b2",
    "ln0_g", "ln0_b",
    "q_w", "q_b", "k_w", "k_b", "v_w", "v_b", "out_w", "out_b",
    "ln1_g", "ln1_b",
    "ff_w1", "ff_b1", "ff_w2", "ff_b2",
    "ln2_g", "ln2_b",
)


# ----------------------------------------------------------------------------
# Fused Pallas kernel: one grid step == one tile of `batches_per_tile * T`
# token rows (whole batches only).
# ----------------------------------------------------------------------------
def _fused_kernel(mask_ref, robot_ref, ts_ref, bias_ref,
                  mw1, mb1, mw2, mb2,
                  rw1, rb1, rw2, rb2,
                  tw1, tb1, tw2, tb2,
                  ln0g, ln0b,
                  qw, qb, kw, kb, vw, vb, ow, ob,
                  ln1g, ln1b,
                  fw1, fb1, fw2, fb2,
                  ln2g, ln2b,
                  o_ref, *, num_heads, head_dim, seq_len, batches_per_tile,
                  ff_chunk):
    f32, bf16 = jnp.float32, jnp.bfloat16

    def dense(x, w_ref, b_ref, act=None):
        # bf16 operands on the MXU, f32 accumulation; bias / activation in f32.
        y = jnp.dot(x.astype(bf16), w_ref[...], preferred_element_type=f32)
        y = y + b_ref[...]
        if act == "relu":
            y = jnp.maximum(y, 0.0)
        return y

    def layer_norm(x, g_ref, b_ref):
        mu = jnp.mean(x, axis=-1, keepdims=True)
        d = x - mu
        var = jnp.mean(d * d, axis=-1, keepdims=True)
        return d * jax.lax.rsqrt(var + LN_EPS) * g_ref[...] + b_ref[...]

    # ---- encoders (position-wise over the whole token tile) ----------------
    mask_feats = dense(dense(mask_ref[...], mw1, mb1, "relu"), mw2, mb2)
    rob_feats = dense(dense(robot_ref[...], rw1, rb1, "relu"), rw2, rb2)
    combined = jnp.concatenate([mask_feats, rob_feats], axis=-1)     # (tile,E)

    t = ts_ref[...]                                                  # (tile,1)
    ts_hidden = jnp.maximum(t * tw1[...] + tb1[...], 0.0)            # K=1 -> VPU
    ts_feats = dense(ts_hidden, tw2, tb2)                            # (tile,E)

    src = layer_norm(combined + ts_feats, ln0g, ln0b)                # f32

    # ---- self-attention: block-diagonal (per original batch) in the tile ---
    scale = 1.0 / float(head_dim) ** 0.5
    src_bf = src.astype(bf16)
    bias = bias_ref[...]                                             # (tile,tile)
    attn = jnp.zeros_like(src)
    for hh in range(num_heads):                                      # static unroll
        qh = (jnp.dot(src_bf, qw[hh], preferred_element_type=f32) + qb[hh]) * scale
        kh = jnp.dot(src_bf, kw[hh], preferred_element_type=f32) + kb[hh]
        vh = jnp.dot(src_bf, vw[hh], preferred_element_type=f32) + vb[hh]
        s = jax.lax.dot_general(qh.astype(bf16), kh.astype(bf16),
                                (((1,), (1,)), ((), ())),
                                preferred_element_type=f32)          # (tile,tile)
        s = s + bias                                                 # mask cross-batch
        s = s - jnp.max(s, axis=-1, keepdims=True)
        p = jnp.exp(s)
        p = p * pl.reciprocal(jnp.sum(p, axis=-1, keepdims=True), approx=True)
        oh = jnp.dot(p.astype(bf16), vh.astype(bf16), preferred_element_type=f32)
        # concat(heads) @ W_out  ==  sum_h  o_h @ W_out[h]
        attn = attn + jnp.dot(oh.astype(bf16), ow[hh], preferred_element_type=f32)
    attn = attn + ob[...]
    src = layer_norm(src + attn, ln1g, ln1b)

    # ---- feed-forward: hidden computed in lane-aligned column chunks -------
    ff_dim = fw1.shape[-1]
    src_bf = src.astype(bf16)
    ff = jnp.zeros_like(src)
    for c in range(0, ff_dim, ff_chunk):
        h = jnp.dot(src_bf, fw1[:, c:c + ff_chunk], preferred_element_type=f32)
        h = jnp.maximum(h + fb1[:, c:c + ff_chunk], 0.0)
        ff = ff + jnp.dot(h.astype(bf16), fw2[c:c + ff_chunk, :],
                          preferred_element_type=f32)
    ff = ff + fb2[...]
    src = layer_norm(src + ff, ln2g, ln2b)

    # ---- mean pool over time per batch (PyTorch: out.mean(dim=0)) ----------
    pooled = jnp.mean(
        src.reshape(batches_per_tile, seq_len, src.shape[-1]), axis=1)
    o_ref[...] = pooled.astype(o_ref.dtype)


# ----------------------------------------------------------------------------
# Wrapper
# ----------------------------------------------------------------------------
@functools.partial(jax.jit, static_argnames=("tile_tokens", "ff_chunk"))
def mask_time_series_forward(p, mask_seq, robot_seq, timestamps, *,
                             tile_tokens=256, ff_chunk=512):
    B, T, C, H, W = mask_seq.shape
    R = robot_seq.shape[-1]
    CHW = C * H * W

    ff_chunk = min(ff_chunk, FF_DIM)
    assert FF_DIM % ff_chunk == 0

    # --- token tiling: whole batches per tile, target `tile_tokens` rows ----
    tb = max(1, tile_tokens // T)
    if tb >= B:
        tb = B                           # single grid step; blocks = full dims
    else:
        tb = max(8, (tb // 8) * 8)       # keep output block sublane-aligned
    b_pad = ((B + tb - 1) // tb) * tb
    n_pad = b_pad * T
    grid = b_pad // tb
    tile = tb * T

    mask_flat = mask_seq.reshape(B * T, CHW).astype(jnp.bfloat16)    # bf16 stream
    robot = robot_seq.reshape(B * T, R).astype(jnp.float32)
    ts = timestamps.reshape(B * T, 1).astype(jnp.float32)
    pad = n_pad - B * T
    if pad:
        mask_flat = jnp.pad(mask_flat, ((0, pad), (0, 0)))
        robot = jnp.pad(robot, ((0, pad), (0, 0)))
        ts = jnp.pad(ts, ((0, pad), (0, 0)))

    # Block-diagonal additive attention mask (same for every tile).
    bid = jnp.repeat(jnp.arange(tb, dtype=jnp.int32), T)
    attn_bias = jnp.where(bid[:, None] == bid[None, :], 0.0, -1e30
                          ).astype(jnp.float32)                      # (tile,tile)

    weights = [p[k] for k in _WEIGHT_ORDER]

    data_specs = [
        pl.BlockSpec((tile, CHW), lambda g: (g, 0)),
        pl.BlockSpec((tile, R), lambda g: (g, 0)),
        pl.BlockSpec((tile, 1), lambda g: (g, 0)),
        pl.BlockSpec((tile, tile), lambda g: (0, 0)),
    ]
    # Full-array weight blocks; constant index_map -> DMA'd once, reused.
    weight_specs = [
        pl.BlockSpec(w.shape, lambda g, _nd=w.ndim: (0,) * _nd) for w in weights
    ]

    kernel = functools.partial(
        _fused_kernel, num_heads=NUM_HEADS, head_dim=HEAD_DIM,
        seq_len=T, batches_per_tile=tb, ff_chunk=ff_chunk)

    out = pl.pallas_call(
        kernel,
        out_shape=jax.ShapeDtypeStruct((b_pad, EMBED_DIM), jnp.float32),
        grid=(grid,),
        in_specs=data_specs + weight_specs,
        out_specs=pl.BlockSpec((tb, EMBED_DIM), lambda g: (g, 0)),
        compiler_params=pltpu.CompilerParams(
            dimension_semantics=("parallel",),
            vmem_limit_bytes=32 * 1024 * 1024),
    )(mask_flat, robot, ts, attn_bias, *weights)

    return out[:B]


# ----------------------------------------------------------------------------
# Parameters (deterministic synthetic init)
# ----------------------------------------------------------------------------
def init_params(key, mask_in_dim, robot_in_dim):
    keys = iter(jax.random.split(key, 40))
    bf16 = jnp.bfloat16

    def lin(fan_in, fan_out, dtype=bf16):
        w = (jax.random.normal(next(keys), (fan_in, fan_out), jnp.float32)
             * 0.02).astype(dtype)
        b = jnp.zeros((1, fan_out), jnp.float32)
        return w, b

    p = {}
    # TODO(synk): MaskResnet is undefined in the source; synthetic MLP used.
    p["mask_w1"], p["mask_b1"] = lin(mask_in_dim, 64)
    p["mask_w2"], p["mask_b2"] = lin(64, 128)
    # TODO(synk): RobotEncoder is undefined in the source; synthetic MLP used.
    p["rob_w1"], p["rob_b1"] = lin(robot_in_dim, 32)
    p["rob_w2"], p["rob_b2"] = lin(32, 32)
    # timestamp_encoder: Linear(1,32) -> ReLU -> Linear(32, embed_dim)
    p["ts_w1"], p["ts_b1"] = lin(1, 32, jnp.float32)   # K=1 layer stays on VPU
    p["ts_w2"], p["ts_b2"] = lin(32, EMBED_DIM)
    # Outer LayerNorm.
    p["ln0_g"] = jnp.ones((1, EMBED_DIM), jnp.float32)
    p["ln0_b"] = jnp.zeros((1, EMBED_DIM), jnp.float32)

    # TransformerEncoderLayer (post-norm, ReLU FFN).  Attention weights are
    # stored head-major (lane-aligned per-head access), bf16 for the MXU.
    def head_proj():
        w = (jax.random.normal(next(keys), (NUM_HEADS, EMBED_DIM, HEAD_DIM),
                               jnp.float32) * 0.02).astype(bf16)
        b = jnp.zeros((NUM_HEADS, 1, HEAD_DIM), jnp.float32)
        return w, b

    p["q_w"], p["q_b"] = head_proj()
    p["k_w"], p["k_b"] = head_proj()
    p["v_w"], p["v_b"] = head_proj()
    p["out_w"] = (jax.random.normal(next(keys), (NUM_HEADS, HEAD_DIM, EMBED_DIM),
                                    jnp.float32) * 0.02).astype(bf16)
    p["out_b"] = jnp.zeros((1, EMBED_DIM), jnp.float32)
    p["ln1_g"] = jnp.ones((1, EMBED_DIM), jnp.float32)
    p["ln1_b"] = jnp.zeros((1, EMBED_DIM), jnp.float32)
    p["ff_w1"], p["ff_b1"] = lin(EMBED_DIM, FF_DIM)
    p["ff_w2"], p["ff_b2"] = lin(FF_DIM, EMBED_DIM)
    p["ln2_g"] = jnp.ones((1, EMBED_DIM), jnp.float32)
    p["ln2_b"] = jnp.zeros((1, EMBED_DIM), jnp.float32)
    return p


# ----------------------------------------------------------------------------
# Pure-JAX reference (same params, full f32) for numerical validation.
# ----------------------------------------------------------------------------
def reference_forward(p, mask_seq, robot_seq, timestamps):
    f32 = jnp.float32
    B, T, C, H, W = mask_seq.shape
    R = robot_seq.shape[-1]

    def lin(x, w, b, act=None):
        y = x @ w.astype(f32) + b.astype(f32)
        return jnp.maximum(y, 0.0) if act == "relu" else y

    def lnorm(x, g, b):
        mu = x.mean(-1, keepdims=True)
        var = ((x - mu) ** 2).mean(-1, keepdims=True)
        return (x - mu) * jax.lax.rsqrt(var + LN_EPS) * g + b

    x = mask_seq.reshape(B * T, C * H * W).astype(f32)
    mask_feats = lin(lin(x, p["mask_w1"], p["mask_b1"], "relu"),
                     p["mask_w2"], p["mask_b2"])
    r = robot_seq.reshape(B * T, R).astype(f32)
    rob_feats = lin(lin(r, p["rob_w1"], p["rob_b1"], "relu"),
                    p["rob_w2"], p["rob_b2"])
    combined = jnp.concatenate([mask_feats, rob_feats], axis=-1)
    ts = timestamps.reshape(B * T, 1).astype(f32)
    ts_feats = lin(lin(ts, p["ts_w1"], p["ts_b1"], "relu"),
                   p["ts_w2"], p["ts_b2"])
    src = lnorm(combined + ts_feats, p["ln0_g"], p["ln0_b"])       # (B*T, E)

    srcb = src.reshape(B, T, EMBED_DIM)
    q = jnp.einsum("bte,hed->bhtd", srcb, p["q_w"].astype(f32)) + p["q_b"].astype(f32)
    k = jnp.einsum("bte,hed->bhtd", srcb, p["k_w"].astype(f32)) + p["k_b"].astype(f32)
    v = jnp.einsum("bte,hed->bhtd", srcb, p["v_w"].astype(f32)) + p["v_b"].astype(f32)
    s = jnp.einsum("bhqd,bhkd->bhqk", q, k) / (HEAD_DIM ** 0.5)
    a = jax.nn.softmax(s, axis=-1)
    o = jnp.einsum("bhqk,bhkd->bhqd", a, v)
    attn = jnp.einsum("bhtd,hde->bte", o, p["out_w"].astype(f32)) + p["out_b"].astype(f32)
    src = lnorm(src + attn.reshape(B * T, EMBED_DIM), p["ln1_g"], p["ln1_b"])

    ff = lin(lin(src, p["ff_w1"], p["ff_b1"], "relu"), p["ff_w2"], p["ff_b2"])
    src = lnorm(src + ff, p["ln2_g"], p["ln2_b"])
    return src.reshape(B, T, EMBED_DIM).mean(axis=1)


# ----------------------------------------------------------------------------
if __name__ == "__main__":
    B, T, C, H, W = 20, 8, 1, 16, 16
    R = 8  # robot state dimension (RobotEncoder input width)

    key = jax.random.PRNGKey(0)
    k_p, k_m, k_r, k_t = jax.random.split(key, 4)

    params = init_params(k_p, mask_in_dim=C * H * W, robot_in_dim=R)
    mask_seq = jax.random.normal(k_m, (B, T, C, H, W), jnp.float32)
    robot_seq = jax.random.normal(k_r, (B, T, R), jnp.float32)
    timestamps = jax.random.uniform(k_t, (B, T), jnp.float32)

    # tile_tokens=64 keeps several "parallel" grid steps at this toy size;
    # production default is 256 (MXU-dense rows on v6e/v7x, fine on v5e).
    out = mask_time_series_forward(params, mask_seq, robot_seq, timestamps,
                                   tile_tokens=64)
    out = jax.block_until_ready(out)

    assert out.shape == (B, EMBED_DIM), out.shape
    assert bool(jnp.all(jnp.isfinite(out)))

    ref = reference_forward(params, mask_seq, robot_seq, timestamps)
    max_err = float(jnp.max(jnp.abs(out - ref)))
    assert max_err < 5e-2, f"mismatch vs reference: {max_err}"

    print("KERNEL_OK")
</pallas_src>

<mosaic_0001>
module attributes {stable_mosaic.version = 11 : i64} {
  func.func @_fused_kernel(%arg0: i32, %arg1: memref<64x256xbf16, #tpu.memory_space<vmem>>, %arg2: memref<64x8xf32, #tpu.memory_space<vmem>>, %arg3: memref<64x1xf32, #tpu.memory_space<vmem>>, %arg4: memref<64x64xf32, #tpu.memory_space<vmem>>, %arg5: memref<256x64xbf16, #tpu.memory_space<vmem>>, %arg6: memref<1x64xf32, #tpu.memory_space<vmem>>, %arg7: memref<64x128xbf16, #tpu.memory_space<vmem>>, %arg8: memref<1x128xf32, #tpu.memory_space<vmem>>, %arg9: memref<8x32xbf16, #tpu.memory_space<vmem>>, %arg10: memref<1x32xf32, #tpu.memory_space<vmem>>, %arg11: memref<32x32xbf16, #tpu.memory_space<vmem>>, %arg12: memref<1x32xf32, #tpu.memory_space<vmem>>, %arg13: memref<1x32xf32, #tpu.memory_space<vmem>>, %arg14: memref<1x32xf32, #tpu.memory_space<vmem>>, %arg15: memref<32x160xbf16, #tpu.memory_space<vmem>>, %arg16: memref<1x160xf32, #tpu.memory_space<vmem>>, %arg17: memref<1x160xf32, #tpu.memory_space<vmem>>, %arg18: memref<1x160xf32, #tpu.memory_space<vmem>>, %arg19: memref<4x160x40xbf16, #tpu.memory_space<vmem>>, %arg20: memref<4x1x40xf32, #tpu.memory_space<vmem>>, %arg21: memref<4x160x40xbf16, #tpu.memory_space<vmem>>, %arg22: memref<4x1x40xf32, #tpu.memory_space<vmem>>, %arg23: memref<4x160x40xbf16, #tpu.memory_space<vmem>>, %arg24: memref<4x1x40xf32, #tpu.memory_space<vmem>>, %arg25: memref<4x40x160xbf16, #tpu.memory_space<vmem>>, %arg26: memref<1x160xf32, #tpu.memory_space<vmem>>, %arg27: memref<1x160xf32, #tpu.memory_space<vmem>>, %arg28: memref<1x160xf32, #tpu.memory_space<vmem>>, %arg29: memref<160x2048xbf16, #tpu.memory_space<vmem>>, %arg30: memref<1x2048xf32, #tpu.memory_space<vmem>>, %arg31: memref<2048x160xbf16, #tpu.memory_space<vmem>>, %arg32: memref<1x160xf32, #tpu.memory_space<vmem>>, %arg33: memref<1x160xf32, #tpu.memory_space<vmem>>, %arg34: memref<1x160xf32, #tpu.memory_space<vmem>>, %arg35: memref<8x160xf32, #tpu.memory_space<vmem>>) attributes {dimension_semantics = [#tpu.dimension_semantics<parallel>], iteration_bounds = array<i64: 3>, scalar_prefetch = 0 : i64, scratch_operands = 0 : i64, tpu.core_type = #tpu.core_type<tc>, window_params = [{transform_indices = @transform_0, window_bounds = array<i64: 64, 256>}, {transform_indices = @transform_1, window_bounds = array<i64: 64, 8>}, {transform_indices = @transform_2, window_bounds = array<i64: 64, 1>}, {pipeline_mode = #tpu.pipeline_mode<synchronous>, transform_indices = @transform_3, window_bounds = array<i64: 64, 64>}, {pipeline_mode = #tpu.pipeline_mode<synchronous>, transform_indices = @transform_4, window_bounds = array<i64: 256, 64>}, {pipeline_mode = #tpu.pipeline_mode<synchronous>, transform_indices = @transform_5, window_bounds = array<i64: 1, 64>}, {pipeline_mode = #tpu.pipeline_mode<synchronous>, transform_indices = @transform_6, window_bounds = array<i64: 64, 128>}, {pipeline_mode = #tpu.pipeline_mode<synchronous>, transform_indices = @transform_7, window_bounds = array<i64: 1, 128>}, {pipeline_mode = #tpu.pipeline_mode<synchronous>, transform_indices = @transform_8, window_bounds = array<i64: 8, 32>}, {pipeline_mode = #tpu.pipeline_mode<synchronous>, transform_indices = @transform_9, window_bounds = array<i64: 1, 32>}, {pipeline_mode = #tpu.pipeline_mode<synchronous>, transform_indices = @transform_10, window_bounds = array<i64: 32, 32>}, {pipeline_mode = #tpu.pipeline_mode<synchronous>, transform_indices = @transform_11, window_bounds = array<i64: 1, 32>}, {pipeline_mode = #tpu.pipeline_mode<synchronous>, transform_indices = @transform_12, window_bounds = array<i64: 1, 32>}, {pipeline_mode = #tpu.pipeline_mode<synchronous>, transform_indices = @transform_13, window_bounds = array<i64: 1, 32>}, {pipeline_mode = #tpu.pipeline_mode<synchronous>, transform_indices = @transform_14, window_bounds = array<i64: 32, 160>}, {pipeline_mode = #tpu.pipeline_mode<synchronous>, transform_indices = @transform_15, window_bounds = array<i64: 1, 160>}, {pipeline_mode = #tpu.pipeline_mode<synchronous>, transform_indices = @transform_16, window_bounds = array<i64: 1, 160>}, {pipeline_mode = #tpu.pipeline_mode<synchronous>, transform_indices = @transform_17, window_bounds = array<i64: 1, 160>}, {pipeline_mode = #tpu.pipeline_mode<synchronous>, transform_indices = @transform_18, window_bounds = array<i64: 4, 160, 40>}, {pipeline_mode = #tpu.pipeline_mode<synchronous>, transform_indices = @transform_19, window_bounds = array<i64: 4, 1, 40>}, {pipeline_mode = #tpu.pipeline_mode<synchronous>, transform_indices = @transform_20, window_bounds = array<i64: 4, 160, 40>}, {pipeline_mode = #tpu.pipeline_mode<synchronous>, transform_indices = @transform_21, window_bounds = array<i64: 4, 1, 40>}, {pipeline_mode = #tpu.pipeline_mode<synchronous>, transform_indices = @transform_22, window_bounds = array<i64: 4, 160, 40>}, {pipeline_mode = #tpu.pipeline_mode<synchronous>, transform_indices = @transform_23, window_bounds = array<i64: 4, 1, 40>}, {pipeline_mode = #tpu.pipeline_mode<synchronous>, transform_indices = @transform_24, window_bounds = array<i64: 4, 40, 160>}, {pipeline_mode = #tpu.pipeline_mode<synchronous>, transform_indices = @transform_25, window_bounds = array<i64: 1, 160>}, {pipeline_mode = #tpu.pipeline_mode<synchronous>, transform_indices = @transform_26, window_bounds = array<i64: 1, 160>}, {pipeline_mode = #tpu.pipeline_mode<synchronous>, transform_indices = @transform_27, window_bounds = array<i64: 1, 160>}, {pipeline_mode = #tpu.pipeline_mode<synchronous>, transform_indices = @transform_28, window_bounds = array<i64: 160, 2048>}, {pipeline_mode = #tpu.pipeline_mode<synchronous>, transform_indices = @transform_29, window_bounds = array<i64: 1, 2048>}, {pipeline_mode = #tpu.pipeline_mode<synchronous>, transform_indices = @transform_30, window_bounds = array<i64: 2048, 160>}, {pipeline_mode = #tpu.pipeline_mode<synchronous>, transform_indices = @transform_31, window_bounds = array<i64: 1, 160>}, {pipeline_mode = #tpu.pipeline_mode<synchronous>, transform_indices = @transform_32, window_bounds = array<i64: 1, 160>}, {pipeline_mode = #tpu.pipeline_mode<synchronous>, transform_indices = @transform_33, window_bounds = array<i64: 1, 160>}, {transform_indices = @transform_34, window_bounds = array<i64: 8, 160>}]} {
    %c0 = arith.constant 0 : index
    %c0_0 = arith.constant 0 : index
    %0 = vector.load %arg1[%c0, %c0_0] : memref<64x256xbf16, #tpu.memory_space<vmem>>, vector<64x256xbf16>
    %c0_1 = arith.constant 0 : index
    %c0_2 = arith.constant 0 : index
    %1 = vector.load %arg5[%c0_1, %c0_2] : memref<256x64xbf16, #tpu.memory_space<vmem>>, vector<256x64xbf16>
    %cst = arith.constant dense<0.000000e+00> : vector<64x64xf32>
    %2 = tpu.matmul %0, %1, %cst {dimension_numbers = #tpu.dot_dimension_numbers<[1], [0], [0], [1], [0, 0, 1, 1], [], []>} : vector<64x256xbf16>, vector<256x64xbf16>, vector<64x64xf32> -> vector<64x64xf32>
    %c0_3 = arith.constant 0 : index
    %c0_4 = arith.constant 0 : index
    %3 = vector.load %arg6[%c0_3, %c0_4] : memref<1x64xf32, #tpu.memory_space<vmem>>, vector<1x64xf32>
    %4 = vector.broadcast %3 : vector<1x64xf32> to vector<64x64xf32>
    %5 = arith.addf %2, %4 : vector<64x64xf32>
    %cst_5 = arith.constant 0.000000e+00 : f32
    %6 = vector.broadcast %cst_5 : f32 to vector<64x64xf32>
    %7 = arith.maximumf %5, %6 : vector<64x64xf32>
    %8 = arith.truncf %7 : vector<64x64xf32> to vector<64x64xbf16>
    %c0_6 = arith.constant 0 : index
    %c0_7 = arith.constant 0 : index
    %9 = vector.load %arg7[%c0_6, %c0_7] : memref<64x128xbf16, #tpu.memory_space<vmem>>, vector<64x128xbf16>
    %cst_8 = arith.constant dense<0.000000e+00> : vector<64x128xf32>
    %10 = tpu.matmul %8, %9, %cst_8 {dimension_numbers = #tpu.dot_dimension_numbers<[1], [0], [0], [1], [0, 0, 1, 1], [], []>} : vector<64x64xbf16>, vector<64x128xbf16>, vector<64x128xf32> -> vector<64x128xf32>
    %c0_9 = arith.constant 0 : index
    %c0_10 = arith.constant 0 : index
    %11 = vector.load %arg8[%c0_9, %c0_10] : memref<1x128xf32, #tpu.memory_space<vmem>>, vector<1x128xf32>
    %12 = vector.broadcast %11 : vector<1x128xf32> to vector<64x128xf32>
    %13 = arith.addf %10, %12 : vector<64x128xf32>
    %c0_11 = arith.constant 0 : index
    %c0_12 = arith.constant 0 : index
    %14 = vector.load %arg2[%c0_11, %c0_12] : memref<64x8xf32, #tpu.memory_space<vmem>>, vector<64x8xf32>
    %15 = arith.truncf %14 : vector<64x8xf32> to vector<64x8xbf16>
    %c0_13 = arith.constant 0 : index
    %c0_14 = arith.constant 0 : index
    %16 = vector.load %arg9[%c0_13, %c0_14] : memref<8x32xbf16, #tpu.memory_space<vmem>>, vector<8x32xbf16>
    %cst_15 = arith.constant dense<0.000000e+00> : vector<64x32xf32>
    %17 = tpu.matmul %15, %16, %cst_15 {dimension_numbers = #tpu.dot_dimension_numbers<[1], [0], [0], [1], [0, 0, 1, 1], [], []>} : vector<64x8xbf16>, vector<8x32xbf16>, vector<64x32xf32> -> vector<64x32xf32>
    %c0_16 = arith.constant 0 : index
    %c0_17 = arith.constant 0 : index
    %18 = vector.load %arg10[%c0_16, %c0_17] : memref<1x32xf32, #tpu.memory_space<vmem>>, vector<1x32xf32>
    %19 = vector.broadcast %18 : vector<1x32xf32> to vector<64x32xf32>
    %20 = arith.addf %17, %19 : vector<64x32xf32>
    %cst_18 = arith.constant 0.000000e+00 : f32
    %21 = vector.broadcast %cst_18 : f32 to vector<64x32xf32>
    %22 = arith.maximumf %20, %21 : vector<64x32xf32>
    %23 = arith.truncf %22 : vector<64x32xf32> to vector<64x32xbf16>
    %c0_19 = arith.constant 0 : index
    %c0_20 = arith.constant 0 : index
    %24 = vector.load %arg11[%c0_19, %c0_20] : memref<32x32xbf16, #tpu.memory_space<vmem>>, vector<32x32xbf16>
    %cst_21 = arith.constant dense<0.000000e+00> : vector<64x32xf32>
    %25 = tpu.matmul %23, %24, %cst_21 {dimension_numbers = #tpu.dot_dimension_numbers<[1], [0], [0], [1], [0, 0, 1, 1], [], []>} : vector<64x32xbf16>, vector<32x32xbf16>, vector<64x32xf32> -> vector<64x32xf32>
    %c0_22 = arith.constant 0 : index
    %c0_23 = arith.constant 0 : index
    %26 = vector.load %arg12[%c0_22, %c0_23] : memref<1x32xf32, #tpu.memory_space<vmem>>, vector<1x32xf32>
    %27 = vector.broadcast %26 : vector<1x32xf32> to vector<64x32xf32>
    %28 = arith.addf %25, %27 : vector<64x32xf32>
    %29 = tpu.concatenate %13, %28 in 1 : vector<64x128xf32>, vector<64x32xf32> -> vector<64x160xf32>
    %c0_24 = arith.constant 0 : index
    %c0_25 = arith.constant 0 : index
    %30 = vector.load %arg3[%c0_24, %c0_25] : memref<64x1xf32, #tpu.memory_space<vmem>>, vector<64x1xf32>
    %c0_26 = arith.constant 0 : index
    %c0_27 = arith.constant 0 : index
    %31 = vector.load %arg13[%c0_26, %c0_27] : memref<1x32xf32, #tpu.memory_space<vmem>>, vector<1x32xf32>
    %32 = vector.broadcast %30 : vector<64x1xf32> to vector<64x32xf32>
    %33 = vector.broadcast %31 : vector<1x32xf32> to vector<64x32xf32>
    %34 = arith.mulf %32, %33 : vector<64x32xf32>
    %c0_28 = arith.constant 0 : index
    %c0_29 = arith.constant 0 : index
    %35 = vector.load %arg14[%c0_28, %c0_29] : memref<1x32xf32, #tpu.memory_space<vmem>>, vector<1x32xf32>
    %36 = vector.broadcast %35 : vector<1x32xf32> to vector<64x32xf32>
    %37 = arith.addf %34, %36 : vector<64x32xf32>
    %cst_30 = arith.constant 0.000000e+00 : f32
    %38 = vector.broadcast %cst_30 : f32 to vector<64x32xf32>
    %39 = arith.maximumf %37, %38 : vector<64x32xf32>
    %40 = arith.truncf %39 : vector<64x32xf32> to vector<64x32xbf16>
    %c0_31 = arith.constant 0 : index
    %c0_32 = arith.constant 0 : index
    %41 = vector.load %arg15[%c0_31, %c0_32] : memref<32x160xbf16, #tpu.memory_space<vmem>>, vector<32x160xbf16>
    %cst_33 = arith.constant dense<0.000000e+00> : vector<64x160xf32>
    %42 = tpu.matmul %40, %41, %cst_33 {dimension_numbers = #tpu.dot_dimension_numbers<[1], [0], [0], [1], [0, 0, 1, 1], [], []>} : vector<64x32xbf16>, vector<32x160xbf16>, vector<64x160xf32> -> vector<64x160xf32>
    %c0_34 = arith.constant 0 : index
    %c0_35 = arith.constant 0 : index
    %43 = vector.load %arg16[%c0_34, %c0_35] : memref<1x160xf32, #tpu.memory_space<vmem>>, vector<1x160xf32>
    %44 = vector.broadcast %43 : vector<1x160xf32> to vector<64x160xf32>
    %45 = arith.addf %42, %44 : vector<64x160xf32>
    %46 = arith.addf %29, %45 : vector<64x160xf32>
    %cst_36 = arith.constant dense<0.000000e+00> : vector<64xf32>
    %47 = vector.multi_reduction <add>, %46, %cst_36 [1] : vector<64x160xf32> to vector<64xf32>
    %48 = vector.shape_cast %47 : vector<64xf32> to vector<64x1xf32>
    %cst_37 = arith.constant 1.600000e+02 : f32
    %49 = vector.broadcast %cst_37 : f32 to vector<64x1xf32>
    %50 = arith.divf %48, %49 : vector<64x1xf32>
    %51 = vector.broadcast %50 : vector<64x1xf32> to vector<64x160xf32>
    %52 = arith.subf %46, %51 : vector<64x160xf32>
    %53 = arith.mulf %52, %52 : vector<64x160xf32>
    %cst_38 = arith.constant dense<0.000000e+00> : vector<64xf32>
    %54 = vector.multi_reduction <add>, %53, %cst_38 [1] : vector<64x160xf32> to vector<64xf32>
    %55 = vector.shape_cast %54 : vector<64xf32> to vector<64x1xf32>
    %cst_39 = arith.constant 1.600000e+02 : f32
    %56 = vector.broadcast %cst_39 : f32 to vector<64x1xf32>
    %57 = arith.divf %55, %56 : vector<64x1xf32>
    %cst_40 = arith.constant 9.99999974E-6 : f32
    %58 = vector.broadcast %cst_40 : f32 to vector<64x1xf32>
    %59 = arith.addf %57, %58 : vector<64x1xf32>
    %60 = math.rsqrt %59 : vector<64x1xf32>
    %61 = vector.broadcast %60 : vector<64x1xf32> to vector<64x160xf32>
    %62 = arith.mulf %52, %61 : vector<64x160xf32>
    %c0_41 = arith.constant 0 : index
    %c0_42 = arith.constant 0 : index
    %63 = vector.load %arg17[%c0_41, %c0_42] : memref<1x160xf32, #tpu.memory_space<vmem>>, vector<1x160xf32>
    %64 = vector.broadcast %63 : vector<1x160xf32> to vector<64x160xf32>
    %65 = arith.mulf %62, %64 : vector<64x160xf32>
    %c0_43 = arith.constant 0 : index
    %c0_44 = arith.constant 0 : index
    %66 = vector.load %arg18[%c0_43, %c0_44] : memref<1x160xf32, #tpu.memory_space<vmem>>, vector<1x160xf32>
    %67 = vector.broadcast %66 : vector<1x160xf32> to vector<64x160xf32>
    %68 = arith.addf %65, %67 : vector<64x160xf32>
    %69 = arith.truncf %68 : vector<64x160xf32> to vector<64x160xbf16>
    %c0_45 = arith.constant 0 : index
    %c0_46 = arith.constant 0 : index
    %70 = vector.load %arg4[%c0_45, %c0_46] : memref<64x64xf32, #tpu.memory_space<vmem>>, vector<64x64xf32>
    %cst_47 = arith.constant 0.000000e+00 : f32
    %71 = vector.broadcast %cst_47 : f32 to vector<64x160xf32>
    %c0_48 = arith.constant 0 : index
    %c0_49 = arith.constant 0 : index
    %c0_50 = arith.constant 0 : index
    %72 = vector.load %arg19[%c0_48, %c0_49, %c0_50] : memref<4x160x40xbf16, #tpu.memory_space<vmem>>, vector<1x160x40xbf16>
    %73 = vector.shape_cast %72 : vector<1x160x40xbf16> to vector<160x40xbf16>
    %cst_51 = arith.constant dense<0.000000e+00> : vector<64x40xf32>
    %74 = tpu.matmul %69, %73, %cst_51 {dimension_numbers = #tpu.dot_dimension_numbers<[1], [0], [0], [1], [0, 0, 1, 1], [], []>} : vector<64x160xbf16>, vector<160x40xbf16>, vector<64x40xf32> -> vector<64x40xf32>
    %c0_52 = arith.constant 0 : index
    %c0_53 = arith.constant 0 : index
    %c0_54 = arith.constant 0 : index
    %75 = vector.load %arg20[%c0_52, %c0_53, %c0_54] : memref<4x1x40xf32, #tpu.memory_space<vmem>>, vector<1x1x40xf32>
    %76 = vector.shape_cast %75 : vector<1x1x40xf32> to vector<1x40xf32>
    %77 = vector.broadcast %76 : vector<1x40xf32> to vector<64x40xf32>
    %78 = arith.addf %74, %77 : vector<64x40xf32>
    %cst_55 = arith.constant 0.158113882 : f32
    %79 = vector.broadcast %cst_55 : f32 to vector<64x40xf32>
    %80 = arith.mulf %78, %79 : vector<64x40xf32>
    %c0_56 = arith.constant 0 : index
    %c0_57 = arith.constant 0 : index
    %c0_58 = arith.constant 0 : index
    %81 = vector.load %arg21[%c0_56, %c0_57, %c0_58] : memref<4x160x40xbf16, #tpu.memory_space<vmem>>, vector<1x160x40xbf16>
    %82 = vector.shape_cast %81 : vector<1x160x40xbf16> to vector<160x40xbf16>
    %cst_59 = arith.constant dense<0.000000e+00> : vector<64x40xf32>
    %83 = tpu.matmul %69, %82, %cst_59 {dimension_numbers = #tpu.dot_dimension_numbers<[1], [0], [0], [1], [0, 0, 1, 1], [], []>} : vector<64x160xbf16>, vector<160x40xbf16>, vector<64x40xf32> -> vector<64x40xf32>
    %c0_60 = arith.constant 0 : index
    %c0_61 = arith.constant 0 : index
    %c0_62 = arith.constant 0 : index
    %84 = vector.load %arg22[%c0_60, %c0_61, %c0_62] : memref<4x1x40xf32, #tpu.memory_space<vmem>>, vector<1x1x40xf32>
    %85 = vector.shape_cast %84 : vector<1x1x40xf32> to vector<1x40xf32>
    %86 = vector.broadcast %85 : vector<1x40xf32> to vector<64x40xf32>
    %87 = arith.addf %83, %86 : vector<64x40xf32>
    %c0_63 = arith.constant 0 : index
    %c0_64 = arith.constant 0 : index
    %c0_65 = arith.constant 0 : index
    %88 = vector.load %arg23[%c0_63, %c0_64, %c0_65] : memref<4x160x40xbf16, #tpu.memory_space<vmem>>, vector<1x160x40xbf16>
    %89 = vector.shape_cast %88 : vector<1x160x40xbf16> to vector<160x40xbf16>
    %cst_66 = arith.constant dense<0.000000e+00> : vector<64x40xf32>
    %90 = tpu.matmul %69, %89, %cst_66 {dimension_numbers = #tpu.dot_dimension_numbers<[1], [0], [0], [1], [0, 0, 1, 1], [], []>} : vector<64x160xbf16>, vector<160x40xbf16>, vector<64x40xf32> -> vector<64x40xf32>
    %c0_67 = arith.constant 0 : index
    %c0_68 = arith.constant 0 : index
    %c0_69 = arith.constant 0 : index
    %91 = vector.load %arg24[%c0_67, %c0_68, %c0_69] : memref<4x1x40xf32, #tpu.memory_space<vmem>>, vector<1x1x40xf32>
    %92 = vector.shape_cast %91 : vector<1x1x40xf32> to vector<1x40xf32>
    %93 = vector.broadcast %92 : vector<1x40xf32> to vector<64x40xf32>
    %94 = arith.addf %90, %93 : vector<64x40xf32>
    %95 = arith.truncf %80 : vector<64x40xf32> to vector<64x40xbf16>
    %96 = arith.truncf %87 : vector<64x40xf32> to vector<64x40xbf16>
    %cst_70 = arith.constant dense<0.000000e+00> : vector<64x64xf32>
    %97 = tpu.matmul %95, %96, %cst_70 {dimension_numbers = #tpu.dot_dimension_numbers<[1], [1], [0], [0], [0, 0, 1, 0], [], []>} : vector<64x40xbf16>, vector<64x40xbf16>, vector<64x64xf32> -> vector<64x64xf32>
    %98 = arith.addf %97, %70 : vector<64x64xf32>
    %cst_71 = arith.constant dense<0xFF800000> : vector<64xf32>
    %99 = vector.multi_reduction <maximumf>, %98, %cst_71 [1] : vector<64x64xf32> to vector<64xf32>
    %100 = vector.shape_cast %99 : vector<64xf32> to vector<64x1xf32>
    %101 = vector.broadcast %100 : vector<64x1xf32> to vector<64x64xf32>
    %102 = arith.subf %98, %101 : vector<64x64xf32>
    %103 = math.exp %102 : vector<64x64xf32>
    %cst_72 = arith.constant dense<0.000000e+00> : vector<64xf32>
    %104 = vector.multi_reduction <add>, %103, %cst_72 [1] : vector<64x64xf32> to vector<64xf32>
    %105 = vector.shape_cast %104 : vector<64xf32> to vector<64x1xf32>
    %106 = tpu.reciprocal %105 {approx = true} : vector<64x1xf32> -> vector<64x1xf32>
    %107 = vector.broadcast %106 : vector<64x1xf32> to vector<64x64xf32>
    %108 = arith.mulf %103, %107 : vector<64x64xf32>
    %109 = arith.truncf %108 : vector<64x64xf32> to vector<64x64xbf16>
    %110 = arith.truncf %94 : vector<64x40xf32> to vector<64x40xbf16>
    %cst_73 = arith.constant dense<0.000000e+00> : vector<64x40xf32>
    %111 = tpu.matmul %109, %110, %cst_73 {dimension_numbers = #tpu.dot_dimension_numbers<[1], [0], [0], [1], [0, 0, 1, 1], [], []>} : vector<64x64xbf16>, vector<64x40xbf16>, vector<64x40xf32> -> vector<64x40xf32>
    %112 = arith.truncf %111 : vector<64x40xf32> to vector<64x40xbf16>
    %c0_74 = arith.constant 0 : index
    %c0_75 = arith.constant 0 : index
    %c0_76 = arith.constant 0 : index
    %113 = vector.load %arg25[%c0_74, %c0_75, %c0_76] : memref<4x40x160xbf16, #tpu.memory_space<vmem>>, vector<1x40x160xbf16>
    %114 = vector.shape_cast %113 : vector<1x40x160xbf16> to vector<40x160xbf16>
    %cst_77 = arith.constant dense<0.000000e+00> : vector<64x160xf32>
    %115 = tpu.matmul %112, %114, %cst_77 {dimension_numbers = #tpu.dot_dimension_numbers<[1], [0], [0], [1], [0, 0, 1, 1], [], []>} : vector<64x40xbf16>, vector<40x160xbf16>, vector<64x160xf32> -> vector<64x160xf32>
    %116 = arith.addf %71, %115 : vector<64x160xf32>
    %c1 = arith.constant 1 : index
    %c0_78 = arith.constant 0 : index
    %c0_79 = arith.constant 0 : index
    %117 = vector.load %arg19[%c1, %c0_78, %c0_79] : memref<4x160x40xbf16, #tpu.memory_space<vmem>>, vector<1x160x40xbf16>
    %118 = vector.shape_cast %117 : vector<1x160x40xbf16> to vector<160x40xbf16>
    %cst_80 = arith.constant dense<0.000000e+00> : vector<64x40xf32>
    %119 = tpu.matmul %69, %118, %cst_80 {dimension_numbers = #tpu.dot_dimension_numbers<[1], [0], [0], [1], [0, 0, 1, 1], [], []>} : vector<64x160xbf16>, vector<160x40xbf16>, vector<64x40xf32> -> vector<64x40xf32>
    %c1_81 = arith.constant 1 : index
    %c0_82 = arith.constant 0 : index
    %c0_83 = arith.constant 0 : index
    %120 = vector.load %arg20[%c1_81, %c0_82, %c0_83] : memref<4x1x40xf32, #tpu.memory_space<vmem>>, vector<1x1x40xf32>
    %121 = vector.shape_cast %120 : vector<1x1x40xf32> to vector<1x40xf32>
    %122 = vector.broadcast %121 : vector<1x40xf32> to vector<64x40xf32>
    %123 = arith.addf %119, %122 : vector<64x40xf32>
    %cst_84 = arith.constant 0.158113882 : f32
    %124 = vector.broadcast %cst_84 : f32 to vector<64x40xf32>
    %125 = arith.mulf %123, %124 : vector<64x40xf32>
    %c1_85 = arith.constant 1 : index
    %c0_86 = arith.constant 0 : index
    %c0_87 = arith.constant 0 : index
    %126 = vector.load %arg21[%c1_85, %c0_86, %c0_87] : memref<4x160x40xbf16, #tpu.memory_space<vmem>>, vector<1x160x40xbf16>
    %127 = vector.shape_cast %126 : vector<1x160x40xbf16> to vector<160x40xbf16>
    %cst_88 = arith.constant dense<0.000000e+00> : vector<64x40xf32>
    %128 = tpu.matmul %69, %127, %cst_88 {dimension_numbers = #tpu.dot_dimension_numbers<[1], [0], [0], [1], [0, 0, 1, 1], [], []>} : vector<64x160xbf16>, vector<160x40xbf16>, vector<64x40xf32> -> vector<64x40xf32>
    %c1_89 = arith.constant 1 : index
    %c0_90 = arith.constant 0 : index
    %c0_91 = arith.constant 0 : index
    %129 = vector.load %arg22[%c1_89, %c0_90, %c0_91] : memref<4x1x40xf32, #tpu.memory_space<vmem>>, vector<1x1x40xf32>
    %130 = vector.shape_cast %129 : vector<1x1x40xf32> to vector<1x40xf32>
    %131 = vector.broadcast %130 : vector<1x40xf32> to vector<64x40xf32>
    %132 = arith.addf %128, %131 : vector<64x40xf32>
    %c1_92 = arith.constant 1 : index
    %c0_93 = arith.constant 0 : index
    %c0_94 = arith.constant 0 : index
    %133 = vector.load %arg23[%c1_92, %c0_93, %c0_94] : memref<4x160x40xbf16, #tpu.memory_space<vmem>>, vector<1x160x40xbf16>
    %134 = vector.shape_cast %133 : vector<1x160x40xbf16> to vector<160x40xbf16>
    %cst_95 = arith.constant dense<0.000000e+00> : vector<64x40xf32>
    %135 = tpu.matmul %69, %134, %cst_95 {dimension_numbers = #tpu.dot_dimension_numbers<[1], [0], [0], [1], [0, 0, 1, 1], [], []>} : vector<64x160xbf16>, vector<160x40xbf16>, vector<64x40xf32> -> vector<64x40xf32>
    %c1_96 = arith.constant 1 : index
    %c0_97 = arith.constant 0 : index
    %c0_98 = arith.constant 0 : index
    %136 = vector.load %arg24[%c1_96, %c0_97, %c0_98] : memref<4x1x40xf32, #tpu.memory_space<vmem>>, vector<1x1x40xf32>
    %137 = vector.shape_cast %136 : vector<1x1x40xf32> to vector<1x40xf32>
    %138 = vector.broadcast %137 : vector<1x40xf32> to vector<64x40xf32>
    %139 = arith.addf %135, %138 : vector<64x40xf32>
    %140 = arith.truncf %125 : vector<64x40xf32> to vector<64x40xbf16>
    %141 = arith.truncf %132 : vector<64x40xf32> to vector<64x40xbf16>
    %cst_99 = arith.constant dense<0.000000e+00> : vector<64x64xf32>
    %142 = tpu.matmul %140, %141, %cst_99 {dimension_numbers = #tpu.dot_dimension_numbers<[1], [1], [0], [0], [0, 0, 1, 0], [], []>} : vector<64x40xbf16>, vector<64x40xbf16>, vector<64x64xf32> -> vector<64x64xf32>
    %143 = arith.addf %142, %70 : vector<64x64xf32>
    %cst_100 = arith.constant dense<0xFF800000> : vector<64xf32>
    %144 = vector.multi_reduction <maximumf>, %143, %cst_100 [1] : vector<64x64xf32> to vector<64xf32>
    %145 = vector.shape_cast %144 : vector<64xf32> to vector<64x1xf32>
    %146 = vector.broadcast %145 : vector<64x1xf32> to vector<64x64xf32>
    %147 = arith.subf %143, %146 : vector<64x64xf32>
    %148 = math.exp %147 : vector<64x64xf32>
    %cst_101 = arith.constant dense<0.000000e+00> : vector<64xf32>
    %149 = vector.multi_reduction <add>, %148, %cst_101 [1] : vector<64x64xf32> to vector<64xf32>
    %150 = vector.shape_cast %149 : vector<64xf32> to vector<64x1xf32>
    %151 = tpu.reciprocal %150 {approx = true} : vector<64x1xf32> -> vector<64x1xf32>
    %152 = vector.broadcast %151 : vector<64x1xf32> to vector<64x64xf32>
    %153 = arith.mulf %148, %152 : vector<64x64xf32>
    %154 = arith.truncf %153 : vector<64x64xf32> to vector<64x64xbf16>
    %155 = arith.truncf %139 : vector<64x40xf32> to vector<64x40xbf16>
    %cst_102 = arith.constant dense<0.000000e+00> : vector<64x40xf32>
    %156 = tpu.matmul %154, %155, %cst_102 {dimension_numbers = #tpu.dot_dimension_numbers<[1], [0], [0], [1], [0, 0, 1, 1], [], []>} : vector<64x64xbf16>, vector<64x40xbf16>, vector<64x40xf32> -> vector<64x40xf32>
    %157 = arith.truncf %156 : vector<64x40xf32> to vector<64x40xbf16>
    %c1_103 = arith.constant 1 : index
    %c0_104 = arith.constant 0 : index
    %c0_105 = arith.constant 0 : index
    %158 = vector.load %arg25[%c1_103, %c0_104, %c0_105] : memref<4x40x160xbf16, #tpu.memory_space<vmem>>, vector<1x40x160xbf16>
    %159 = vector.shape_cast %158 : vector<1x40x160xbf16> to vector<40x160xbf16>
    %cst_106 = arith.constant dense<0.000000e+00> : vector<64x160xf32>
    %160 = tpu.matmul %157, %159, %cst_106 {dimension_numbers = #tpu.dot_dimension_numbers<[1], [0], [0], [1], [0, 0, 1, 1], [], []>} : vector<64x40xbf16>, vector<40x160xbf16>, vector<64x160xf32> -> vector<64x160xf32>
    %161 = arith.addf %116, %160 : vector<64x160xf32>
    %c2 = arith.constant 2 : index
    %c0_107 = arith.constant 0 : index
    %c0_108 = arith.constant 0 : index
    %162 = vector.load %arg19[%c2, %c0_107, %c0_108] : memref<4x160x40xbf16, #tpu.memory_space<vmem>>, vector<1x160x40xbf16>
    %163 = vector.shape_cast %162 : vector<1x160x40xbf16> to vector<160x40xbf16>
    %cst_109 = arith.constant dense<0.000000e+00> : vector<64x40xf32>
    %164 = tpu.matmul %69, %163, %cst_109 {dimension_numbers = #tpu.dot_dimension_numbers<[1], [0], [0], [1], [0, 0, 1, 1], [], []>} : vector<64x160xbf16>, vector<160x40xbf16>, vector<64x40xf32> -> vector<64x40xf32>
    %c2_110 = arith.constant 2 : index
    %c0_111 = arith.constant 0 : index
    %c0_112 = arith.constant 0 : index
    %165 = vector.load %arg20[%c2_110, %c0_111, %c0_112] : memref<4x1x40xf32, #tpu.memory_space<vmem>>, vector<1x1x40xf32>
    %166 = vector.shape_cast %165 : vector<1x1x40xf32> to vector<1x40xf32>
    %167 = vector.broadcast %166 : vector<1x40xf32> to vector<64x40xf32>
    %168 = arith.addf %164, %167 : vector<64x40xf32>
    %cst_113 = arith.constant 0.158113882 : f32
    %169 = vector.broadcast %cst_113 : f32 to vector<64x40xf32>
    %170 = arith.mulf %168, %169 : vector<64x40xf32>
    %c2_114 = arith.constant 2 : index
    %c0_115 = arith.constant 0 : index
    %c0_116 = arith.constant 0 : index
    %171 = vector.load %arg21[%c2_114, %c0_115, %c0_116] : memref<4x160x40xbf16, #tpu.memory_space<vmem>>, vector<1x160x40xbf16>
    %172 = vector.shape_cast %171 : vector<1x160x40xbf16> to vector<160x40xbf16>
    %cst_117 = arith.constant dense<0.000000e+00> : vector<64x40xf32>
    %173 = tpu.matmul %69, %172, %cst_117 {dimension_numbers = #tpu.dot_dimension_numbers<[1], [0], [0], [1], [0, 0, 1, 1], [], []>} : vector<64x160xbf16>, vector<160x40xbf16>, vector<64x40xf32> -> vector<64x40xf32>
    %c2_118 = arith.constant 2 : index
    %c0_119 = arith.constant 0 : index
    %c0_120 = arith.constant 0 : index
    %174 = vector.load %arg22[%c2_118, %c0_119, %c0_120] : memref<4x1x40xf32, #tpu.memory_space<vmem>>, vector<1x1x40xf32>
    %175 = vector.shape_cast %174 : vector<1x1x40xf32> to vector<1x40xf32>
    %176 = vector.broadcast %175 : vector<1x40xf32> to vector<64x40xf32>
    %177 = arith.addf %173, %176 : vector<64x40xf32>
    %c2_121 = arith.constant 2 : index
    %c0_122 = arith.constant 0 : index
    %c0_123 = arith.constant 0 : index
    %178 = vector.load %arg23[%c2_121, %c0_122, %c0_123] : memref<4x160x40xbf16, #tpu.memory_space<vmem>>, vector<1x160x40xbf16>
    %179 = vector.shape_cast %178 : vector<1x160x40xbf16> to vector<160x40xbf16>
    %cst_124 = arith.constant dense<0.000000e+00> : vector<64x40xf32>
    %180 = tpu.matmul %69, %179, %cst_124 {dimension_numbers = #tpu.dot_dimension_numbers<[1], [0], [0], [1], [0, 0, 1, 1], [], []>} : vector<64x160xbf16>, vector<160x40xbf16>, vector<64x40xf32> -> vector<64x40xf32>
    %c2_125 = arith.constant 2 : index
    %c0_126 = arith.constant 0 : index
    %c0_127 = arith.constant 0 : index
    %181 = vector.load %arg24[%c2_125, %c0_126, %c0_127] : memref<4x1x40xf32, #tpu.memory_space<vmem>>, vector<1x1x40xf32>
    %182 = vector.shape_cast %181 : vector<1x1x40xf32> to vector<1x40xf32>
    %183 = vector.broadcast %182 : vector<1x40xf32> to vector<64x40xf32>
    %184 = arith.addf %180, %183 : vector<64x40xf32>
    %185 = arith.truncf %170 : vector<64x40xf32> to vector<64x40xbf16>
    %186 = arith.truncf %177 : vector<64x40xf32> to vector<64x40xbf16>
    %cst_128 = arith.constant dense<0.000000e+00> : vector<64x64xf32>
    %187 = tpu.matmul %185, %186, %cst_128 {dimension_numbers = #tpu.dot_dimension_numbers<[1], [1], [0], [0], [0, 0, 1, 0], [], []>} : vector<64x40xbf16>, vector<64x40xbf16>, vector<64x64xf32> -> vector<64x64xf32>
    %188 = arith.addf %187, %70 : vector<64x64xf32>
    %cst_129 = arith.constant dense<0xFF800000> : vector<64xf32>
    %189 = vector.multi_reduction <maximumf>, %188, %cst_129 [1] : vector<64x64xf32> to vector<64xf32>
    %190 = vector.shape_cast %189 : vector<64xf32> to vector<64x1xf32>
    %191 = vector.broadcast %190 : vector<64x1xf32> to vector<64x64xf32>
    %192 = arith.subf %188, %191 : vector<64x64xf32>
    %193 = math.exp %192 : vector<64x64xf32>
    %cst_130 = arith.constant dense<0.000000e+00> : vector<64xf32>
    %194 = vector.multi_reduction <add>, %193, %cst_130 [1] : vector<64x64xf32> to vector<64xf32>
    %195 = vector.shape_cast %194 : vector<64xf32> to vector<64x1xf32>
    %196 = tpu.reciprocal %195 {approx = true} : vector<64x1xf32> -> vector<64x1xf32>
    %197 = vector.broadcast %196 : vector<64x1xf32> to vector<64x64xf32>
    %198 = arith.mulf %193, %197 : vector<64x64xf32>
    %199 = arith.truncf %198 : vector<64x64xf32> to vector<64x64xbf16>
    %200 = arith.truncf %184 : vector<64x40xf32> to vector<64x40xbf16>
    %cst_131 = arith.constant dense<0.000000e+00> : vector<64x40xf32>
    %201 = tpu.matmul %199, %200, %cst_131 {dimension_numbers = #tpu.dot_dimension_numbers<[1], [0], [0], [1], [0, 0, 1, 1], [], []>} : vector<64x64xbf16>, vector<64x40xbf16>, vector<64x40xf32> -> vector<64x40xf32>
    %202 = arith.truncf %201 : vector<64x40xf32> to vector<64x40xbf16>
    %c2_132 = arith.constant 2 : index
    %c0_133 = arith.constant 0 : index
    %c0_134 = arith.constant 0 : index
    %203 = vector.load %arg25[%c2_132, %c0_133, %c0_134] : memref<4x40x160xbf16, #tpu.memory_space<vmem>>, vector<1x40x160xbf16>
    %204 = vector.shape_cast %203 : vector<1x40x160xbf16> to vector<40x160xbf16>
    %cst_135 = arith.constant dense<0.000000e+00> : vector<64x160xf32>
    %205 = tpu.matmul %202, %204, %cst_135 {dimension_numbers = #tpu.dot_dimension_numbers<[1], [0], [0], [1], [0, 0, 1, 1], [], []>} : vector<64x40xbf16>, vector<40x160xbf16>, vector<64x160xf32> -> vector<64x160xf32>
    %206 = arith.addf %161, %205 : vector<64x160xf32>
    %c3 = arith.constant 3 : index
    %c0_136 = arith.constant 0 : index
    %c0_137 = arith.constant 0 : index
    %207 = vector.load %arg19[%c3, %c0_136, %c0_137] : memref<4x160x40xbf16, #tpu.memory_space<vmem>>, vector<1x160x40xbf16>
    %208 = vector.shape_cast %207 : vector<1x160x40xbf16> to vector<160x40xbf16>
    %cst_138 = arith.constant dense<0.000000e+00> : vector<64x40xf32>
    %209 = tpu.matmul %69, %208, %cst_138 {dimension_numbers = #tpu.dot_dimension_numbers<[1], [0], [0], [1], [0, 0, 1, 1], [], []>} : vector<64x160xbf16>, vector<160x40xbf16>, vector<64x40xf32> -> vector<64x40xf32>
    %c3_139 = arith.constant 3 : index
    %c0_140 = arith.constant 0 : index
    %c0_141 = arith.constant 0 : index
    %210 = vector.load %arg20[%c3_139, %c0_140, %c0_141] : memref<4x1x40xf32, #tpu.memory_space<vmem>>, vector<1x1x40xf32>
    %211 = vector.shape_cast %210 : vector<1x1x40xf32> to vector<1x40xf32>
    %212 = vector.broadcast %211 : vector<1x40xf32> to vector<64x40xf32>
    %213 = arith.addf %209, %212 : vector<64x40xf32>
    %cst_142 = arith.constant 0.158113882 : f32
    %214 = vector.broadcast %cst_142 : f32 to vector<64x40xf32>
    %215 = arith.mulf %213, %214 : vector<64x40xf32>
    %c3_143 = arith.constant 3 : index
    %c0_144 = arith.constant 0 : index
    %c0_145 = arith.constant 0 : index
    %216 = vector.load %arg21[%c3_143, %c0_144, %c0_145] : memref<4x160x40xbf16, #tpu.memory_space<vmem>>, vector<1x160x40xbf16>
    %217 = vector.shape_cast %216 : vector<1x160x40xbf16> to vector<160x40xbf16>
    %cst_146 = arith.constant dense<0.000000e+00> : vector<64x40xf32>
    %218 = tpu.matmul %69, %217, %cst_146 {dimension_numbers = #tpu.dot_dimension_numbers<[1], [0], [0], [1], [0, 0, 1, 1], [], []>} : vector<64x160xbf16>, vector<160x40xbf16>, vector<64x40xf32> -> vector<64x40xf32>
    %c3_147 = arith.constant 3 : index
    %c0_148 = arith.constant 0 : index
    %c0_149 = arith.constant 0 : index
    %219 = vector.load %arg22[%c3_147, %c0_148, %c0_149] : memref<4x1x40xf32, #tpu.memory_space<vmem>>, vector<1x1x40xf32>
    %220 = vector.shape_cast %219 : vector<1x1x40xf32> to vector<1x40xf32>
    %221 = vector.broadcast %220 : vector<1x40xf32> to vector<64x40xf32>
    %222 = arith.addf %218, %221 : vector<64x40xf32>
    %c3_150 = arith.constant 3 : index
    %c0_151 = arith.constant 0 : index
    %c0_152 = arith.constant 0 : index
    %223 = vector.load %arg23[%c3_150, %c0_151, %c0_152] : memref<4x160x40xbf16, #tpu.memory_space<vmem>>, vector<1x160x40xbf16>
    %224 = vector.shape_cast %223 : vector<1x160x40xbf16> to vector<160x40xbf16>
    %cst_153 = arith.constant dense<0.000000e+00> : vector<64x40xf32>
    %225 = tpu.matmul %69, %224, %cst_153 {dimension_numbers = #tpu.dot_dimension_numbers<[1], [0], [0], [1], [0, 0, 1, 1], [], []>} : vector<64x160xbf16>, vector<160x40xbf16>, vector<64x40xf32> -> vector<64x40xf32>
    %c3_154 = arith.constant 3 : index
    %c0_155 = arith.constant 0 : index
    %c0_156 = arith.constant 0 : index
    %226 = vector.load %arg24[%c3_154, %c0_155, %c0_156] : memref<4x1x40xf32, #tpu.memory_space<vmem>>, vector<1x1x40xf32>
    %227 = vector.shape_cast %226 : vector<1x1x40xf32> to vector<1x40xf32>
    %228 = vector.broadcast %227 : vector<1x40xf32> to vector<64x40xf32>
    %229 = arith.addf %225, %228 : vector<64x40xf32>
    %230 = arith.truncf %215 : vector<64x40xf32> to vector<64x40xbf16>
    %231 = arith.truncf %222 : vector<64x40xf32> to vector<64x40xbf16>
    %cst_157 = arith.constant dense<0.000000e+00> : vector<64x64xf32>
    %232 = tpu.matmul %230, %231, %cst_157 {dimension_numbers = #tpu.dot_dimension_numbers<[1], [1], [0], [0], [0, 0, 1, 0], [], []>} : vector<64x40xbf16>, vector<64x40xbf16>, vector<64x64xf32> -> vector<64x64xf32>
    %233 = arith.addf %232, %70 : vector<64x64xf32>
    %cst_158 = arith.constant dense<0xFF800000> : vector<64xf32>
    %234 = vector.multi_reduction <maximumf>, %233, %cst_158 [1] : vector<64x64xf32> to vector<64xf32>
    %235 = vector.shape_cast %234 : vector<64xf32> to vector<64x1xf32>
    %236 = vector.broadcast %235 : vector<64x1xf32> to vector<64x64xf32>
    %237 = arith.subf %233, %236 : vector<64x64xf32>
    %238 = math.exp %237 : vector<64x64xf32>
    %cst_159 = arith.constant dense<0.000000e+00> : vector<64xf32>
    %239 = vector.multi_reduction <add>, %238, %cst_159 [1] : vector<64x64xf32> to vector<64xf32>
    %240 = vector.shape_cast %239 : vector<64xf32> to vector<64x1xf32>
    %241 = tpu.reciprocal %240 {approx = true} : vector<64x1xf32> -> vector<64x1xf32>
    %242 = vector.broadcast %241 : vector<64x1xf32> to vector<64x64xf32>
    %243 = arith.mulf %238, %242 : vector<64x64xf32>
    %244 = arith.truncf %243 : vector<64x64xf32> to vector<64x64xbf16>
    %245 = arith.truncf %229 : vector<64x40xf32> to vector<64x40xbf16>
    %cst_160 = arith.constant dense<0.000000e+00> : vector<64x40xf32>
    %246 = tpu.matmul %244, %245, %cst_160 {dimension_numbers = #tpu.dot_dimension_numbers<[1], [0], [0], [1], [0, 0, 1, 1], [], []>} : vector<64x64xbf16>, vector<64x40xbf16>, vector<64x40xf32> -> vector<64x40xf32>
    %247 = arith.truncf %246 : vector<64x40xf32> to vector<64x40xbf16>
    %c3_161 = arith.constant 3 : index
    %c0_162 = arith.constant 0 : index
    %c0_163 = arith.constant 0 : index
    %248 = vector.load %arg25[%c3_161, %c0_162, %c0_163] : memref<4x40x160xbf16, #tpu.memory_space<vmem>>, vector<1x40x160xbf16>
    %249 = vector.shape_cast %248 : vector<1x40x160xbf16> to vector<40x160xbf16>
    %cst_164 = arith.constant dense<0.000000e+00> : vector<64x160xf32>
    %250 = tpu.matmul %247, %249, %cst_164 {dimension_numbers = #tpu.dot_dimension_numbers<[1], [0], [0], [1], [0, 0, 1, 1], [], []>} : vector<64x40xbf16>, vector<40x160xbf16>, vector<64x160xf32> -> vector<64x160xf32>
    %251 = arith.addf %206, %250 : vector<64x160xf32>
    %c0_165 = arith.constant 0 : index
    %c0_166 = arith.constant 0 : index
    %252 = vector.load %arg26[%c0_165, %c0_166] : memref<1x160xf32, #tpu.memory_space<vmem>>, vector<1x160xf32>
    %253 = vector.broadcast %252 : vector<1x160xf32> to vector<64x160xf32>
    %254 = arith.addf %251, %253 : vector<64x160xf32>
    %255 = arith.addf %68, %254 : vector<64x160xf32>
    %cst_167 = arith.constant dense<0.000000e+00> : vector<64xf32>
    %256 = vector.multi_reduction <add>, %255, %cst_167 [1] : vector<64x160xf32> to vector<64xf32>
    %257 = vector.shape_cast %256 : vector<64xf32> to vector<64x1xf32>
    %cst_168 = arith.constant 1.600000e+02 : f32
    %258 = vector.broadcast %cst_168 : f32 to vector<64x1xf32>
    %259 = arith.divf %257, %258 : vector<64x1xf32>
    %260 = vector.broadcast %259 : vector<64x1xf32> to vector<64x160xf32>
    %261 = arith.subf %255, %260 : vector<64x160xf32>
    %262 = arith.mulf %261, %261 : vector<64x160xf32>
    %cst_169 = arith.constant dense<0.000000e+00> : vector<64xf32>
    %263 = vector.multi_reduction <add>, %262, %cst_169 [1] : vector<64x160xf32> to vector<64xf32>
    %264 = vector.shape_cast %263 : vector<64xf32> to vector<64x1xf32>
    %cst_170 = arith.constant 1.600000e+02 : f32
    %265 = vector.broadcast %cst_170 : f32 to vector<64x1xf32>
    %266 = arith.divf %264, %265 : vector<64x1xf32>
    %cst_171 = arith.constant 9.99999974E-6 : f32
    %267 = vector.broadcast %cst_171 : f32 to vector<64x1xf32>
    %268 = arith.addf %266, %267 : vector<64x1xf32>
    %269 = math.rsqrt %268 : vector<64x1xf32>
    %270 = vector.broadcast %269 : vector<64x1xf32> to vector<64x160xf32>
    %271 = arith.mulf %261, %270 : vector<64x160xf32>
    %c0_172 = arith.constant 0 : index
    %c0_173 = arith.constant 0 : index
    %272 = vector.load %arg27[%c0_172, %c0_173] : memref<1x160xf32, #tpu.memory_space<vmem>>, vector<1x160xf32>
    %273 = vector.broadcast %272 : vector<1x160xf32> to vector<64x160xf32>
    %274 = arith.mulf %271, %273 : vector<64x160xf32>
    %c0_174 = arith.constant 0 : index
    %c0_175 = arith.constant 0 : index
    %275 = vector.load %arg28[%c0_174, %c0_175] : memref<1x160xf32, #tpu.memory_space<vmem>>, vector<1x160xf32>
    %276 = vector.broadcast %275 : vector<1x160xf32> to vector<64x160xf32>
    %277 = arith.addf %274, %276 : vector<64x160xf32>
    %278 = arith.truncf %277 : vector<64x160xf32> to vector<64x160xbf16>
    %cst_176 = arith.constant 0.000000e+00 : f32
    %279 = vector.broadcast %cst_176 : f32 to vector<64x160xf32>
    %c0_177 = arith.constant 0 : index
    %c0_178 = arith.constant 0 : index
    %280 = vector.load %arg29[%c0_177, %c0_178] : memref<160x2048xbf16, #tpu.memory_space<vmem>>, vector<160x512xbf16>
    %cst_179 = arith.constant dense<0.000000e+00> : vector<64x512xf32>
    %281 = tpu.matmul %278, %280, %cst_179 {dimension_numbers = #tpu.dot_dimension_numbers<[1], [0], [0], [1], [0, 0, 1, 1], [], []>} : vector<64x160xbf16>, vector<160x512xbf16>, vector<64x512xf32> -> vector<64x512xf32>
    %c0_180 = arith.constant 0 : index
    %c0_181 = arith.constant 0 : index
    %282 = vector.load %arg30[%c0_180, %c0_181] : memref<1x2048xf32, #tpu.memory_space<vmem>>, vector<1x512xf32>
    %283 = vector.broadcast %282 : vector<1x512xf32> to vector<64x512xf32>
    %284 = arith.addf %281, %283 : vector<64x512xf32>
    %cst_182 = arith.constant 0.000000e+00 : f32
    %285 = vector.broadcast %cst_182 : f32 to vector<64x512xf32>
    %286 = arith.maximumf %284, %285 : vector<64x512xf32>
    %287 = arith.truncf %286 : vector<64x512xf32> to vector<64x512xbf16>
    %c0_183 = arith.constant 0 : index
    %c0_184 = arith.constant 0 : index
    %288 = vector.load %arg31[%c0_183, %c0_184] : memref<2048x160xbf16, #tpu.memory_space<vmem>>, vector<512x160xbf16>
    %cst_185 = arith.constant dense<0.000000e+00> : vector<64x160xf32>
    %289 = tpu.matmul %287, %288, %cst_185 {dimension_numbers = #tpu.dot_dimension_numbers<[1], [0], [0], [1], [0, 0, 1, 1], [], []>} : vector<64x512xbf16>, vector<512x160xbf16>, vector<64x160xf32> -> vector<64x160xf32>
    %290 = arith.addf %279, %289 : vector<64x160xf32>
    %c0_186 = arith.constant 0 : index
    %c512 = arith.constant 512 : index
    %291 = vector.load %arg29[%c0_186, %c512] : memref<160x2048xbf16, #tpu.memory_space<vmem>>, vector<160x512xbf16>
    %cst_187 = arith.constant dense<0.000000e+00> : vector<64x512xf32>
    %292 = tpu.matmul %278, %291, %cst_187 {dimension_numbers = #tpu.dot_dimension_numbers<[1], [0], [0], [1], [0, 0, 1, 1], [], []>} : vector<64x160xbf16>, vector<160x512xbf16>, vector<64x512xf32> -> vector<64x512xf32>
    %c0_188 = arith.constant 0 : index
    %c512_189 = arith.constant 512 : index
    %293 = vector.load %arg30[%c0_188, %c512_189] : memref<1x2048xf32, #tpu.memory_space<vmem>>, vector<1x512xf32>
    %294 = vector.broadcast %293 : vector<1x512xf32> to vector<64x512xf32>
    %295 = arith.addf %292, %294 : vector<64x512xf32>
    %cst_190 = arith.constant 0.000000e+00 : f32
    %296 = vector.broadcast %cst_190 : f32 to vector<64x512xf32>
    %297 = arith.maximumf %295, %296 : vector<64x512xf32>
    %298 = arith.truncf %297 : vector<64x512xf32> to vector<64x512xbf16>
    %c512_191 = arith.constant 512 : index
    %c0_192 = arith.constant 0 : index
    %299 = vector.load %arg31[%c512_191, %c0_192] : memref<2048x160xbf16, #tpu.memory_space<vmem>>, vector<512x160xbf16>
    %cst_193 = arith.constant dense<0.000000e+00> : vector<64x160xf32>
    %300 = tpu.matmul %298, %299, %cst_193 {dimension_numbers = #tpu.dot_dimension_numbers<[1], [0], [0], [1], [0, 0, 1, 1], [], []>} : vector<64x512xbf16>, vector<512x160xbf16>, vector<64x160xf32> -> vector<64x160xf32>
    %301 = arith.addf %290, %300 : vector<64x160xf32>
    %c0_194 = arith.constant 0 : index
    %c1024 = arith.constant 1024 : index
    %302 = vector.load %arg29[%c0_194, %c1024] : memref<160x2048xbf16, #tpu.memory_space<vmem>>, vector<160x512xbf16>
    %cst_195 = arith.constant dense<0.000000e+00> : vector<64x512xf32>
    %303 = tpu.matmul %278, %302, %cst_195 {dimension_numbers = #tpu.dot_dimension_numbers<[1], [0], [0], [1], [0, 0, 1, 1], [], []>} : vector<64x160xbf16>, vector<160x512xbf16>, vector<64x512xf32> -> vector<64x512xf32>
    %c0_196 = arith.constant 0 : index
    %c1024_197 = arith.constant 1024 : index
    %304 = vector.load %arg30[%c0_196, %c1024_197] : memref<1x2048xf32, #tpu.memory_space<vmem>>, vector<1x512xf32>
    %305 = vector.broadcast %304 : vector<1x512xf32> to vector<64x512xf32>
    %306 = arith.addf %303, %305 : vector<64x512xf32>
    %cst_198 = arith.constant 0.000000e+00 : f32
    %307 = vector.broadcast %cst_198 : f32 to vector<64x512xf32>
    %308 = arith.maximumf %306, %307 : vector<64x512xf32>
    %309 = arith.truncf %308 : vector<64x512xf32> to vector<64x512xbf16>
    %c1024_199 = arith.constant 1024 : index
    %c0_200 = arith.constant 0 : index
    %310 = vector.load %arg31[%c1024_199, %c0_200] : memref<2048x160xbf16, #tpu.memory_space<vmem>>, vector<512x160xbf16>
    %cst_201 = arith.constant dense<0.000000e+00> : vector<64x160xf32>
    %311 = tpu.matmul %309, %310, %cst_201 {dimension_numbers = #tpu.dot_dimension_numbers<[1], [0], [0], [1], [0, 0, 1, 1], [], []>} : vector<64x512xbf16>, vector<512x160xbf16>, vector<64x160xf32> -> vector<64x160xf32>
    %312 = arith.addf %301, %311 : vector<64x160xf32>
    %c0_202 = arith.constant 0 : index
    %c1536 = arith.constant 1536 : index
    %313 = vector.load %arg29[%c0_202, %c1536] : memref<160x2048xbf16, #tpu.memory_space<vmem>>, vector<160x512xbf16>
    %cst_203 = arith.constant dense<0.000000e+00> : vector<64x512xf32>
    %314 = tpu.matmul %278, %313, %cst_203 {dimension_numbers = #tpu.dot_dimension_numbers<[1], [0], [0], [1], [0, 0, 1, 1], [], []>} : vector<64x160xbf16>, vector<160x512xbf16>, vector<64x512xf32> -> vector<64x512xf32>
    %c0_204 = arith.constant 0 : index
    %c1536_205 = arith.constant 1536 : index
    %315 = vector.load %arg30[%c0_204, %c1536_205] : memref<1x2048xf32, #tpu.memory_space<vmem>>, vector<1x512xf32>
    %316 = vector.broadcast %315 : vector<1x512xf32> to vector<64x512xf32>
    %317 = arith.addf %314, %316 : vector<64x512xf32>
    %cst_206 = arith.constant 0.000000e+00 : f32
    %318 = vector.broadcast %cst_206 : f32 to vector<64x512xf32>
    %319 = arith.maximumf %317, %318 : vector<64x512xf32>
    %320 = arith.truncf %319 : vector<64x512xf32> to vector<64x512xbf16>
    %c1536_207 = arith.constant 1536 : index
    %c0_208 = arith.constant 0 : index
    %321 = vector.load %arg31[%c1536_207, %c0_208] : memref<2048x160xbf16, #tpu.memory_space<vmem>>, vector<512x160xbf16>
    %cst_209 = arith.constant dense<0.000000e+00> : vector<64x160xf32>
    %322 = tpu.matmul %320, %321, %cst_209 {dimension_numbers = #tpu.dot_dimension_numbers<[1], [0], [0], [1], [0, 0, 1, 1], [], []>} : vector<64x512xbf16>, vector<512x160xbf16>, vector<64x160xf32> -> vector<64x160xf32>
    %323 = arith.addf %312, %322 : vector<64x160xf32>
    %c0_210 = arith.constant 0 : index
    %c0_211 = arith.constant 0 : index
    %324 = vector.load %arg32[%c0_210, %c0_211] : memref<1x160xf32, #tpu.memory_space<vmem>>, vector<1x160xf32>
    %325 = vector.broadcast %324 : vector<1x160xf32> to vector<64x160xf32>
    %326 = arith.addf %323, %325 : vector<64x160xf32>
    %327 = arith.addf %277, %326 : vector<64x160xf32>
    %cst_212 = arith.constant dense<0.000000e+00> : vector<64xf32>
    %328 = vector.multi_reduction <add>, %327, %cst_212 [1] : vector<64x160xf32> to vector<64xf32>
    %329 = vector.shape_cast %328 : vector<64xf32> to vector<64x1xf32>
    %cst_213 = arith.constant 1.600000e+02 : f32
    %330 = vector.broadcast %cst_213 : f32 to vector<64x1xf32>
    %331 = arith.divf %329, %330 : vector<64x1xf32>
    %332 = vector.broadcast %331 : vector<64x1xf32> to vector<64x160xf32>
    %333 = arith.subf %327, %332 : vector<64x160xf32>
    %334 = arith.mulf %333, %333 : vector<64x160xf32>
    %cst_214 = arith.constant dense<0.000000e+00> : vector<64xf32>
    %335 = vector.multi_reduction <add>, %334, %cst_214 [1] : vector<64x160xf32> to vector<64xf32>
    %336 = vector.shape_cast %335 : vector<64xf32> to vector<64x1xf32>
    %cst_215 = arith.constant 1.600000e+02 : f32
    %337 = vector.broadcast %cst_215 : f32 to vector<64x1xf32>
    %338 = arith.divf %336, %337 : vector<64x1xf32>
    %cst_216 = arith.constant 9.99999974E-6 : f32
    %339 = vector.broadcast %cst_216 : f32 to vector<64x1xf32>
    %340 = arith.addf %338, %339 : vector<64x1xf32>
    %341 = math.rsqrt %340 : vector<64x1xf32>
    %342 = vector.broadcast %341 : vector<64x1xf32> to vector<64x160xf32>
    %343 = arith.mulf %333, %342 : vector<64x160xf32>
    %c0_217 = arith.constant 0 : index
    %c0_218 = arith.constant 0 : index
    %344 = vector.load %arg33[%c0_217, %c0_218] : memref<1x160xf32, #tpu.memory_space<vmem>>, vector<1x160xf32>
    %345 = vector.broadcast %344 : vector<1x160xf32> to vector<64x160xf32>
    %346 = arith.mulf %343, %345 : vector<64x160xf32>
    %c0_219 = arith.constant 0 : index
    %c0_220 = arith.constant 0 : index
    %347 = vector.load %arg34[%c0_219, %c0_220] : memref<1x160xf32, #tpu.memory_space<vmem>>, vector<1x160xf32>
    %348 = vector.broadcast %347 : vector<1x160xf32> to vector<64x160xf32>
    %349 = arith.addf %346, %348 : vector<64x160xf32>
    %350 = vector.shape_cast %349 : vector<64x160xf32> to vector<8x8x160xf32>
    %cst_221 = arith.constant dense<0.000000e+00> : vector<8x160xf32>
    %351 = vector.multi_reduction <add>, %350, %cst_221 [1] : vector<8x8x160xf32> to vector<8x160xf32>
    %cst_222 = arith.constant 8.000000e+00 : f32
    %352 = vector.broadcast %cst_222 : f32 to vector<8x160xf32>
    %353 = arith.divf %351, %352 : vector<8x160xf32>
    %c0_223 = arith.constant 0 : index
    %c0_224 = arith.constant 0 : index
    %354 = vector.load %arg35[%c0_223, %c0_224] : memref<8x160xf32, #tpu.memory_space<vmem>>, vector<8x160xf32>
    tpu.vector_store %arg35[%c0_223, %c0_224], %353 {strides = array<i32>} : memref<8x160xf32, #tpu.memory_space<vmem>>, vector<8x160xf32>,
    return
  }
  func.func @transform_0(%arg0: i32) -> (i32, i32) {
    %c0_i32 = arith.constant 0 : i32
    %c0_i32_0 = arith.constant 0 : i32
    return %arg0, %c0_i32 : i32, i32
  }
  func.func @transform_1(%arg0: i32) -> (i32, i32) {
    %c0_i32 = arith.constant 0 : i32
    %c0_i32_0 = arith.constant 0 : i32
    return %arg0, %c0_i32 : i32, i32
  }
  func.func @transform_2(%arg0: i32) -> (i32, i32) {
    %c0_i32 = arith.constant 0 : i32
    %c0_i32_0 = arith.constant 0 : i32
    return %arg0, %c0_i32 : i32, i32
  }
  func.func @transform_3(%arg0: i32) -> (i32, i32) {
    %c0_i32 = arith.constant 0 : i32
    %c0_i32_0 = arith.constant 0 : i32
    %c0_i32_1 = arith.constant 0 : i32
    return %c0_i32, %c0_i32_0 : i32, i32
  }
  func.func @transform_4(%arg0: i32) -> (i32, i32) {
    %c0_i32 = arith.constant 0 : i32
    %c0_i32_0 = arith.constant 0 : i32
    %c0_i32_1 = arith.constant 0 : i32
    return %c0_i32, %c0_i32_0 : i32, i32
  }
  func.func @transform_5(%arg0: i32) -> (i32, i32) {
    %c0_i32 = arith.constant 0 : i32
    %c0_i32_0 = arith.constant 0 : i32
    %c0_i32_1 = arith.constant 0 : i32
    return %c0_i32, %c0_i32_0 : i32, i32
  }
  func.func @transform_6(%arg0: i32) -> (i32, i32) {
    %c0_i32 = arith.constant 0 : i32
    %c0_i32_0 = arith.constant 0 : i32
    %c0_i32_1 = arith.constant 0 : i32
    return %c0_i32, %c0_i32_0 : i32, i32
  }
  func.func @transform_7(%arg0: i32) -> (i32, i32) {
    %c0_i32 = arith.constant 0 : i32
    %c0_i32_0 = arith.constant 0 : i32
    %c0_i32_1 = arith.constant 0 : i32
    return %c0_i32, %c0_i32_0 : i32, i32
  }
  func.func @transform_8(%arg0: i32) -> (i32, i32) {
    %c0_i32 = arith.constant 0 : i32
    %c0_i32_0 = arith.constant 0 : i32
    %c0_i32_1 = arith.constant 0 : i32
    return %c0_i32, %c0_i32_0 : i32, i32
  }
  func.func @transform_9(%arg0: i32) -> (i32, i32) {
    %c0_i32 = arith.constant 0 : i32
    %c0_i32_0 = arith.constant 0 : i32
    %c0_i32_1 = arith.constant 0 : i32
    return %c0_i32, %c0_i32_0 : i32, i32
  }
  func.func @transform_10(%arg0: i32) -> (i32, i32) {
    %c0_i32 = arith.constant 0 : i32
    %c0_i32_0 = arith.constant 0 : i32
    %c0_i32_1 = arith.constant 0 : i32
    return %c0_i32, %c0_i32_0 : i32, i32
  }
  func.func @transform_11(%arg0: i32) -> (i32, i32) {
    %c0_i32 = arith.constant 0 : i32
    %c0_i32_0 = arith.constant 0 : i32
    %c0_i32_1 = arith.constant 0 : i32
    return %c0_i32, %c0_i32_0 : i32, i32
  }
  func.func @transform_12(%arg0: i32) -> (i32, i32) {
    %c0_i32 = arith.constant 0 : i32
    %c0_i32_0 = arith.constant 0 : i32
    %c0_i32_1 = arith.constant 0 : i32
    return %c0_i32, %c0_i32_0 : i32, i32
  }
  func.func @transform_13(%arg0: i32) -> (i32, i32) {
    %c0_i32 = arith.constant 0 : i32
    %c0_i32_0 = arith.constant 0 : i32
    %c0_i32_1 = arith.constant 0 : i32
    return %c0_i32, %c0_i32_0 : i32, i32
  }
  func.func @transform_14(%arg0: i32) -> (i32, i32) {
    %c0_i32 = arith.constant 0 : i32
    %c0_i32_0 = arith.constant 0 : i32
    %c0_i32_1 = arith.constant 0 : i32
    return %c0_i32, %c0_i32_0 : i32, i32
  }
  func.func @transform_15(%arg0: i32) -> (i32, i32) {
    %c0_i32 = arith.constant 0 : i32
    %c0_i32_0 = arith.constant 0 : i32
    %c0_i32_1 = arith.constant 0 : i32
    return %c0_i32, %c0_i32_0 : i32, i32
  }
  func.func @transform_16(%arg0: i32) -> (i32, i32) {
    %c0_i32 = arith.constant 0 : i32
    %c0_i32_0 = arith.constant 0 : i32
    %c0_i32_1 = arith.constant 0 : i32
    return %c0_i32, %c0_i32_0 : i32, i32
  }
  func.func @transform_17(%arg0: i32) -> (i32, i32) {
    %c0_i32 = arith.constant 0 : i32
    %c0_i32_0 = arith.constant 0 : i32
    %c0_i32_1 = arith.constant 0 : i32
    return %c0_i32, %c0_i32_0 : i32, i32
  }
  func.func @transform_18(%arg0: i32) -> (i32, i32, i32) {
    %c0_i32 = arith.constant 0 : i32
    %c0_i32_0 = arith.constant 0 : i32
    %c0_i32_1 = arith.constant 0 : i32
    %c0_i32_2 = arith.constant 0 : i32
    return %c0_i32, %c0_i32_0, %c0_i32_1 : i32, i32, i32
  }
  func.func @transform_19(%arg0: i32) -> (i32, i32, i32) {
    %c0_i32 = arith.constant 0 : i32
    %c0_i32_0 = arith.constant 0 : i32
    %c0_i32_1 = arith.constant 0 : i32
    %c0_i32_2 = arith.constant 0 : i32
    return %c0_i32, %c0_i32_0, %c0_i32_1 : i32, i32, i32
  }
  func.func @transform_20(%arg0: i32) -> (i32, i32, i32) {
    %c0_i32 = arith.constant 0 : i32
    %c0_i32_0 = arith.constant 0 : i32
    %c0_i32_1 = arith.constant 0 : i32
    %c0_i32_2 = arith.constant 0 : i32
    return %c0_i32, %c0_i32_0, %c0_i32_1 : i32, i32, i32
  }
  func.func @transform_21(%arg0: i32) -> (i32, i32, i32) {
    %c0_i32 = arith.constant 0 : i32
    %c0_i32_0 = arith.constant 0 : i32
    %c0_i32_1 = arith.constant 0 : i32
    %c0_i32_2 = arith.constant 0 : i32
    return %c0_i32, %c0_i32_0, %c0_i32_1 : i32, i32, i32
  }
  func.func @transform_22(%arg0: i32) -> (i32, i32, i32) {
    %c0_i32 = arith.constant 0 : i32
    %c0_i32_0 = arith.constant 0 : i32
    %c0_i32_1 = arith.constant 0 : i32
    %c0_i32_2 = arith.constant 0 : i32
    return %c0_i32, %c0_i32_0, %c0_i32_1 : i32, i32, i32
  }
  func.func @transform_23(%arg0: i32) -> (i32, i32, i32) {
    %c0_i32 = arith.constant 0 : i32
    %c0_i32_0 = arith.constant 0 : i32
    %c0_i32_1 = arith.constant 0 : i32
    %c0_i32_2 = arith.constant 0 : i32
    return %c0_i32, %c0_i32_0, %c0_i32_1 : i32, i32, i32
  }
  func.func @transform_24(%arg0: i32) -> (i32, i32, i32) {
    %c0_i32 = arith.constant 0 : i32
    %c0_i32_0 = arith.constant 0 : i32
    %c0_i32_1 = arith.constant 0 : i32
    %c0_i32_2 = arith.constant 0 : i32
    return %c0_i32, %c0_i32_0, %c0_i32_1 : i32, i32, i32
  }
  func.func @transform_25(%arg0: i32) -> (i32, i32) {
    %c0_i32 = arith.constant 0 : i32
    %c0_i32_0 = arith.constant 0 : i32
    %c0_i32_1 = arith.constant 0 : i32
    return %c0_i32, %c0_i32_0 : i32, i32
  }
  func.func @transform_26(%arg0: i32) -> (i32, i32) {
    %c0_i32 = arith.constant 0 : i32
    %c0_i32_0 = arith.constant 0 : i32
    %c0_i32_1 = arith.constant 0 : i32
    return %c0_i32, %c0_i32_0 : i32, i32
  }
  func.func @transform_27(%arg0: i32) -> (i32, i32) {
    %c0_i32 = arith.constant 0 : i32
    %c0_i32_0 = arith.constant 0 : i32
    %c0_i32_1 = arith.constant 0 : i32
    return %c0_i32, %c0_i32_0 : i32, i32
  }
  func.func @transform_28(%arg0: i32) -> (i32, i32) {
    %c0_i32 = arith.constant 0 : i32
    %c0_i32_0 = arith.constant 0 : i32
    %c0_i32_1 = arith.constant 0 : i32
    return %c0_i32, %c0_i32_0 : i32, i32
  }
  func.func @transform_29(%arg0: i32) -> (i32, i32) {
    %c0_i32 = arith.constant 0 : i32
    %c0_i32_0 = arith.constant 0 : i32
    %c0_i32_1 = arith.constant 0 : i32
    return %c0_i32, %c0_i32_0 : i32, i32
  }
  func.func @transform_30(%arg0: i32) -> (i32, i32) {
    %c0_i32 = arith.constant 0 : i32
    %c0_i32_0 = arith.constant 0 : i32
    %c0_i32_1 = arith.constant 0 : i32
    return %c0_i32, %c0_i32_0 : i32, i32
  }
  func.func @transform_31(%arg0: i32) -> (i32, i32) {
    %c0_i32 = arith.constant 0 : i32
    %c0_i32_0 = arith.constant 0 : i32
    %c0_i32_1 = arith.constant 0 : i32
    return %c0_i32, %c0_i32_0 : i32, i32
  }
  func.func @transform_32(%arg0: i32) -> (i32, i32) {
    %c0_i32 = arith.constant 0 : i32
    %c0_i32_0 = arith.constant 0 : i32
    %c0_i32_1 = arith.constant 0 : i32
    return %c0_i32, %c0_i32_0 : i32, i32
  }
  func.func @transform_33(%arg0: i32) -> (i32, i32) {
    %c0_i32 = arith.constant 0 : i32
    %c0_i32_0 = arith.constant 0 : i32
    %c0_i32_1 = arith.constant 0 : i32
    return %c0_i32, %c0_i32_0 : i32, i32
  }
  func.func @transform_34(%arg0: i32) -> (i32, i32) {
    %c0_i32 = arith.constant 0 : i32
    %c0_i32_0 = arith.constant 0 : i32
    return %arg0, %c0_i32 : i32, i32
  }
}

</mosaic_0001>

<llo_original>
// kernel: eq.8
$region0: #{eq.8}
  %s0 = inlined_call_operand.vmem [shape: s32[8,8], index: 0, kind: input, shape index: {}]
  %s1 = inlined_call_operand.vmem [shape: s32[64], index: 1, kind: output, shape index: {}]
  $region1: #{eq.8} parent=0
    #allocation0 [shape = 'u8[4096]{0}', space=vmem, size = 0x1000, scoped, tag = 'scoped mem for output reshape']
    %v2 = vld [vmem:[%s0] sm:$0x1]
    %vm3 = vcmask 64512
    %4 = vst.msk [vmem:[#allocation0] sm:$0x1] %vm3, %v2
    %s5 = scalar_lea.vmem %s0, 7
    %v6 = vld [vmem:[%s5] sm:$0x1]
    %7 = vrot.lane.b32.xlu0 %v6, 56
    %v8 = vpop.permute.xlu0 %7
    %vm9 = vcmask 523712
    %10 = vst.msk [vmem:[#allocation0] sm:$0x1] %vm9, %v8
    %s11 = scalar_lea.vmem %s0, 6
    %v12 = vld [vmem:[%s11] sm:$0x1]
    %13 = vrot.lane.b32.xlu0 %v12, 48
    %v14 = vpop.permute.xlu0 %13
    %vm15 = vcmask 458112
    %16 = vst.msk [vmem:[#allocation0] sm:$0x1] %vm15, %v14
    %s17 = scalar_lea.vmem %s0, 5
    %v18 = vld [vmem:[%s17] sm:$0x1]
    %19 = vrot.lane.b32.xlu0 %v18, 40
    %v20 = vpop.permute.xlu0 %19
    %vm21 = vcmask 392512
    %22 = vst.msk [vmem:[#allocation0] sm:$0x1] %vm21, %v20
    %s23 = scalar_lea.vmem %s0, 4
    %v24 = vld [vmem:[%s23] sm:$0x1]
    %25 = vrot.lane.b32.xlu0 %v24, 32
    %v26 = vpop.permute.xlu0 %25
    %vm27 = vcmask 326912
    %28 = vst.msk [vmem:[#allocation0] sm:$0x1] %vm27, %v26
    %s29 = scalar_lea.vmem %s0, 3
    %v30 = vld [vmem:[%s29] sm:$0x1]
    %31 = vrot.lane.b32.xlu0 %v30, 24
    %v32 = vpop.permute.xlu0 %31
    %vm33 = vcmask 261312
    %34 = vst.msk [vmem:[#allocation0] sm:$0x1] %vm33, %v32
    %s35 = scalar_lea.vmem %s0, 2
    %v36 = vld [vmem:[%s35] sm:$0x1]
    %37 = vrot.lane.b32.xlu0 %v36, 16
    %v38 = vpop.permute.xlu0 %37
    %vm39 = vcmask 195712
    %40 = vst.msk [vmem:[#allocation0] sm:$0x1] %vm39, %v38
    %s41 = scalar_lea.vmem %s0, 1
    %v42 = vld [vmem:[%s41] sm:$0x1]
    %43 = vrot.lane.b32.xlu0 %v42, 8
    %v44 = vpop.permute.xlu0 %43
    %vm45 = vcmask 130112
    %46 = vst.msk [vmem:[#allocation0] sm:$0x1] %vm45, %v44
    %s48 = sshllo.u32 0, 1
    %v50 = vld [vmem:[#allocation0] sm:%s48]
    %s51 = sshllo.u32 0, 1
    %52 = vst [vmem:[%s1] sm:%s51] %v50

// kernel: mask_time_series_forward.1
$region0: #{mask_time_series_forward.1}
  #allocation0 [shape = 'u32[]', space=smem, size = 0x4, offset = 0x4, fixed_abs, tag = 'smem constant byte address 0x4 - core index']
  #allocation1 [shape = 'u32[144,128]{1,0:T(1,128)}', space=vmem, size = 0x12000, scoped, tag = 'internal scratch']
  %s0 = inlined_call_operand.smem [shape: u32[35], index: -1, kind: input, shape index: {}]
  %s1 = sld [smem:[%s0]]
  %s2 = scalar_lea.smem %s0, 1
  %s3 = sld [smem:[%s2]]
  %s4 = scalar_lea.smem %s0, 2
  %s5 = sld [smem:[%s4]]
  %s6 = scalar_lea.smem %s0, 3
  %s7 = sld [smem:[%s6]]
  %s8 = scalar_lea.smem %s0, 4
  %s9 = sld [smem:[%s8]]
  %s10 = scalar_lea.smem %s0, 5
  %s11 = sld [smem:[%s10]]
  %s12 = scalar_lea.smem %s0, 6
  %s13 = sld [smem:[%s12]]
  %s14 = scalar_lea.smem %s0, 7
  %s15 = sld [smem:[%s14]]
  %s16 = scalar_lea.smem %s0, 8
  %s17 = sld [smem:[%s16]]
  %s18 = scalar_lea.smem %s0, 9
  %s19 = sld [smem:[%s18]]
  %s20 = scalar_lea.smem %s0, 10
  %s21 = sld [smem:[%s20]]
  %s22 = scalar_lea.smem %s0, 11
  %s23 = sld [smem:[%s22]]
  %s24 = scalar_lea.smem %s0, 12
  %s25 = sld [smem:[%s24]]
  %s26 = scalar_lea.smem %s0, 13
  %s27 = sld [smem:[%s26]]
  %s28 = scalar_lea.smem %s0, 14
  %s29 = sld [smem:[%s28]]
  %s30 = scalar_lea.smem %s0, 15
  %s31 = sld [smem:[%s30]]
  %s32 = scalar_lea.smem %s0, 16
  %s33 = sld [smem:[%s32]]
  %s34 = scalar_lea.smem %s0, 17
  %s35 = sld [smem:[%s34]]
  %s36 = scalar_lea.smem %s0, 18
  %s37 = sld [smem:[%s36]]
  %s38 = scalar_lea.smem %s0, 19
  %s39 = sld [smem:[%s38]]
  %s40 = scalar_lea.smem %s0, 20
  %s41 = sld [smem:[%s40]]
  %s42 = scalar_lea.smem %s0, 21
  %s43 = sld [smem:[%s42]]
  %s44 = scalar_lea.smem %s0, 22
  %s45 = sld [smem:[%s44]]
  %s46 = scalar_lea.smem %s0, 23
  %s47 = sld [smem:[%s46]]
  %s48 = scalar_lea.smem %s0, 24
  %s49 = sld [smem:[%s48]]
  %s50 = scalar_lea.smem %s0, 25
  %s51 = sld [smem:[%s50]]
  %s52 = scalar_lea.smem %s0, 26
  %s53 = sld [smem:[%s52]]
  %s54 = scalar_lea.smem %s0, 27
  %s55 = sld [smem:[%s54]]
  %s56 = scalar_lea.smem %s0, 28
  %s57 = sld [smem:[%s56]]
  %s58 = scalar_lea.smem %s0, 29
  %s59 = sld [smem:[%s58]]
  %s60 = scalar_lea.smem %s0, 30
  %s61 = sld [smem:[%s60]]
  %s62 = scalar_lea.smem %s0, 31
  %s63 = sld [smem:[%s62]]
  %s64 = scalar_lea.smem %s0, 32
  %s65 = sld [smem:[%s64]]
  %s66 = scalar_lea.smem %s0, 33
  %s67 = sld [smem:[%s66]]
  %s68 = scalar_lea.smem %s0, 34
  %s69 = sld [smem:[%s68]]
  %s70 = sld [smem:[#allocation0]]
  $region169: #{mask_time_series_forward.1} parent=0
    _
  %s72 = ssub.s32 1, %s70
  %s73 = scalar_select 0, %s72, %s70
  $region1: #{mask_time_series_forward.1} parent=0
    #allocation2 [shape = 'u8[16384]{0}', space=vmem, size = 0x4000, scoped, tag = 'output window, operand 0']
    #allocation3 [shape = 's32[2]{0}', space=sflag, size = 0x8, scoped, tag = 'scoped memory for mask_time_series_forward.1']
    %74 = vsyncpa [#allocation3], 0
    %s75 = scalar_lea.sflag [#allocation3], 1
    %76 = vsyncpa %s75, 0
    loop: start=0, step=1, limit=5
    $region2: #{mask_time_series_forward.1} parent=1 // loop_pre_header
      _
    $region3: #{mask_time_series_forward.1} parent=1 // loop_header
      %s78 = sphi 0, %s82
      %p79 = scmp.ge.s32.totalorder %s78, 5
      %s88 = sphi 0, %s90
      %s91 = sphi 0, %s88
      %s92 = sphi 0, %s91
      %s108 = sphi 0, %s92
      %s114 = sphi 0, %s116
      %s117 = sphi 0, %s114
      %s118 = sphi 0, %s117
      %s134 = sphi 0, %s118
      %s140 = sphi 0, %s142
      %s143 = sphi 0, %s140
      %s144 = sphi 0, %s143
      %s160 = sphi 0, %s144
      %s164 = sphi 0, %s164
      %s166 = sphi 0, %s164
      %s167 = sphi 0, %s166
      %s181 = sphi 0, %s167
      %s185 = sphi 0, %s185
      %s187 = sphi 0, %s185
      %s188 = sphi 0, %s187
      %s202 = sphi 0, %s188
      %s206 = sphi 0, %s206
      %s208 = sphi 0, %s206
      %s209 = sphi 0, %s208
      %s223 = sphi 0, %s209
      %s227 = sphi 0, %s227
      %s229 = sphi 0, %s227
      %s230 = sphi 0, %s229
      %s244 = sphi 0, %s230
      %s248 = sphi 0, %s248
      %s250 = sphi 0, %s248
      %s251 = sphi 0, %s250
      %s265 = sphi 0, %s251
      %s269 = sphi 0, %s269
      %s271 = sphi 0, %s269
      %s272 = sphi 0, %s271
      %s286 = sphi 0, %s272
      %s290 = sphi 0, %s290
      %s292 = sphi 0, %s290
      %s293 = sphi 0, %s292
      %s307 = sphi 0, %s293
      %s311 = sphi 0, %s311
      %s313 = sphi 0, %s311
      %s314 = sphi 0, %s313
      %s328 = sphi 0, %s314
      %s332 = sphi 0, %s332
      %s334 = sphi 0, %s332
      %s335 = sphi 0, %s334
      %s349 = sphi 0, %s335
      %s353 = sphi 0, %s353
      %s355 = sphi 0, %s353
      %s356 = sphi 0, %s355
      %s370 = sphi 0, %s356
      %s374 = sphi 0, %s374
      %s376 = sphi 0, %s374
      %s377 = sphi 0, %s376
      %s391 = sphi 0, %s377
      %s395 = sphi 0, %s395
      %s397 = sphi 0, %s395
      %s398 = sphi 0, %s397
      %s412 = sphi 0, %s398
      %s416 = sphi 0, %s416
      %s418 = sphi 0, %s416
      %s419 = sphi 0, %s418
      %s433 = sphi 0, %s419
      %s437 = sphi 0, %s437
      %s439 = sphi 0, %s437
      %s440 = sphi 0, %s439
      %s454 = sphi 0, %s440
      %s458 = sphi 0, %s458
      %s460 = sphi 0, %s458
      %s461 = sphi 0, %s460
      %s475 = sphi 0, %s461
      %s479 = sphi 0, %s479
      %s481 = sphi 0, %s479
      %s482 = sphi 0, %s481
      %s496 = sphi 0, %s482
      %s500 = sphi 0, %s500
      %s502 = sphi 0, %s500
      %s503 = sphi 0, %s502
      %s517 = sphi 0, %s503
      %s521 = sphi 0, %s521
      %s523 = sphi 0, %s521
      %s524 = sphi 0, %s523
      %s538 = sphi 0, %s524
      %s542 = sphi 0, %s542
      %s544 = sphi 0, %s542
      %s545 = sphi 0, %s544
      %s559 = sphi 0, %s545
      %s563 = sphi 0, %s563
      %s565 = sphi 0, %s563
      %s566 = sphi 0, %s565
      %s580 = sphi 0, %s566
      %s584 = sphi 0, %s584
      %s586 = sphi 0, %s584
      %s587 = sphi 0, %s586
      %s601 = sphi 0, %s587
      %s605 = sphi 0, %s605
      %s607 = sphi 0, %s605
      %s608 = sphi 0, %s607
      %s622 = sphi 0, %s608
      %s626 = sphi 0, %s626
      %s628 = sphi 0, %s626
      %s629 = sphi 0, %s628
      %s643 = sphi 0, %s629
      %s647 = sphi 0, %s647
      %s649 = sphi 0, %s647
      %s650 = sphi 0, %s649
      %s664 = sphi 0, %s650
      %s668 = sphi 0, %s668
      %s670 = sphi 0, %s668
      %s671 = sphi 0, %s670
      %s685 = sphi 0, %s671
      %s689 = sphi 0, %s689
      %s691 = sphi 0, %s689
      %s692 = sphi 0, %s691
      %s706 = sphi 0, %s692
      %s710 = sphi 0, %s710
      %s712 = sphi 0, %s710
      %s713 = sphi 0, %s712
      %s727 = sphi 0, %s713
      %s731 = sphi 0, %s731
      %s733 = sphi 0, %s731
      %s734 = sphi 0, %s733
      %s748 = sphi 0, %s734
      %s752 = sphi 0, %s752
      %s754 = sphi 0, %s752
      %s755 = sphi 0, %s754
      %s769 = sphi 0, %s755
      %s773 = sphi 0, %s773
      %s775 = sphi 0, %s773
      %s776 = sphi 0, %s775
      %s790 = sphi 0, %s776
      %s794 = sphi 0, %s794
      %s796 = sphi 0, %s794
      %s797 = sphi 0, %s796
      %s811 = sphi 0, %s797
      %s817 = sphi 0, %s819
      %s820 = sphi 0, %s817
      %s821 = sphi 0, %s820
      %s837 = sphi 0, %s821
    $region4: #{mask_time_series_forward.1} parent=1 // loop_header_branch
      %81 = sbr.rel (%p79) target = $region8
    $region5: #{mask_time_series_forward.1} parent=1 // loop_body
      %s83 = ssub.s32 %s78, 1
      %s84 = ssub.s32 %s78, 2
      %s85 = sadd.s32 %s78, 1
      %s86 = ssub.s32 %s78, %s85
      %p87 = scmp.eq.s32.totalorder %s86, 0
      %s89 = sadd.s32 %s88, 1
      %s90 = scalar_select %p87, %s88, %s89
      %p93 = pneg %p87
      %p94 = scmp.eq.s32.totalorder %s78, 2
      %p95 = por %p93, %p94
      %p96 = scmp.ne.s32.totalorder %s88, %s91
      %p97 = scmp.eq.s32.totalorder %s78, 0
      %p98 = por %p96, %p97
      %p99 = scmp.ne.s32.totalorder %s88, %s91
      %p100 = scmp.eq.s32.totalorder %s83, 2
      %p101 = por %p99, %p100
      %p102 = scmp.ne.s32.totalorder %s91, %s92
      %p103 = scmp.eq.s32.totalorder %s83, 0
      %p104 = por %p102, %p103
      %p105 = scmp.ne.s32.totalorder %s91, %s92
      %p106 = scmp.eq.s32.totalorder %s84, 2
      %p107 = por %p105, %p106
      %p109 = scmp.ne.s32.totalorder %s92, %s108
      %p110 = scmp.eq.s32.totalorder %s84, 0
      %p111 = por %p109, %p110
      %s112 = ssub.s32 %s78, %s85
      %p113 = scmp.eq.s32.totalorder %s112, 0
      %s115 = sadd.s32 %s114, 1
      %s116 = scalar_select %p113, %s114, %s115
      %p119 = pneg %p113
      %p120 = scmp.eq.s32.totalorder %s78, 2
      %p121 = por %p119, %p120
      %p122 = scmp.ne.s32.totalorder %s114, %s117
      %p123 = scmp.eq.s32.totalorder %s78, 0
      %p124 = por %p122, %p123
      %p125 = scmp.ne.s32.totalorder %s114, %s117
      %p126 = scmp.eq.s32.totalorder %s83, 2
      %p127 = por %p125, %p126
      %p128 = scmp.ne.s32.totalorder %s117, %s118
      %p129 = scmp.eq.s32.totalorder %s83, 0
      %p130 = por %p128, %p129
      %p131 = scmp.ne.s32.totalorder %s117, %s118
      %p132 = scmp.eq.s32.totalorder %s84, 2
      %p133 = por %p131, %p132
      %p135 = scmp.ne.s32.totalorder %s118, %s134
      %p136 = scmp.eq.s32.totalorder %s84, 0
      %p137 = por %p135, %p136
      %s138 = ssub.s32 %s78, %s85
      %p139 = scmp.eq.s32.totalorder %s138, 0
      %s141 = sadd.s32 %s140, 1
      %s142 = scalar_select %p139, %s140, %s141
      %p145 = pneg %p139
      %p146 = scmp.eq.s32.totalorder %s78, 2
      %p147 = por %p145, %p146
      %p148 = scmp.ne.s32.totalorder %s140, %s143
      %p149 = scmp.eq.s32.totalorder %s78, 0
      %p150 = por %p148, %p149
      %p151 = scmp.ne.s32.totalorder %s140, %s143
      %p152 = scmp.eq.s32.totalorder %s83, 2
      %p153 = por %p151, %p152
      %p154 = scmp.ne.s32.totalorder %s143, %s144
      %p155 = scmp.eq.s32.totalorder %s83, 0
      %p156 = por %p154, %p155
      %p157 = scmp.ne.s32.totalorder %s143, %s144
      %p158 = scmp.eq.s32.totalorder %s84, 2
      %p159 = por %p157, %p158
      %p161 = scmp.ne.s32.totalorder %s144, %s160
      %p162 = scmp.eq.s32.totalorder %s84, 0
      %p163 = por %p161, %p162
      %s165 = sadd.s32 %s164, 1
      %p168 = scmp.eq.s32.totalorder %s78, 2
      %p169 = scmp.ne.s32.totalorder %s164, %s166
      %p170 = scmp.eq.s32.totalorder %s78, 0
      %p171 = por %p169, %p170
      %p172 = scmp.ne.s32.totalorder %s164, %s166
      %p173 = scmp.eq.s32.totalorder %s83, 2
      %p174 = por %p172, %p173
      %p175 = scmp.ne.s32.totalorder %s166, %s167
      %p176 = scmp.eq.s32.totalorder %s83, 0
      %p177 = por %p175, %p176
      %p178 = scmp.ne.s32.totalorder %s166, %s167
      %p179 = scmp.eq.s32.totalorder %s84, 2
      %p180 = por %p178, %p179
      %p182 = scmp.ne.s32.totalorder %s167, %s181
      %p183 = scmp.eq.s32.totalorder %s84, 0
      %p184 = por %p182, %p183
      %s186 = sadd.s32 %s185, 1
      %p189 = scmp.eq.s32.totalorder %s78, 2
      %p190 = scmp.ne.s32.totalorder %s185, %s187
      %p191 = scmp.eq.s32.totalorder %s78, 0
      %p192 = por %p190, %p191
      %p193 = scmp.ne.s32.totalorder %s185, %s187
      %p194 = scmp.eq.s32.totalorder %s83, 2
      %p195 = por %p193, %p194
      %p196 = scmp.ne.s32.totalorder %s187, %s188
      %p197 = scmp.eq.s32.totalorder %s83, 0
      %p198 = por %p196, %p197
      %p199 = scmp.ne.s32.totalorder %s187, %s188
      %p200 = scmp.eq.s32.totalorder %s84, 2
      %p201 = por %p199, %p200
      %p203 = scmp.ne.s32.totalorder %s188, %s202
      %p204 = scmp.eq.s32.totalorder %s84, 0
      %p205 = por %p203, %p204
      %s207 = sadd.s32 %s206, 1
      %p210 = scmp.eq.s32.totalorder %s78, 2
      %p211 = scmp.ne.s32.totalorder %s206, %s208
      %p212 = scmp.eq.s32.totalorder %s78, 0
      %p213 = por %p211, %p212
      %p214 = scmp.ne.s32.totalorder %s206, %s208
      %p215 = scmp.eq.s32.totalorder %s83, 2
      %p216 = por %p214, %p215
      %p217 = scmp.ne.s32.totalorder %s208, %s209
      %p218 = scmp.eq.s32.totalorder %s83, 0
      %p219 = por %p217, %p218
      %p220 = scmp.ne.s32.totalorder %s208, %s209
      %p221 = scmp.eq.s32.totalorder %s84, 2
      %p222 = por %p220, %p221
      %p224 = scmp.ne.s32.totalorder %s209, %s223
      %p225 = scmp.eq.s32.totalorder %s84, 0
      %p226 = por %p224, %p225
      %s228 = sadd.s32 %s227, 1
      %p231 = scmp.eq.s32.totalorder %s78, 2
      %p232 = scmp.ne.s32.totalorder %s227, %s229
      %p233 = scmp.eq.s32.totalorder %s78, 0
      %p234 = por %p232, %p233
      %p235 = scmp.ne.s32.totalorder %s227, %s229
      %p236 = scmp.eq.s32.totalorder %s83, 2
      %p237 = por %p235, %p236
      %p238 = scmp.ne.s32.totalorder %s229, %s230
      %p239 = scmp.eq.s32.totalorder %s83, 0
      %p240 = por %p238, %p239
      %p241 = scmp.ne.s32.totalorder %s229, %s230
      %p242 = scmp.eq.s32.totalorder %s84, 2
      %p243 = por %p241, %p242
      %p245 = scmp.ne.s32.totalorder %s230, %s244
      %p246 = scmp.eq.s32.totalorder %s84, 0
      %p247 = por %p245, %p246
      %s249 = sadd.s32 %s248, 1
      %p252 = scmp.eq.s32.totalorder %s78, 2
      %p253 = scmp.ne.s32.totalorder %s248, %s250
      %p254 = scmp.eq.s32.totalorder %s78, 0
      %p255 = por %p253, %p254
      %p256 = scmp.ne.s32.totalorder %s248, %s250
      %p257 = scmp.eq.s32.totalorder %s83, 2
      %p258 = por %p256, %p257
      %p259 = scmp.ne.s32.totalorder %s250, %s251
      %p260 = scmp.eq.s32.totalorder %s83, 0
      %p261 = por %p259, %p260
      %p262 = scmp.ne.s32.totalorder %s250, %s251
      %p263 = scmp.eq.s32.totalorder %s84, 2
      %p264 = por %p262, %p263
      %p266 = scmp.ne.s32.totalorder %s251, %s265
      %p267 = scmp.eq.s32.totalorder %s84, 0
      %p268 = por %p266, %p267
      %s270 = sadd.s32 %s269, 1
      %p273 = scmp.eq.s32.totalorder %s78, 2
      %p274 = scmp.ne.s32.totalorder %s269, %s271
      %p275 = scmp.eq.s32.totalorder %s78, 0
      %p276 = por %p274, %p275
      %p277 = scmp.ne.s32.totalorder %s269, %s271
      %p278 = scmp.eq.s32.totalorder %s83, 2
      %p279 = por %p277, %p278
      %p280 = scmp.ne.s32.totalorder %s271, %s272
      %p281 = scmp.eq.s32.totalorder %s83, 0
      %p282 = por %p280, %p281
      %p283 = scmp.ne.s32.totalorder %s271, %s272
      %p284 = scmp.eq.s32.totalorder %s84, 2
      %p285 = por %p283, %p284
      %p287 = scmp.ne.s32.totalorder %s272, %s286
      %p288 = scmp.eq.s32.totalorder %s84, 0
      %p289 = por %p287, %p288
      %s291 = sadd.s32 %s290, 1
      %p294 = scmp.eq.s32.totalorder %s78, 2
      %p295 = scmp.ne.s32.totalorder %s290, %s292
      %p296 = scmp.eq.s32.totalorder %s78, 0
      %p297 = por %p295, %p296
      %p298 = scmp.ne.s32.totalorder %s290, %s292
      %p299 = scmp.eq.s32.totalorder %s83, 2
      %p300 = por %p298, %p299
      %p301 = scmp.ne.s32.totalorder %s292, %s293
      %p302 = scmp.eq.s32.totalorder %s83, 0
      %p303 = por %p301, %p302
      %p304 = scmp.ne.s32.totalorder %s292, %s293
      %p305 = scmp.eq.s32.totalorder %s84, 2
      %p306 = por %p304, %p305
      %p308 = scmp.ne.s32.totalorder %s293, %s307
      %p309 = scmp.eq.s32.totalorder %s84, 0
      %p310 = por %p308, %p309
      %s312 = sadd.s32 %s311, 1
      %p315 = scmp.eq.s32.totalorder %s78, 2
      %p316 = scmp.ne.s32.totalorder %s311, %s313
      %p317 = scmp.eq.s32.totalorder %s78, 0
      %p318 = por %p316, %p317
      %p319 = scmp.ne.s32.totalorder %s311, %s313
      %p320 = scmp.eq.s32.totalorder %s83, 2
      %p321 = por %p319, %p320
      %p322 = scmp.ne.s32.totalorder %s313, %s314
      %p323 = scmp.eq.s32.totalorder %s83, 0
      %p324 = por %p322, %p323
      %p325 = scmp.ne.s32.totalorder %s313, %s314
      %p326 = scmp.eq.s32.totalorder %s84, 2
      %p327 = por %p325, %p326
      %p329 = scmp.ne.s32.totalorder %s314, %s328
      %p330 = scmp.eq.s32.totalorder %s84, 0
      %p331 = por %p329, %p330
      %s333 = sadd.s32 %s332, 1
      %p336 = scmp.eq.s32.totalorder %s78, 2
      %p337 = scmp.ne.s32.totalorder %s332, %s334
      %p338 = scmp.eq.s32.totalorder %s78, 0
      %p339 = por %p337, %p338
      %p340 = scmp.ne.s32.totalorder %s332, %s334
      %p341 = scmp.eq.s32.totalorder %s83, 2
      %p342 = por %p340, %p341
      %p343 = scmp.ne.s32.totalorder %s334, %s335
      %p344 = scmp.eq.s32.totalorder %s83, 0
      %p345 = por %p343, %p344
      %p346 = scmp.ne.s32.totalorder %s334, %s335
      %p347 = scmp.eq.s32.totalorder %s84, 2
      %p348 = por %p346, %p347
      %p350 = scmp.ne.s32.totalorder %s335, %s349
      %p351 = scmp.eq.s32.totalorder %s84, 0
      %p352 = por %p350, %p351
      %s354 = sadd.s32 %s353, 1
      %p357 = scmp.eq.s32.totalorder %s78, 2
      %p358 = scmp.ne.s32.totalorder %s353, %s355
      %p359 = scmp.eq.s32.totalorder %s78, 0
      %p360 = por %p358, %p359
      %p361 = scmp.ne.s32.totalorder %s353, %s355
      %p362 = scmp.eq.s32.totalorder %s83, 2
      %p363 = por %p361, %p362
      %p364 = scmp.ne.s32.totalorder %s355, %s356
      %p365 = scmp.eq.s32.totalorder %s83, 0
      %p366 = por %p364, %p365
      %p367 = scmp.ne.s32.totalorder %s355, %s356
      %p368 = scmp.eq.s32.totalorder %s84, 2
      %p369 = por %p367, %p368
      %p371 = scmp.ne.s32.totalorder %s356, %s370
      %p372 = scmp.eq.s32.totalorder %s84, 0
      %p373 = por %p371, %p372
      %s375 = sadd.s32 %s374, 1
      %p378 = scmp.eq.s32.totalorder %s78, 2
      %p379 = scmp.ne.s32.totalorder %s374, %s376
      %p380 = scmp.eq.s32.totalorder %s78, 0
      %p381 = por %p379, %p380
      %p382 = scmp.ne.s32.totalorder %s374, %s376
      %p383 = scmp.eq.s32.totalorder %s83, 2
      %p384 = por %p382, %p383
      %p385 = scmp.ne.s32.totalorder %s376, %s377
      %p386 = scmp.eq.s32.totalorder %s83, 0
      %p387 = por %p385, %p386
      %p388 = scmp.ne.s32.totalorder %s376, %s377
      %p389 = scmp.eq.s32.totalorder %s84, 2
      %p390 = por %p388, %p389
      %p392 = scmp.ne.s32.totalorder %s377, %s391
      %p393 = scmp.eq.s32.totalorder %s84, 0
      %p394 = por %p392, %p393
      %s396 = sadd.s32 %s395, 1
      %p399 = scmp.eq.s32.totalorder %s78, 2
      %p400 = scmp.ne.s32.totalorder %s395, %s397
      %p401 = scmp.eq.s32.totalorder %s78, 0
      %p402 = por %p400, %p401
      %p403 = scmp.ne.s32.totalorder %s395, %s397
      %p404 = scmp.eq.s32.totalorder %s83, 2
      %p405 = por %p403, %p404
      %p406 = scmp.ne.s32.totalorder %s397, %s398
      %p407 = scmp.eq.s32.totalorder %s83, 0
      %p408 = por %p406, %p407
      %p409 = scmp.ne.s32.totalorder %s397, %s398
      %p410 = scmp.eq.s32.totalorder %s84, 2
      %p411 = por %p409, %p410
      %p413 = scmp.ne.s32.totalorder %s398, %s412
      %p414 = scmp.eq.s32.totalorder %s84, 0
      %p415 = por %p413, %p414
      %s417 = sadd.s32 %s416, 1
      %p420 = scmp.eq.s32.totalorder %s78, 2
      %p421 = scmp.ne.s32.totalorder %s416, %s418
      %p422 = scmp.eq.s32.totalorder %s78, 0
      %p423 = por %p421, %p422
      %p424 = scmp.ne.s32.totalorder %s416, %s418
      %p425 = scmp.eq.s32.totalorder %s83, 2
      %p426 = por %p424, %p425
      %p427 = scmp.ne.s32.totalorder %s418, %s419
      %p428 = scmp.eq.s32.totalorder %s83, 0
      %p429 = por %p427, %p428
      %p430 = scmp.ne.s32.totalorder %s418, %s419
      %p431 = scmp.eq.s32.totalorder %s84, 2
      %p432 = por %p430, %p431
      %p434 = scmp.ne.s32.totalorder %s419, %s433
      %p435 = scmp.eq.s32.totalorder %s84, 0
      %p436 = por %p434, %p435
      %s438 = sadd.s32 %s437, 1
      %p441 = scmp.eq.s32.totalorder %s78, 2
      %p442 = scmp.ne.s32.totalorder %s437, %s439
      %p443 = scmp.eq.s32.totalorder %s78, 0
      %p444 = por %p442, %p443
      %p445 = scmp.ne.s32.totalorder %s437, %s439
      %p446 = scmp.eq.s32.totalorder %s83, 2
      %p447 = por %p445, %p446
      %p448 = scmp.ne.s32.totalorder %s439, %s440
      %p449 = scmp.eq.s32.totalorder %s83, 0
      %p450 = por %p448, %p449
      %p451 = scmp.ne.s32.totalorder %s439, %s440
      %p452 = scmp.eq.s32.totalorder %s84, 2
      %p453 = por %p451, %p452
      %p455 = scmp.ne.s32.totalorder %s440, %s454
      %p456 = scmp.eq.s32.totalorder %s84, 0
      %p457 = por %p455, %p456
      %s459 = sadd.s32 %s458, 1
      %p462 = scmp.eq.s32.totalorder %s78, 2
      %p463 = scmp.ne.s32.totalorder %s458, %s460
      %p464 = scmp.eq.s32.totalorder %s78, 0
      %p465 = por %p463, %p464
      %p466 = scmp.ne.s32.totalorder %s458, %s460
      %p467 = scmp.eq.s32.totalorder %s83, 2
      %p468 = por %p466, %p467
      %p469 = scmp.ne.s32.totalorder %s460, %s461
      %p470 = scmp.eq.s32.totalorder %s83, 0
      %p471 = por %p469, %p470
      %p472 = scmp.ne.s32.totalorder %s460, %s461
      %p473 = scmp.eq.s32.totalorder %s84, 2
      %p474 = por %p472, %p473
      %p476 = scmp.ne.s32.totalorder %s461, %s475
      %p477 = scmp.eq.s32.totalorder %s84, 0
      %p478 = por %p476, %p477
      %s480 = sadd.s32 %s479, 1
      %p483 = scmp.eq.s32.totalorder %s78, 2
      %p484 = scmp.ne.s32.totalorder %s479, %s481
      %p485 = scmp.eq.s32.totalorder %s78, 0
      %p486 = por %p484, %p485
      %p487 = scmp.ne.s32.totalorder %s479, %s481
      %p488 = scmp.eq.s32.totalorder %s83, 2
      %p489 = por %p487, %p488
      %p490 = scmp.ne.s32.totalorder %s481, %s482
      %p491 = scmp.eq.s32.totalorder %s83, 0
      %p492 = por %p490, %p491
      %p493 = scmp.ne.s32.totalorder %s481, %s482
      %p494 = scmp.eq.s32.totalorder %s84, 2
      %p495 = por %p493, %p494
      %p497 = scmp.ne.s32.totalorder %s482, %s496
      %p498 = scmp.eq.s32.totalorder %s84, 0
      %p499 = por %p497, %p498
      %s501 = sadd.s32 %s500, 1
      %p504 = scmp.eq.s32.totalorder %s78, 2
      %p505 = scmp.ne.s32.totalorder %s500, %s502
      %p506 = scmp.eq.s32.totalorder %s78, 0
      %p507 = por %p505, %p506
      %p508 = scmp.ne.s32.totalorder %s500, %s502
      %p509 = scmp.eq.s32.totalorder %s83, 2
      %p510 = por %p508, %p509
      %p511 = scmp.ne.s32.totalorder %s502, %s503
      %p512 = scmp.eq.s32.totalorder %s83, 0
      %p513 = por %p511, %p512
      %p514 = scmp.ne.s32.totalorder %s502, %s503
      %p515 = scmp.eq.s32.totalorder %s84, 2
      %p516 = por %p514, %p515
      %p518 = scmp.ne.s32.totalorder %s503, %s517
      %p519 = scmp.eq.s32.totalorder %s84, 0
      %p520 = por %p518, %p519
      %s522 = sadd.s32 %s521, 1
      %p525 = scmp.eq.s32.totalorder %s78, 2
      %p526 = scmp.ne.s32.totalorder %s521, %s523
      %p527 = scmp.eq.s32.totalorder %s78, 0
      %p528 = por %p526, %p527
      %p529 = scmp.ne.s32.totalorder %s521, %s523
      %p530 = scmp.eq.s32.totalorder %s83, 2
      %p531 = por %p529, %p530
      %p532 = scmp.ne.s32.totalorder %s523, %s524
      %p533 = scmp.eq.s32.totalorder %s83, 0
      %p534 = por %p532, %p533
      %p535 = scmp.ne.s32.totalorder %s523, %s524
      %p536 = scmp.eq.s32.totalorder %s84, 2
      %p537 = por %p535, %p536
      %p539 = scmp.ne.s32.totalorder %s524, %s538
      %p540 = scmp.eq.s32.totalorder %s84, 0
      %p541 = por %p539, %p540
      %s543 = sadd.s32 %s542, 1
      %p546 = scmp.eq.s32.totalorder %s78, 2
      %p547 = scmp.ne.s32.totalorder %s542, %s544
      %p548 = scmp.eq.s32.totalorder %s78, 0
      %p549 = por %p547, %p548
      %p550 = scmp.ne.s32.totalorder %s542, %s544
      %p551 = scmp.eq.s32.totalorder %s83, 2
      %p552 = por %p550, %p551
      %p553 = scmp.ne.s32.totalorder %s544, %s545
      %p554 = scmp.eq.s32.totalorder %s83, 0
      %p555 = por %p553, %p554
      %p556 = scmp.ne.s32.totalorder %s544, %s545
      %p557 = scmp.eq.s32.totalorder %s84, 2
      %p558 = por %p556, %p557
      %p560 = scmp.ne.s32.totalorder %s545, %s559
      %p561 = scmp.eq.s32.totalorder %s84, 0
      %p562 = por %p560, %p561
      %s564 = sadd.s32 %s563, 1
      %p567 = scmp.eq.s32.totalorder %s78, 2
      %p568 = scmp.ne.s32.totalorder %s563, %s565
      %p569 = scmp.eq.s32.totalorder %s78, 0
      %p570 = por %p568, %p569
      %p571 = scmp.ne.s32.totalorder %s563, %s565
      %p572 = scmp.eq.s32.totalorder %s83, 2
      %p573 = por %p571, %p572
      %p574 = scmp.ne.s32.totalorder %s565, %s566
      %p575 = scmp.eq.s32.totalorder %s83, 0
      %p576 = por %p574, %p575
      %p577 = scmp.ne.s32.totalorder %s565, %s566
      %p578 = scmp.eq.s32.totalorder %s84, 2
      %p579 = por %p577, %p578
      %p581 = scmp.ne.s32.totalorder %s566, %s580
      %p582 = scmp.eq.s32.totalorder %s84, 0
      %p583 = por %p581, %p582
      %s585 = sadd.s32 %s584, 1
      %p588 = scmp.eq.s32.totalorder %s78, 2
      %p589 = scmp.ne.s32.totalorder %s584, %s586
      %p590 = scmp.eq.s32.totalorder %s78, 0
      %p591 = por %p589, %p590
      %p592 = scmp.ne.s32.totalorder %s584, %s586
      %p593 = scmp.eq.s32.totalorder %s83, 2
      %p594 = por %p592, %p593
      %p595 = scmp.ne.s32.totalorder %s586, %s587
      %p596 = scmp.eq.s32.totalorder %s83, 0
      %p597 = por %p595, %p596
      %p598 = scmp.ne.s32.totalorder %s586, %s587
      %p599 = scmp.eq.s32.totalorder %s84, 2
      %p600 = por %p598, %p599
      %p602 = scmp.ne.s32.totalorder %s587, %s601
      %p603 = scmp.eq.s32.totalorder %s84, 0
      %p604 = por %p602, %p603
      %s606 = sadd.s32 %s605, 1
      %p609 = scmp.eq.s32.totalorder %s78, 2
      %p610 = scmp.ne.s32.totalorder %s605, %s607
      %p611 = scmp.eq.s32.totalorder %s78, 0
      %p612 = por %p610, %p611
      %p613 = scmp.ne.s32.totalorder %s605, %s607
      %p614 = scmp.eq.s32.totalorder %s83, 2
      %p615 = por %p613, %p614
      %p616 = scmp.ne.s32.totalorder %s607, %s608
      %p617 = scmp.eq.s32.totalorder %s83, 0
      %p618 = por %p616, %p617
      %p619 = scmp.ne.s32.totalorder %s607, %s608
      %p620 = scmp.eq.s32.totalorder %s84, 2
      %p621 = por %p619, %p620
      %p623 = scmp.ne.s32.totalorder %s608, %s622
      %p624 = scmp.eq.s32.totalorder %s84, 0
      %p625 = por %p623, %p624
      %s627 = sadd.s32 %s626, 1
      %p630 = scmp.eq.s32.totalorder %s78, 2
      %p631 = scmp.ne.s32.totalorder %s626, %s628
      %p632 = scmp.eq.s32.totalorder %s78, 0
      %p633 = por %p631, %p632
      %p634 = scmp.ne.s32.totalorder %s626, %s628
      %p635 = scmp.eq.s32.totalorder %s83, 2
      %p636 = por %p634, %p635
      %p637 = scmp.ne.s32.totalorder %s628, %s629
      %p638 = scmp.eq.s32.totalorder %s83, 0
      %p639 = por %p637, %p638
      %p640 = scmp.ne.s32.totalorder %s628, %s629
      %p641 = scmp.eq.s32.totalorder %s84, 2
      %p642 = por %p640, %p641
      %p644 = scmp.ne.s32.totalorder %s629, %s643
      %p645 = scmp.eq.s32.totalorder %s84, 0
      %p646 = por %p644, %p645
      %s648 = sadd.s32 %s647, 1
      %p651 = scmp.eq.s32.totalorder %s78, 2
      %p652 = scmp.ne.s32.totalorder %s647, %s649
      %p653 = scmp.eq.s32.totalorder %s78, 0
      %p654 = por %p652, %p653
      %p655 = scmp.ne.s32.totalorder %s647, %s649
      %p656 = scmp.eq.s32.totalorder %s83, 2
      %p657 = por %p655, %p656
      %p658 = scmp.ne.s32.totalorder %s649, %s650
      %p659 = scmp.eq.s32.totalorder %s83, 0
      %p660 = por %p658, %p659
      %p661 = scmp.ne.s32.totalorder %s649, %s650
      %p662 = scmp.eq.s32.totalorder %s84, 2
      %p663 = por %p661, %p662
      %p665 = scmp.ne.s32.totalorder %s650, %s664
      %p666 = scmp.eq.s32.totalorder %s84, 0
      %p667 = por %p665, %p666
      %s669 = sadd.s32 %s668, 1
      %p672 = scmp.eq.s32.totalorder %s78, 2
      %p673 = scmp.ne.s32.totalorder %s668, %s670
      %p674 = scmp.eq.s32.totalorder %s78, 0
      %p675 = por %p673, %p674
      %p676 = scmp.ne.s32.totalorder %s668, %s670
      %p677 = scmp.eq.s32.totalorder %s83, 2
      %p678 = por %p676, %p677
      %p679 = scmp.ne.s32.totalorder %s670, %s671
      %p680 = scmp.eq.s32.totalorder %s83, 0
      %p681 = por %p679, %p680
      %p682 = scmp.ne.s32.totalorder %s670, %s671
      %p683 = scmp.eq.s32.totalorder %s84, 2
      %p684 = por %p682, %p683
      %p686 = scmp.ne.s32.totalorder %s671, %s685
      %p687 = scmp.eq.s32.totalorder %s84, 0
      %p688 = por %p686, %p687
      %s690 = sadd.s32 %s689, 1
      %p693 = scmp.eq.s32.totalorder %s78, 2
      %p694 = scmp.ne.s32.totalorder %s689, %s691
      %p695 = scmp.eq.s32.totalorder %s78, 0
      %p696 = por %p694, %p695
      %p697 = scmp.ne.s32.totalorder %s689, %s691
      %p698 = scmp.eq.s32.totalorder %s83, 2
      %p699 = por %p697, %p698
      %p700 = scmp.ne.s32.totalorder %s691, %s692
      %p701 = scmp.eq.s32.totalorder %s83, 0
      %p702 = por %p700, %p701
      %p703 = scmp.ne.s32.totalorder %s691, %s692
      %p704 = scmp.eq.s32.totalorder %s84, 2
      %p705 = por %p703, %p704
      %p707 = scmp.ne.s32.totalorder %s692, %s706
      %p708 = scmp.eq.s32.totalorder %s84, 0
      %p709 = por %p707, %p708
      %s711 = sadd.s32 %s710, 1
      %p714 = scmp.eq.s32.totalorder %s78, 2
      %p715 = scmp.ne.s32.totalorder %s710, %s712
      %p716 = scmp.eq.s32.totalorder %s78, 0
      %p717 = por %p715, %p716
      %p718 = scmp.ne.s32.totalorder %s710, %s712
      %p719 = scmp.eq.s32.totalorder %s83, 2
      %p720 = por %p718, %p719
      %p721 = scmp.ne.s32.totalorder %s712, %s713
      %p722 = scmp.eq.s32.totalorder %s83, 0
      %p723 = por %p721, %p722
      %p724 = scmp.ne.s32.totalorder %s712, %s713
      %p725 = scmp.eq.s32.totalorder %s84, 2
      %p726 = por %p724, %p725
      %p728 = scmp.ne.s32.totalorder %s713, %s727
      %p729 = scmp.eq.s32.totalorder %s84, 0
      %p730 = por %p728, %p729
      %s732 = sadd.s32 %s731, 1
      %p735 = scmp.eq.s32.totalorder %s78, 2
      %p736 = scmp.ne.s32.totalorder %s731, %s733
      %p737 = scmp.eq.s32.totalorder %s78, 0
      %p738 = por %p736, %p737
      %p739 = scmp.ne.s32.totalorder %s731, %s733
      %p740 = scmp.eq.s32.totalorder %s83, 2
      %p741 = por %p739, %p740
      %p742 = scmp.ne.s32.totalorder %s733, %s734
      %p743 = scmp.eq.s32.totalorder %s83, 0
      %p744 = por %p742, %p743
      %p745 = scmp.ne.s32.totalorder %s733, %s734
      %p746 = scmp.eq.s32.totalorder %s84, 2
      %p747 = por %p745, %p746
      %p749 = scmp.ne.s32.totalorder %s734, %s748
      %p750 = scmp.eq.s32.totalorder %s84, 0
      %p751 = por %p749, %p750
      %s753 = sadd.s32 %s752, 1
      %p756 = scmp.eq.s32.totalorder %s78, 2
      %p757 = scmp.ne.s32.totalorder %s752, %s754
      %p758 = scmp.eq.s32.totalorder %s78, 0
      %p759 = por %p757, %p758
      %p760 = scmp.ne.s32.totalorder %s752, %s754
      %p761 = scmp.eq.s32.totalorder %s83, 2
      %p762 = por %p760, %p761
      %p763 = scmp.ne.s32.totalorder %s754, %s755
      %p764 = scmp.eq.s32.totalorder %s83, 0
      %p765 = por %p763, %p764
      %p766 = scmp.ne.s32.totalorder %s754, %s755
      %p767 = scmp.eq.s32.totalorder %s84, 2
      %p768 = por %p766, %p767
      %p770 = scmp.ne.s32.totalorder %s755, %s769
      %p771 = scmp.eq.s32.totalorder %s84, 0
      %p772 = por %p770, %p771
      %s774 = sadd.s32 %s773, 1
      %p777 = scmp.eq.s32.totalorder %s78, 2
      %p778 = scmp.ne.s32.totalorder %s773, %s775
      %p779 = scmp.eq.s32.totalorder %s78, 0
      %p780 = por %p778, %p779
      %p781 = scmp.ne.s32.totalorder %s773, %s775
      %p782 = scmp.eq.s32.totalorder %s83, 2
      %p783 = por %p781, %p782
      %p784 = scmp.ne.s32.totalorder %s775, %s776
      %p785 = scmp.eq.s32.totalorder %s83, 0
      %p786 = por %p784, %p785
      %p787 = scmp.ne.s32.totalorder %s775, %s776
      %p788 = scmp.eq.s32.totalorder %s84, 2
      %p789 = por %p787, %p788
      %p791 = scmp.ne.s32.totalorder %s776, %s790
      %p792 = scmp.eq.s32.totalorder %s84, 0
      %p793 = por %p791, %p792
      %s795 = sadd.s32 %s794, 1
      %p798 = scmp.eq.s32.totalorder %s78, 2
      %p799 = scmp.ne.s32.totalorder %s794, %s796
      %p800 = scmp.eq.s32.totalorder %s78, 0
      %p801 = por %p799, %p800
      %p802 = scmp.ne.s32.totalorder %s794, %s796
      %p803 = scmp.eq.s32.totalorder %s83, 2
      %p804 = por %p802, %p803
      %p805 = scmp.ne.s32.totalorder %s796, %s797
      %p806 = scmp.eq.s32.totalorder %s83, 0
      %p807 = por %p805, %p806
      %p808 = scmp.ne.s32.totalorder %s796, %s797
      %p809 = scmp.eq.s32.totalorder %s84, 2
      %p810 = por %p808, %p809
      %p812 = scmp.ne.s32.totalorder %s797, %s811
      %p813 = scmp.eq.s32.totalorder %s84, 0
      %p814 = por %p812, %p813
      %s815 = ssub.s32 %s78, %s85
      %p816 = scmp.eq.s32.totalorder %s815, 0
      %s818 = sadd.s32 %s817, 1
      %s819 = scalar_select %p816, %s817, %s818
      %p822 = pneg %p816
      %p823 = scmp.eq.s32.totalorder %s78, 2
      %p824 = por %p822, %p823
      %p825 = scmp.ne.s32.totalorder %s817, %s820
      %p826 = scmp.eq.s32.totalorder %s78, 0
      %p827 = por %p825, %p826
      %p828 = scmp.ne.s32.totalorder %s817, %s820
      %p829 = scmp.eq.s32.totalorder %s83, 2
      %p830 = por %p828, %p829
      %p831 = scmp.ne.s32.totalorder %s820, %s821
      %p832 = scmp.eq.s32.totalorder %s83, 0
      %p833 = por %p831, %p832
      %p834 = scmp.ne.s32.totalorder %s820, %s821
      %p835 = scmp.eq.s32.totalorder %s84, 2
      %p836 = por %p834, %p835
      %p838 = scmp.ne.s32.totalorder %s821, %s837
      %p839 = scmp.eq.s32.totalorder %s84, 0
      %p840 = por %p838, %p839
      %p841 = scmp.le.s32.totalorder 1, %s78
      %p842 = scmp.lt.s32.totalorder %s78, 4
      %p843 = pnand %p841, %p842
      %p844 = pneg %p843
      // Predicated region
      $region9: #{mask_time_series_forward.1} parent=5 // pred_check
        _
      $region10: #{mask_time_series_forward.1} parent=5 // pred_check_branch
        %846 = sbr.rel (%p843) target = $region12
      $region11: #{mask_time_series_forward.1} parent=5 // pred_region
        %s847 = ssub.s32 %s78, 1
        // Predicated region
        $region13: #{mask_time_series_forward.1} parent=11 // pred_check
          %p848 = pneg %p177
        $region14: #{mask_time_series_forward.1} parent=11 // pred_check_branch
          %850 = sbr.rel (%p848) target = $region16
        $region15: #{mask_time_series_forward.1} parent=11 // pred_region
          _
        $region16: #{mask_time_series_forward.1} parent=11 // pred_fallthru
          _
        // Predicated region
        $region17: #{mask_time_series_forward.1} parent=11 // pred_check
          %p851 = pneg %p198
        $region18: #{mask_time_series_forward.1} parent=11 // pred_check_branch
          %853 = sbr.rel (%p851) target = $region20
        $region19: #{mask_time_series_forward.1} parent=11 // pred_region
          _
        $region20: #{mask_time_series_forward.1} parent=11 // pred_fallthru
          _
        // Predicated region
        $region21: #{mask_time_series_forward.1} parent=11 // pred_check
          %p854 = pneg %p219
        $region22: #{mask_time_series_forward.1} parent=11 // pred_check_branch
          %856 = sbr.rel (%p854) target = $region24
        $region23: #{mask_time_series_forward.1} parent=11 // pred_region
          _
        $region24: #{mask_time_series_forward.1} parent=11 // pred_fallthru
          _
        // Predicated region
        $region25: #{mask_time_series_forward.1} parent=11 // pred_check
          %p857 = pneg %p240
        $region26: #{mask_time_series_forward.1} parent=11 // pred_check_branch
          %859 = sbr.rel (%p857) target = $region28
        $region27: #{mask_time_series_forward.1} parent=11 // pred_region
          _
        $region28: #{mask_time_series_forward.1} parent=11 // pred_fallthru
          _
        // Predicated region
        $region29: #{mask_time_series_forward.1} parent=11 // pred_check
          %p860 = pneg %p261
        $region30: #{mask_time_series_forward.1} parent=11 // pred_check_branch
          %862 = sbr.rel (%p860) target = $region32
        $region31: #{mask_time_series_forward.1} parent=11 // pred_region
          _
        $region32: #{mask_time_series_forward.1} parent=11 // pred_fallthru
          _
        // Predicated region
        $region33: #{mask_time_series_forward.1} parent=11 // pred_check
          %p863 = pneg %p282
        $region34: #{mask_time_series_forward.1} parent=11 // pred_check_branch
          %865 = sbr.rel (%p863) target = $region36
        $region35: #{mask_time_series_forward.1} parent=11 // pred_region
          _
        $region36: #{mask_time_series_forward.1} parent=11 // pred_fallthru
          _
        // Predicated region
        $region37: #{mask_time_series_forward.1} parent=11 // pred_check
          %p866 = pneg %p303
        $region38: #{mask_time_series_forward.1} parent=11 // pred_check_branch
          %868 = sbr.rel (%p866) target = $region40
        $region39: #{mask_time_series_forward.1} parent=11 // pred_region
          _
        $region40: #{mask_time_series_forward.1} parent=11 // pred_fallthru
          _
        // Predicated region
        $region41: #{mask_time_series_forward.1} parent=11 // pred_check
          %p869 = pneg %p324
        $region42: #{mask_time_series_forward.1} parent=11 // pred_check_branch
          %871 = sbr.rel (%p869) target = $region44
        $region43: #{mask_time_series_forward.1} parent=11 // pred_region
          _
        $region44: #{mask_time_series_forward.1} parent=11 // pred_fallthru
          _
        // Predicated region
        $region45: #{mask_time_series_forward.1} parent=11 // pred_check
          %p872 = pneg %p345
        $region46: #{mask_time_series_forward.1} parent=11 // pred_check_branch
          %874 = sbr.rel (%p872) target = $region48
        $region47: #{mask_time_series_forward.1} parent=11 // pred_region
          _
        $region48: #{mask_time_series_forward.1} parent=11 // pred_fallthru
          _
        // Predicated region
        $region49: #{mask_time_series_forward.1} parent=11 // pred_check
          %p875 = pneg %p366
        $region50: #{mask_time_series_forward.1} parent=11 // pred_check_branch
          %877 = sbr.rel (%p875) target = $region52
        $region51: #{mask_time_series_forward.1} parent=11 // pred_region
          _
        $region52: #{mask_time_series_forward.1} parent=11 // pred_fallthru
          _
        // Predicated region
        $region53: #{mask_time_series_forward.1} parent=11 // pred_check
          %p878 = pneg %p387
        $region54: #{mask_time_series_forward.1} parent=11 // pred_check_branch
          %880 = sbr.rel (%p878) target = $region56
        $region55: #{mask_time_series_forward.1} parent=11 // pred_region
          _
        $region56: #{mask_time_series_forward.1} parent=11 // pred_fallthru
          _
        // Predicated region
        $region57: #{mask_time_series_forward.1} parent=11 // pred_check
          %p881 = pneg %p408
        $region58: #{mask_time_series_forward.1} parent=11 // pred_check_branch
          %883 = sbr.rel (%p881) target = $region60
        $region59: #{mask_time_series_forward.1} parent=11 // pred_region
          _
        $region60: #{mask_time_series_forward.1} parent=11 // pred_fallthru
          _
        // Predicated region
        $region61: #{mask_time_series_forward.1} parent=11 // pred_check
          %p884 = pneg %p429
        $region62: #{mask_time_series_forward.1} parent=11 // pred_check_branch
          %886 = sbr.rel (%p884) target = $region64
        $region63: #{mask_time_series_forward.1} parent=11 // pred_region
          _
        $region64: #{mask_time_series_forward.1} parent=11 // pred_fallthru
          _
        // Predicated region
        $region65: #{mask_time_series_forward.1} parent=11 // pred_check
          %p887 = pneg %p450
        $region66: #{mask_time_series_forward.1} parent=11 // pred_check_branch
          %889 = sbr.rel (%p887) target = $region68
        $region67: #{mask_time_series_forward.1} parent=11 // pred_region
          _
        $region68: #{mask_time_series_forward.1} parent=11 // pred_fallthru
          _
        // Predicated region
        $region69: #{mask_time_series_forward.1} parent=11 // pred_check
          %p890 = pneg %p471
        $region70: #{mask_time_series_forward.1} parent=11 // pred_check_branch
          %892 = sbr.rel (%p890) target = $region72
        $region71: #{mask_time_series_forward.1} parent=11 // pred_region
          _
        $region72: #{mask_time_series_forward.1} parent=11 // pred_fallthru
          _
        // Predicated region
        $region73: #{mask_time_series_forward.1} parent=11 // pred_check
          %p893 = pneg %p492
        $region74: #{mask_time_series_forward.1} parent=11 // pred_check_branch
          %895 = sbr.rel (%p893) target = $region76
        $region75: #{mask_time_series_forward.1} parent=11 // pred_region
          _
        $region76: #{mask_time_series_forward.1} parent=11 // pred_fallthru
          _
        // Predicated region
        $region77: #{mask_time_series_forward.1} parent=11 // pred_check
          %p896 = pneg %p513
        $region78: #{mask_time_series_forward.1} parent=11 // pred_check_branch
          %898 = sbr.rel (%p896) target = $region80
        $region79: #{mask_time_series_forward.1} parent=11 // pred_region
          _
        $region80: #{mask_time_series_forward.1} parent=11 // pred_fallthru
          _
        // Predicated region
        $region81: #{mask_time_series_forward.1} parent=11 // pred_check
          %p899 = pneg %p534
        $region82: #{mask_time_series_forward.1} parent=11 // pred_check_branch
          %901 = sbr.rel (%p899) target = $region84
        $region83: #{mask_time_series_forward.1} parent=11 // pred_region
          _
        $region84: #{mask_time_series_forward.1} parent=11 // pred_fallthru
          _
        // Predicated region
        $region85: #{mask_time_series_forward.1} parent=11 // pred_check
          %p902 = pneg %p555
        $region86: #{mask_time_series_forward.1} parent=11 // pred_check_branch
          %904 = sbr.rel (%p902) target = $region88
        $region87: #{mask_time_series_forward.1} parent=11 // pred_region
          _
        $region88: #{mask_time_series_forward.1} parent=11 // pred_fallthru
          _
        // Predicated region
        $region89: #{mask_time_series_forward.1} parent=11 // pred_check
          %p905 = pneg %p576
        $region90: #{mask_time_series_forward.1} parent=11 // pred_check_branch
          %907 = sbr.rel (%p905) target = $region92
        $region91: #{mask_time_series_forward.1} parent=11 // pred_region
          _
        $region92: #{mask_time_series_forward.1} parent=11 // pred_fallthru
          _
        // Predicated region
        $region93: #{mask_time_series_forward.1} parent=11 // pred_check
          %p908 = pneg %p597
        $region94: #{mask_time_series_forward.1} parent=11 // pred_check_branch
          %910 = sbr.rel (%p908) target = $region96
        $region95: #{mask_time_series_forward.1} parent=11 // pred_region
          _
        $region96: #{mask_time_series_forward.1} parent=11 // pred_fallthru
          _
        // Predicated region
        $region97: #{mask_time_series_forward.1} parent=11 // pred_check
          %p911 = pneg %p618
        $region98: #{mask_time_series_forward.1} parent=11 // pred_check_branch
          %913 = sbr.rel (%p911) target = $region100
        $region99: #{mask_time_series_forward.1} parent=11 // pred_region
          _
        $region100: #{mask_time_series_forward.1} parent=11 // pred_fallthru
          _
        // Predicated region
        $region101: #{mask_time_series_forward.1} parent=11 // pred_check
          %p914 = pneg %p639
        $region102: #{mask_time_series_forward.1} parent=11 // pred_check_branch
          %916 = sbr.rel (%p914) target = $region104
        $region103: #{mask_time_series_forward.1} parent=11 // pred_region
          _
        $region104: #{mask_time_series_forward.1} parent=11 // pred_fallthru
          _
        // Predicated region
        $region105: #{mask_time_series_forward.1} parent=11 // pred_check
          %p917 = pneg %p660
        $region106: #{mask_time_series_forward.1} parent=11 // pred_check_branch
          %919 = sbr.rel (%p917) target = $region108
        $region107: #{mask_time_series_forward.1} parent=11 // pred_region
          _
        $region108: #{mask_time_series_forward.1} parent=11 // pred_fallthru
          _
        // Predicated region
        $region109: #{mask_time_series_forward.1} parent=11 // pred_check
          %p920 = pneg %p681
        $region110: #{mask_time_series_forward.1} parent=11 // pred_check_branch
          %922 = sbr.rel (%p920) target = $region112
        $region111: #{mask_time_series_forward.1} parent=11 // pred_region
          _
        $region112: #{mask_time_series_forward.1} parent=11 // pred_fallthru
          _
        // Predicated region
        $region113: #{mask_time_series_forward.1} parent=11 // pred_check
          %p923 = pneg %p702
        $region114: #{mask_time_series_forward.1} parent=11 // pred_check_branch
          %925 = sbr.rel (%p923) target = $region116
        $region115: #{mask_time_series_forward.1} parent=11 // pred_region
          _
        $region116: #{mask_time_series_forward.1} parent=11 // pred_fallthru
          _
        // Predicated region
        $region117: #{mask_time_series_forward.1} parent=11 // pred_check
          %p926 = pneg %p723
        $region118: #{mask_time_series_forward.1} parent=11 // pred_check_branch
          %928 = sbr.rel (%p926) target = $region120
        $region119: #{mask_time_series_forward.1} parent=11 // pred_region
          _
        $region120: #{mask_time_series_forward.1} parent=11 // pred_fallthru
          _
        // Predicated region
        $region121: #{mask_time_series_forward.1} parent=11 // pred_check
          %p929 = pneg %p744
        $region122: #{mask_time_series_forward.1} parent=11 // pred_check_branch
          %931 = sbr.rel (%p929) target = $region124
        $region123: #{mask_time_series_forward.1} parent=11 // pred_region
          _
        $region124: #{mask_time_series_forward.1} parent=11 // pred_fallthru
          _
        // Predicated region
        $region125: #{mask_time_series_forward.1} parent=11 // pred_check
          %p932 = pneg %p765
        $region126: #{mask_time_series_forward.1} parent=11 // pred_check_branch
          %934 = sbr.rel (%p932) target = $region128
        $region127: #{mask_time_series_forward.1} parent=11 // pred_region
          _
        $region128: #{mask_time_series_forward.1} parent=11 // pred_fallthru
          _
        // Predicated region
        $region129: #{mask_time_series_forward.1} parent=11 // pred_check
          %p935 = pneg %p786
        $region130: #{mask_time_series_forward.1} parent=11 // pred_check_branch
          %937 = sbr.rel (%p935) target = $region132
        $region131: #{mask_time_series_forward.1} parent=11 // pred_region
          _
        $region132: #{mask_time_series_forward.1} parent=11 // pred_fallthru
          _
        // Predicated region
        $region133: #{mask_time_series_forward.1} parent=11 // pred_check
          %p938 = pneg %p807
        $region134: #{mask_time_series_forward.1} parent=11 // pred_check_branch
          %940 = sbr.rel (%p938) target = $region136
        $region135: #{mask_time_series_forward.1} parent=11 // pred_region
          _
        $region136: #{mask_time_series_forward.1} parent=11 // pred_fallthru
          _
      $region12: #{mask_time_series_forward.1} parent=5 // pred_fallthru
        _
      %p941 = scmp.lt.s32.totalorder %s78, 3
      // Predicated region
      $region137: #{mask_time_series_forward.1} parent=5 // pred_check
        %p942 = pneg %p941
      $region138: #{mask_time_series_forward.1} parent=5 // pred_check_branch
        %944 = sbr.rel (%p942) target = $region140
      $region139: #{mask_time_series_forward.1} parent=5 // pred_region
        // Predicated region
        $region141: #{mask_time_series_forward.1} parent=139 // pred_check
          %p945 = pneg %p98
        $region142: #{mask_time_series_forward.1} parent=139 // pred_check_branch
          %947 = sbr.rel (%p945) target = $region144
        $region143: #{mask_time_series_forward.1} parent=139 // pred_region
          %s948 = smul.u32 8, %s78
          %p949 = scmp.lt.s32.totalorder %s948, 23
          %s950 = scalar_select %p949, %s948, 23
          %s951 = smul.addr %s950, 2
          %s952 = smul.addr %s951, 4
          %s953 = scalar_lea.vmem %s1, %s952
          %s954 = smul.u32 8, %s78
        $region144: #{mask_time_series_forward.1} parent=139 // pred_fallthru
          _
        // Predicated region
        $region145: #{mask_time_series_forward.1} parent=139 // pred_check
          %p955 = pneg %p124
        $region146: #{mask_time_series_forward.1} parent=139 // pred_check_branch
          %957 = sbr.rel (%p955) target = $region148
        $region147: #{mask_time_series_forward.1} parent=139 // pred_region
          %s958 = smul.u32 8, %s78
          %p959 = scmp.lt.s32.totalorder %s958, 23
          %s960 = scalar_select %p959, %s958, 23
          %s961 = smul.addr %s960, 8
          %s962 = scalar_lea.vmem %s3, %s961
          %s963 = smul.u32 8, %s78
        $region148: #{mask_time_series_forward.1} parent=139 // pred_fallthru
          _
        // Predicated region
        $region149: #{mask_time_series_forward.1} parent=139 // pred_check
          %p964 = pneg %p150
        $region150: #{mask_time_series_forward.1} parent=139 // pred_check_branch
          %966 = sbr.rel (%p964) target = $region152
        $region151: #{mask_time_series_forward.1} parent=139 // pred_region
          %s967 = smul.u32 8, %s78
          %p968 = scmp.lt.s32.totalorder %s967, 23
          %s969 = scalar_select %p968, %s967, 23
          %s970 = smul.addr %s969, 8
          %s971 = scalar_lea.vmem %s5, %s970
          %s972 = smul.u32 8, %s78
        $region152: #{mask_time_series_forward.1} parent=139 // pred_fallthru
          _
      $region140: #{mask_time_series_forward.1} parent=5 // pred_fallthru
        _
      %p973 = scmp.le.s32.totalorder 1, %s78
      %p974 = scmp.lt.s32.totalorder %s78, 4
      %p975 = pnand %p973, %p974
      %p976 = pneg %p975
      // Predicated region
      $region153: #{mask_time_series_forward.1} parent=5 // pred_check
        _
      $region154: #{mask_time_series_forward.1} parent=5 // pred_check_branch
        %978 = sbr.rel (%p975) target = $region156
      $region155: #{mask_time_series_forward.1} parent=5 // pred_region
        %s979 = ssub.s32 %s78, 1
        %s980 = smul.u32 8, %s83
        %p981 = scmp.lt.s32.totalorder %s980, 23
        %s982 = scalar_select %p981, %s980, 23
        %s983 = smul.addr %s982, 2
        %s984 = smul.addr %s983, 4
        %s985 = scalar_lea.vmem %s1, %s984
        %p986 = pneg %p104
        %p987 = pneg %p101
        %s988 = smul.u32 8, %s83
        %p989 = scmp.lt.s32.totalorder %s988, 23
        %s990 = scalar_select %p989, %s988, 23
        %s991 = smul.addr %s990, 8
        %s992 = scalar_lea.vmem %s3, %s991
        %p993 = pneg %p130
        %p994 = pneg %p127
        %s995 = smul.u32 8, %s83
        %p996 = scmp.lt.s32.totalorder %s995, 23
        %s997 = scalar_select %p996, %s995, 23
        %s998 = smul.addr %s997, 8
        %s999 = scalar_lea.vmem %s5, %s998
        %p1000 = pneg %p156
        %p1001 = pneg %p153
        %p1002 = pneg %p177
        %p1003 = pneg %p174
        %p1004 = pneg %p198
        %p1005 = pneg %p195
        %p1006 = pneg %p219
        %p1007 = pneg %p216
        %p1008 = pneg %p240
        %p1009 = pneg %p237
        %p1010 = pneg %p261
        %p1011 = pneg %p258
        %p1012 = pneg %p282
        %p1013 = pneg %p279
        %p1014 = pneg %p303
        %p1015 = pneg %p300
        %p1016 = pneg %p324
        %p1017 = pneg %p321
        %p1018 = pneg %p345
        %p1019 = pneg %p342
        %p1020 = pneg %p366
        %p1021 = pneg %p363
        %p1022 = pneg %p387
        %p1023 = pneg %p384
        %p1024 = pneg %p408
        %p1025 = pneg %p405
        %p1026 = pneg %p429
        %p1027 = pneg %p426
        %p1028 = pneg %p450
        %p1029 = pneg %p447
        %p1030 = pneg %p471
        %p1031 = pneg %p468
        %p1032 = pneg %p492
        %p1033 = pneg %p489
        %p1034 = pneg %p513
        %p1035 = pneg %p510
        %p1036 = pneg %p534
        %p1037 = pneg %p531
        %p1038 = pneg %p555
        %p1039 = pneg %p552
        %p1040 = pneg %p576
        %p1041 = pneg %p573
        %p1042 = pneg %p597
        %p1043 = pneg %p594
        %p1044 = pneg %p618
        %p1045 = pneg %p615
        %p1046 = pneg %p639
        %p1047 = pneg %p636
        %p1048 = pneg %p660
        %p1049 = pneg %p657
        %p1050 = pneg %p681
        %p1051 = pneg %p678
        %p1052 = pneg %p702
        %p1053 = pneg %p699
        %p1054 = pneg %p723
        %p1055 = pneg %p720
        %p1056 = pneg %p744
        %p1057 = pneg %p741
        %p1058 = pneg %p765
        %p1059 = pneg %p762
        %p1060 = pneg %p786
        %p1061 = pneg %p783
        %p1062 = pneg %p807
        %p1063 = pneg %p804
        %p1064 = pneg %p833
        %p1065 = pneg %p830
        %s1066 = sand.u32 %s820, 1
        %s1067 = scalar_lea.sflag [#allocation3], %s1066
        %s1068 = sand.u32 %s820, 1
        %s1069 = smul.addr %s1068, 16
        %s1070 = scalar_lea.vmem [#allocation2], %s1069
        %s1071 = smul.u32 8, %s83
        %p1072 = scmp.lt.s32.totalorder %s1071, 23
        %s1073 = scalar_select %p1072, %s1071, 23
        %s1074 = smul.addr %s1073, 2
        %s1075 = smul.addr %s1074, 4
        %s1076 = scalar_lea.vmem %s1, %s1075
        %s1077 = smul.u32 8, %s83
        %s1078 = smul.u32 8, %s83
        %p1079 = scmp.lt.s32.totalorder %s1078, 23
        %s1080 = scalar_select %p1079, %s1078, 23
        %s1081 = smul.addr %s1080, 8
        %s1082 = scalar_lea.vmem %s3, %s1081
        %s1083 = smul.u32 8, %s83
        %s1084 = smul.u32 8, %s83
        %p1085 = scmp.lt.s32.totalorder %s1084, 23
        %s1086 = scalar_select %p1085, %s1084, 23
        %s1087 = smul.addr %s1086, 8
        %s1088 = scalar_lea.vmem %s5, %s1087
        %s1089 = smul.u32 8, %s83
        %v1091 = vld [vmem:[%s1076] sm:$0xff]
        %v1092 = vld [vmem:[%s1076 + $0x8] sm:$0xff]
        %v1093 = vld [vmem:[%s1076 + $0x10] sm:$0xff]
        %v1094 = vld [vmem:[%s1076 + $0x18] sm:$0xff]
        %v1095 = vld [vmem:[%s1076 + $0x20] sm:$0xff]
        %v1096 = vld [vmem:[%s1076 + $0x28] sm:$0xff]
        %v1097 = vld [vmem:[%s1076 + $0x30] sm:$0xff]
        %v1098 = vld [vmem:[%s1076 + $0x38] sm:$0xff]
        %v1099 = vld [vmem:[%s9] sm:$0xf]
        %v1100 = vld [vmem:[%s9 + $0x4] sm:$0xf]
        %v1101 = vld [vmem:[%s9 + $0x8] sm:$0xf]
        %v1102 = vld [vmem:[%s9 + $0xc] sm:$0xf]
        %v1103 = vld [vmem:[%s9 + $0x10] sm:$0xf]
        %v1104 = vld [vmem:[%s9 + $0x14] sm:$0xf]
        %v1105 = vld [vmem:[%s9 + $0x18] sm:$0xf]
        %v1106 = vld [vmem:[%s9 + $0x1c] sm:$0xf]
        %v1107 = vld [vmem:[%s9 + $0x20] sm:$0xf]
        %v1108 = vld [vmem:[%s9 + $0x24] sm:$0xf]
        %v1109 = vld [vmem:[%s9 + $0x28] sm:$0xf]
        %v1110 = vld [vmem:[%s9 + $0x2c] sm:$0xf]
        %v1111 = vld [vmem:[%s9 + $0x30] sm:$0xf]
        %v1112 = vld [vmem:[%s9 + $0x34] sm:$0xf]
        %v1113 = vld [vmem:[%s9 + $0x38] sm:$0xf]
        %v1114 = vld [vmem:[%s9 + $0x3c] sm:$0xf]
        %v1115 = vld [vmem:[%s9 + $0x40] sm:$0xf]
        %v1116 = vld [vmem:[%s9 + $0x44] sm:$0xf]
        %v1117 = vld [vmem:[%s9 + $0x48] sm:$0xf]
        %v1118 = vld [vmem:[%s9 + $0x4c] sm:$0xf]
        %v1119 = vld [vmem:[%s9 + $0x50] sm:$0xf]
        %v1120 = vld [vmem:[%s9 + $0x54] sm:$0xf]
        %v1121 = vld [vmem:[%s9 + $0x58] sm:$0xf]
        %v1122 = vld [vmem:[%s9 + $0x5c] sm:$0xf]
        %v1123 = vld [vmem:[%s9 + $0x60] sm:$0xf]
        %v1124 = vld [vmem:[%s9 + $0x64] sm:$0xf]
        %v1125 = vld [vmem:[%s9 + $0x68] sm:$0xf]
        %v1126 = vld [vmem:[%s9 + $0x6c] sm:$0xf]
        %v1127 = vld [vmem:[%s9 + $0x70] sm:$0xf]
        %v1128 = vld [vmem:[%s9 + $0x74] sm:$0xf]
        %v1129 = vld [vmem:[%s9 + $0x78] sm:$0xf]
        %v1130 = vld [vmem:[%s9 + $0x7c] sm:$0xf]
        %v1131 = vld [vmem:[%s11] sm:$0x1]
        %v1133 = vlaneseq
        %v1134 = vshrl.u32 %v1133, 7
        %v1135 = vsub.s32 0, %v1134
        %v1136 = vrot.slane %v1131, %v1135
        %v1146 = vunpack.c.l.b16 %v1091
        %v1147 = vunpack.c.h.b16 %v1091
        %v1148 = vunpack.c.l.b16 %v1092
        %v1149 = vunpack.c.h.b16 %v1092
        %v1150 = vunpack.c.l.b16 %v1093
        %v1151 = vunpack.c.h.b16 %v1093
        %v1152 = vunpack.c.l.b16 %v1094
        %v1153 = vunpack.c.h.b16 %v1094
        %v1154 = vunpack.c.l.b16 %v1095
        %v1155 = vunpack.c.h.b16 %v1095
        %v1156 = vunpack.c.l.b16 %v1096
        %v1157 = vunpack.c.h.b16 %v1096
        %v1158 = vunpack.c.l.b16 %v1097
        %v1159 = vunpack.c.h.b16 %v1097
        %v1160 = vunpack.c.l.b16 %v1098
        %v1161 = vunpack.c.h.b16 %v1098
        %v1162 = vpack.c.b16 %v1148, %v1146
        %v1163 = vpack.c.b16 %v1149, %v1147
        %v1164 = vpack.c.b16 %v1152, %v1150
        %v1165 = vpack.c.b16 %v1153, %v1151
        %v1166 = vpack.c.b16 %v1156, %v1154
        %v1167 = vpack.c.b16 %v1157, %v1155
        %v1168 = vpack.c.b16 %v1160, %v1158
        %v1169 = vpack.c.b16 %v1161, %v1159
        %v1210 = vunpack.c.l.b16 %v1099
        %v1211 = vunpack.c.l.b16 %v1100
        %v1212 = vunpack.c.l.b16 %v1101
        %v1213 = vunpack.c.l.b16 %v1102
        %v1214 = vunpack.c.l.b16 %v1103
        %v1215 = vunpack.c.l.b16 %v1104
        %v1216 = vunpack.c.l.b16 %v1105
        %v1217 = vunpack.c.l.b16 %v1106
        %v1218 = vunpack.c.l.b16 %v1107
        %v1219 = vunpack.c.l.b16 %v1108
        %v1220 = vunpack.c.l.b16 %v1109
        %v1221 = vunpack.c.l.b16 %v1110
        %v1222 = vunpack.c.l.b16 %v1111
        %v1223 = vunpack.c.l.b16 %v1112
        %v1224 = vunpack.c.l.b16 %v1113
        %v1225 = vunpack.c.l.b16 %v1114
        %v1226 = vunpack.c.l.b16 %v1115
        %v1227 = vunpack.c.l.b16 %v1116
        %v1228 = vunpack.c.l.b16 %v1117
        %v1229 = vunpack.c.l.b16 %v1118
        %v1230 = vunpack.c.l.b16 %v1119
        %v1231 = vunpack.c.l.b16 %v1120
        %v1232 = vunpack.c.l.b16 %v1121
        %v1233 = vunpack.c.l.b16 %v1122
        %v1234 = vunpack.c.l.b16 %v1123
        %v1235 = vunpack.c.l.b16 %v1124
        %v1236 = vunpack.c.l.b16 %v1125
        %v1237 = vunpack.c.l.b16 %v1126
        %v1238 = vunpack.c.l.b16 %v1127
        %v1239 = vunpack.c.l.b16 %v1128
        %v1240 = vunpack.c.l.b16 %v1129
        %v1241 = vunpack.c.l.b16 %v1130
        %v1242 = vpack.c.b16 %v1211, %v1210
        %v1243 = vpack.c.b16 %v1213, %v1212
        %v1244 = vpack.c.b16 %v1215, %v1214
        %v1245 = vpack.c.b16 %v1217, %v1216
        %v1246 = vpack.c.b16 %v1219, %v1218
        %v1247 = vpack.c.b16 %v1221, %v1220
        %v1248 = vpack.c.b16 %v1223, %v1222
        %v1249 = vpack.c.b16 %v1225, %v1224
        %v1250 = vpack.c.b16 %v1227, %v1226
        %v1251 = vpack.c.b16 %v1229, %v1228
        %v1252 = vpack.c.b16 %v1231, %v1230
        %v1253 = vpack.c.b16 %v1233, %v1232
        %v1254 = vpack.c.b16 %v1235, %v1234
        %v1255 = vpack.c.b16 %v1237, %v1236
        %v1256 = vpack.c.b16 %v1239, %v1238
        %v1257 = vpack.c.b16 %v1241, %v1240
        %1274 = vmatprep.subr.bf16.mxu0 0
        %1275 = vmatpush1.bf16.msra.mxu0 %v1242
        %1276 = vmatprep.subr.bf16.mxu0 0
        %1277 = vmatpush1.bf16.msra.mxu0 %v1243
        %1278 = vmatprep.subr.bf16.mxu0 0
        %1279 = vmatpush1.bf16.msra.mxu0 %v1244
        %1280 = vmatprep.subr.bf16.mxu0 0
        %1281 = vmatpush1.bf16.msra.mxu0 %v1245
        %1282 = vmatprep.subr.bf16.mxu0 0
        %1283 = vmatpush1.bf16.msra.mxu0 %v1246
        %1284 = vmatprep.subr.bf16.mxu0 0
        %1285 = vmatpush1.bf16.msra.mxu0 %v1247
        %1286 = vmatprep.subr.bf16.mxu0 0
        %1287 = vmatpush1.bf16.msra.mxu0 %v1248
        %1288 = vmatprep.subr.bf16.mxu0 0
        %1289 = vmatpush1.bf16.msra.mxu0 %v1249
        %1290 = vmatprep.subr.bf16.mxu0 0
        %1291 = vmatpush1.bf16.msra.mxu0 %v1250
        %1292 = vmatprep.subr.bf16.mxu0 0
        %1293 = vmatpush1.bf16.msra.mxu0 %v1251
        %1294 = vmatprep.subr.bf16.mxu0 0
        %1295 = vmatpush1.bf16.msra.mxu0 %v1252
        %1296 = vmatprep.subr.bf16.mxu0 0
        %1297 = vmatpush1.bf16.msra.mxu0 %v1253
        %1298 = vmatprep.subr.bf16.mxu0 0
        %1299 = vmatpush1.bf16.msra.mxu0 %v1254
        %1300 = vmatprep.subr.bf16.mxu0 0
        %1301 = vmatpush1.bf16.msra.mxu0 %v1255
        %1302 = vmatprep.subr.bf16.mxu0 0
        %1303 = vmatpush1.bf16.msra.mxu0 %v1256
        %1304 = vmatprep.subr.bf16.mxu0 0
        %1305 = vmatpush1.bf16.msra.mxu0 %v1257
        %1306 = vmatprep.mubr.bf16.mxu0 %v1163
        %1307 = vmatmul.mubr.bf16.gmra.mrb[0].mxu0 %v1162
        %v1308 = vpop.f32.mrb[0].mxu0
        %v1309 = vadd.f32 %v1136, %v1308
        %v1310 = vpop.f32.mrb[0].mxu0
        %v1311 = vpop.f32.mrb[0].mxu0
        %v1312 = vadd.f32 %v1136, %v1311
        %v1313 = vpop.f32.mrb[0].mxu0
        %1314 = vmatprep.mubr.bf16.mxu0 %v1165
        %1315 = vmatmul.mubr.bf16.gmra.mrb[0].mxu0 %v1164
        %v1316 = vpop.f32.mrb[0].mxu0
        %v1317 = vadd.f32 %v1136, %v1316
        %v1318 = vpop.f32.mrb[0].mxu0
        %v1319 = vpop.f32.mrb[0].mxu0
        %v1320 = vadd.f32 %v1136, %v1319
        %v1321 = vpop.f32.mrb[0].mxu0
        %1322 = vmatprep.mubr.bf16.mxu0 %v1167
        %1323 = vmatmul.mubr.bf16.gmra.mrb[0].mxu0 %v1166
        %v1324 = vpop.f32.mrb[0].mxu0
        %v1325 = vadd.f32 %v1136, %v1324
        %v1326 = vpop.f32.mrb[0].mxu0
        %v1327 = vpop.f32.mrb[0].mxu0
        %v1328 = vadd.f32 %v1136, %v1327
        %v1329 = vpop.f32.mrb[0].mxu0
        %1330 = vmatprep.mubr.bf16.mxu0 %v1169
        %1331 = vmatmul.mubr.bf16.gmra.mrb[0].mxu0 %v1168
        %v1332 = vpop.f32.mrb[0].mxu0
        %v1333 = vadd.f32 %v1136, %v1332
        %v1334 = vpop.f32.mrb[0].mxu0
        %v1335 = vpop.f32.mrb[0].mxu0
        %v1336 = vadd.f32 %v1136, %v1335
        %v1337 = vpop.f32.mrb[0].mxu0
        %1338 = vdwg.mxu0
        %v1339 = vmax.f32 %v1309, 0.0
        %v1340 = vmax.f32 %v1312, 0.0
        %v1341 = vmax.f32 %v1317, 0.0
        %v1342 = vmax.f32 %v1320, 0.0
        %v1343 = vmax.f32 %v1325, 0.0
        %v1344 = vmax.f32 %v1328, 0.0
        %v1345 = vmax.f32 %v1333, 0.0
        %v1346 = vmax.f32 %v1336, 0.0
        %v1347 = vpack.c.bf16 %v1340, %v1339
        %v1348 = vpack.c.bf16 %v1342, %v1341
        %v1349 = vpack.c.bf16 %v1344, %v1343
        %v1350 = vpack.c.bf16 %v1346, %v1345
        %v1351 = vld [vmem:[%s13] sm:$0xf]
        %v1352 = vld [vmem:[%s13 + $0x4] sm:$0xf]
        %v1353 = vld [vmem:[%s13 + $0x8] sm:$0xf]
        %v1354 = vld [vmem:[%s13 + $0xc] sm:$0xf]
        %v1355 = vld [vmem:[%s13 + $0x10] sm:$0xf]
        %v1356 = vld [vmem:[%s13 + $0x14] sm:$0xf]
        %v1357 = vld [vmem:[%s13 + $0x18] sm:$0xf]
        %v1358 = vld [vmem:[%s13 + $0x1c] sm:$0xf]
        %v1359 = vld [vmem:[%s15] sm:$0x1]
        %v1361 = vlaneseq
        %v1362 = vshrl.u32 %v1361, 7
        %v1363 = vsub.s32 0, %v1362
        %v1364 = vrot.slane %v1359, %v1363
        %v1374 = vunpack.c.l.b16 %v1351
        %v1375 = vunpack.c.l.b16 %v1352
        %v1376 = vunpack.c.l.b16 %v1353
        %v1377 = vunpack.c.l.b16 %v1354
        %v1378 = vunpack.c.l.b16 %v1355
        %v1379 = vunpack.c.l.b16 %v1356
        %v1380 = vunpack.c.l.b16 %v1357
        %v1381 = vunpack.c.l.b16 %v1358
        %v1382 = vpack.c.b16 %v1375, %v1374
        %v1383 = vpack.c.b16 %v1377, %v1376
        %v1384 = vpack.c.b16 %v1379, %v1378
        %v1385 = vpack.c.b16 %v1381, %v1380
        %vm1390 = vcmask 523264
        %v1392 = vsel %vm1390, %v1347, 0
        %v1395 = vsel %vm1390, %v1348, 0
        %v1398 = vsel %vm1390, %v1349, 0
        %v1401 = vsel %vm1390, %v1350, 0
        %1403 = vmatprep.subr.bf16.mxu0 0
        %1404 = vmatpush1.bf16.msra.mxu0 %v1382
        %1405 = vmatprep.subr.bf16.mxu0 0
        %1406 = vmatpush1.bf16.msra.mxu0 %v1383
        %1407 = vmatprep.subr.bf16.mxu0 0
        %1408 = vmatpush1.bf16.msra.mxu0 %v1384
        %1409 = vmatprep.subr.bf16.mxu0 0
        %1410 = vmatpush1.bf16.msra.mxu0 %v1385
        %1411 = vmatprep.subr.bf16.mxu0 0
        %1412 = vmatpush1.bf16.msra.mxu0 0
        %1413 = vmatprep.subr.bf16.mxu0 0
        %1414 = vmatpush1.bf16.msra.mxu0 0
        %1415 = vmatprep.subr.bf16.mxu0 0
        %1416 = vmatpush1.bf16.msra.mxu0 0
        %1417 = vmatprep.subr.bf16.mxu0 0
        %1418 = vmatpush1.bf16.msra.mxu0 0
        %1419 = vmatprep.subr.bf16.mxu0 0
        %1420 = vmatpush1.bf16.msra.mxu0 0
        %1421 = vmatprep.subr.bf16.mxu0 0
        %1422 = vmatpush1.bf16.msra.mxu0 0
        %1423 = vmatprep.subr.bf16.mxu0 0
        %1424 = vmatpush1.bf16.msra.mxu0 0
        %1425 = vmatprep.subr.bf16.mxu0 0
        %1426 = vmatpush1.bf16.msra.mxu0 0
        %1427 = vmatprep.subr.bf16.mxu0 0
        %1428 = vmatpush1.bf16.msra.mxu0 0
        %1429 = vmatprep.subr.bf16.mxu0 0
        %1430 = vmatpush1.bf16.msra.mxu0 0
        %1431 = vmatprep.subr.bf16.mxu0 0
        %1432 = vmatpush1.bf16.msra.mxu0 0
        %1433 = vmatprep.subr.bf16.mxu0 0
        %1434 = vmatpush1.bf16.msra.mxu0 0
        %1435 = vmatprep.mubr.bf16.mxu0 0
        %1436 = vmatmul.mubr.bf16.gmra.mrb[0].mxu0 %v1392
        %v1437 = vpop.f32.mrb[0].mxu0
        %v1438 = vadd.f32 %v1364, %v1437
        %v1439 = vpop.f32.mrb[0].mxu0
        %v1440 = vpop.f32.mrb[0].mxu0
        %v1441 = vadd.f32 %v1364, %v1440
        %v1442 = vpop.f32.mrb[0].mxu0
        %1443 = vmatprep.mubr.bf16.mxu0 0
        %1444 = vmatmul.mubr.bf16.gmra.mrb[0].mxu0 %v1395
        %v1445 = vpop.f32.mrb[0].mxu0
        %v1446 = vadd.f32 %v1364, %v1445
        %v1447 = vpop.f32.mrb[0].mxu0
        %v1448 = vpop.f32.mrb[0].mxu0
        %v1449 = vadd.f32 %v1364, %v1448
        %v1450 = vpop.f32.mrb[0].mxu0
        %1451 = vmatprep.mubr.bf16.mxu0 0
        %1452 = vmatmul.mubr.bf16.gmra.mrb[0].mxu0 %v1398
        %v1453 = vpop.f32.mrb[0].mxu0
        %v1454 = vadd.f32 %v1364, %v1453
        %v1455 = vpop.f32.mrb[0].mxu0
        %v1456 = vpop.f32.mrb[0].mxu0
        %v1457 = vadd.f32 %v1364, %v1456
        %v1458 = vpop.f32.mrb[0].mxu0
        %1459 = vmatprep.mubr.bf16.mxu0 0
        %1460 = vmatmul.mubr.bf16.gmra.mrb[0].mxu0 %v1401
        %v1461 = vpop.f32.mrb[0].mxu0
        %v1462 = vadd.f32 %v1364, %v1461
        %v1463 = vpop.f32.mrb[0].mxu0
        %v1464 = vpop.f32.mrb[0].mxu0
        %v1465 = vadd.f32 %v1364, %v1464
        %v1466 = vpop.f32.mrb[0].mxu0
        %1467 = vdwg.mxu0
        %v1468 = vld [vmem:[%s1082] sm:$0xff]
        %v1469 = vld [vmem:[%s1082 + $0x8] sm:$0xff]
        %v1470 = vld [vmem:[%s1082 + $0x10] sm:$0xff]
        %v1471 = vld [vmem:[%s1082 + $0x18] sm:$0xff]
        %v1472 = vld [vmem:[%s1082 + $0x20] sm:$0xff]
        %v1473 = vld [vmem:[%s1082 + $0x28] sm:$0xff]
        %v1474 = vld [vmem:[%s1082 + $0x30] sm:$0xff]
        %v1475 = vld [vmem:[%s1082 + $0x38] sm:$0xff]
        %v1476 = vpack.c.bf16 %v1469, %v1468
        %v1477 = vpack.c.bf16 %v1471, %v1470
        %v1478 = vpack.c.bf16 %v1473, %v1472
        %v1479 = vpack.c.bf16 %v1475, %v1474
        %v1480 = vld [vmem:[%s17] sm:$0xf]
        %v1481 = vld [vmem:[%s19] sm:$0x1]
        %v1483 = vlaneseq
        %v1484 = vshrl.u32 %v1483, 7
        %v1485 = vsub.s32 0, %v1484
        %v1486 = vrot.slane %v1481, %v1485
        %vm1488 = vcmask 64512
        %v1490 = vsel %vm1488, %v1476, 0
        %v1493 = vsel %vm1488, %v1477, 0
        %v1496 = vsel %vm1488, %v1478, 0
        %v1499 = vsel %vm1488, %v1479, 0
        %vm1501 = vcmask 1043456
        %v1503 = vsel %vm1501, %v1480, 0
        %1505 = vmatprep.subr.bf16.mxu0 0
        %1506 = vmatpush1.bf16.msra.mxu0 %v1503
        %1507 = vmatprep.subr.bf16.mxu0 0
        %1508 = vmatpush1.bf16.msra.mxu0 0
        %1509 = vmatprep.subr.bf16.mxu0 0
        %1510 = vmatpush1.bf16.msra.mxu0 0
        %1511 = vmatprep.subr.bf16.mxu0 0
        %1512 = vmatpush1.bf16.msra.mxu0 0
        %1513 = vmatprep.subr.bf16.mxu0 0
        %1514 = vmatpush1.bf16.msra.mxu0 0
        %1515 = vmatprep.subr.bf16.mxu0 0
        %1516 = vmatpush1.bf16.msra.mxu0 0
        %1517 = vmatprep.subr.bf16.mxu0 0
        %1518 = vmatpush1.bf16.msra.mxu0 0
        %1519 = vmatprep.subr.bf16.mxu0 0
        %1520 = vmatpush1.bf16.msra.mxu0 0
        %1521 = vmatprep.subr.bf16.mxu0 0
        %1522 = vmatpush1.bf16.msra.mxu0 0
        %1523 = vmatprep.subr.bf16.mxu0 0
        %1524 = vmatpush1.bf16.msra.mxu0 0
        %1525 = vmatprep.subr.bf16.mxu0 0
        %1526 = vmatpush1.bf16.msra.mxu0 0
        %1527 = vmatprep.subr.bf16.mxu0 0
        %1528 = vmatpush1.bf16.msra.mxu0 0
        %1529 = vmatprep.subr.bf16.mxu0 0
        %1530 = vmatpush1.bf16.msra.mxu0 0
        %1531 = vmatprep.subr.bf16.mxu0 0
        %1532 = vmatpush1.bf16.msra.mxu0 0
        %1533 = vmatprep.subr.bf16.mxu0 0
        %1534 = vmatpush1.bf16.msra.mxu0 0
        %1535 = vmatprep.subr.bf16.mxu0 0
        %1536 = vmatpush1.bf16.msra.mxu0 0
        %1537 = vmatprep.mubr.bf16.mxu0 0
        %1538 = vmatmul.mubr.bf16.gmra.mrb[0].mxu0 %v1490
        %v1539 = vpop.f32.mrb[0].mxu0
        %v1540 = vadd.f32 %v1486, %v1539
        %v1541 = vpop.f32.mrb[0].mxu0
        %v1542 = vpop.f32.mrb[0].mxu0
        %v1543 = vadd.f32 %v1486, %v1542
        %v1544 = vpop.f32.mrb[0].mxu0
        %1545 = vmatprep.mubr.bf16.mxu0 0
        %1546 = vmatmul.mubr.bf16.gmra.mrb[0].mxu0 %v1493
        %v1547 = vpop.f32.mrb[0].mxu0
        %v1548 = vadd.f32 %v1486, %v1547
        %v1549 = vpop.f32.mrb[0].mxu0
        %v1550 = vpop.f32.mrb[0].mxu0
        %v1551 = vadd.f32 %v1486, %v1550
        %v1552 = vpop.f32.mrb[0].mxu0
        %1553 = vmatprep.mubr.bf16.mxu0 0
        %1554 = vmatmul.mubr.bf16.gmra.mrb[0].mxu0 %v1496
        %v1555 = vpop.f32.mrb[0].mxu0
        %v1556 = vadd.f32 %v1486, %v1555
        %v1557 = vpop.f32.mrb[0].mxu0
        %v1558 = vpop.f32.mrb[0].mxu0
        %v1559 = vadd.f32 %v1486, %v1558
        %v1560 = vpop.f32.mrb[0].mxu0
        %1561 = vmatprep.mubr.bf16.mxu0 0
        %1562 = vmatmul.mubr.bf16.gmra.mrb[0].mxu0 %v1499
        %v1563 = vpop.f32.mrb[0].mxu0
        %v1564 = vadd.f32 %v1486, %v1563
        %v1565 = vpop.f32.mrb[0].mxu0
        %v1566 = vpop.f32.mrb[0].mxu0
        %v1567 = vadd.f32 %v1486, %v1566
        %v1568 = vpop.f32.mrb[0].mxu0
        %1569 = vdwg.mxu0
        %v1570 = vmax.f32 %v1540, 0.0
        %v1571 = vmax.f32 %v1543, 0.0
        %v1572 = vmax.f32 %v1548, 0.0
        %v1573 = vmax.f32 %v1551, 0.0
        %v1574 = vmax.f32 %v1556, 0.0
        %v1575 = vmax.f32 %v1559, 0.0
        %v1576 = vmax.f32 %v1564, 0.0
        %v1577 = vmax.f32 %v1567, 0.0
        %v1578 = vpack.c.bf16 %v1571, %v1570
        %v1579 = vpack.c.bf16 %v1573, %v1572
        %v1580 = vpack.c.bf16 %v1575, %v1574
        %v1581 = vpack.c.bf16 %v1577, %v1576
        %v1582 = vld [vmem:[%s21] sm:$0xf]
        %v1583 = vld [vmem:[%s21 + $0x4] sm:$0xf]
        %v1584 = vld [vmem:[%s21 + $0x8] sm:$0xf]
        %v1585 = vld [vmem:[%s21 + $0xc] sm:$0xf]
        %v1586 = vld [vmem:[%s23] sm:$0x1]
        %v1588 = vlaneseq
        %v1589 = vshrl.u32 %v1588, 7
        %v1590 = vsub.s32 0, %v1589
        %v1591 = vrot.slane %v1586, %v1590
        %v1597 = vunpack.c.l.b16 %v1582
        %v1598 = vunpack.c.l.b16 %v1583
        %v1599 = vunpack.c.l.b16 %v1584
        %v1600 = vunpack.c.l.b16 %v1585
        %v1601 = vpack.c.b16 %v1598, %v1597
        %v1602 = vpack.c.b16 %v1600, %v1599
        %vm1605 = vcmask 261120
        %v1607 = vsel %vm1605, %v1578, 0
        %v1610 = vsel %vm1605, %v1579, 0
        %v1613 = vsel %vm1605, %v1580, 0
        %v1616 = vsel %vm1605, %v1581, 0
        %1618 = vmatprep.subr.bf16.mxu0 0
        %1619 = vmatpush1.bf16.msra.mxu0 %v1601
        %1620 = vmatprep.subr.bf16.mxu0 0
        %1621 = vmatpush1.bf16.msra.mxu0 %v1602
        %1622 = vmatprep.subr.bf16.mxu0 0
        %1623 = vmatpush1.bf16.msra.mxu0 0
        %1624 = vmatprep.subr.bf16.mxu0 0
        %1625 = vmatpush1.bf16.msra.mxu0 0
        %1626 = vmatprep.subr.bf16.mxu0 0
        %1627 = vmatpush1.bf16.msra.mxu0 0
        %1628 = vmatprep.subr.bf16.mxu0 0
        %1629 = vmatpush1.bf16.msra.mxu0 0
        %1630 = vmatprep.subr.bf16.mxu0 0
        %1631 = vmatpush1.bf16.msra.mxu0 0
        %1632 = vmatprep.subr.bf16.mxu0 0
        %1633 = vmatpush1.bf16.msra.mxu0 0
        %1634 = vmatprep.subr.bf16.mxu0 0
        %1635 = vmatpush1.bf16.msra.mxu0 0
        %1636 = vmatprep.subr.bf16.mxu0 0
        %1637 = vmatpush1.bf16.msra.mxu0 0
        %1638 = vmatprep.subr.bf16.mxu0 0
        %1639 = vmatpush1.bf16.msra.mxu0 0
        %1640 = vmatprep.subr.bf16.mxu0 0
        %1641 = vmatpush1.bf16.msra.mxu0 0
        %1642 = vmatprep.subr.bf16.mxu0 0
        %1643 = vmatpush1.bf16.msra.mxu0 0
        %1644 = vmatprep.subr.bf16.mxu0 0
        %1645 = vmatpush1.bf16.msra.mxu0 0
        %1646 = vmatprep.subr.bf16.mxu0 0
        %1647 = vmatpush1.bf16.msra.mxu0 0
        %1648 = vmatprep.subr.bf16.mxu0 0
        %1649 = vmatpush1.bf16.msra.mxu0 0
        %1650 = vmatprep.mubr.bf16.mxu0 0
        %1651 = vmatmul.mubr.bf16.gmra.mrb[0].mxu0 %v1607
        %v1652 = vpop.f32.mrb[0].mxu0
        %v1653 = vadd.f32 %v1591, %v1652
        %v1654 = vpop.f32.mrb[0].mxu0
        %v1655 = vpop.f32.mrb[0].mxu0
        %v1656 = vadd.f32 %v1591, %v1655
        %v1657 = vpop.f32.mrb[0].mxu0
        %1658 = vmatprep.mubr.bf16.mxu0 0
        %1659 = vmatmul.mubr.bf16.gmra.mrb[0].mxu0 %v1610
        %v1660 = vpop.f32.mrb[0].mxu0
        %v1661 = vadd.f32 %v1591, %v1660
        %v1662 = vpop.f32.mrb[0].mxu0
        %v1663 = vpop.f32.mrb[0].mxu0
        %v1664 = vadd.f32 %v1591, %v1663
        %v1665 = vpop.f32.mrb[0].mxu0
        %1666 = vmatprep.mubr.bf16.mxu0 0
        %1667 = vmatmul.mubr.bf16.gmra.mrb[0].mxu0 %v1613
        %v1668 = vpop.f32.mrb[0].mxu0
        %v1669 = vadd.f32 %v1591, %v1668
        %v1670 = vpop.f32.mrb[0].mxu0
        %v1671 = vpop.f32.mrb[0].mxu0
        %v1672 = vadd.f32 %v1591, %v1671
        %v1673 = vpop.f32.mrb[0].mxu0
        %1674 = vmatprep.mubr.bf16.mxu0 0
        %1675 = vmatmul.mubr.bf16.gmra.mrb[0].mxu0 %v1616
        %v1676 = vpop.f32.mrb[0].mxu0
        %v1677 = vadd.f32 %v1591, %v1676
        %v1678 = vpop.f32.mrb[0].mxu0
        %v1679 = vpop.f32.mrb[0].mxu0
        %v1680 = vadd.f32 %v1591, %v1679
        %v1681 = vpop.f32.mrb[0].mxu0
        %1682 = vdwg.mxu0
        %v1683 = vld [vmem:[%s1088] sm:$0xff]
        %v1684 = vld [vmem:[%s1088 + $0x8] sm:$0xff]
        %v1685 = vld [vmem:[%s1088 + $0x10] sm:$0xff]
        %v1686 = vld [vmem:[%s1088 + $0x18] sm:$0xff]
        %v1687 = vld [vmem:[%s1088 + $0x20] sm:$0xff]
        %v1688 = vld [vmem:[%s1088 + $0x28] sm:$0xff]
        %v1689 = vld [vmem:[%s1088 + $0x30] sm:$0xff]
        %v1690 = vld [vmem:[%s1088 + $0x38] sm:$0xff]
        %v1691 = vld [vmem:[%s25] sm:$0x1]
        %1693 = vset.pattern.permute.xlu0 0
        %1694 = vperm.xlu0 %1693, %v1683
        %v1695 = vpop.permute.xlu0 %1694
        %1698 = vset.pattern.permute.xlu0 0
        %1699 = vperm.xlu0 %1698, %v1684
        %v1700 = vpop.permute.xlu0 %1699
        %1703 = vset.pattern.permute.xlu0 0
        %1704 = vperm.xlu0 %1703, %v1685
        %v1705 = vpop.permute.xlu0 %1704
        %1708 = vset.pattern.permute.xlu0 0
        %1709 = vperm.xlu0 %1708, %v1686
        %v1710 = vpop.permute.xlu0 %1709
        %1713 = vset.pattern.permute.xlu0 0
        %1714 = vperm.xlu0 %1713, %v1687
        %v1715 = vpop.permute.xlu0 %1714
        %1718 = vset.pattern.permute.xlu0 0
        %1719 = vperm.xlu0 %1718, %v1688
        %v1720 = vpop.permute.xlu0 %1719
        %1723 = vset.pattern.permute.xlu0 0
        %1724 = vperm.xlu0 %1723, %v1689
        %v1725 = vpop.permute.xlu0 %1724
        %1728 = vset.pattern.permute.xlu0 0
        %1729 = vperm.xlu0 %1728, %v1690
        %v1730 = vpop.permute.xlu0 %1729
        %v1733 = vlaneseq
        %v1734 = vshrl.u32 %v1733, 7
        %v1735 = vsub.s32 0, %v1734
        %v1736 = vrot.slane %v1691, %v1735
        %v1738 = vmul.f32 %v1695, %v1736
        %v1739 = vmul.f32 %v1700, %v1736
        %v1740 = vmul.f32 %v1705, %v1736
        %v1741 = vmul.f32 %v1710, %v1736
        %v1742 = vmul.f32 %v1715, %v1736
        %v1743 = vmul.f32 %v1720, %v1736
        %v1744 = vmul.f32 %v1725, %v1736
        %v1745 = vmul.f32 %v1730, %v1736
        %v1746 = vld [vmem:[%s27] sm:$0x1]
        %v1748 = vlaneseq
        %v1749 = vshrl.u32 %v1748, 7
        %v1750 = vsub.s32 0, %v1749
        %v1751 = vrot.slane %v1746, %v1750
        %v1753 = vadd.f32 %v1738, %v1751
        %v1754 = vadd.f32 %v1739, %v1751
        %v1755 = vadd.f32 %v1740, %v1751
        %v1756 = vadd.f32 %v1741, %v1751
        %v1757 = vadd.f32 %v1742, %v1751
        %v1758 = vadd.f32 %v1743, %v1751
        %v1759 = vadd.f32 %v1744, %v1751
        %v1760 = vadd.f32 %v1745, %v1751
        %v1761 = vmax.f32 %v1753, 0.0
        %v1762 = vmax.f32 %v1754, 0.0
        %v1763 = vmax.f32 %v1755, 0.0
        %v1764 = vmax.f32 %v1756, 0.0
        %v1765 = vmax.f32 %v1757, 0.0
        %v1766 = vmax.f32 %v1758, 0.0
        %v1767 = vmax.f32 %v1759, 0.0
        %v1768 = vmax.f32 %v1760, 0.0
        %v1769 = vpack.c.bf16 %v1762, %v1761
        %v1770 = vpack.c.bf16 %v1764, %v1763
        %v1771 = vpack.c.bf16 %v1766, %v1765
        %v1772 = vpack.c.bf16 %v1768, %v1767
        %v1773 = vld [vmem:[%s29] sm:$0xff]
        %v1774 = vld [vmem:[%s29 + $0x8] sm:$0xff]
        %v1775 = vld [vmem:[%s29 + $0x10] sm:$0xff]
        %v1776 = vld [vmem:[%s29 + $0x18] sm:$0xff]
        %v1777 = vld [vmem:[%s31] sm:$0x3]
        %v1779 = vlaneseq
        %v1780 = vshrl.u32 %v1779, 7
        %v1781 = vsub.s32 0, %v1780
        %v1782 = vrot.slane %v1777, %v1781
        %v1783 = vlaneseq
        %v1784 = vshrl.u32 %v1783, 7
        %v1785 = vsub.s32 1, %v1784
        %v1786 = vrot.slane %v1777, %v1785
        %v1793 = vunpack.c.l.b16 %v1773
        %v1794 = vunpack.c.h.b16 %v1773
        %v1795 = vunpack.c.l.b16 %v1774
        %v1796 = vunpack.c.h.b16 %v1774
        %v1797 = vunpack.c.l.b16 %v1775
        %v1798 = vunpack.c.h.b16 %v1775
        %v1799 = vunpack.c.l.b16 %v1776
        %v1800 = vunpack.c.h.b16 %v1776
        %v1801 = vpack.c.b16 %v1795, %v1793
        %v1802 = vpack.c.b16 %v1796, %v1794
        %v1803 = vpack.c.b16 %v1799, %v1797
        %v1804 = vpack.c.b16 %v1800, %v1798
        %v1810 = vsel %vm1605, %v1769, 0
        %v1813 = vsel %vm1605, %v1770, 0
        %v1816 = vsel %vm1605, %v1771, 0
        %v1819 = vsel %vm1605, %v1772, 0
        %1821 = vmatprep.subr.bf16.mxu0 %v1802
        %1822 = vmatpush1.bf16.msra.mxu0 %v1801
        %1823 = vmatprep.subr.bf16.mxu0 %v1804
        %1824 = vmatpush1.bf16.msra.mxu0 %v1803
        %1825 = vmatprep.subr.bf16.mxu0 0
        %1826 = vmatpush1.bf16.msra.mxu0 0
        %1827 = vmatprep.subr.bf16.mxu0 0
        %1828 = vmatpush1.bf16.msra.mxu0 0
        %1829 = vmatprep.subr.bf16.mxu0 0
        %1830 = vmatpush1.bf16.msra.mxu0 0
        %1831 = vmatprep.subr.bf16.mxu0 0
        %1832 = vmatpush1.bf16.msra.mxu0 0
        %1833 = vmatprep.subr.bf16.mxu0 0
        %1834 = vmatpush1.bf16.msra.mxu0 0
        %1835 = vmatprep.subr.bf16.mxu0 0
        %1836 = vmatpush1.bf16.msra.mxu0 0
        %1837 = vmatprep.subr.bf16.mxu0 0
        %1838 = vmatpush1.bf16.msra.mxu0 0
        %1839 = vmatprep.subr.bf16.mxu0 0
        %1840 = vmatpush1.bf16.msra.mxu0 0
        %1841 = vmatprep.subr.bf16.mxu0 0
        %1842 = vmatpush1.bf16.msra.mxu0 0
        %1843 = vmatprep.subr.bf16.mxu0 0
        %1844 = vmatpush1.bf16.msra.mxu0 0
        %1845 = vmatprep.subr.bf16.mxu0 0
        %1846 = vmatpush1.bf16.msra.mxu0 0
        %1847 = vmatprep.subr.bf16.mxu0 0
        %1848 = vmatpush1.bf16.msra.mxu0 0
        %1849 = vmatprep.subr.bf16.mxu0 0
        %1850 = vmatpush1.bf16.msra.mxu0 0
        %1851 = vmatprep.subr.bf16.mxu0 0
        %1852 = vmatpush1.bf16.msra.mxu0 0
        %1853 = vmatprep.mubr.bf16.mxu0 0
        %1854 = vmatmul.mubr.bf16.gmra.mrb[0].mxu0 %v1810
        %v1855 = vpop.f32.mrb[0].mxu0
        %v1856 = vadd.f32 %v1782, %v1855
        %v1857 = vpop.f32.mrb[0].mxu0
        %v1858 = vadd.f32 %v1786, %v1857
        %v1859 = vpop.f32.mrb[0].mxu0
        %v1860 = vadd.f32 %v1782, %v1859
        %v1861 = vpop.f32.mrb[0].mxu0
        %v1862 = vadd.f32 %v1786, %v1861
        %1863 = vmatprep.mubr.bf16.mxu0 0
        %1864 = vmatmul.mubr.bf16.gmra.mrb[0].mxu0 %v1813
        %v1865 = vpop.f32.mrb[0].mxu0
        %v1866 = vadd.f32 %v1782, %v1865
        %v1867 = vpop.f32.mrb[0].mxu0
        %v1868 = vadd.f32 %v1786, %v1867
        %v1869 = vpop.f32.mrb[0].mxu0
        %v1870 = vadd.f32 %v1782, %v1869
        %v1871 = vpop.f32.mrb[0].mxu0
        %v1872 = vadd.f32 %v1786, %v1871
        %1873 = vmatprep.mubr.bf16.mxu0 0
        %1874 = vmatmul.mubr.bf16.gmra.mrb[0].mxu0 %v1816
        %v1875 = vpop.f32.mrb[0].mxu0
        %v1876 = vadd.f32 %v1782, %v1875
        %v1877 = vpop.f32.mrb[0].mxu0
        %v1878 = vadd.f32 %v1786, %v1877
        %v1879 = vpop.f32.mrb[0].mxu0
        %v1880 = vadd.f32 %v1782, %v1879
        %v1881 = vpop.f32.mrb[0].mxu0
        %v1882 = vadd.f32 %v1786, %v1881
        %1883 = vmatprep.mubr.bf16.mxu0 0
        %1884 = vmatmul.mubr.bf16.gmra.mrb[0].mxu0 %v1819
        %v1885 = vpop.f32.mrb[0].mxu0
        %v1886 = vadd.f32 %v1782, %v1885
        %v1887 = vpop.f32.mrb[0].mxu0
        %v1888 = vadd.f32 %v1786, %v1887
        %v1889 = vpop.f32.mrb[0].mxu0
        %v1890 = vadd.f32 %v1782, %v1889
        %v1891 = vpop.f32.mrb[0].mxu0
        %v1892 = vadd.f32 %v1786, %v1891
        %1893 = vdwg.mxu0
        %v1894 = vadd.f32 %v1438, %v1856
        %v1895 = vadd.f32 %v1653, %v1858
        %v1896 = vadd.f32 %v1441, %v1860
        %v1897 = vadd.f32 %v1656, %v1862
        %v1898 = vadd.f32 %v1446, %v1866
        %v1899 = vadd.f32 %v1661, %v1868
        %v1900 = vadd.f32 %v1449, %v1870
        %v1901 = vadd.f32 %v1664, %v1872
        %v1902 = vadd.f32 %v1454, %v1876
        %v1903 = vadd.f32 %v1669, %v1878
        %v1904 = vadd.f32 %v1457, %v1880
        %v1905 = vadd.f32 %v1672, %v1882
        %v1906 = vadd.f32 %v1462, %v1886
        %v1907 = vadd.f32 %v1677, %v1888
        %v1908 = vadd.f32 %v1465, %v1890
        %v1909 = vadd.f32 %v1680, %v1892
        %v1910 = vsel %vm1605, %v1895, 0.0
        %v1911 = vadd.f32 %v1894, %v1910
        %1912 = vadd.xlane.f32.xlu0 %v1911
        %v1913 = vpop.xlane.xlu0 %1912
        %v1914 = vsel %vm1605, %v1897, 0.0
        %v1915 = vadd.f32 %v1896, %v1914
        %1916 = vadd.xlane.f32.xlu0 %v1915
        %v1917 = vpop.xlane.xlu0 %1916
        %v1918 = vsel %vm1605, %v1899, 0.0
        %v1919 = vadd.f32 %v1898, %v1918
        %1920 = vadd.xlane.f32.xlu0 %v1919
        %v1921 = vpop.xlane.xlu0 %1920
        %v1922 = vsel %vm1605, %v1901, 0.0
        %v1923 = vadd.f32 %v1900, %v1922
        %1924 = vadd.xlane.f32.xlu0 %v1923
        %v1925 = vpop.xlane.xlu0 %1924
        %v1926 = vsel %vm1605, %v1903, 0.0
        %v1927 = vadd.f32 %v1902, %v1926
        %1928 = vadd.xlane.f32.xlu0 %v1927
        %v1929 = vpop.xlane.xlu0 %1928
        %v1930 = vsel %vm1605, %v1905, 0.0
        %v1931 = vadd.f32 %v1904, %v1930
        %1932 = vadd.xlane.f32.xlu0 %v1931
        %v1933 = vpop.xlane.xlu0 %1932
        %v1934 = vsel %vm1605, %v1907, 0.0
        %v1935 = vadd.f32 %v1906, %v1934
        %1936 = vadd.xlane.f32.xlu0 %v1935
        %v1937 = vpop.xlane.xlu0 %1936
        %v1938 = vsel %vm1605, %v1909, 0.0
        %v1939 = vadd.f32 %v1908, %v1938
        %1940 = vadd.xlane.f32.xlu0 %v1939
        %v1941 = vpop.xlane.xlu0 %1940
        %v1942 = vrcp.pop 160.0
        %v1943 = vmul.f32 %v1913, %v1942
        %v1944 = vmul.f32 %v1917, %v1942
        %v1945 = vmul.f32 %v1921, %v1942
        %v1946 = vmul.f32 %v1925, %v1942
        %v1947 = vmul.f32 %v1929, %v1942
        %v1948 = vmul.f32 %v1933, %v1942
        %v1949 = vmul.f32 %v1937, %v1942
        %v1950 = vmul.f32 %v1941, %v1942
        %v1951 = vsub.f32 %v1894, %v1943
        %v1952 = vsub.f32 %v1895, %v1943
        %v1953 = vsub.f32 %v1896, %v1944
        %v1954 = vsub.f32 %v1897, %v1944
        %v1955 = vsub.f32 %v1898, %v1945
        %v1956 = vsub.f32 %v1899, %v1945
        %v1957 = vsub.f32 %v1900, %v1946
        %v1958 = vsub.f32 %v1901, %v1946
        %v1959 = vsub.f32 %v1902, %v1947
        %v1960 = vsub.f32 %v1903, %v1947
        %v1961 = vsub.f32 %v1904, %v1948
        %v1962 = vsub.f32 %v1905, %v1948
        %v1963 = vsub.f32 %v1906, %v1949
        %v1964 = vsub.f32 %v1907, %v1949
        %v1965 = vsub.f32 %v1908, %v1950
        %v1966 = vsub.f32 %v1909, %v1950
        %v1967 = vmul.f32 %v1951, %v1951
        %v1968 = vmul.f32 %v1952, %v1952
        %v1969 = vmul.f32 %v1953, %v1953
        %v1970 = vmul.f32 %v1954, %v1954
        %v1971 = vmul.f32 %v1955, %v1955
        %v1972 = vmul.f32 %v1956, %v1956
        %v1973 = vmul.f32 %v1957, %v1957
        %v1974 = vmul.f32 %v1958, %v1958
        %v1975 = vmul.f32 %v1959, %v1959
        %v1976 = vmul.f32 %v1960, %v1960
        %v1977 = vmul.f32 %v1961, %v1961
        %v1978 = vmul.f32 %v1962, %v1962
        %v1979 = vmul.f32 %v1963, %v1963
        %v1980 = vmul.f32 %v1964, %v1964
        %v1981 = vmul.f32 %v1965, %v1965
        %v1982 = vmul.f32 %v1966, %v1966
        %v1983 = vsel %vm1605, %v1968, 0.0
        %v1984 = vadd.f32 %v1967, %v1983
        %1985 = vadd.xlane.f32.xlu0 %v1984
        %v1986 = vpop.xlane.xlu0 %1985
        %v1987 = vsel %vm1605, %v1970, 0.0
        %v1988 = vadd.f32 %v1969, %v1987
        %1989 = vadd.xlane.f32.xlu0 %v1988
        %v1990 = vpop.xlane.xlu0 %1989
        %v1991 = vsel %vm1605, %v1972, 0.0
        %v1992 = vadd.f32 %v1971, %v1991
        %1993 = vadd.xlane.f32.xlu0 %v1992
        %v1994 = vpop.xlane.xlu0 %1993
        %v1995 = vsel %vm1605, %v1974, 0.0
        %v1996 = vadd.f32 %v1973, %v1995
        %1997 = vadd.xlane.f32.xlu0 %v1996
        %v1998 = vpop.xlane.xlu0 %1997
        %v1999 = vsel %vm1605, %v1976, 0.0
        %v2000 = vadd.f32 %v1975, %v1999
        %2001 = vadd.xlane.f32.xlu0 %v2000
        %v2002 = vpop.xlane.xlu0 %2001
        %v2003 = vsel %vm1605, %v1978, 0.0
        %v2004 = vadd.f32 %v1977, %v2003
        %2005 = vadd.xlane.f32.xlu0 %v2004
        %v2006 = vpop.xlane.xlu0 %2005
        %v2007 = vsel %vm1605, %v1980, 0.0
        %v2008 = vadd.f32 %v1979, %v2007
        %2009 = vadd.xlane.f32.xlu0 %v2008
        %v2010 = vpop.xlane.xlu0 %2009
        %v2011 = vsel %vm1605, %v1982, 0.0
        %v2012 = vadd.f32 %v1981, %v2011
        %2013 = vadd.xlane.f32.xlu0 %v2012
        %v2014 = vpop.xlane.xlu0 %2013
        %v2015 = vmul.f32 %v1986, %v1942
        %v2016 = vmul.f32 %v1990, %v1942
        %v2017 = vmul.f32 %v1994, %v1942
        %v2018 = vmul.f32 %v1998, %v1942
        %v2019 = vmul.f32 %v2002, %v1942
        %v2020 = vmul.f32 %v2006, %v1942
        %v2021 = vmul.f32 %v2010, %v1942
        %v2022 = vmul.f32 %v2014, %v1942
        %v2023 = vadd.f32 %v2015, 1e-05
        %v2024 = vadd.f32 %v2016, 1e-05
        %v2025 = vadd.f32 %v2017, 1e-05
        %v2026 = vadd.f32 %v2018, 1e-05
        %v2027 = vadd.f32 %v2019, 1e-05
        %v2028 = vadd.f32 %v2020, 1e-05
        %v2029 = vadd.f32 %v2021, 1e-05
        %v2030 = vadd.f32 %v2022, 1e-05
        %v2031 = vrsqrt.pop %v2023
        %v2032 = vrsqrt.pop %v2024
        %v2033 = vrsqrt.pop %v2025
        %v2034 = vrsqrt.pop %v2026
        %v2035 = vrsqrt.pop %v2027
        %v2036 = vrsqrt.pop %v2028
        %v2037 = vrsqrt.pop %v2029
        %v2038 = vrsqrt.pop %v2030
        %v2039 = vmul.f32 %v1951, %v2031
        %v2040 = vmul.f32 %v1952, %v2031
        %v2041 = vmul.f32 %v1953, %v2032
        %v2042 = vmul.f32 %v1954, %v2032
        %v2043 = vmul.f32 %v1955, %v2033
        %v2044 = vmul.f32 %v1956, %v2033
        %v2045 = vmul.f32 %v1957, %v2034
        %v2046 = vmul.f32 %v1958, %v2034
        %v2047 = vmul.f32 %v1959, %v2035
        %v2048 = vmul.f32 %v1960, %v2035
        %v2049 = vmul.f32 %v1961, %v2036
        %v2050 = vmul.f32 %v1962, %v2036
        %v2051 = vmul.f32 %v1963, %v2037
        %v2052 = vmul.f32 %v1964, %v2037
        %v2053 = vmul.f32 %v1965, %v2038
        %v2054 = vmul.f32 %v1966, %v2038
        %v2055 = vld [vmem:[%s33] sm:$0x3]
        %v2057 = vlaneseq
        %v2058 = vshrl.u32 %v2057, 7
        %v2059 = vsub.s32 0, %v2058
        %v2060 = vrot.slane %v2055, %v2059
        %v2061 = vlaneseq
        %v2062 = vshrl.u32 %v2061, 7
        %v2063 = vsub.s32 1, %v2062
        %v2064 = vrot.slane %v2055, %v2063
        %v2067 = vmul.f32 %v2039, %v2060
        %v2068 = vmul.f32 %v2040, %v2064
        %v2069 = vmul.f32 %v2041, %v2060
        %v2070 = vmul.f32 %v2042, %v2064
        %v2071 = vmul.f32 %v2043, %v2060
        %v2072 = vmul.f32 %v2044, %v2064
        %v2073 = vmul.f32 %v2045, %v2060
        %v2074 = vmul.f32 %v2046, %v2064
        %v2075 = vmul.f32 %v2047, %v2060
        %v2076 = vmul.f32 %v2048, %v2064
        %v2077 = vmul.f32 %v2049, %v2060
        %v2078 = vmul.f32 %v2050, %v2064
        %v2079 = vmul.f32 %v2051, %v2060
        %v2080 = vmul.f32 %v2052, %v2064
        %v2081 = vmul.f32 %v2053, %v2060
        %v2082 = vmul.f32 %v2054, %v2064
        %v2083 = vld [vmem:[%s35] sm:$0x3]
        %v2085 = vlaneseq
        %v2086 = vshrl.u32 %v2085, 7
        %v2087 = vsub.s32 0, %v2086
        %v2088 = vrot.slane %v2083, %v2087
        %v2089 = vlaneseq
        %v2090 = vshrl.u32 %v2089, 7
        %v2091 = vsub.s32 1, %v2090
        %v2092 = vrot.slane %v2083, %v2091
        %v2095 = vadd.f32 %v2067, %v2088
        %v2096 = vadd.f32 %v2068, %v2092
        %v2097 = vadd.f32 %v2069, %v2088
        %v2098 = vadd.f32 %v2070, %v2092
        %v2099 = vadd.f32 %v2071, %v2088
        %v2100 = vadd.f32 %v2072, %v2092
        %v2101 = vadd.f32 %v2073, %v2088
        %v2102 = vadd.f32 %v2074, %v2092
        %v2103 = vadd.f32 %v2075, %v2088
        %v2104 = vadd.f32 %v2076, %v2092
        %v2105 = vadd.f32 %v2077, %v2088
        %v2106 = vadd.f32 %v2078, %v2092
        %v2107 = vadd.f32 %v2079, %v2088
        %v2108 = vadd.f32 %v2080, %v2092
        %v2109 = vadd.f32 %v2081, %v2088
        %v2110 = vadd.f32 %v2082, %v2092
        %v2111 = vpack.c.bf16 %v2097, %v2095
        %v2112 = vpack.c.bf16 %v2098, %v2096
        %v2113 = vpack.c.bf16 %v2101, %v2099
        %v2114 = vpack.c.bf16 %v2102, %v2100
        %v2115 = vpack.c.bf16 %v2105, %v2103
        %v2116 = vpack.c.bf16 %v2106, %v2104
        %v2117 = vpack.c.bf16 %v2109, %v2107
        %v2118 = vpack.c.bf16 %v2110, %v2108
        %v2119 = vld [vmem:[%s7] sm:$0xff]
        %v2120 = vld [vmem:[%s7 + $0x8] sm:$0xff]
        %v2121 = vld [vmem:[%s7 + $0x10] sm:$0xff]
        %v2122 = vld [vmem:[%s7 + $0x18] sm:$0xff]
        %v2123 = vld [vmem:[%s7 + $0x20] sm:$0xff]
        %v2124 = vld [vmem:[%s7 + $0x28] sm:$0xff]
        %v2125 = vld [vmem:[%s7 + $0x30] sm:$0xff]
        %v2126 = vld [vmem:[%s7 + $0x38] sm:$0xff]
        %v2127 = vld [vmem:[%s37] sm:$0xf]
        %v2128 = vld [vmem:[%s37 + $0x4] sm:$0xf]
        %v2129 = vld [vmem:[%s37 + $0x8] sm:$0xf]
        %v2130 = vld [vmem:[%s37 + $0xc] sm:$0xf]
        %v2131 = vld [vmem:[%s37 + $0x10] sm:$0xf]
        %v2132 = vld [vmem:[%s37 + $0x14] sm:$0xf]
        %v2133 = vld [vmem:[%s37 + $0x18] sm:$0xf]
        %v2134 = vld [vmem:[%s37 + $0x1c] sm:$0xf]
        %v2135 = vld [vmem:[%s37 + $0x20] sm:$0xf]
        %v2136 = vld [vmem:[%s37 + $0x24] sm:$0xf]
        %v2137 = vld [vmem:[%s37 + $0x28] sm:$0xf]
        %v2138 = vld [vmem:[%s37 + $0x2c] sm:$0xf]
        %v2139 = vld [vmem:[%s37 + $0x30] sm:$0xf]
        %v2140 = vld [vmem:[%s37 + $0x34] sm:$0xf]
        %v2141 = vld [vmem:[%s37 + $0x38] sm:$0xf]
        %v2142 = vld [vmem:[%s37 + $0x3c] sm:$0xf]
        %v2143 = vld [vmem:[%s37 + $0x40] sm:$0xf]
        %v2144 = vld [vmem:[%s37 + $0x44] sm:$0xf]
        %v2145 = vld [vmem:[%s37 + $0x48] sm:$0xf]
        %v2146 = vld [vmem:[%s37 + $0x4c] sm:$0xf]
        %v2147 = vld [vmem:[%s39] sm:$0x1]
        %v2149 = vlaneseq
        %v2150 = vshrl.u32 %v2149, 7
        %v2151 = vsub.s32 0, %v2150
        %v2152 = vrot.slane %v2147, %v2151
        %v2174 = vunpack.c.l.b16 %v2127
        %v2175 = vunpack.c.l.b16 %v2128
        %v2176 = vunpack.c.l.b16 %v2129
        %v2177 = vunpack.c.l.b16 %v2130
        %v2178 = vunpack.c.l.b16 %v2131
        %v2179 = vunpack.c.l.b16 %v2132
        %v2180 = vunpack.c.l.b16 %v2133
        %v2181 = vunpack.c.l.b16 %v2134
        %v2182 = vunpack.c.l.b16 %v2135
        %v2183 = vunpack.c.l.b16 %v2136
        %v2184 = vunpack.c.l.b16 %v2137
        %v2185 = vunpack.c.l.b16 %v2138
        %v2186 = vunpack.c.l.b16 %v2139
        %v2187 = vunpack.c.l.b16 %v2140
        %v2188 = vunpack.c.l.b16 %v2141
        %v2189 = vunpack.c.l.b16 %v2142
        %v2190 = vunpack.c.l.b16 %v2143
        %v2191 = vunpack.c.l.b16 %v2144
        %v2192 = vunpack.c.l.b16 %v2145
        %v2193 = vunpack.c.l.b16 %v2146
        %v2194 = vpack.c.b16 %v2175, %v2174
        %v2195 = vpack.c.b16 %v2177, %v2176
        %v2196 = vpack.c.b16 %v2179, %v2178
        %v2197 = vpack.c.b16 %v2181, %v2180
        %v2198 = vpack.c.b16 %v2183, %v2182
        %v2199 = vpack.c.b16 %v2185, %v2184
        %v2200 = vpack.c.b16 %v2187, %v2186
        %v2201 = vpack.c.b16 %v2189, %v2188
        %v2202 = vpack.c.b16 %v2191, %v2190
        %v2203 = vpack.c.b16 %v2193, %v2192
        %v2215 = vsel %vm1605, %v2112, 0
        %v2218 = vsel %vm1605, %v2114, 0
        %v2221 = vsel %vm1605, %v2116, 0
        %v2224 = vsel %vm1605, %v2118, 0
        %2226 = vmatprep.subr.bf16.mxu0 0
        %2227 = vmatpush1.bf16.msra.mxu0 %v2194
        %2228 = vmatprep.subr.bf16.mxu0 0
        %2229 = vmatpush1.bf16.msra.mxu0 %v2195
        %2230 = vmatprep.subr.bf16.mxu0 0
        %2231 = vmatpush1.bf16.msra.mxu0 %v2196
        %2232 = vmatprep.subr.bf16.mxu0 0
        %2233 = vmatpush1.bf16.msra.mxu0 %v2197
        %2234 = vmatprep.subr.bf16.mxu0 0
        %2235 = vmatpush1.bf16.msra.mxu0 %v2198
        %2236 = vmatprep.subr.bf16.mxu0 0
        %2237 = vmatpush1.bf16.msra.mxu0 %v2199
        %2238 = vmatprep.subr.bf16.mxu0 0
        %2239 = vmatpush1.bf16.msra.mxu0 %v2200
        %2240 = vmatprep.subr.bf16.mxu0 0
        %2241 = vmatpush1.bf16.msra.mxu0 %v2201
        %2242 = vmatprep.subr.bf16.mxu0 0
        %2243 = vmatpush1.bf16.msra.mxu0 %v2202
        %2244 = vmatprep.subr.bf16.mxu0 0
        %2245 = vmatpush1.bf16.msra.mxu0 %v2203
        %2246 = vmatprep.subr.bf16.mxu0 0
        %2247 = vmatpush1.bf16.msra.mxu0 0
        %2248 = vmatprep.subr.bf16.mxu0 0
        %2249 = vmatpush1.bf16.msra.mxu0 0
        %2250 = vmatprep.subr.bf16.mxu0 0
        %2251 = vmatpush1.bf16.msra.mxu0 0
        %2252 = vmatprep.subr.bf16.mxu0 0
        %2253 = vmatpush1.bf16.msra.mxu0 0
        %2254 = vmatprep.subr.bf16.mxu0 0
        %2255 = vmatpush1.bf16.msra.mxu0 0
        %2256 = vmatprep.subr.bf16.mxu0 0
        %2257 = vmatpush1.bf16.msra.mxu0 0
        %2258 = vmatprep.mubr.bf16.mxu0 %v2215
        %2259 = vmatmul.mubr.bf16.gmra.mrb[0].mxu0 %v2111
        %v2260 = vpop.f32.mrb[0].mxu0
        %v2261 = vadd.f32 %v2152, %v2260
        %v2262 = vpop.f32.mrb[0].mxu0
        %v2263 = vpop.f32.mrb[0].mxu0
        %v2264 = vadd.f32 %v2152, %v2263
        %v2265 = vpop.f32.mrb[0].mxu0
        %2266 = vmatprep.mubr.bf16.mxu0 %v2218
        %2267 = vmatmul.mubr.bf16.gmra.mrb[0].mxu0 %v2113
        %v2268 = vpop.f32.mrb[0].mxu0
        %v2269 = vadd.f32 %v2152, %v2268
        %v2270 = vpop.f32.mrb[0].mxu0
        %v2271 = vpop.f32.mrb[0].mxu0
        %v2272 = vadd.f32 %v2152, %v2271
        %v2273 = vpop.f32.mrb[0].mxu0
        %2274 = vmatprep.mubr.bf16.mxu0 %v2221
        %2275 = vmatmul.mubr.bf16.gmra.mrb[0].mxu0 %v2115
        %v2276 = vpop.f32.mrb[0].mxu0
        %v2277 = vadd.f32 %v2152, %v2276
        %v2278 = vpop.f32.mrb[0].mxu0
        %v2279 = vpop.f32.mrb[0].mxu0
        %v2280 = vadd.f32 %v2152, %v2279
        %v2281 = vpop.f32.mrb[0].mxu0
        %2282 = vmatprep.mubr.bf16.mxu0 %v2224
        %2283 = vmatmul.mubr.bf16.gmra.mrb[0].mxu0 %v2117
        %v2284 = vpop.f32.mrb[0].mxu0
        %v2285 = vadd.f32 %v2152, %v2284
        %v2286 = vpop.f32.mrb[0].mxu0
        %v2287 = vpop.f32.mrb[0].mxu0
        %v2288 = vadd.f32 %v2152, %v2287
        %v2289 = vpop.f32.mrb[0].mxu0
        %2290 = vdwg.mxu0
        %v2291 = vmul.f32 %v2261, 0.15811388
        %v2292 = vmul.f32 %v2264, 0.15811388
        %v2293 = vmul.f32 %v2269, 0.15811388
        %v2294 = vmul.f32 %v2272, 0.15811388
        %v2295 = vmul.f32 %v2277, 0.15811388
        %v2296 = vmul.f32 %v2280, 0.15811388
        %v2297 = vmul.f32 %v2285, 0.15811388
        %v2298 = vmul.f32 %v2288, 0.15811388
        %v2299 = vld [vmem:[%s41] sm:$0xf]
        %v2300 = vld [vmem:[%s41 + $0x4] sm:$0xf]
        %v2301 = vld [vmem:[%s41 + $0x8] sm:$0xf]
        %v2302 = vld [vmem:[%s41 + $0xc] sm:$0xf]
        %v2303 = vld [vmem:[%s41 + $0x10] sm:$0xf]
        %v2304 = vld [vmem:[%s41 + $0x14] sm:$0xf]
        %v2305 = vld [vmem:[%s41 + $0x18] sm:$0xf]
        %v2306 = vld [vmem:[%s41 + $0x1c] sm:$0xf]
        %v2307 = vld [vmem:[%s41 + $0x20] sm:$0xf]
        %v2308 = vld [vmem:[%s41 + $0x24] sm:$0xf]
        %v2309 = vld [vmem:[%s41 + $0x28] sm:$0xf]
        %v2310 = vld [vmem:[%s41 + $0x2c] sm:$0xf]
        %v2311 = vld [vmem:[%s41 + $0x30] sm:$0xf]
        %v2312 = vld [vmem:[%s41 + $0x34] sm:$0xf]
        %v2313 = vld [vmem:[%s41 + $0x38] sm:$0xf]
        %v2314 = vld [vmem:[%s41 + $0x3c] sm:$0xf]
        %v2315 = vld [vmem:[%s41 + $0x40] sm:$0xf]
        %v2316 = vld [vmem:[%s41 + $0x44] sm:$0xf]
        %v2317 = vld [vmem:[%s41 + $0x48] sm:$0xf]
        %v2318 = vld [vmem:[%s41 + $0x4c] sm:$0xf]
        %v2319 = vld [vmem:[%s43] sm:$0x1]
        %v2321 = vlaneseq
        %v2322 = vshrl.u32 %v2321, 7
        %v2323 = vsub.s32 0, %v2322
        %v2324 = vrot.slane %v2319, %v2323
        %v2346 = vunpack.c.l.b16 %v2299
        %v2347 = vunpack.c.l.b16 %v2300
        %v2348 = vunpack.c.l.b16 %v2301
        %v2349 = vunpack.c.l.b16 %v2302
        %v2350 = vunpack.c.l.b16 %v2303
        %v2351 = vunpack.c.l.b16 %v2304
        %v2352 = vunpack.c.l.b16 %v2305
        %v2353 = vunpack.c.l.b16 %v2306
        %v2354 = vunpack.c.l.b16 %v2307
        %v2355 = vunpack.c.l.b16 %v2308
        %v2356 = vunpack.c.l.b16 %v2309
        %v2357 = vunpack.c.l.b16 %v2310
        %v2358 = vunpack.c.l.b16 %v2311
        %v2359 = vunpack.c.l.b16 %v2312
        %v2360 = vunpack.c.l.b16 %v2313
        %v2361 = vunpack.c.l.b16 %v2314
        %v2362 = vunpack.c.l.b16 %v2315
        %v2363 = vunpack.c.l.b16 %v2316
        %v2364 = vunpack.c.l.b16 %v2317
        %v2365 = vunpack.c.l.b16 %v2318
        %v2366 = vpack.c.b16 %v2347, %v2346
        %v2367 = vpack.c.b16 %v2349, %v2348
        %v2368 = vpack.c.b16 %v2351, %v2350
        %v2369 = vpack.c.b16 %v2353, %v2352
        %v2370 = vpack.c.b16 %v2355, %v2354
        %v2371 = vpack.c.b16 %v2357, %v2356
        %v2372 = vpack.c.b16 %v2359, %v2358
        %v2373 = vpack.c.b16 %v2361, %v2360
        %v2374 = vpack.c.b16 %v2363, %v2362
        %v2375 = vpack.c.b16 %v2365, %v2364
        %2386 = vmatprep.subr.bf16.mxu0 0
        %2387 = vmatpush1.bf16.msra.mxu0 %v2366
        %2388 = vmatprep.subr.bf16.mxu0 0
        %2389 = vmatpush1.bf16.msra.mxu0 %v2367
        %2390 = vmatprep.subr.bf16.mxu0 0
        %2391 = vmatpush1.bf16.msra.mxu0 %v2368
        %2392 = vmatprep.subr.bf16.mxu0 0
        %2393 = vmatpush1.bf16.msra.mxu0 %v2369
        %2394 = vmatprep.subr.bf16.mxu0 0
        %2395 = vmatpush1.bf16.msra.mxu0 %v2370
        %2396 = vmatprep.subr.bf16.mxu0 0
        %2397 = vmatpush1.bf16.msra.mxu0 %v2371
        %2398 = vmatprep.subr.bf16.mxu0 0
        %2399 = vmatpush1.bf16.msra.mxu0 %v2372
        %2400 = vmatprep.subr.bf16.mxu0 0
        %2401 = vmatpush1.bf16.msra.mxu0 %v2373
        %2402 = vmatprep.subr.bf16.mxu0 0
        %2403 = vmatpush1.bf16.msra.mxu0 %v2374
        %2404 = vmatprep.subr.bf16.mxu0 0
        %2405 = vmatpush1.bf16.msra.mxu0 %v2375
        %2406 = vmatprep.subr.bf16.mxu0 0
        %2407 = vmatpush1.bf16.msra.mxu0 0
        %2408 = vmatprep.subr.bf16.mxu0 0
        %2409 = vmatpush1.bf16.msra.mxu0 0
        %2410 = vmatprep.subr.bf16.mxu0 0
        %2411 = vmatpush1.bf16.msra.mxu0 0
        %2412 = vmatprep.subr.bf16.mxu0 0
        %2413 = vmatpush1.bf16.msra.mxu0 0
        %2414 = vmatprep.subr.bf16.mxu0 0
        %2415 = vmatpush1.bf16.msra.mxu0 0
        %2416 = vmatprep.subr.bf16.mxu0 0
        %2417 = vmatpush1.bf16.msra.mxu0 0
        %2418 = vmatprep.mubr.bf16.mxu0 %v2215
        %2419 = vmatmul.mubr.bf16.gmra.mrb[0].mxu0 %v2111
        %v2420 = vpop.f32.mrb[0].mxu0
        %v2421 = vadd.f32 %v2324, %v2420
        %v2422 = vpop.f32.mrb[0].mxu0
        %v2423 = vpop.f32.mrb[0].mxu0
        %v2424 = vadd.f32 %v2324, %v2423
        %v2425 = vpop.f32.mrb[0].mxu0
        %2426 = vmatprep.mubr.bf16.mxu0 %v2218
        %2427 = vmatmul.mubr.bf16.gmra.mrb[0].mxu0 %v2113
        %v2428 = vpop.f32.mrb[0].mxu0
        %v2429 = vadd.f32 %v2324, %v2428
        %v2430 = vpop.f32.mrb[0].mxu0
        %v2431 = vpop.f32.mrb[0].mxu0
        %v2432 = vadd.f32 %v2324, %v2431
        %v2433 = vpop.f32.mrb[0].mxu0
        %2434 = vmatprep.mubr.bf16.mxu0 %v2221
        %2435 = vmatmul.mubr.bf16.gmra.mrb[0].mxu0 %v2115
        %v2436 = vpop.f32.mrb[0].mxu0
        %v2437 = vadd.f32 %v2324, %v2436
        %v2438 = vpop.f32.mrb[0].mxu0
        %v2439 = vpop.f32.mrb[0].mxu0
        %v2440 = vadd.f32 %v2324, %v2439
        %v2441 = vpop.f32.mrb[0].mxu0
        %2442 = vmatprep.mubr.bf16.mxu0 %v2224
        %2443 = vmatmul.mubr.bf16.gmra.mrb[0].mxu0 %v2117
        %v2444 = vpop.f32.mrb[0].mxu0
        %v2445 = vadd.f32 %v2324, %v2444
        %v2446 = vpop.f32.mrb[0].mxu0
        %v2447 = vpop.f32.mrb[0].mxu0
        %v2448 = vadd.f32 %v2324, %v2447
        %v2449 = vpop.f32.mrb[0].mxu0
        %2450 = vdwg.mxu0
        %v2451 = vld [vmem:[%s45] sm:$0xf]
        %v2452 = vld [vmem:[%s45 + $0x4] sm:$0xf]
        %v2453 = vld [vmem:[%s45 + $0x8] sm:$0xf]
        %v2454 = vld [vmem:[%s45 + $0xc] sm:$0xf]
        %v2455 = vld [vmem:[%s45 + $0x10] sm:$0xf]
        %v2456 = vld [vmem:[%s45 + $0x14] sm:$0xf]
        %v2457 = vld [vmem:[%s45 + $0x18] sm:$0xf]
        %v2458 = vld [vmem:[%s45 + $0x1c] sm:$0xf]
        %v2459 = vld [vmem:[%s45 + $0x20] sm:$0xf]
        %v2460 = vld [vmem:[%s45 + $0x24] sm:$0xf]
        %v2461 = vld [vmem:[%s45 + $0x28] sm:$0xf]
        %v2462 = vld [vmem:[%s45 + $0x2c] sm:$0xf]
        %v2463 = vld [vmem:[%s45 + $0x30] sm:$0xf]
        %v2464 = vld [vmem:[%s45 + $0x34] sm:$0xf]
        %v2465 = vld [vmem:[%s45 + $0x38] sm:$0xf]
        %v2466 = vld [vmem:[%s45 + $0x3c] sm:$0xf]
        %v2467 = vld [vmem:[%s45 + $0x40] sm:$0xf]
        %v2468 = vld [vmem:[%s45 + $0x44] sm:$0xf]
        %v2469 = vld [vmem:[%s45 + $0x48] sm:$0xf]
        %v2470 = vld [vmem:[%s45 + $0x4c] sm:$0xf]
        %v2471 = vld [vmem:[%s47] sm:$0x1]
        %v2473 = vlaneseq
        %v2474 = vshrl.u32 %v2473, 7
        %v2475 = vsub.s32 0, %v2474
        %v2476 = vrot.slane %v2471, %v2475
        %v2498 = vunpack.c.l.b16 %v2451
        %v2499 = vunpack.c.l.b16 %v2452
        %v2500 = vunpack.c.l.b16 %v2453
        %v2501 = vunpack.c.l.b16 %v2454
        %v2502 = vunpack.c.l.b16 %v2455
        %v2503 = vunpack.c.l.b16 %v2456
        %v2504 = vunpack.c.l.b16 %v2457
        %v2505 = vunpack.c.l.b16 %v2458
        %v2506 = vunpack.c.l.b16 %v2459
        %v2507 = vunpack.c.l.b16 %v2460
        %v2508 = vunpack.c.l.b16 %v2461
        %v2509 = vunpack.c.l.b16 %v2462
        %v2510 = vunpack.c.l.b16 %v2463
        %v2511 = vunpack.c.l.b16 %v2464
        %v2512 = vunpack.c.l.b16 %v2465
        %v2513 = vunpack.c.l.b16 %v2466
        %v2514 = vunpack.c.l.b16 %v2467
        %v2515 = vunpack.c.l.b16 %v2468
        %v2516 = vunpack.c.l.b16 %v2469
        %v2517 = vunpack.c.l.b16 %v2470
        %v2518 = vpack.c.b16 %v2499, %v2498
        %v2519 = vpack.c.b16 %v2501, %v2500
        %v2520 = vpack.c.b16 %v2503, %v2502
        %v2521 = vpack.c.b16 %v2505, %v2504
        %v2522 = vpack.c.b16 %v2507, %v2506
        %v2523 = vpack.c.b16 %v2509, %v2508
        %v2524 = vpack.c.b16 %v2511, %v2510
        %v2525 = vpack.c.b16 %v2513, %v2512
        %v2526 = vpack.c.b16 %v2515, %v2514
        %v2527 = vpack.c.b16 %v2517, %v2516
        %2538 = vmatprep.subr.bf16.mxu0 0
        %2539 = vmatpush1.bf16.msra.mxu0 %v2518
        %2540 = vmatprep.subr.bf16.mxu0 0
        %2541 = vmatpush1.bf16.msra.mxu0 %v2519
        %2542 = vmatprep.subr.bf16.mxu0 0
        %2543 = vmatpush1.bf16.msra.mxu0 %v2520
        %2544 = vmatprep.subr.bf16.mxu0 0
        %2545 = vmatpush1.bf16.msra.mxu0 %v2521
        %2546 = vmatprep.subr.bf16.mxu0 0
        %2547 = vmatpush1.bf16.msra.mxu0 %v2522
        %2548 = vmatprep.subr.bf16.mxu0 0
        %2549 = vmatpush1.bf16.msra.mxu0 %v2523
        %2550 = vmatprep.subr.bf16.mxu0 0
        %2551 = vmatpush1.bf16.msra.mxu0 %v2524
        %2552 = vmatprep.subr.bf16.mxu0 0
        %2553 = vmatpush1.bf16.msra.mxu0 %v2525
        %2554 = vmatprep.subr.bf16.mxu0 0
        %2555 = vmatpush1.bf16.msra.mxu0 %v2526
        %2556 = vmatprep.subr.bf16.mxu0 0
        %2557 = vmatpush1.bf16.msra.mxu0 %v2527
        %2558 = vmatprep.subr.bf16.mxu0 0
        %2559 = vmatpush1.bf16.msra.mxu0 0
        %2560 = vmatprep.subr.bf16.mxu0 0
        %2561 = vmatpush1.bf16.msra.mxu0 0
        %2562 = vmatprep.subr.bf16.mxu0 0
        %2563 = vmatpush1.bf16.msra.mxu0 0
        %2564 = vmatprep.subr.bf16.mxu0 0
        %2565 = vmatpush1.bf16.msra.mxu0 0
        %2566 = vmatprep.subr.bf16.mxu0 0
        %2567 = vmatpush1.bf16.msra.mxu0 0
        %2568 = vmatprep.subr.bf16.mxu0 0
        %2569 = vmatpush1.bf16.msra.mxu0 0
        %2570 = vmatprep.mubr.bf16.mxu0 %v2215
        %2571 = vmatmul.mubr.bf16.gmra.mrb[0].mxu0 %v2111
        %v2572 = vpop.f32.mrb[0].mxu0
        %v2573 = vadd.f32 %v2476, %v2572
        %v2574 = vpop.f32.mrb[0].mxu0
        %v2575 = vpop.f32.mrb[0].mxu0
        %v2576 = vadd.f32 %v2476, %v2575
        %v2577 = vpop.f32.mrb[0].mxu0
        %2578 = vmatprep.mubr.bf16.mxu0 %v2218
        %2579 = vmatmul.mubr.bf16.gmra.mrb[0].mxu0 %v2113
        %v2580 = vpop.f32.mrb[0].mxu0
        %v2581 = vadd.f32 %v2476, %v2580
        %v2582 = vpop.f32.mrb[0].mxu0
        %v2583 = vpop.f32.mrb[0].mxu0
        %v2584 = vadd.f32 %v2476, %v2583
        %v2585 = vpop.f32.mrb[0].mxu0
        %2586 = vmatprep.mubr.bf16.mxu0 %v2221
        %2587 = vmatmul.mubr.bf16.gmra.mrb[0].mxu0 %v2115
        %v2588 = vpop.f32.mrb[0].mxu0
        %v2589 = vadd.f32 %v2476, %v2588
        %v2590 = vpop.f32.mrb[0].mxu0
        %v2591 = vpop.f32.mrb[0].mxu0
        %v2592 = vadd.f32 %v2476, %v2591
        %v2593 = vpop.f32.mrb[0].mxu0
        %2594 = vmatprep.mubr.bf16.mxu0 %v2224
        %2595 = vmatmul.mubr.bf16.gmra.mrb[0].mxu0 %v2117
        %v2596 = vpop.f32.mrb[0].mxu0
        %v2597 = vadd.f32 %v2476, %v2596
        %v2598 = vpop.f32.mrb[0].mxu0
        %v2599 = vpop.f32.mrb[0].mxu0
        %v2600 = vadd.f32 %v2476, %v2599
        %v2601 = vpop.f32.mrb[0].mxu0
        %2602 = vdwg.mxu0
        %v2603 = vpack.c.bf16 %v2292, %v2291
        %v2604 = vpack.c.bf16 %v2294, %v2293
        %v2605 = vpack.c.bf16 %v2296, %v2295
        %v2606 = vpack.c.bf16 %v2298, %v2297
        %v2607 = vpack.c.bf16 %v2424, %v2421
        %v2608 = vpack.c.bf16 %v2432, %v2429
        %v2609 = vpack.c.bf16 %v2440, %v2437
        %v2610 = vpack.c.bf16 %v2448, %v2445
        %vm2611 = vcmask 326656
        %v2613 = vsel %vm2611, %v2603, 0
        %v2616 = vsel %vm2611, %v2604, 0
        %v2619 = vsel %vm2611, %v2605, 0
        %v2622 = vsel %vm2611, %v2606, 0
        %v2625 = vsel %vm2611, %v2607, 0
        %v2628 = vsel %vm2611, %v2608, 0
        %v2631 = vsel %vm2611, %v2609, 0
        %v2634 = vsel %vm2611, %v2610, 0
        %2636 = vmatprep.subr.bf16.mxu0 0
        %2637 = vmatpush1.bf16.xpose.msra.mxu0 %v2625
        %2638 = vmatprep.subr.bf16.mxu0 0
        %2639 = vmatpush1.bf16.xpose.msra.mxu0 %v2628
        %2640 = vmatprep.subr.bf16.mxu0 0
        %2641 = vmatpush1.bf16.xpose.msra.mxu0 %v2631
        %2642 = vmatprep.subr.bf16.mxu0 0
        %2643 = vmatpush1.bf16.xpose.msra.mxu0 %v2634
        %2644 = vmatprep.subr.bf16.mxu0 0
        %2645 = vmatpush1.bf16.xpose.msra.mxu0 0
        %2646 = vmatprep.subr.bf16.mxu0 0
        %2647 = vmatpush1.bf16.xpose.msra.mxu0 0
        %2648 = vmatprep.subr.bf16.mxu0 0
        %2649 = vmatpush1.bf16.xpose.msra.mxu0 0
        %2650 = vmatprep.subr.bf16.mxu0 0
        %2651 = vmatpush1.bf16.xpose.msra.mxu0 0
        %2652 = vmatprep.subr.bf16.mxu0 0
        %2653 = vmatpush1.bf16.xpose.msra.mxu0 0
        %2654 = vmatprep.subr.bf16.mxu0 0
        %2655 = vmatpush1.bf16.xpose.msra.mxu0 0
        %2656 = vmatprep.subr.bf16.mxu0 0
        %2657 = vmatpush1.bf16.xpose.msra.mxu0 0
        %2658 = vmatprep.subr.bf16.mxu0 0
        %2659 = vmatpush1.bf16.xpose.msra.mxu0 0
        %2660 = vmatprep.subr.bf16.mxu0 0
        %2661 = vmatpush1.bf16.xpose.msra.mxu0 0
        %2662 = vmatprep.subr.bf16.mxu0 0
        %2663 = vmatpush1.bf16.xpose.msra.mxu0 0
        %2664 = vmatprep.subr.bf16.mxu0 0
        %2665 = vmatpush1.bf16.xpose.msra.mxu0 0
        %2666 = vmatprep.subr.bf16.mxu0 0
        %2667 = vmatpush1.bf16.xpose.msra.mxu0 0
        %2668 = vmatprep.mubr.bf16.mxu0 0
        %2669 = vmatmul.mubr.bf16.gmra.mrb[0].mxu0 %v2613
        %v2670 = vpop.f32.mrb[0].mxu0
        %v2671 = vadd.f32 %v2119, %v2670
        %v2672 = vpop.f32.mrb[0].mxu0
        %v2673 = vpop.f32.mrb[0].mxu0
        %v2674 = vadd.f32 %v2120, %v2673
        %v2675 = vpop.f32.mrb[0].mxu0
        %2676 = vmatprep.mubr.bf16.mxu0 0
        %2677 = vmatmul.mubr.bf16.gmra.mrb[0].mxu0 %v2616
        %v2678 = vpop.f32.mrb[0].mxu0
        %v2679 = vadd.f32 %v2121, %v2678
        %v2680 = vpop.f32.mrb[0].mxu0
        %v2681 = vpop.f32.mrb[0].mxu0
        %v2682 = vadd.f32 %v2122, %v2681
        %v2683 = vpop.f32.mrb[0].mxu0
        %2684 = vmatprep.mubr.bf16.mxu0 0
        %2685 = vmatmul.mubr.bf16.gmra.mrb[0].mxu0 %v2619
        %v2686 = vpop.f32.mrb[0].mxu0
        %v2687 = vadd.f32 %v2123, %v2686
        %v2688 = vpop.f32.mrb[0].mxu0
        %v2689 = vpop.f32.mrb[0].mxu0
        %v2690 = vadd.f32 %v2124, %v2689
        %v2691 = vpop.f32.mrb[0].mxu0
        %2692 = vmatprep.mubr.bf16.mxu0 0
        %2693 = vmatmul.mubr.bf16.gmra.mrb[0].mxu0 %v2622
        %v2694 = vpop.f32.mrb[0].mxu0
        %v2695 = vadd.f32 %v2125, %v2694
        %v2696 = vpop.f32.mrb[0].mxu0
        %v2697 = vpop.f32.mrb[0].mxu0
        %v2698 = vadd.f32 %v2126, %v2697
        %v2699 = vpop.f32.mrb[0].mxu0
        %2700 = vdwg.mxu0
        %v2701 = vsel %vm1390, %v2671, -inf
        %2702 = vmax.xlane.f32.xlu0 %v2701
        %v2703 = vpop.xlane.xlu0 %2702
        %v2704 = vsel %vm1390, %v2674, -inf
        %2705 = vmax.xlane.f32.xlu0 %v2704
        %v2706 = vpop.xlane.xlu0 %2705
        %v2707 = vsel %vm1390, %v2679, -inf
        %2708 = vmax.xlane.f32.xlu0 %v2707
        %v2709 = vpop.xlane.xlu0 %2708
        %v2710 = vsel %vm1390, %v2682, -inf
        %2711 = vmax.xlane.f32.xlu0 %v2710
        %v2712 = vpop.xlane.xlu0 %2711
        %v2713 = vsel %vm1390, %v2687, -inf
        %2714 = vmax.xlane.f32.xlu0 %v2713
        %v2715 = vpop.xlane.xlu0 %2714
        %v2716 = vsel %vm1390, %v2690, -inf
        %2717 = vmax.xlane.f32.xlu0 %v2716
        %v2718 = vpop.xlane.xlu0 %2717
        %v2719 = vsel %vm1390, %v2695, -inf
        %2720 = vmax.xlane.f32.xlu0 %v2719
        %v2721 = vpop.xlane.xlu0 %2720
        %v2722 = vsel %vm1390, %v2698, -inf
        %2723 = vmax.xlane.f32.xlu0 %v2722
        %v2724 = vpop.xlane.xlu0 %2723
        %v2725 = vsub.f32 %v2671, %v2703
        %v2726 = vsub.f32 %v2674, %v2706
        %v2727 = vsub.f32 %v2679, %v2709
        %v2728 = vsub.f32 %v2682, %v2712
        %v2729 = vsub.f32 %v2687, %v2715
        %v2730 = vsub.f32 %v2690, %v2718
        %v2731 = vsub.f32 %v2695, %v2721
        %v2732 = vsub.f32 %v2698, %v2724
        %v2733 = vmul.f32 %v2725, 1.442695
        %v2734 = vpow.pop %v2733
        %v2735 = vmul.f32 %v2726, 1.442695
        %v2736 = vpow.pop %v2735
        %v2737 = vmul.f32 %v2727, 1.442695
        %v2738 = vpow.pop %v2737
        %v2739 = vmul.f32 %v2728, 1.442695
        %v2740 = vpow.pop %v2739
        %v2741 = vmul.f32 %v2729, 1.442695
        %v2742 = vpow.pop %v2741
        %v2743 = vmul.f32 %v2730, 1.442695
        %v2744 = vpow.pop %v2743
        %v2745 = vmul.f32 %v2731, 1.442695
        %v2746 = vpow.pop %v2745
        %v2747 = vmul.f32 %v2732, 1.442695
        %v2748 = vpow.pop %v2747
        %v2749 = vsel %vm1390, %v2734, 0.0
        %2750 = vadd.xlane.f32.xlu0 %v2749
        %v2751 = vpop.xlane.xlu0 %2750
        %v2752 = vsel %vm1390, %v2736, 0.0
        %2753 = vadd.xlane.f32.xlu0 %v2752
        %v2754 = vpop.xlane.xlu0 %2753
        %v2755 = vsel %vm1390, %v2738, 0.0
        %2756 = vadd.xlane.f32.xlu0 %v2755
        %v2757 = vpop.xlane.xlu0 %2756
        %v2758 = vsel %vm1390, %v2740, 0.0
        %2759 = vadd.xlane.f32.xlu0 %v2758
        %v2760 = vpop.xlane.xlu0 %2759
        %v2761 = vsel %vm1390, %v2742, 0.0
        %2762 = vadd.xlane.f32.xlu0 %v2761
        %v2763 = vpop.xlane.xlu0 %2762
        %v2764 = vsel %vm1390, %v2744, 0.0
        %2765 = vadd.xlane.f32.xlu0 %v2764
        %v2766 = vpop.xlane.xlu0 %2765
        %v2767 = vsel %vm1390, %v2746, 0.0
        %2768 = vadd.xlane.f32.xlu0 %v2767
        %v2769 = vpop.xlane.xlu0 %2768
        %v2770 = vsel %vm1390, %v2748, 0.0
        %2771 = vadd.xlane.f32.xlu0 %v2770
        %v2772 = vpop.xlane.xlu0 %2771
        %v2773 = vrcp.pop %v2751
        %v2774 = vrcp.pop %v2754
        %v2775 = vrcp.pop %v2757
        %v2776 = vrcp.pop %v2760
        %v2777 = vrcp.pop %v2763
        %v2778 = vrcp.pop %v2766
        %v2779 = vrcp.pop %v2769
        %v2780 = vrcp.pop %v2772
        %v2781 = vmul.f32 %v2734, %v2773
        %v2782 = vmul.f32 %v2736, %v2774
        %v2783 = vmul.f32 %v2738, %v2775
        %v2784 = vmul.f32 %v2740, %v2776
        %v2785 = vmul.f32 %v2742, %v2777
        %v2786 = vmul.f32 %v2744, %v2778
        %v2787 = vmul.f32 %v2746, %v2779
        %v2788 = vmul.f32 %v2748, %v2780
        %v2789 = vpack.c.bf16 %v2782, %v2781
        %v2790 = vpack.c.bf16 %v2784, %v2783
        %v2791 = vpack.c.bf16 %v2786, %v2785
        %v2792 = vpack.c.bf16 %v2788, %v2787
        %v2793 = vpack.c.bf16 %v2576, %v2573
        %v2794 = vpack.c.bf16 %v2584, %v2581
        %v2795 = vpack.c.bf16 %v2592, %v2589
        %v2796 = vpack.c.bf16 %v2600, %v2597
        %v2798 = vsel %vm1390, %v2789, 0
        %v2801 = vsel %vm1390, %v2790, 0
        %v2804 = vsel %vm1390, %v2791, 0
        %v2807 = vsel %vm1390, %v2792, 0
        %2809 = vmatprep.subr.bf16.mxu0 0
        %2810 = vmatpush1.bf16.msra.mxu0 %v2793
        %2811 = vmatprep.subr.bf16.mxu0 0
        %2812 = vmatpush1.bf16.msra.mxu0 %v2794
        %2813 = vmatprep.subr.bf16.mxu0 0
        %2814 = vmatpush1.bf16.msra.mxu0 %v2795
        %2815 = vmatprep.subr.bf16.mxu0 0
        %2816 = vmatpush1.bf16.msra.mxu0 %v2796
        %2817 = vmatprep.subr.bf16.mxu0 0
        %2818 = vmatpush1.bf16.msra.mxu0 0
        %2819 = vmatprep.subr.bf16.mxu0 0
        %2820 = vmatpush1.bf16.msra.mxu0 0
        %2821 = vmatprep.subr.bf16.mxu0 0
        %2822 = vmatpush1.bf16.msra.mxu0 0
        %2823 = vmatprep.subr.bf16.mxu0 0
        %2824 = vmatpush1.bf16.msra.mxu0 0
        %2825 = vmatprep.subr.bf16.mxu0 0
        %2826 = vmatpush1.bf16.msra.mxu0 0
        %2827 = vmatprep.subr.bf16.mxu0 0
        %2828 = vmatpush1.bf16.msra.mxu0 0
        %2829 = vmatprep.subr.bf16.mxu0 0
        %2830 = vmatpush1.bf16.msra.mxu0 0
        %2831 = vmatprep.subr.bf16.mxu0 0
        %2832 = vmatpush1.bf16.msra.mxu0 0
        %2833 = vmatprep.subr.bf16.mxu0 0
        %2834 = vmatpush1.bf16.msra.mxu0 0
        %2835 = vmatprep.subr.bf16.mxu0 0
        %2836 = vmatpush1.bf16.msra.mxu0 0
        %2837 = vmatprep.subr.bf16.mxu0 0
        %2838 = vmatpush1.bf16.msra.mxu0 0
        %2839 = vmatprep.subr.bf16.mxu0 0
        %2840 = vmatpush1.bf16.msra.mxu0 0
        %2841 = vmatprep.mubr.bf16.mxu0 0
        %2842 = vmatmul.mubr.bf16.gmra.mrb[0].mxu0 %v2798
        %v2843 = vpop.f32.mrb[0].mxu0
        %v2844 = vadd.f32 0.0, %v2843
        %v2845 = vpop.f32.mrb[0].mxu0
        %v2846 = vpop.f32.mrb[0].mxu0
        %v2847 = vadd.f32 0.0, %v2846
        %v2848 = vpop.f32.mrb[0].mxu0
        %2849 = vmatprep.mubr.bf16.mxu0 0
        %2850 = vmatmul.mubr.bf16.gmra.mrb[0].mxu0 %v2801
        %v2851 = vpop.f32.mrb[0].mxu0
        %v2852 = vadd.f32 0.0, %v2851
        %v2853 = vpop.f32.mrb[0].mxu0
        %v2854 = vpop.f32.mrb[0].mxu0
        %v2855 = vadd.f32 0.0, %v2854
        %v2856 = vpop.f32.mrb[0].mxu0
        %2857 = vmatprep.mubr.bf16.mxu0 0
        %2858 = vmatmul.mubr.bf16.gmra.mrb[0].mxu0 %v2804
        %v2859 = vpop.f32.mrb[0].mxu0
        %v2860 = vadd.f32 0.0, %v2859
        %v2861 = vpop.f32.mrb[0].mxu0
        %v2862 = vpop.f32.mrb[0].mxu0
        %v2863 = vadd.f32 0.0, %v2862
        %v2864 = vpop.f32.mrb[0].mxu0
        %2865 = vmatprep.mubr.bf16.mxu0 0
        %2866 = vmatmul.mubr.bf16.gmra.mrb[0].mxu0 %v2807
        %v2867 = vpop.f32.mrb[0].mxu0
        %v2868 = vadd.f32 0.0, %v2867
        %v2869 = vpop.f32.mrb[0].mxu0
        %v2870 = vpop.f32.mrb[0].mxu0
        %v2871 = vadd.f32 0.0, %v2870
        %v2872 = vpop.f32.mrb[0].mxu0
        %2873 = vdwg.mxu0
        %v2874 = vpack.c.bf16 %v2847, %v2844
        %v2875 = vpack.c.bf16 %v2855, %v2852
        %v2876 = vpack.c.bf16 %v2863, %v2860
        %v2877 = vpack.c.bf16 %v2871, %v2868
        %v2878 = vld [vmem:[%s49] sm:$0xff]
        %v2879 = vld [vmem:[%s49 + $0x8] sm:$0xff]
        %v2880 = vld [vmem:[%s49 + $0x10] sm:$0xff]
        %v2881 = vld [vmem:[%s49 + $0x18] sm:$0xff]
        %v2882 = vld [vmem:[%s49 + $0x20] sm:$0xff]
        %s2883 = scalar_lea.vmem %s37, 80
        %v2884 = vld [vmem:[%s2883] sm:$0xf]
        %v2885 = vld [vmem:[%s2883 + $0x4] sm:$0xf]
        %v2886 = vld [vmem:[%s2883 + $0x8] sm:$0xf]
        %v2887 = vld [vmem:[%s2883 + $0xc] sm:$0xf]
        %v2888 = vld [vmem:[%s2883 + $0x10] sm:$0xf]
        %v2889 = vld [vmem:[%s2883 + $0x14] sm:$0xf]
        %v2890 = vld [vmem:[%s2883 + $0x18] sm:$0xf]
        %v2891 = vld [vmem:[%s2883 + $0x1c] sm:$0xf]
        %v2892 = vld [vmem:[%s2883 + $0x20] sm:$0xf]
        %v2893 = vld [vmem:[%s2883 + $0x24] sm:$0xf]
        %v2894 = vld [vmem:[%s2883 + $0x28] sm:$0xf]
        %v2895 = vld [vmem:[%s2883 + $0x2c] sm:$0xf]
        %v2896 = vld [vmem:[%s2883 + $0x30] sm:$0xf]
        %v2897 = vld [vmem:[%s2883 + $0x34] sm:$0xf]
        %v2898 = vld [vmem:[%s2883 + $0x38] sm:$0xf]
        %v2899 = vld [vmem:[%s2883 + $0x3c] sm:$0xf]
        %v2900 = vld [vmem:[%s2883 + $0x40] sm:$0xf]
        %v2901 = vld [vmem:[%s2883 + $0x44] sm:$0xf]
        %v2902 = vld [vmem:[%s2883 + $0x48] sm:$0xf]
        %v2903 = vld [vmem:[%s2883 + $0x4c] sm:$0xf]
        %s2904 = scalar_lea.vmem %s39, 1
        %v2905 = vld [vmem:[%s2904] sm:$0x1]
        %v2907 = vlaneseq
        %v2908 = vshrl.u32 %v2907, 7
        %v2909 = vsub.s32 0, %v2908
        %v2910 = vrot.slane %v2905, %v2909
        %v2932 = vunpack.c.l.b16 %v2884
        %v2933 = vunpack.c.l.b16 %v2885
        %v2934 = vunpack.c.l.b16 %v2886
        %v2935 = vunpack.c.l.b16 %v2887
        %v2936 = vunpack.c.l.b16 %v2888
        %v2937 = vunpack.c.l.b16 %v2889
        %v2938 = vunpack.c.l.b16 %v2890
        %v2939 = vunpack.c.l.b16 %v2891
        %v2940 = vunpack.c.l.b16 %v2892
        %v2941 = vunpack.c.l.b16 %v2893
        %v2942 = vunpack.c.l.b16 %v2894
        %v2943 = vunpack.c.l.b16 %v2895
        %v2944 = vunpack.c.l.b16 %v2896
        %v2945 = vunpack.c.l.b16 %v2897
        %v2946 = vunpack.c.l.b16 %v2898
        %v2947 = vunpack.c.l.b16 %v2899
        %v2948 = vunpack.c.l.b16 %v2900
        %v2949 = vunpack.c.l.b16 %v2901
        %v2950 = vunpack.c.l.b16 %v2902
        %v2951 = vunpack.c.l.b16 %v2903
        %v2952 = vpack.c.b16 %v2933, %v2932
        %v2953 = vpack.c.b16 %v2935, %v2934
        %v2954 = vpack.c.b16 %v2937, %v2936
        %v2955 = vpack.c.b16 %v2939, %v2938
        %v2956 = vpack.c.b16 %v2941, %v2940
        %v2957 = vpack.c.b16 %v2943, %v2942
        %v2958 = vpack.c.b16 %v2945, %v2944
        %v2959 = vpack.c.b16 %v2947, %v2946
        %v2960 = vpack.c.b16 %v2949, %v2948
        %v2961 = vpack.c.b16 %v2951, %v2950
        %2972 = vmatprep.subr.bf16.mxu0 0
        %2973 = vmatpush1.bf16.msra.mxu0 %v2952
        %2974 = vmatprep.subr.bf16.mxu0 0
        %2975 = vmatpush1.bf16.msra.mxu0 %v2953
        %2976 = vmatprep.subr.bf16.mxu0 0
        %2977 = vmatpush1.bf16.msra.mxu0 %v2954
        %2978 = vmatprep.subr.bf16.mxu0 0
        %2979 = vmatpush1.bf16.msra.mxu0 %v2955
        %2980 = vmatprep.subr.bf16.mxu0 0
        %2981 = vmatpush1.bf16.msra.mxu0 %v2956
        %2982 = vmatprep.subr.bf16.mxu0 0
        %2983 = vmatpush1.bf16.msra.mxu0 %v2957
        %2984 = vmatprep.subr.bf16.mxu0 0
        %2985 = vmatpush1.bf16.msra.mxu0 %v2958
        %2986 = vmatprep.subr.bf16.mxu0 0
        %2987 = vmatpush1.bf16.msra.mxu0 %v2959
        %2988 = vmatprep.subr.bf16.mxu0 0
        %2989 = vmatpush1.bf16.msra.mxu0 %v2960
        %2990 = vmatprep.subr.bf16.mxu0 0
        %2991 = vmatpush1.bf16.msra.mxu0 %v2961
        %2992 = vmatprep.subr.bf16.mxu0 0
        %2993 = vmatpush1.bf16.msra.mxu0 0
        %2994 = vmatprep.subr.bf16.mxu0 0
        %2995 = vmatpush1.bf16.msra.mxu0 0
        %2996 = vmatprep.subr.bf16.mxu0 0
        %2997 = vmatpush1.bf16.msra.mxu0 0
        %2998 = vmatprep.subr.bf16.mxu0 0
        %2999 = vmatpush1.bf16.msra.mxu0 0
        %3000 = vmatprep.subr.bf16.mxu0 0
        %3001 = vmatpush1.bf16.msra.mxu0 0
        %3002 = vmatprep.subr.bf16.mxu0 0
        %3003 = vmatpush1.bf16.msra.mxu0 0
        %3004 = vmatprep.mubr.bf16.mxu0 %v2215
        %3005 = vmatmul.mubr.bf16.gmra.mrb[0].mxu0 %v2111
        %v3006 = vpop.f32.mrb[0].mxu0
        %v3007 = vadd.f32 %v2910, %v3006
        %v3008 = vpop.f32.mrb[0].mxu0
        %v3009 = vpop.f32.mrb[0].mxu0
        %v3010 = vadd.f32 %v2910, %v3009
        %v3011 = vpop.f32.mrb[0].mxu0
        %3012 = vmatprep.mubr.bf16.mxu0 %v2218
        %3013 = vmatmul.mubr.bf16.gmra.mrb[0].mxu0 %v2113
        %v3014 = vpop.f32.mrb[0].mxu0
        %v3015 = vadd.f32 %v2910, %v3014
        %v3016 = vpop.f32.mrb[0].mxu0
        %v3017 = vpop.f32.mrb[0].mxu0
        %v3018 = vadd.f32 %v2910, %v3017
        %v3019 = vpop.f32.mrb[0].mxu0
        %3020 = vmatprep.mubr.bf16.mxu0 %v2221
        %3021 = vmatmul.mubr.bf16.gmra.mrb[0].mxu0 %v2115
        %v3022 = vpop.f32.mrb[0].mxu0
        %v3023 = vadd.f32 %v2910, %v3022
        %v3024 = vpop.f32.mrb[0].mxu0
        %v3025 = vpop.f32.mrb[0].mxu0
        %v3026 = vadd.f32 %v2910, %v3025
        %v3027 = vpop.f32.mrb[0].mxu0
        %3028 = vmatprep.mubr.bf16.mxu0 %v2224
        %3029 = vmatmul.mubr.bf16.gmra.mrb[0].mxu0 %v2117
        %v3030 = vpop.f32.mrb[0].mxu0
        %v3031 = vadd.f32 %v2910, %v3030
        %v3032 = vpop.f32.mrb[0].mxu0
        %v3033 = vpop.f32.mrb[0].mxu0
        %v3034 = vadd.f32 %v2910, %v3033
        %v3035 = vpop.f32.mrb[0].mxu0
        %3036 = vdwg.mxu0
        %v3037 = vmul.f32 %v3007, 0.15811388
        %v3038 = vmul.f32 %v3010, 0.15811388
        %v3039 = vmul.f32 %v3015, 0.15811388
        %v3040 = vmul.f32 %v3018, 0.15811388
        %v3041 = vmul.f32 %v3023, 0.15811388
        %v3042 = vmul.f32 %v3026, 0.15811388
        %v3043 = vmul.f32 %v3031, 0.15811388
        %v3044 = vmul.f32 %v3034, 0.15811388
        %s3045 = scalar_lea.vmem %s41, 80
        %v3046 = vld [vmem:[%s3045] sm:$0xf]
        %v3047 = vld [vmem:[%s3045 + $0x4] sm:$0xf]
        %v3048 = vld [vmem:[%s3045 + $0x8] sm:$0xf]
        %v3049 = vld [vmem:[%s3045 + $0xc] sm:$0xf]
        %v3050 = vld [vmem:[%s3045 + $0x10] sm:$0xf]
        %v3051 = vld [vmem:[%s3045 + $0x14] sm:$0xf]
        %v3052 = vld [vmem:[%s3045 + $0x18] sm:$0xf]
        %v3053 = vld [vmem:[%s3045 + $0x1c] sm:$0xf]
        %v3054 = vld [vmem:[%s3045 + $0x20] sm:$0xf]
        %v3055 = vld [vmem:[%s3045 + $0x24] sm:$0xf]
        %v3056 = vld [vmem:[%s3045 + $0x28] sm:$0xf]
        %v3057 = vld [vmem:[%s3045 + $0x2c] sm:$0xf]
        %v3058 = vld [vmem:[%s3045 + $0x30] sm:$0xf]
        %v3059 = vld [vmem:[%s3045 + $0x34] sm:$0xf]
        %v3060 = vld [vmem:[%s3045 + $0x38] sm:$0xf]
        %v3061 = vld [vmem:[%s3045 + $0x3c] sm:$0xf]
        %v3062 = vld [vmem:[%s3045 + $0x40] sm:$0xf]
        %v3063 = vld [vmem:[%s3045 + $0x44] sm:$0xf]
        %v3064 = vld [vmem:[%s3045 + $0x48] sm:$0xf]
        %v3065 = vld [vmem:[%s3045 + $0x4c] sm:$0xf]
        %s3066 = scalar_lea.vmem %s43, 1
        %v3067 = vld [vmem:[%s3066] sm:$0x1]
        %v3069 = vlaneseq
        %v3070 = vshrl.u32 %v3069, 7
        %v3071 = vsub.s32 0, %v3070
        %v3072 = vrot.slane %v3067, %v3071
        %v3094 = vunpack.c.l.b16 %v3046
        %v3095 = vunpack.c.l.b16 %v3047
        %v3096 = vunpack.c.l.b16 %v3048
        %v3097 = vunpack.c.l.b16 %v3049
        %v3098 = vunpack.c.l.b16 %v3050
        %v3099 = vunpack.c.l.b16 %v3051
        %v3100 = vunpack.c.l.b16 %v3052
        %v3101 = vunpack.c.l.b16 %v3053
        %v3102 = vunpack.c.l.b16 %v3054
        %v3103 = vunpack.c.l.b16 %v3055
        %v3104 = vunpack.c.l.b16 %v3056
        %v3105 = vunpack.c.l.b16 %v3057
        %v3106 = vunpack.c.l.b16 %v3058
        %v3107 = vunpack.c.l.b16 %v3059
        %v3108 = vunpack.c.l.b16 %v3060
        %v3109 = vunpack.c.l.b16 %v3061
        %v3110 = vunpack.c.l.b16 %v3062
        %v3111 = vunpack.c.l.b16 %v3063
        %v3112 = vunpack.c.l.b16 %v3064
        %v3113 = vunpack.c.l.b16 %v3065
        %v3114 = vpack.c.b16 %v3095, %v3094
        %v3115 = vpack.c.b16 %v3097, %v3096
        %v3116 = vpack.c.b16 %v3099, %v3098
        %v3117 = vpack.c.b16 %v3101, %v3100
        %v3118 = vpack.c.b16 %v3103, %v3102
        %v3119 = vpack.c.b16 %v3105, %v3104
        %v3120 = vpack.c.b16 %v3107, %v3106
        %v3121 = vpack.c.b16 %v3109, %v3108
        %v3122 = vpack.c.b16 %v3111, %v3110
        %v3123 = vpack.c.b16 %v3113, %v3112
        %3134 = vmatprep.subr.bf16.mxu0 0
        %3135 = vmatpush1.bf16.msra.mxu0 %v3114
        %3136 = vmatprep.subr.bf16.mxu0 0
        %3137 = vmatpush1.bf16.msra.mxu0 %v3115
        %3138 = vmatprep.subr.bf16.mxu0 0
        %3139 = vmatpush1.bf16.msra.mxu0 %v3116
        %3140 = vmatprep.subr.bf16.mxu0 0
        %3141 = vmatpush1.bf16.msra.mxu0 %v3117
        %3142 = vmatprep.subr.bf16.mxu0 0
        %3143 = vmatpush1.bf16.msra.mxu0 %v3118
        %3144 = vmatprep.subr.bf16.mxu0 0
        %3145 = vmatpush1.bf16.msra.mxu0 %v3119
        %3146 = vmatprep.subr.bf16.mxu0 0
        %3147 = vmatpush1.bf16.msra.mxu0 %v3120
        %3148 = vmatprep.subr.bf16.mxu0 0
        %3149 = vmatpush1.bf16.msra.mxu0 %v3121
        %3150 = vmatprep.subr.bf16.mxu0 0
        %3151 = vmatpush1.bf16.msra.mxu0 %v3122
        %3152 = vmatprep.subr.bf16.mxu0 0
        %3153 = vmatpush1.bf16.msra.mxu0 %v3123
        %3154 = vmatprep.subr.bf16.mxu0 0
        %3155 = vmatpush1.bf16.msra.mxu0 0
        %3156 = vmatprep.subr.bf16.mxu0 0
        %3157 = vmatpush1.bf16.msra.mxu0 0
        %3158 = vmatprep.subr.bf16.mxu0 0
        %3159 = vmatpush1.bf16.msra.mxu0 0
        %3160 = vmatprep.subr.bf16.mxu0 0
        %3161 = vmatpush1.bf16.msra.mxu0 0
        %3162 = vmatprep.subr.bf16.mxu0 0
        %3163 = vmatpush1.bf16.msra.mxu0 0
        %3164 = vmatprep.subr.bf16.mxu0 0
        %3165 = vmatpush1.bf16.msra.mxu0 0
        %3166 = vmatprep.mubr.bf16.mxu0 %v2215
        %3167 = vmatmul.mubr.bf16.gmra.mrb[0].mxu0 %v2111
        %v3168 = vpop.f32.mrb[0].mxu0
        %v3169 = vadd.f32 %v3072, %v3168
        %v3170 = vpop.f32.mrb[0].mxu0
        %v3171 = vpop.f32.mrb[0].mxu0
        %v3172 = vadd.f32 %v3072, %v3171
        %v3173 = vpop.f32.mrb[0].mxu0
        %3174 = vmatprep.mubr.bf16.mxu0 %v2218
        %3175 = vmatmul.mubr.bf16.gmra.mrb[0].mxu0 %v2113
        %v3176 = vpop.f32.mrb[0].mxu0
        %v3177 = vadd.f32 %v3072, %v3176
        %v3178 = vpop.f32.mrb[0].mxu0
        %v3179 = vpop.f32.mrb[0].mxu0
        %v3180 = vadd.f32 %v3072, %v3179
        %v3181 = vpop.f32.mrb[0].mxu0
        %3182 = vmatprep.mubr.bf16.mxu0 %v2221
        %3183 = vmatmul.mubr.bf16.gmra.mrb[0].mxu0 %v2115
        %v3184 = vpop.f32.mrb[0].mxu0
        %v3185 = vadd.f32 %v3072, %v3184
        %v3186 = vpop.f32.mrb[0].mxu0
        %v3187 = vpop.f32.mrb[0].mxu0
        %v3188 = vadd.f32 %v3072, %v3187
        %v3189 = vpop.f32.mrb[0].mxu0
        %3190 = vmatprep.mubr.bf16.mxu0 %v2224
        %3191 = vmatmul.mubr.bf16.gmra.mrb[0].mxu0 %v2117
        %v3192 = vpop.f32.mrb[0].mxu0
        %v3193 = vadd.f32 %v3072, %v3192
        %v3194 = vpop.f32.mrb[0].mxu0
        %v3195 = vpop.f32.mrb[0].mxu0
        %v3196 = vadd.f32 %v3072, %v3195
        %v3197 = vpop.f32.mrb[0].mxu0
        %3198 = vdwg.mxu0
        %s3199 = scalar_lea.vmem %s45, 80
        %v3200 = vld [vmem:[%s3199] sm:$0xf]
        %v3201 = vld [vmem:[%s3199 + $0x4] sm:$0xf]
        %v3202 = vld [vmem:[%s3199 + $0x8] sm:$0xf]
        %v3203 = vld [vmem:[%s3199 + $0xc] sm:$0xf]
        %v3204 = vld [vmem:[%s3199 + $0x10] sm:$0xf]
        %v3205 = vld [vmem:[%s3199 + $0x14] sm:$0xf]
        %v3206 = vld [vmem:[%s3199 + $0x18] sm:$0xf]
        %v3207 = vld [vmem:[%s3199 + $0x1c] sm:$0xf]
        %v3208 = vld [vmem:[%s3199 + $0x20] sm:$0xf]
        %v3209 = vld [vmem:[%s3199 + $0x24] sm:$0xf]
        %v3210 = vld [vmem:[%s3199 + $0x28] sm:$0xf]
        %v3211 = vld [vmem:[%s3199 + $0x2c] sm:$0xf]
        %v3212 = vld [vmem:[%s3199 + $0x30] sm:$0xf]
        %v3213 = vld [vmem:[%s3199 + $0x34] sm:$0xf]
        %v3214 = vld [vmem:[%s3199 + $0x38] sm:$0xf]
        %v3215 = vld [vmem:[%s3199 + $0x3c] sm:$0xf]
        %v3216 = vld [vmem:[%s3199 + $0x40] sm:$0xf]
        %v3217 = vld [vmem:[%s3199 + $0x44] sm:$0xf]
        %v3218 = vld [vmem:[%s3199 + $0x48] sm:$0xf]
        %v3219 = vld [vmem:[%s3199 + $0x4c] sm:$0xf]
        %s3220 = scalar_lea.vmem %s47, 1
        %v3221 = vld [vmem:[%s3220] sm:$0x1]
        %v3223 = vlaneseq
        %v3224 = vshrl.u32 %v3223, 7
        %v3225 = vsub.s32 0, %v3224
        %v3226 = vrot.slane %v3221, %v3225
        %v3248 = vunpack.c.l.b16 %v3200
        %v3249 = vunpack.c.l.b16 %v3201
        %v3250 = vunpack.c.l.b16 %v3202
        %v3251 = vunpack.c.l.b16 %v3203
        %v3252 = vunpack.c.l.b16 %v3204
        %v3253 = vunpack.c.l.b16 %v3205
        %v3254 = vunpack.c.l.b16 %v3206
        %v3255 = vunpack.c.l.b16 %v3207
        %v3256 = vunpack.c.l.b16 %v3208
        %v3257 = vunpack.c.l.b16 %v3209
        %v3258 = vunpack.c.l.b16 %v3210
        %v3259 = vunpack.c.l.b16 %v3211
        %v3260 = vunpack.c.l.b16 %v3212
        %v3261 = vunpack.c.l.b16 %v3213
        %v3262 = vunpack.c.l.b16 %v3214
        %v3263 = vunpack.c.l.b16 %v3215
        %v3264 = vunpack.c.l.b16 %v3216
        %v3265 = vunpack.c.l.b16 %v3217
        %v3266 = vunpack.c.l.b16 %v3218
        %v3267 = vunpack.c.l.b16 %v3219
        %v3268 = vpack.c.b16 %v3249, %v3248
        %v3269 = vpack.c.b16 %v3251, %v3250
        %v3270 = vpack.c.b16 %v3253, %v3252
        %v3271 = vpack.c.b16 %v3255, %v3254
        %v3272 = vpack.c.b16 %v3257, %v3256
        %v3273 = vpack.c.b16 %v3259, %v3258
        %v3274 = vpack.c.b16 %v3261, %v3260
        %v3275 = vpack.c.b16 %v3263, %v3262
        %v3276 = vpack.c.b16 %v3265, %v3264
        %v3277 = vpack.c.b16 %v3267, %v3266
        %3288 = vmatprep.subr.bf16.mxu0 0
        %3289 = vmatpush1.bf16.msra.mxu0 %v3268
        %3290 = vmatprep.subr.bf16.mxu0 0
        %3291 = vmatpush1.bf16.msra.mxu0 %v3269
        %3292 = vmatprep.subr.bf16.mxu0 0
        %3293 = vmatpush1.bf16.msra.mxu0 %v3270
        %3294 = vmatprep.subr.bf16.mxu0 0
        %3295 = vmatpush1.bf16.msra.mxu0 %v3271
        %3296 = vmatprep.subr.bf16.mxu0 0
        %3297 = vmatpush1.bf16.msra.mxu0 %v3272
        %3298 = vmatprep.subr.bf16.mxu0 0
        %3299 = vmatpush1.bf16.msra.mxu0 %v3273
        %3300 = vmatprep.subr.bf16.mxu0 0
        %3301 = vmatpush1.bf16.msra.mxu0 %v3274
        %3302 = vmatprep.subr.bf16.mxu0 0
        %3303 = vmatpush1.bf16.msra.mxu0 %v3275
        %3304 = vmatprep.subr.bf16.mxu0 0
        %3305 = vmatpush1.bf16.msra.mxu0 %v3276
        %3306 = vmatprep.subr.bf16.mxu0 0
        %3307 = vmatpush1.bf16.msra.mxu0 %v3277
        %3308 = vmatprep.subr.bf16.mxu0 0
        %3309 = vmatpush1.bf16.msra.mxu0 0
        %3310 = vmatprep.subr.bf16.mxu0 0
        %3311 = vmatpush1.bf16.msra.mxu0 0
        %3312 = vmatprep.subr.bf16.mxu0 0
        %3313 = vmatpush1.bf16.msra.mxu0 0
        %3314 = vmatprep.subr.bf16.mxu0 0
        %3315 = vmatpush1.bf16.msra.mxu0 0
        %3316 = vmatprep.subr.bf16.mxu0 0
        %3317 = vmatpush1.bf16.msra.mxu0 0
        %3318 = vmatprep.subr.bf16.mxu0 0
        %3319 = vmatpush1.bf16.msra.mxu0 0
        %3320 = vmatprep.mubr.bf16.mxu0 %v2215
        %3321 = vmatmul.mubr.bf16.gmra.mrb[0].mxu0 %v2111
        %v3322 = vpop.f32.mrb[0].mxu0
        %v3323 = vadd.f32 %v3226, %v3322
        %v3324 = vpop.f32.mrb[0].mxu0
        %v3325 = vpop.f32.mrb[0].mxu0
        %v3326 = vadd.f32 %v3226, %v3325
        %v3327 = vpop.f32.mrb[0].mxu0
        %3328 = vmatprep.mubr.bf16.mxu0 %v2218
        %3329 = vmatmul.mubr.bf16.gmra.mrb[0].mxu0 %v2113
        %v3330 = vpop.f32.mrb[0].mxu0
        %v3331 = vadd.f32 %v3226, %v3330
        %v3332 = vpop.f32.mrb[0].mxu0
        %v3333 = vpop.f32.mrb[0].mxu0
        %v3334 = vadd.f32 %v3226, %v3333
        %v3335 = vpop.f32.mrb[0].mxu0
        %3336 = vmatprep.mubr.bf16.mxu0 %v2221
        %3337 = vmatmul.mubr.bf16.gmra.mrb[0].mxu0 %v2115
        %v3338 = vpop.f32.mrb[0].mxu0
        %v3339 = vadd.f32 %v3226, %v3338
        %v3340 = vpop.f32.mrb[0].mxu0
        %v3341 = vpop.f32.mrb[0].mxu0
        %v3342 = vadd.f32 %v3226, %v3341
        %v3343 = vpop.f32.mrb[0].mxu0
        %3344 = vmatprep.mubr.bf16.mxu0 %v2224
        %3345 = vmatmul.mubr.bf16.gmra.mrb[0].mxu0 %v2117
        %v3346 = vpop.f32.mrb[0].mxu0
        %v3347 = vadd.f32 %v3226, %v3346
        %v3348 = vpop.f32.mrb[0].mxu0
        %v3349 = vpop.f32.mrb[0].mxu0
        %v3350 = vadd.f32 %v3226, %v3349
        %v3351 = vpop.f32.mrb[0].mxu0
        %3352 = vdwg.mxu0
        %v3353 = vpack.c.bf16 %v3038, %v3037
        %v3354 = vpack.c.bf16 %v3040, %v3039
        %v3355 = vpack.c.bf16 %v3042, %v3041
        %v3356 = vpack.c.bf16 %v3044, %v3043
        %v3357 = vpack.c.bf16 %v3172, %v3169
        %v3358 = vpack.c.bf16 %v3180, %v3177
        %v3359 = vpack.c.bf16 %v3188, %v3185
        %v3360 = vpack.c.bf16 %v3196, %v3193
        %v3362 = vsel %vm2611, %v3353, 0
        %v3365 = vsel %vm2611, %v3354, 0
        %v3368 = vsel %vm2611, %v3355, 0
        %v3371 = vsel %vm2611, %v3356, 0
        %v3374 = vsel %vm2611, %v3357, 0
        %v3377 = vsel %vm2611, %v3358, 0
        %v3380 = vsel %vm2611, %v3359, 0
        %v3383 = vsel %vm2611, %v3360, 0
        %3385 = vmatprep.subr.bf16.mxu0 0
        %3386 = vmatpush1.bf16.xpose.msra.mxu0 %v3374
        %3387 = vmatprep.subr.bf16.mxu0 0
        %3388 = vmatpush1.bf16.xpose.msra.mxu0 %v3377
        %3389 = vmatprep.subr.bf16.mxu0 0
        %3390 = vmatpush1.bf16.xpose.msra.mxu0 %v3380
        %3391 = vmatprep.subr.bf16.mxu0 0
        %3392 = vmatpush1.bf16.xpose.msra.mxu0 %v3383
        %3393 = vmatprep.subr.bf16.mxu0 0
        %3394 = vmatpush1.bf16.xpose.msra.mxu0 0
        %3395 = vmatprep.subr.bf16.mxu0 0
        %3396 = vmatpush1.bf16.xpose.msra.mxu0 0
        %3397 = vmatprep.subr.bf16.mxu0 0
        %3398 = vmatpush1.bf16.xpose.msra.mxu0 0
        %3399 = vmatprep.subr.bf16.mxu0 0
        %3400 = vmatpush1.bf16.xpose.msra.mxu0 0
        %3401 = vmatprep.subr.bf16.mxu0 0
        %3402 = vmatpush1.bf16.xpose.msra.mxu0 0
        %3403 = vmatprep.subr.bf16.mxu0 0
        %3404 = vmatpush1.bf16.xpose.msra.mxu0 0
        %3405 = vmatprep.subr.bf16.mxu0 0
        %3406 = vmatpush1.bf16.xpose.msra.mxu0 0
        %3407 = vmatprep.subr.bf16.mxu0 0
        %3408 = vmatpush1.bf16.xpose.msra.mxu0 0
        %3409 = vmatprep.subr.bf16.mxu0 0
        %3410 = vmatpush1.bf16.xpose.msra.mxu0 0
        %3411 = vmatprep.subr.bf16.mxu0 0
        %3412 = vmatpush1.bf16.xpose.msra.mxu0 0
        %3413 = vmatprep.subr.bf16.mxu0 0
        %3414 = vmatpush1.bf16.xpose.msra.mxu0 0
        %3415 = vmatprep.subr.bf16.mxu0 0
        %3416 = vmatpush1.bf16.xpose.msra.mxu0 0
        %3417 = vmatprep.mubr.bf16.mxu0 0
        %3418 = vmatmul.mubr.bf16.gmra.mrb[0].mxu0 %v3362
        %v3419 = vpop.f32.mrb[0].mxu0
        %v3420 = vadd.f32 %v2119, %v3419
        %v3421 = vpop.f32.mrb[0].mxu0
        %v3422 = vpop.f32.mrb[0].mxu0
        %v3423 = vadd.f32 %v2120, %v3422
        %v3424 = vpop.f32.mrb[0].mxu0
        %3425 = vmatprep.mubr.bf16.mxu0 0
        %3426 = vmatmul.mubr.bf16.gmra.mrb[0].mxu0 %v3365
        %v3427 = vpop.f32.mrb[0].mxu0
        %v3428 = vadd.f32 %v2121, %v3427
        %v3429 = vpop.f32.mrb[0].mxu0
        %v3430 = vpop.f32.mrb[0].mxu0
        %v3431 = vadd.f32 %v2122, %v3430
        %v3432 = vpop.f32.mrb[0].mxu0
        %3433 = vmatprep.mubr.bf16.mxu0 0
        %3434 = vmatmul.mubr.bf16.gmra.mrb[0].mxu0 %v3368
        %v3435 = vpop.f32.mrb[0].mxu0
        %v3436 = vadd.f32 %v2123, %v3435
        %v3437 = vpop.f32.mrb[0].mxu0
        %v3438 = vpop.f32.mrb[0].mxu0
        %v3439 = vadd.f32 %v2124, %v3438
        %v3440 = vpop.f32.mrb[0].mxu0
        %3441 = vmatprep.mubr.bf16.mxu0 0
        %3442 = vmatmul.mubr.bf16.gmra.mrb[0].mxu0 %v3371
        %v3443 = vpop.f32.mrb[0].mxu0
        %v3444 = vadd.f32 %v2125, %v3443
        %v3445 = vpop.f32.mrb[0].mxu0
        %v3446 = vpop.f32.mrb[0].mxu0
        %v3447 = vadd.f32 %v2126, %v3446
        %v3448 = vpop.f32.mrb[0].mxu0
        %3449 = vdwg.mxu0
        %v3450 = vsel %vm1390, %v3420, -inf
        %3451 = vmax.xlane.f32.xlu0 %v3450
        %v3452 = vpop.xlane.xlu0 %3451
        %v3453 = vsel %vm1390, %v3423, -inf
        %3454 = vmax.xlane.f32.xlu0 %v3453
        %v3455 = vpop.xlane.xlu0 %3454
        %v3456 = vsel %vm1390, %v3428, -inf
        %3457 = vmax.xlane.f32.xlu0 %v3456
        %v3458 = vpop.xlane.xlu0 %3457
        %v3459 = vsel %vm1390, %v3431, -inf
        %3460 = vmax.xlane.f32.xlu0 %v3459
        %v3461 = vpop.xlane.xlu0 %3460
        %v3462 = vsel %vm1390, %v3436, -inf
        %3463 = vmax.xlane.f32.xlu0 %v3462
        %v3464 = vpop.xlane.xlu0 %3463
        %v3465 = vsel %vm1390, %v3439, -inf
        %3466 = vmax.xlane.f32.xlu0 %v3465
        %v3467 = vpop.xlane.xlu0 %3466
        %v3468 = vsel %vm1390, %v3444, -inf
        %3469 = vmax.xlane.f32.xlu0 %v3468
        %v3470 = vpop.xlane.xlu0 %3469
        %v3471 = vsel %vm1390, %v3447, -inf
        %3472 = vmax.xlane.f32.xlu0 %v3471
        %v3473 = vpop.xlane.xlu0 %3472
        %v3474 = vsub.f32 %v3420, %v3452
        %v3475 = vsub.f32 %v3423, %v3455
        %v3476 = vsub.f32 %v3428, %v3458
        %v3477 = vsub.f32 %v3431, %v3461
        %v3478 = vsub.f32 %v3436, %v3464
        %v3479 = vsub.f32 %v3439, %v3467
        %v3480 = vsub.f32 %v3444, %v3470
        %v3481 = vsub.f32 %v3447, %v3473
        %v3482 = vmul.f32 %v3474, 1.442695
        %v3483 = vpow.pop %v3482
        %v3484 = vmul.f32 %v3475, 1.442695
        %v3485 = vpow.pop %v3484
        %v3486 = vmul.f32 %v3476, 1.442695
        %v3487 = vpow.pop %v3486
        %v3488 = vmul.f32 %v3477, 1.442695
        %v3489 = vpow.pop %v3488
        %v3490 = vmul.f32 %v3478, 1.442695
        %v3491 = vpow.pop %v3490
        %v3492 = vmul.f32 %v3479, 1.442695
        %v3493 = vpow.pop %v3492
        %v3494 = vmul.f32 %v3480, 1.442695
        %v3495 = vpow.pop %v3494
        %v3496 = vmul.f32 %v3481, 1.442695
        %v3497 = vpow.pop %v3496
        %v3498 = vsel %vm1390, %v3483, 0.0
        %3499 = vadd.xlane.f32.xlu0 %v3498
        %v3500 = vpop.xlane.xlu0 %3499
        %v3501 = vsel %vm1390, %v3485, 0.0
        %3502 = vadd.xlane.f32.xlu0 %v3501
        %v3503 = vpop.xlane.xlu0 %3502
        %v3504 = vsel %vm1390, %v3487, 0.0
        %3505 = vadd.xlane.f32.xlu0 %v3504
        %v3506 = vpop.xlane.xlu0 %3505
        %v3507 = vsel %vm1390, %v3489, 0.0
        %3508 = vadd.xlane.f32.xlu0 %v3507
        %v3509 = vpop.xlane.xlu0 %3508
        %v3510 = vsel %vm1390, %v3491, 0.0
        %3511 = vadd.xlane.f32.xlu0 %v3510
        %v3512 = vpop.xlane.xlu0 %3511
        %v3513 = vsel %vm1390, %v3493, 0.0
        %3514 = vadd.xlane.f32.xlu0 %v3513
        %v3515 = vpop.xlane.xlu0 %3514
        %v3516 = vsel %vm1390, %v3495, 0.0
        %3517 = vadd.xlane.f32.xlu0 %v3516
        %v3518 = vpop.xlane.xlu0 %3517
        %v3519 = vsel %vm1390, %v3497, 0.0
        %3520 = vadd.xlane.f32.xlu0 %v3519
        %v3521 = vpop.xlane.xlu0 %3520
        %v3522 = vrcp.pop %v3500
        %v3523 = vrcp.pop %v3503
        %v3524 = vrcp.pop %v3506
        %v3525 = vrcp.pop %v3509
        %v3526 = vrcp.pop %v3512
        %v3527 = vrcp.pop %v3515
        %v3528 = vrcp.pop %v3518
        %v3529 = vrcp.pop %v3521
        %v3530 = vmul.f32 %v3483, %v3522
        %v3531 = vmul.f32 %v3485, %v3523
        %v3532 = vmul.f32 %v3487, %v3524
        %v3533 = vmul.f32 %v3489, %v3525
        %v3534 = vmul.f32 %v3491, %v3526
        %v3535 = vmul.f32 %v3493, %v3527
        %v3536 = vmul.f32 %v3495, %v3528
        %v3537 = vmul.f32 %v3497, %v3529
        %v3538 = vpack.c.bf16 %v3531, %v3530
        %v3539 = vpack.c.bf16 %v3533, %v3532
        %v3540 = vpack.c.bf16 %v3535, %v3534
        %v3541 = vpack.c.bf16 %v3537, %v3536
        %v3542 = vpack.c.bf16 %v3326, %v3323
        %v3543 = vpack.c.bf16 %v3334, %v3331
        %v3544 = vpack.c.bf16 %v3342, %v3339
        %v3545 = vpack.c.bf16 %v3350, %v3347
        %v3547 = vsel %vm1390, %v3538, 0
        %v3550 = vsel %vm1390, %v3539, 0
        %v3553 = vsel %vm1390, %v3540, 0
        %v3556 = vsel %vm1390, %v3541, 0
        %3558 = vmatprep.subr.bf16.mxu0 0
        %3559 = vmatpush1.bf16.msra.mxu0 %v3542
        %3560 = vmatprep.subr.bf16.mxu0 0
        %3561 = vmatpush1.bf16.msra.mxu0 %v3543
        %3562 = vmatprep.subr.bf16.mxu0 0
        %3563 = vmatpush1.bf16.msra.mxu0 %v3544
        %3564 = vmatprep.subr.bf16.mxu0 0
        %3565 = vmatpush1.bf16.msra.mxu0 %v3545
        %3566 = vmatprep.subr.bf16.mxu0 0
        %3567 = vmatpush1.bf16.msra.mxu0 0
        %3568 = vmatprep.subr.bf16.mxu0 0
        %3569 = vmatpush1.bf16.msra.mxu0 0
        %3570 = vmatprep.subr.bf16.mxu0 0
        %3571 = vmatpush1.bf16.msra.mxu0 0
        %3572 = vmatprep.subr.bf16.mxu0 0
        %3573 = vmatpush1.bf16.msra.mxu0 0
        %3574 = vmatprep.subr.bf16.mxu0 0
        %3575 = vmatpush1.bf16.msra.mxu0 0
        %3576 = vmatprep.subr.bf16.mxu0 0
        %3577 = vmatpush1.bf16.msra.mxu0 0
        %3578 = vmatprep.subr.bf16.mxu0 0
        %3579 = vmatpush1.bf16.msra.mxu0 0
        %3580 = vmatprep.subr.bf16.mxu0 0
        %3581 = vmatpush1.bf16.msra.mxu0 0
        %3582 = vmatprep.subr.bf16.mxu0 0
        %3583 = vmatpush1.bf16.msra.mxu0 0
        %3584 = vmatprep.subr.bf16.mxu0 0
        %3585 = vmatpush1.bf16.msra.mxu0 0
        %3586 = vmatprep.subr.bf16.mxu0 0
        %3587 = vmatpush1.bf16.msra.mxu0 0
        %3588 = vmatprep.subr.bf16.mxu0 0
        %3589 = vmatpush1.bf16.msra.mxu0 0
        %3590 = vmatprep.mubr.bf16.mxu0 0
        %3591 = vmatmul.mubr.bf16.gmra.mrb[0].mxu0 %v3547
        %v3592 = vpop.f32.mrb[0].mxu0
        %v3593 = vadd.f32 0.0, %v3592
        %v3594 = vpop.f32.mrb[0].mxu0
        %v3595 = vpop.f32.mrb[0].mxu0
        %v3596 = vadd.f32 0.0, %v3595
        %v3597 = vpop.f32.mrb[0].mxu0
        %3598 = vmatprep.mubr.bf16.mxu0 0
        %3599 = vmatmul.mubr.bf16.gmra.mrb[0].mxu0 %v3550
        %v3600 = vpop.f32.mrb[0].mxu0
        %v3601 = vadd.f32 0.0, %v3600
        %v3602 = vpop.f32.mrb[0].mxu0
        %v3603 = vpop.f32.mrb[0].mxu0
        %v3604 = vadd.f32 0.0, %v3603
        %v3605 = vpop.f32.mrb[0].mxu0
        %3606 = vmatprep.mubr.bf16.mxu0 0
        %3607 = vmatmul.mubr.bf16.gmra.mrb[0].mxu0 %v3553
        %v3608 = vpop.f32.mrb[0].mxu0
        %v3609 = vadd.f32 0.0, %v3608
        %v3610 = vpop.f32.mrb[0].mxu0
        %v3611 = vpop.f32.mrb[0].mxu0
        %v3612 = vadd.f32 0.0, %v3611
        %v3613 = vpop.f32.mrb[0].mxu0
        %3614 = vmatprep.mubr.bf16.mxu0 0
        %3615 = vmatmul.mubr.bf16.gmra.mrb[0].mxu0 %v3556
        %v3616 = vpop.f32.mrb[0].mxu0
        %v3617 = vadd.f32 0.0, %v3616
        %v3618 = vpop.f32.mrb[0].mxu0
        %v3619 = vpop.f32.mrb[0].mxu0
        %v3620 = vadd.f32 0.0, %v3619
        %v3621 = vpop.f32.mrb[0].mxu0
        %3622 = vdwg.mxu0
        %v3623 = vpack.c.bf16 %v3596, %v3593
        %v3624 = vpack.c.bf16 %v3604, %v3601
        %v3625 = vpack.c.bf16 %v3612, %v3609
        %v3626 = vpack.c.bf16 %v3620, %v3617
        %s3627 = scalar_lea.vmem %s49, 40
        %v3628 = vld [vmem:[%s3627] sm:$0xff]
        %v3629 = vld [vmem:[%s3627 + $0x8] sm:$0xff]
        %v3630 = vld [vmem:[%s3627 + $0x10] sm:$0xff]
        %v3631 = vld [vmem:[%s3627 + $0x18] sm:$0xff]
        %v3632 = vld [vmem:[%s3627 + $0x20] sm:$0xff]
        %v3638 = vunpack.c.l.b16 %v3628
        %v3639 = vunpack.c.h.b16 %v3628
        %v3640 = vunpack.c.l.b16 %v3629
        %v3641 = vunpack.c.h.b16 %v3629
        %v3642 = vunpack.c.l.b16 %v3630
        %v3643 = vunpack.c.h.b16 %v3630
        %v3644 = vunpack.c.l.b16 %v3631
        %v3645 = vunpack.c.h.b16 %v3631
        %v3646 = vunpack.c.l.b16 %v3632
        %v3647 = vunpack.c.h.b16 %v3632
        %v3648 = vpack.c.b16 %v3640, %v3638
        %v3649 = vpack.c.b16 %v3641, %v3639
        %v3650 = vpack.c.b16 %v3644, %v3642
        %v3651 = vpack.c.b16 %v3645, %v3643
        %v3652 = vpack.c.b16 %v3646, %v3646
        %v3653 = vpack.c.b16 %v3647, %v3647
        %v3659 = vsel %vm2611, %v3623, 0
        %v3662 = vsel %vm2611, %v3624, 0
        %v3665 = vsel %vm2611, %v3625, 0
        %v3668 = vsel %vm2611, %v3626, 0
        %v3671 = vsel %vm1501, %v3652, 0
        %v3674 = vsel %vm1501, %v3653, 0
        %3676 = vmatprep.subr.bf16.mxu0 %v3649
        %3677 = vmatpush1.bf16.msra.mxu0 %v3648
        %3678 = vmatprep.subr.bf16.mxu0 %v3651
        %3679 = vmatpush1.bf16.msra.mxu0 %v3650
        %3680 = vmatprep.subr.bf16.mxu0 %v3674
        %3681 = vmatpush1.bf16.msra.mxu0 %v3671
        %3682 = vmatprep.subr.bf16.mxu0 0
        %3683 = vmatpush1.bf16.msra.mxu0 0
        %3684 = vmatprep.subr.bf16.mxu0 0
        %3685 = vmatpush1.bf16.msra.mxu0 0
        %3686 = vmatprep.subr.bf16.mxu0 0
        %3687 = vmatpush1.bf16.msra.mxu0 0
        %3688 = vmatprep.subr.bf16.mxu0 0
        %3689 = vmatpush1.bf16.msra.mxu0 0
        %3690 = vmatprep.subr.bf16.mxu0 0
        %3691 = vmatpush1.bf16.msra.mxu0 0
        %3692 = vmatprep.subr.bf16.mxu0 0
        %3693 = vmatpush1.bf16.msra.mxu0 0
        %3694 = vmatprep.subr.bf16.mxu0 0
        %3695 = vmatpush1.bf16.msra.mxu0 0
        %3696 = vmatprep.subr.bf16.mxu0 0
        %3697 = vmatpush1.bf16.msra.mxu0 0
        %3698 = vmatprep.subr.bf16.mxu0 0
        %3699 = vmatpush1.bf16.msra.mxu0 0
        %3700 = vmatprep.subr.bf16.mxu0 0
        %3701 = vmatpush1.bf16.msra.mxu0 0
        %3702 = vmatprep.subr.bf16.mxu0 0
        %3703 = vmatpush1.bf16.msra.mxu0 0
        %3704 = vmatprep.subr.bf16.mxu0 0
        %3705 = vmatpush1.bf16.msra.mxu0 0
        %3706 = vmatprep.subr.bf16.mxu0 0
        %3707 = vmatpush1.bf16.msra.mxu0 0
        %3708 = vmatprep.mubr.bf16.mxu0 0
        %3709 = vmatmul.mubr.bf16.gmra.mrb[0].mxu0 %v3659
        %v3710 = vpop.f32.mrb[0].mxu0
        %v3711 = vadd.f32 0.0, %v3710
        %v3712 = vpop.f32.mrb[0].mxu0
        %v3713 = vadd.f32 0.0, %v3712
        %v3714 = vpop.f32.mrb[0].mxu0
        %v3715 = vadd.f32 0.0, %v3714
        %v3716 = vpop.f32.mrb[0].mxu0
        %v3717 = vadd.f32 0.0, %v3716
        %3718 = vmatprep.mubr.bf16.mxu0 0
        %3719 = vmatmul.mubr.bf16.gmra.mrb[0].mxu0 %v3662
        %v3720 = vpop.f32.mrb[0].mxu0
        %v3721 = vadd.f32 0.0, %v3720
        %v3722 = vpop.f32.mrb[0].mxu0
        %v3723 = vadd.f32 0.0, %v3722
        %v3724 = vpop.f32.mrb[0].mxu0
        %v3725 = vadd.f32 0.0, %v3724
        %v3726 = vpop.f32.mrb[0].mxu0
        %v3727 = vadd.f32 0.0, %v3726
        %3728 = vmatprep.mubr.bf16.mxu0 0
        %3729 = vmatmul.mubr.bf16.gmra.mrb[0].mxu0 %v3665
        %v3730 = vpop.f32.mrb[0].mxu0
        %v3731 = vadd.f32 0.0, %v3730
        %v3732 = vpop.f32.mrb[0].mxu0
        %v3733 = vadd.f32 0.0, %v3732
        %v3734 = vpop.f32.mrb[0].mxu0
        %v3735 = vadd.f32 0.0, %v3734
        %v3736 = vpop.f32.mrb[0].mxu0
        %v3737 = vadd.f32 0.0, %v3736
        %3738 = vmatprep.mubr.bf16.mxu0 0
        %3739 = vmatmul.mubr.bf16.gmra.mrb[0].mxu0 %v3668
        %v3740 = vpop.f32.mrb[0].mxu0
        %v3741 = vadd.f32 0.0, %v3740
        %v3742 = vpop.f32.mrb[0].mxu0
        %v3743 = vadd.f32 0.0, %v3742
        %v3744 = vpop.f32.mrb[0].mxu0
        %v3745 = vadd.f32 0.0, %v3744
        %v3746 = vpop.f32.mrb[0].mxu0
        %v3747 = vadd.f32 0.0, %v3746
        %3748 = vdwg.mxu0
        %v3754 = vunpack.c.l.b16 %v2878
        %v3755 = vunpack.c.h.b16 %v2878
        %v3756 = vunpack.c.l.b16 %v2879
        %v3757 = vunpack.c.h.b16 %v2879
        %v3758 = vunpack.c.l.b16 %v2880
        %v3759 = vunpack.c.h.b16 %v2880
        %v3760 = vunpack.c.l.b16 %v2881
        %v3761 = vunpack.c.h.b16 %v2881
        %v3762 = vunpack.c.l.b16 %v2882
        %v3763 = vunpack.c.h.b16 %v2882
        %v3764 = vpack.c.b16 %v3756, %v3754
        %v3765 = vpack.c.b16 %v3757, %v3755
        %v3766 = vpack.c.b16 %v3760, %v3758
        %v3767 = vpack.c.b16 %v3761, %v3759
        %v3768 = vpack.c.b16 %v3762, %v3762
        %v3769 = vpack.c.b16 %v3763, %v3763
        %v3775 = vsel %vm2611, %v2874, 0
        %v3778 = vsel %vm2611, %v2875, 0
        %v3781 = vsel %vm2611, %v2876, 0
        %v3784 = vsel %vm2611, %v2877, 0
        %v3787 = vsel %vm1501, %v3768, 0
        %v3790 = vsel %vm1501, %v3769, 0
        %3792 = vmatprep.subr.bf16.mxu0 %v3765
        %3793 = vmatpush1.bf16.msra.mxu0 %v3764
        %3794 = vmatprep.subr.bf16.mxu0 %v3767
        %3795 = vmatpush1.bf16.msra.mxu0 %v3766
        %3796 = vmatprep.subr.bf16.mxu0 %v3790
        %3797 = vmatpush1.bf16.msra.mxu0 %v3787
        %3798 = vmatprep.subr.bf16.mxu0 0
        %3799 = vmatpush1.bf16.msra.mxu0 0
        %3800 = vmatprep.subr.bf16.mxu0 0
        %3801 = vmatpush1.bf16.msra.mxu0 0
        %3802 = vmatprep.subr.bf16.mxu0 0
        %3803 = vmatpush1.bf16.msra.mxu0 0
        %3804 = vmatprep.subr.bf16.mxu0 0
        %3805 = vmatpush1.bf16.msra.mxu0 0
        %3806 = vmatprep.subr.bf16.mxu0 0
        %3807 = vmatpush1.bf16.msra.mxu0 0
        %3808 = vmatprep.subr.bf16.mxu0 0
        %3809 = vmatpush1.bf16.msra.mxu0 0
        %3810 = vmatprep.subr.bf16.mxu0 0
        %3811 = vmatpush1.bf16.msra.mxu0 0
        %3812 = vmatprep.subr.bf16.mxu0 0
        %3813 = vmatpush1.bf16.msra.mxu0 0
        %3814 = vmatprep.subr.bf16.mxu0 0
        %3815 = vmatpush1.bf16.msra.mxu0 0
        %3816 = vmatprep.subr.bf16.mxu0 0
        %3817 = vmatpush1.bf16.msra.mxu0 0
        %3818 = vmatprep.subr.bf16.mxu0 0
        %3819 = vmatpush1.bf16.msra.mxu0 0
        %3820 = vmatprep.subr.bf16.mxu0 0
        %3821 = vmatpush1.bf16.msra.mxu0 0
        %3822 = vmatprep.subr.bf16.mxu0 0
        %3823 = vmatpush1.bf16.msra.mxu0 0
        %3824 = vmatprep.mubr.bf16.mxu0 0
        %3825 = vmatmul.mubr.bf16.gmra.mrb[0].mxu0 %v3775
        %v3826 = vpop.f32.mrb[0].mxu0
        %v3827 = vadd.f32 %v3711, %v3826
        %v3828 = vpop.f32.mrb[0].mxu0
        %v3829 = vadd.f32 %v3713, %v3828
        %v3830 = vpop.f32.mrb[0].mxu0
        %v3831 = vadd.f32 %v3715, %v3830
        %v3832 = vpop.f32.mrb[0].mxu0
        %v3833 = vadd.f32 %v3717, %v3832
        %3834 = vmatprep.mubr.bf16.mxu0 0
        %3835 = vmatmul.mubr.bf16.gmra.mrb[0].mxu0 %v3778
        %v3836 = vpop.f32.mrb[0].mxu0
        %v3837 = vadd.f32 %v3721, %v3836
        %v3838 = vpop.f32.mrb[0].mxu0
        %v3839 = vadd.f32 %v3723, %v3838
        %v3840 = vpop.f32.mrb[0].mxu0
        %v3841 = vadd.f32 %v3725, %v3840
        %v3842 = vpop.f32.mrb[0].mxu0
        %v3843 = vadd.f32 %v3727, %v3842
        %3844 = vmatprep.mubr.bf16.mxu0 0
        %3845 = vmatmul.mubr.bf16.gmra.mrb[0].mxu0 %v3781
        %v3846 = vpop.f32.mrb[0].mxu0
        %v3847 = vadd.f32 %v3731, %v3846
        %v3848 = vpop.f32.mrb[0].mxu0
        %v3849 = vadd.f32 %v3733, %v3848
        %v3850 = vpop.f32.mrb[0].mxu0
        %v3851 = vadd.f32 %v3735, %v3850
        %v3852 = vpop.f32.mrb[0].mxu0
        %v3853 = vadd.f32 %v3737, %v3852
        %3854 = vmatprep.mubr.bf16.mxu0 0
        %3855 = vmatmul.mubr.bf16.gmra.mrb[0].mxu0 %v3784
        %v3856 = vpop.f32.mrb[0].mxu0
        %v3857 = vadd.f32 %v3741, %v3856
        %v3858 = vpop.f32.mrb[0].mxu0
        %v3859 = vadd.f32 %v3743, %v3858
        %v3860 = vpop.f32.mrb[0].mxu0
        %v3861 = vadd.f32 %v3745, %v3860
        %v3862 = vpop.f32.mrb[0].mxu0
        %v3863 = vadd.f32 %v3747, %v3862
        %3864 = vdwg.mxu0
        %s3865 = scalar_lea.vmem %s37, 160
        %v3866 = vld [vmem:[%s3865] sm:$0xf]
        %v3867 = vld [vmem:[%s3865 + $0x4] sm:$0xf]
        %v3868 = vld [vmem:[%s3865 + $0x8] sm:$0xf]
        %v3869 = vld [vmem:[%s3865 + $0xc] sm:$0xf]
        %v3870 = vld [vmem:[%s3865 + $0x10] sm:$0xf]
        %v3871 = vld [vmem:[%s3865 + $0x14] sm:$0xf]
        %v3872 = vld [vmem:[%s3865 + $0x18] sm:$0xf]
        %v3873 = vld [vmem:[%s3865 + $0x1c] sm:$0xf]
        %v3874 = vld [vmem:[%s3865 + $0x20] sm:$0xf]
        %v3875 = vld [vmem:[%s3865 + $0x24] sm:$0xf]
        %v3876 = vld [vmem:[%s3865 + $0x28] sm:$0xf]
        %v3877 = vld [vmem:[%s3865 + $0x2c] sm:$0xf]
        %v3878 = vld [vmem:[%s3865 + $0x30] sm:$0xf]
        %v3879 = vld [vmem:[%s3865 + $0x34] sm:$0xf]
        %v3880 = vld [vmem:[%s3865 + $0x38] sm:$0xf]
        %v3881 = vld [vmem:[%s3865 + $0x3c] sm:$0xf]
        %v3882 = vld [vmem:[%s3865 + $0x40] sm:$0xf]
        %v3883 = vld [vmem:[%s3865 + $0x44] sm:$0xf]
        %v3884 = vld [vmem:[%s3865 + $0x48] sm:$0xf]
        %v3885 = vld [vmem:[%s3865 + $0x4c] sm:$0xf]
        %s3886 = scalar_lea.vmem %s39, 2
        %v3887 = vld [vmem:[%s3886] sm:$0x1]
        %v3889 = vlaneseq
        %v3890 = vshrl.u32 %v3889, 7
        %v3891 = vsub.s32 0, %v3890
        %v3892 = vrot.slane %v3887, %v3891
        %v3914 = vunpack.c.l.b16 %v3866
        %v3915 = vunpack.c.l.b16 %v3867
        %v3916 = vunpack.c.l.b16 %v3868
        %v3917 = vunpack.c.l.b16 %v3869
        %v3918 = vunpack.c.l.b16 %v3870
        %v3919 = vunpack.c.l.b16 %v3871
        %v3920 = vunpack.c.l.b16 %v3872
        %v3921 = vunpack.c.l.b16 %v3873
        %v3922 = vunpack.c.l.b16 %v3874
        %v3923 = vunpack.c.l.b16 %v3875
        %v3924 = vunpack.c.l.b16 %v3876
        %v3925 = vunpack.c.l.b16 %v3877
        %v3926 = vunpack.c.l.b16 %v3878
        %v3927 = vunpack.c.l.b16 %v3879
        %v3928 = vunpack.c.l.b16 %v3880
        %v3929 = vunpack.c.l.b16 %v3881
        %v3930 = vunpack.c.l.b16 %v3882
        %v3931 = vunpack.c.l.b16 %v3883
        %v3932 = vunpack.c.l.b16 %v3884
        %v3933 = vunpack.c.l.b16 %v3885
        %v3934 = vpack.c.b16 %v3915, %v3914
        %v3935 = vpack.c.b16 %v3917, %v3916
        %v3936 = vpack.c.b16 %v3919, %v3918
        %v3937 = vpack.c.b16 %v3921, %v3920
        %v3938 = vpack.c.b16 %v3923, %v3922
        %v3939 = vpack.c.b16 %v3925, %v3924
        %v3940 = vpack.c.b16 %v3927, %v3926
        %v3941 = vpack.c.b16 %v3929, %v3928
        %v3942 = vpack.c.b16 %v3931, %v3930
        %v3943 = vpack.c.b16 %v3933, %v3932
        %3954 = vmatprep.subr.bf16.mxu0 0
        %3955 = vmatpush1.bf16.msra.mxu0 %v3934
        %3956 = vmatprep.subr.bf16.mxu0 0
        %3957 = vmatpush1.bf16.msra.mxu0 %v3935
        %3958 = vmatprep.subr.bf16.mxu0 0
        %3959 = vmatpush1.bf16.msra.mxu0 %v3936
        %3960 = vmatprep.subr.bf16.mxu0 0
        %3961 = vmatpush1.bf16.msra.mxu0 %v3937
        %3962 = vmatprep.subr.bf16.mxu0 0
        %3963 = vmatpush1.bf16.msra.mxu0 %v3938
        %3964 = vmatprep.subr.bf16.mxu0 0
        %3965 = vmatpush1.bf16.msra.mxu0 %v3939
        %3966 = vmatprep.subr.bf16.mxu0 0
        %3967 = vmatpush1.bf16.msra.mxu0 %v3940
        %3968 = vmatprep.subr.bf16.mxu0 0
        %3969 = vmatpush1.bf16.msra.mxu0 %v3941
        %3970 = vmatprep.subr.bf16.mxu0 0
        %3971 = vmatpush1.bf16.msra.mxu0 %v3942
        %3972 = vmatprep.subr.bf16.mxu0 0
        %3973 = vmatpush1.bf16.msra.mxu0 %v3943
        %3974 = vmatprep.subr.bf16.mxu0 0
        %3975 = vmatpush1.bf16.msra.mxu0 0
        %3976 = vmatprep.subr.bf16.mxu0 0
        %3977 = vmatpush1.bf16.msra.mxu0 0
        %3978 = vmatprep.subr.bf16.mxu0 0
        %3979 = vmatpush1.bf16.msra.mxu0 0
        %3980 = vmatprep.subr.bf16.mxu0 0
        %3981 = vmatpush1.bf16.msra.mxu0 0
        %3982 = vmatprep.subr.bf16.mxu0 0
        %3983 = vmatpush1.bf16.msra.mxu0 0
        %3984 = vmatprep.subr.bf16.mxu0 0
        %3985 = vmatpush1.bf16.msra.mxu0 0
        %3986 = vmatprep.mubr.bf16.mxu0 %v2215
        %3987 = vmatmul.mubr.bf16.gmra.mrb[0].mxu0 %v2111
        %v3988 = vpop.f32.mrb[0].mxu0
        %v3989 = vadd.f32 %v3892, %v3988
        %v3990 = vpop.f32.mrb[0].mxu0
        %v3991 = vpop.f32.mrb[0].mxu0
        %v3992 = vadd.f32 %v3892, %v3991
        %v3993 = vpop.f32.mrb[0].mxu0
        %3994 = vmatprep.mubr.bf16.mxu0 %v2218
        %3995 = vmatmul.mubr.bf16.gmra.mrb[0].mxu0 %v2113
        %v3996 = vpop.f32.mrb[0].mxu0
        %v3997 = vadd.f32 %v3892, %v3996
        %v3998 = vpop.f32.mrb[0].mxu0
        %v3999 = vpop.f32.mrb[0].mxu0
        %v4000 = vadd.f32 %v3892, %v3999
        %v4001 = vpop.f32.mrb[0].mxu0
        %4002 = vmatprep.mubr.bf16.mxu0 %v2221
        %4003 = vmatmul.mubr.bf16.gmra.mrb[0].mxu0 %v2115
        %v4004 = vpop.f32.mrb[0].mxu0
        %v4005 = vadd.f32 %v3892, %v4004
        %v4006 = vpop.f32.mrb[0].mxu0
        %v4007 = vpop.f32.mrb[0].mxu0
        %v4008 = vadd.f32 %v3892, %v4007
        %v4009 = vpop.f32.mrb[0].mxu0
        %4010 = vmatprep.mubr.bf16.mxu0 %v2224
        %4011 = vmatmul.mubr.bf16.gmra.mrb[0].mxu0 %v2117
        %v4012 = vpop.f32.mrb[0].mxu0
        %v4013 = vadd.f32 %v3892, %v4012
        %v4014 = vpop.f32.mrb[0].mxu0
        %v4015 = vpop.f32.mrb[0].mxu0
        %v4016 = vadd.f32 %v3892, %v4015
        %v4017 = vpop.f32.mrb[0].mxu0
        %4018 = vdwg.mxu0
        %v4019 = vmul.f32 %v3989, 0.15811388
        %v4020 = vmul.f32 %v3992, 0.15811388
        %v4021 = vmul.f32 %v3997, 0.15811388
        %v4022 = vmul.f32 %v4000, 0.15811388
        %v4023 = vmul.f32 %v4005, 0.15811388
        %v4024 = vmul.f32 %v4008, 0.15811388
        %v4025 = vmul.f32 %v4013, 0.15811388
        %v4026 = vmul.f32 %v4016, 0.15811388
        %s4027 = scalar_lea.vmem %s41, 160
        %v4028 = vld [vmem:[%s4027] sm:$0xf]
        %v4029 = vld [vmem:[%s4027 + $0x4] sm:$0xf]
        %v4030 = vld [vmem:[%s4027 + $0x8] sm:$0xf]
        %v4031 = vld [vmem:[%s4027 + $0xc] sm:$0xf]
        %v4032 = vld [vmem:[%s4027 + $0x10] sm:$0xf]
        %v4033 = vld [vmem:[%s4027 + $0x14] sm:$0xf]
        %v4034 = vld [vmem:[%s4027 + $0x18] sm:$0xf]
        %v4035 = vld [vmem:[%s4027 + $0x1c] sm:$0xf]
        %v4036 = vld [vmem:[%s4027 + $0x20] sm:$0xf]
        %v4037 = vld [vmem:[%s4027 + $0x24] sm:$0xf]
        %v4038 = vld [vmem:[%s4027 + $0x28] sm:$0xf]
        %v4039 = vld [vmem:[%s4027 + $0x2c] sm:$0xf]
        %v4040 = vld [vmem:[%s4027 + $0x30] sm:$0xf]
        %v4041 = vld [vmem:[%s4027 + $0x34] sm:$0xf]
        %v4042 = vld [vmem:[%s4027 + $0x38] sm:$0xf]
        %v4043 = vld [vmem:[%s4027 + $0x3c] sm:$0xf]
        %v4044 = vld [vmem:[%s4027 + $0x40] sm:$0xf]
        %v4045 = vld [vmem:[%s4027 + $0x44] sm:$0xf]
        %v4046 = vld [vmem:[%s4027 + $0x48] sm:$0xf]
        %v4047 = vld [vmem:[%s4027 + $0x4c] sm:$0xf]
        %s4048 = scalar_lea.vmem %s43, 2
        %v4049 = vld [vmem:[%s4048] sm:$0x1]
        %v4051 = vlaneseq
        %v4052 = vshrl.u32 %v4051, 7
        %v4053 = vsub.s32 0, %v4052
        %v4054 = vrot.slane %v4049, %v4053
        %v4076 = vunpack.c.l.b16 %v4028
        %v4077 = vunpack.c.l.b16 %v4029
        %v4078 = vunpack.c.l.b16 %v4030
        %v4079 = vunpack.c.l.b16 %v4031
        %v4080 = vunpack.c.l.b16 %v4032
        %v4081 = vunpack.c.l.b16 %v4033
        %v4082 = vunpack.c.l.b16 %v4034
        %v4083 = vunpack.c.l.b16 %v4035
        %v4084 = vunpack.c.l.b16 %v4036
        %v4085 = vunpack.c.l.b16 %v4037
        %v4086 = vunpack.c.l.b16 %v4038
        %v4087 = vunpack.c.l.b16 %v4039
        %v4088 = vunpack.c.l.b16 %v4040
        %v4089 = vunpack.c.l.b16 %v4041
        %v4090 = vunpack.c.l.b16 %v4042
        %v4091 = vunpack.c.l.b16 %v4043
        %v4092 = vunpack.c.l.b16 %v4044
        %v4093 = vunpack.c.l.b16 %v4045
        %v4094 = vunpack.c.l.b16 %v4046
        %v4095 = vunpack.c.l.b16 %v4047
        %v4096 = vpack.c.b16 %v4077, %v4076
        %v4097 = vpack.c.b16 %v4079, %v4078
        %v4098 = vpack.c.b16 %v4081, %v4080
        %v4099 = vpack.c.b16 %v4083, %v4082
        %v4100 = vpack.c.b16 %v4085, %v4084
        %v4101 = vpack.c.b16 %v4087, %v4086
        %v4102 = vpack.c.b16 %v4089, %v4088
        %v4103 = vpack.c.b16 %v4091, %v4090
        %v4104 = vpack.c.b16 %v4093, %v4092
        %v4105 = vpack.c.b16 %v4095, %v4094
        %4116 = vmatprep.subr.bf16.mxu0 0
        %4117 = vmatpush1.bf16.msra.mxu0 %v4096
        %4118 = vmatprep.subr.bf16.mxu0 0
        %4119 = vmatpush1.bf16.msra.mxu0 %v4097
        %4120 = vmatprep.subr.bf16.mxu0 0
        %4121 = vmatpush1.bf16.msra.mxu0 %v4098
        %4122 = vmatprep.subr.bf16.mxu0 0
        %4123 = vmatpush1.bf16.msra.mxu0 %v4099
        %4124 = vmatprep.subr.bf16.mxu0 0
        %4125 = vmatpush1.bf16.msra.mxu0 %v4100
        %4126 = vmatprep.subr.bf16.mxu0 0
        %4127 = vmatpush1.bf16.msra.mxu0 %v4101
        %4128 = vmatprep.subr.bf16.mxu0 0
        %4129 = vmatpush1.bf16.msra.mxu0 %v4102
        %4130 = vmatprep.subr.bf16.mxu0 0
        %4131 = vmatpush1.bf16.msra.mxu0 %v4103
        %4132 = vmatprep.subr.bf16.mxu0 0
        %4133 = vmatpush1.bf16.msra.mxu0 %v4104
        %4134 = vmatprep.subr.bf16.mxu0 0
        %4135 = vmatpush1.bf16.msra.mxu0 %v4105
        %4136 = vmatprep.subr.bf16.mxu0 0
        %4137 = vmatpush1.bf16.msra.mxu0 0
        %4138 = vmatprep.subr.bf16.mxu0 0
        %4139 = vmatpush1.bf16.msra.mxu0 0
        %4140 = vmatprep.subr.bf16.mxu0 0
        %4141 = vmatpush1.bf16.msra.mxu0 0
        %4142 = vmatprep.subr.bf16.mxu0 0
        %4143 = vmatpush1.bf16.msra.mxu0 0
        %4144 = vmatprep.subr.bf16.mxu0 0
        %4145 = vmatpush1.bf16.msra.mxu0 0
        %4146 = vmatprep.subr.bf16.mxu0 0
        %4147 = vmatpush1.bf16.msra.mxu0 0
        %4148 = vmatprep.mubr.bf16.mxu0 %v2215
        %4149 = vmatmul.mubr.bf16.gmra.mrb[0].mxu0 %v2111
        %v4150 = vpop.f32.mrb[0].mxu0
        %v4151 = vadd.f32 %v4054, %v4150
        %v4152 = vpop.f32.mrb[0].mxu0
        %v4153 = vpop.f32.mrb[0].mxu0
        %v4154 = vadd.f32 %v4054, %v4153
        %v4155 = vpop.f32.mrb[0].mxu0
        %4156 = vmatprep.mubr.bf16.mxu0 %v2218
        %4157 = vmatmul.mubr.bf16.gmra.mrb[0].mxu0 %v2113
        %v4158 = vpop.f32.mrb[0].mxu0
        %v4159 = vadd.f32 %v4054, %v4158
        %v4160 = vpop.f32.mrb[0].mxu0
        %v4161 = vpop.f32.mrb[0].mxu0
        %v4162 = vadd.f32 %v4054, %v4161
        %v4163 = vpop.f32.mrb[0].mxu0
        %4164 = vmatprep.mubr.bf16.mxu0 %v2221
        %4165 = vmatmul.mubr.bf16.gmra.mrb[0].mxu0 %v2115
        %v4166 = vpop.f32.mrb[0].mxu0
        %v4167 = vadd.f32 %v4054, %v4166
        %v4168 = vpop.f32.mrb[0].mxu0
        %v4169 = vpop.f32.mrb[0].mxu0
        %v4170 = vadd.f32 %v4054, %v4169
        %v4171 = vpop.f32.mrb[0].mxu0
        %4172 = vmatprep.mubr.bf16.mxu0 %v2224
        %4173 = vmatmul.mubr.bf16.gmra.mrb[0].mxu0 %v2117
        %v4174 = vpop.f32.mrb[0].mxu0
        %v4175 = vadd.f32 %v4054, %v4174
        %v4176 = vpop.f32.mrb[0].mxu0
        %v4177 = vpop.f32.mrb[0].mxu0
        %v4178 = vadd.f32 %v4054, %v4177
        %v4179 = vpop.f32.mrb[0].mxu0
        %4180 = vdwg.mxu0
        %s4181 = scalar_lea.vmem %s45, 160
        %v4182 = vld [vmem:[%s4181] sm:$0xf]
        %v4183 = vld [vmem:[%s4181 + $0x4] sm:$0xf]
        %v4184 = vld [vmem:[%s4181 + $0x8] sm:$0xf]
        %v4185 = vld [vmem:[%s4181 + $0xc] sm:$0xf]
        %v4186 = vld [vmem:[%s4181 + $0x10] sm:$0xf]
        %v4187 = vld [vmem:[%s4181 + $0x14] sm:$0xf]
        %v4188 = vld [vmem:[%s4181 + $0x18] sm:$0xf]
        %v4189 = vld [vmem:[%s4181 + $0x1c] sm:$0xf]
        %v4190 = vld [vmem:[%s4181 + $0x20] sm:$0xf]
        %v4191 = vld [vmem:[%s4181 + $0x24] sm:$0xf]
        %v4192 = vld [vmem:[%s4181 + $0x28] sm:$0xf]
        %v4193 = vld [vmem:[%s4181 + $0x2c] sm:$0xf]
        %v4194 = vld [vmem:[%s4181 + $0x30] sm:$0xf]
        %v4195 = vld [vmem:[%s4181 + $0x34] sm:$0xf]
        %v4196 = vld [vmem:[%s4181 + $0x38] sm:$0xf]
        %v4197 = vld [vmem:[%s4181 + $0x3c] sm:$0xf]
        %v4198 = vld [vmem:[%s4181 + $0x40] sm:$0xf]
        %v4199 = vld [vmem:[%s4181 + $0x44] sm:$0xf]
        %v4200 = vld [vmem:[%s4181 + $0x48] sm:$0xf]
        %v4201 = vld [vmem:[%s4181 + $0x4c] sm:$0xf]
        %s4202 = scalar_lea.vmem %s47, 2
        %v4203 = vld [vmem:[%s4202] sm:$0x1]
        %v4205 = vlaneseq
        %v4206 = vshrl.u32 %v4205, 7
        %v4207 = vsub.s32 0, %v4206
        %v4208 = vrot.slane %v4203, %v4207
        %v4230 = vunpack.c.l.b16 %v4182
        %v4231 = vunpack.c.l.b16 %v4183
        %v4232 = vunpack.c.l.b16 %v4184
        %v4233 = vunpack.c.l.b16 %v4185
        %v4234 = vunpack.c.l.b16 %v4186
        %v4235 = vunpack.c.l.b16 %v4187
        %v4236 = vunpack.c.l.b16 %v4188
        %v4237 = vunpack.c.l.b16 %v4189
        %v4238 = vunpack.c.l.b16 %v4190
        %v4239 = vunpack.c.l.b16 %v4191
        %v4240 = vunpack.c.l.b16 %v4192
        %v4241 = vunpack.c.l.b16 %v4193
        %v4242 = vunpack.c.l.b16 %v4194
        %v4243 = vunpack.c.l.b16 %v4195
        %v4244 = vunpack.c.l.b16 %v4196
        %v4245 = vunpack.c.l.b16 %v4197
        %v4246 = vunpack.c.l.b16 %v4198
        %v4247 = vunpack.c.l.b16 %v4199
        %v4248 = vunpack.c.l.b16 %v4200
        %v4249 = vunpack.c.l.b16 %v4201
        %v4250 = vpack.c.b16 %v4231, %v4230
        %v4251 = vpack.c.b16 %v4233, %v4232
        %v4252 = vpack.c.b16 %v4235, %v4234
        %v4253 = vpack.c.b16 %v4237, %v4236
        %v4254 = vpack.c.b16 %v4239, %v4238
        %v4255 = vpack.c.b16 %v4241, %v4240
        %v4256 = vpack.c.b16 %v4243, %v4242
        %v4257 = vpack.c.b16 %v4245, %v4244
        %v4258 = vpack.c.b16 %v4247, %v4246
        %v4259 = vpack.c.b16 %v4249, %v4248
        %4270 = vmatprep.subr.bf16.mxu0 0
        %4271 = vmatpush1.bf16.msra.mxu0 %v4250
        %4272 = vmatprep.subr.bf16.mxu0 0
        %4273 = vmatpush1.bf16.msra.mxu0 %v4251
        %4274 = vmatprep.subr.bf16.mxu0 0
        %4275 = vmatpush1.bf16.msra.mxu0 %v4252
        %4276 = vmatprep.subr.bf16.mxu0 0
        %4277 = vmatpush1.bf16.msra.mxu0 %v4253
        %4278 = vmatprep.subr.bf16.mxu0 0
        %4279 = vmatpush1.bf16.msra.mxu0 %v4254
        %4280 = vmatprep.subr.bf16.mxu0 0
        %4281 = vmatpush1.bf16.msra.mxu0 %v4255
        %4282 = vmatprep.subr.bf16.mxu0 0
        %4283 = vmatpush1.bf16.msra.mxu0 %v4256
        %4284 = vmatprep.subr.bf16.mxu0 0
        %4285 = vmatpush1.bf16.msra.mxu0 %v4257
        %4286 = vmatprep.subr.bf16.mxu0 0
        %4287 = vmatpush1.bf16.msra.mxu0 %v4258
        %4288 = vmatprep.subr.bf16.mxu0 0
        %4289 = vmatpush1.bf16.msra.mxu0 %v4259
        %4290 = vmatprep.subr.bf16.mxu0 0
        %4291 = vmatpush1.bf16.msra.mxu0 0
        %4292 = vmatprep.subr.bf16.mxu0 0
        %4293 = vmatpush1.bf16.msra.mxu0 0
        %4294 = vmatprep.subr.bf16.mxu0 0
        %4295 = vmatpush1.bf16.msra.mxu0 0
        %4296 = vmatprep.subr.bf16.mxu0 0
        %4297 = vmatpush1.bf16.msra.mxu0 0
        %4298 = vmatprep.subr.bf16.mxu0 0
        %4299 = vmatpush1.bf16.msra.mxu0 0
        %4300 = vmatprep.subr.bf16.mxu0 0
        %4301 = vmatpush1.bf16.msra.mxu0 0
        %4302 = vmatprep.mubr.bf16.mxu0 %v2215
        %4303 = vmatmul.mubr.bf16.gmra.mrb[0].mxu0 %v2111
        %v4304 = vpop.f32.mrb[0].mxu0
        %v4305 = vadd.f32 %v4208, %v4304
        %v4306 = vpop.f32.mrb[0].mxu0
        %v4307 = vpop.f32.mrb[0].mxu0
        %v4308 = vadd.f32 %v4208, %v4307
        %v4309 = vpop.f32.mrb[0].mxu0
        %4310 = vmatprep.mubr.bf16.mxu0 %v2218
        %4311 = vmatmul.mubr.bf16.gmra.mrb[0].mxu0 %v2113
        %v4312 = vpop.f32.mrb[0].mxu0
        %v4313 = vadd.f32 %v4208, %v4312
        %v4314 = vpop.f32.mrb[0].mxu0
        %v4315 = vpop.f32.mrb[0].mxu0
        %v4316 = vadd.f32 %v4208, %v4315
        %v4317 = vpop.f32.mrb[0].mxu0
        %4318 = vmatprep.mubr.bf16.mxu0 %v2221
        %4319 = vmatmul.mubr.bf16.gmra.mrb[0].mxu0 %v2115
        %v4320 = vpop.f32.mrb[0].mxu0
        %v4321 = vadd.f32 %v4208, %v4320
        %v4322 = vpop.f32.mrb[0].mxu0
        %v4323 = vpop.f32.mrb[0].mxu0
        %v4324 = vadd.f32 %v4208, %v4323
        %v4325 = vpop.f32.mrb[0].mxu0
        %4326 = vmatprep.mubr.bf16.mxu0 %v2224
        %4327 = vmatmul.mubr.bf16.gmra.mrb[0].mxu0 %v2117
        %v4328 = vpop.f32.mrb[0].mxu0
        %v4329 = vadd.f32 %v4208, %v4328
        %v4330 = vpop.f32.mrb[0].mxu0
        %v4331 = vpop.f32.mrb[0].mxu0
        %v4332 = vadd.f32 %v4208, %v4331
        %v4333 = vpop.f32.mrb[0].mxu0
        %4334 = vdwg.mxu0
        %v4335 = vpack.c.bf16 %v4020, %v4019
        %v4336 = vpack.c.bf16 %v4022, %v4021
        %v4337 = vpack.c.bf16 %v4024, %v4023
        %v4338 = vpack.c.bf16 %v4026, %v4025
        %v4339 = vpack.c.bf16 %v4154, %v4151
        %v4340 = vpack.c.bf16 %v4162, %v4159
        %v4341 = vpack.c.bf16 %v4170, %v4167
        %v4342 = vpack.c.bf16 %v4178, %v4175
        %v4344 = vsel %vm2611, %v4335, 0
        %v4347 = vsel %vm2611, %v4336, 0
        %v4350 = vsel %vm2611, %v4337, 0
        %v4353 = vsel %vm2611, %v4338, 0
        %v4356 = vsel %vm2611, %v4339, 0
        %v4359 = vsel %vm2611, %v4340, 0
        %v4362 = vsel %vm2611, %v4341, 0
        %v4365 = vsel %vm2611, %v4342, 0
        %4367 = vmatprep.subr.bf16.mxu0 0
        %4368 = vmatpush1.bf16.xpose.msra.mxu0 %v4356
        %4369 = vmatprep.subr.bf16.mxu0 0
        %4370 = vmatpush1.bf16.xpose.msra.mxu0 %v4359
        %4371 = vmatprep.subr.bf16.mxu0 0
        %4372 = vmatpush1.bf16.xpose.msra.mxu0 %v4362
        %4373 = vmatprep.subr.bf16.mxu0 0
        %4374 = vmatpush1.bf16.xpose.msra.mxu0 %v4365
        %4375 = vmatprep.subr.bf16.mxu0 0
        %4376 = vmatpush1.bf16.xpose.msra.mxu0 0
        %4377 = vmatprep.subr.bf16.mxu0 0
        %4378 = vmatpush1.bf16.xpose.msra.mxu0 0
        %4379 = vmatprep.subr.bf16.mxu0 0
        %4380 = vmatpush1.bf16.xpose.msra.mxu0 0
        %4381 = vmatprep.subr.bf16.mxu0 0
        %4382 = vmatpush1.bf16.xpose.msra.mxu0 0
        %4383 = vmatprep.subr.bf16.mxu0 0
        %4384 = vmatpush1.bf16.xpose.msra.mxu0 0
        %4385 = vmatprep.subr.bf16.mxu0 0
        %4386 = vmatpush1.bf16.xpose.msra.mxu0 0
        %4387 = vmatprep.subr.bf16.mxu0 0
        %4388 = vmatpush1.bf16.xpose.msra.mxu0 0
        %4389 = vmatprep.subr.bf16.mxu0 0
        %4390 = vmatpush1.bf16.xpose.msra.mxu0 0
        %4391 = vmatprep.subr.bf16.mxu0 0
        %4392 = vmatpush1.bf16.xpose.msra.mxu0 0
        %4393 = vmatprep.subr.bf16.mxu0 0
        %4394 = vmatpush1.bf16.xpose.msra.mxu0 0
        %4395 = vmatprep.subr.bf16.mxu0 0
        %4396 = vmatpush1.bf16.xpose.msra.mxu0 0
        %4397 = vmatprep.subr.bf16.mxu0 0
        %4398 = vmatpush1.bf16.xpose.msra.mxu0 0
        %4399 = vmatprep.mubr.bf16.mxu0 0
        %4400 = vmatmul.mubr.bf16.gmra.mrb[0].mxu0 %v4344
        %v4401 = vpop.f32.mrb[0].mxu0
        %v4402 = vadd.f32 %v2119, %v4401
        %v4403 = vpop.f32.mrb[0].mxu0
        %v4404 = vpop.f32.mrb[0].mxu0
        %v4405 = vadd.f32 %v2120, %v4404
        %v4406 = vpop.f32.mrb[0].mxu0
        %4407 = vmatprep.mubr.bf16.mxu0 0
        %4408 = vmatmul.mubr.bf16.gmra.mrb[0].mxu0 %v4347
        %v4409 = vpop.f32.mrb[0].mxu0
        %v4410 = vadd.f32 %v2121, %v4409
        %v4411 = vpop.f32.mrb[0].mxu0
        %v4412 = vpop.f32.mrb[0].mxu0
        %v4413 = vadd.f32 %v2122, %v4412
        %v4414 = vpop.f32.mrb[0].mxu0
        %4415 = vmatprep.mubr.bf16.mxu0 0
        %4416 = vmatmul.mubr.bf16.gmra.mrb[0].mxu0 %v4350
        %v4417 = vpop.f32.mrb[0].mxu0
        %v4418 = vadd.f32 %v2123, %v4417
        %v4419 = vpop.f32.mrb[0].mxu0
        %v4420 = vpop.f32.mrb[0].mxu0
        %v4421 = vadd.f32 %v2124, %v4420
        %v4422 = vpop.f32.mrb[0].mxu0
        %4423 = vmatprep.mubr.bf16.mxu0 0
        %4424 = vmatmul.mubr.bf16.gmra.mrb[0].mxu0 %v4353
        %v4425 = vpop.f32.mrb[0].mxu0
        %v4426 = vadd.f32 %v2125, %v4425
        %v4427 = vpop.f32.mrb[0].mxu0
        %v4428 = vpop.f32.mrb[0].mxu0
        %v4429 = vadd.f32 %v2126, %v4428
        %v4430 = vpop.f32.mrb[0].mxu0
        %4431 = vdwg.mxu0
        %v4432 = vsel %vm1390, %v4402, -inf
        %4433 = vmax.xlane.f32.xlu0 %v4432
        %v4434 = vpop.xlane.xlu0 %4433
        %v4435 = vsel %vm1390, %v4405, -inf
        %4436 = vmax.xlane.f32.xlu0 %v4435
        %v4437 = vpop.xlane.xlu0 %4436
        %v4438 = vsel %vm1390, %v4410, -inf
        %4439 = vmax.xlane.f32.xlu0 %v4438
        %v4440 = vpop.xlane.xlu0 %4439
        %v4441 = vsel %vm1390, %v4413, -inf
        %4442 = vmax.xlane.f32.xlu0 %v4441
        %v4443 = vpop.xlane.xlu0 %4442
        %v4444 = vsel %vm1390, %v4418, -inf
        %4445 = vmax.xlane.f32.xlu0 %v4444
        %v4446 = vpop.xlane.xlu0 %4445
        %v4447 = vsel %vm1390, %v4421, -inf
        %4448 = vmax.xlane.f32.xlu0 %v4447
        %v4449 = vpop.xlane.xlu0 %4448
        %v4450 = vsel %vm1390, %v4426, -inf
        %4451 = vmax.xlane.f32.xlu0 %v4450
        %v4452 = vpop.xlane.xlu0 %4451
        %v4453 = vsel %vm1390, %v4429, -inf
        %4454 = vmax.xlane.f32.xlu0 %v4453
        %v4455 = vpop.xlane.xlu0 %4454
        %v4456 = vsub.f32 %v4402, %v4434
        %v4457 = vsub.f32 %v4405, %v4437
        %v4458 = vsub.f32 %v4410, %v4440
        %v4459 = vsub.f32 %v4413, %v4443
        %v4460 = vsub.f32 %v4418, %v4446
        %v4461 = vsub.f32 %v4421, %v4449
        %v4462 = vsub.f32 %v4426, %v4452
        %v4463 = vsub.f32 %v4429, %v4455
        %v4464 = vmul.f32 %v4456, 1.442695
        %v4465 = vpow.pop %v4464
        %v4466 = vmul.f32 %v4457, 1.442695
        %v4467 = vpow.pop %v4466
        %v4468 = vmul.f32 %v4458, 1.442695
        %v4469 = vpow.pop %v4468
        %v4470 = vmul.f32 %v4459, 1.442695
        %v4471 = vpow.pop %v4470
        %v4472 = vmul.f32 %v4460, 1.442695
        %v4473 = vpow.pop %v4472
        %v4474 = vmul.f32 %v4461, 1.442695
        %v4475 = vpow.pop %v4474
        %v4476 = vmul.f32 %v4462, 1.442695
        %v4477 = vpow.pop %v4476
        %v4478 = vmul.f32 %v4463, 1.442695
        %v4479 = vpow.pop %v4478
        %v4480 = vsel %vm1390, %v4465, 0.0
        %4481 = vadd.xlane.f32.xlu0 %v4480
        %v4482 = vpop.xlane.xlu0 %4481
        %v4483 = vsel %vm1390, %v4467, 0.0
        %4484 = vadd.xlane.f32.xlu0 %v4483
        %v4485 = vpop.xlane.xlu0 %4484
        %v4486 = vsel %vm1390, %v4469, 0.0
        %4487 = vadd.xlane.f32.xlu0 %v4486
        %v4488 = vpop.xlane.xlu0 %4487
        %v4489 = vsel %vm1390, %v4471, 0.0
        %4490 = vadd.xlane.f32.xlu0 %v4489
        %v4491 = vpop.xlane.xlu0 %4490
        %v4492 = vsel %vm1390, %v4473, 0.0
        %4493 = vadd.xlane.f32.xlu0 %v4492
        %v4494 = vpop.xlane.xlu0 %4493
        %v4495 = vsel %vm1390, %v4475, 0.0
        %4496 = vadd.xlane.f32.xlu0 %v4495
        %v4497 = vpop.xlane.xlu0 %4496
        %v4498 = vsel %vm1390, %v4477, 0.0
        %4499 = vadd.xlane.f32.xlu0 %v4498
        %v4500 = vpop.xlane.xlu0 %4499
        %v4501 = vsel %vm1390, %v4479, 0.0
        %4502 = vadd.xlane.f32.xlu0 %v4501
        %v4503 = vpop.xlane.xlu0 %4502
        %v4504 = vrcp.pop %v4482
        %v4505 = vrcp.pop %v4485
        %v4506 = vrcp.pop %v4488
        %v4507 = vrcp.pop %v4491
        %v4508 = vrcp.pop %v4494
        %v4509 = vrcp.pop %v4497
        %v4510 = vrcp.pop %v4500
        %v4511 = vrcp.pop %v4503
        %v4512 = vmul.f32 %v4465, %v4504
        %v4513 = vmul.f32 %v4467, %v4505
        %v4514 = vmul.f32 %v4469, %v4506
        %v4515 = vmul.f32 %v4471, %v4507
        %v4516 = vmul.f32 %v4473, %v4508
        %v4517 = vmul.f32 %v4475, %v4509
        %v4518 = vmul.f32 %v4477, %v4510
        %v4519 = vmul.f32 %v4479, %v4511
        %v4520 = vpack.c.bf16 %v4513, %v4512
        %v4521 = vpack.c.bf16 %v4515, %v4514
        %v4522 = vpack.c.bf16 %v4517, %v4516
        %v4523 = vpack.c.bf16 %v4519, %v4518
        %v4524 = vpack.c.bf16 %v4308, %v4305
        %v4525 = vpack.c.bf16 %v4316, %v4313
        %v4526 = vpack.c.bf16 %v4324, %v4321
        %v4527 = vpack.c.bf16 %v4332, %v4329
        %v4529 = vsel %vm1390, %v4520, 0
        %v4532 = vsel %vm1390, %v4521, 0
        %v4535 = vsel %vm1390, %v4522, 0
        %v4538 = vsel %vm1390, %v4523, 0
        %4540 = vmatprep.subr.bf16.mxu0 0
        %4541 = vmatpush1.bf16.msra.mxu0 %v4524
        %4542 = vmatprep.subr.bf16.mxu0 0
        %4543 = vmatpush1.bf16.msra.mxu0 %v4525
        %4544 = vmatprep.subr.bf16.mxu0 0
        %4545 = vmatpush1.bf16.msra.mxu0 %v4526
        %4546 = vmatprep.subr.bf16.mxu0 0
        %4547 = vmatpush1.bf16.msra.mxu0 %v4527
        %4548 = vmatprep.subr.bf16.mxu0 0
        %4549 = vmatpush1.bf16.msra.mxu0 0
        %4550 = vmatprep.subr.bf16.mxu0 0
        %4551 = vmatpush1.bf16.msra.mxu0 0
        %4552 = vmatprep.subr.bf16.mxu0 0
        %4553 = vmatpush1.bf16.msra.mxu0 0
        %4554 = vmatprep.subr.bf16.mxu0 0
        %4555 = vmatpush1.bf16.msra.mxu0 0
        %4556 = vmatprep.subr.bf16.mxu0 0
        %4557 = vmatpush1.bf16.msra.mxu0 0
        %4558 = vmatprep.subr.bf16.mxu0 0
        %4559 = vmatpush1.bf16.msra.mxu0 0
        %4560 = vmatprep.subr.bf16.mxu0 0
        %4561 = vmatpush1.bf16.msra.mxu0 0
        %4562 = vmatprep.subr.bf16.mxu0 0
        %4563 = vmatpush1.bf16.msra.mxu0 0
        %4564 = vmatprep.subr.bf16.mxu0 0
        %4565 = vmatpush1.bf16.msra.mxu0 0
        %4566 = vmatprep.subr.bf16.mxu0 0
        %4567 = vmatpush1.bf16.msra.mxu0 0
        %4568 = vmatprep.subr.bf16.mxu0 0
        %4569 = vmatpush1.bf16.msra.mxu0 0
        %4570 = vmatprep.subr.bf16.mxu0 0
        %4571 = vmatpush1.bf16.msra.mxu0 0
        %4572 = vmatprep.mubr.bf16.mxu0 0
        %4573 = vmatmul.mubr.bf16.gmra.mrb[0].mxu0 %v4529
        %v4574 = vpop.f32.mrb[0].mxu0
        %v4575 = vadd.f32 0.0, %v4574
        %v4576 = vpop.f32.mrb[0].mxu0
        %v4577 = vpop.f32.mrb[0].mxu0
        %v4578 = vadd.f32 0.0, %v4577
        %v4579 = vpop.f32.mrb[0].mxu0
        %4580 = vmatprep.mubr.bf16.mxu0 0
        %4581 = vmatmul.mubr.bf16.gmra.mrb[0].mxu0 %v4532
        %v4582 = vpop.f32.mrb[0].mxu0
        %v4583 = vadd.f32 0.0, %v4582
        %v4584 = vpop.f32.mrb[0].mxu0
        %v4585 = vpop.f32.mrb[0].mxu0
        %v4586 = vadd.f32 0.0, %v4585
        %v4587 = vpop.f32.mrb[0].mxu0
        %4588 = vmatprep.mubr.bf16.mxu0 0
        %4589 = vmatmul.mubr.bf16.gmra.mrb[0].mxu0 %v4535
        %v4590 = vpop.f32.mrb[0].mxu0
        %v4591 = vadd.f32 0.0, %v4590
        %v4592 = vpop.f32.mrb[0].mxu0
        %v4593 = vpop.f32.mrb[0].mxu0
        %v4594 = vadd.f32 0.0, %v4593
        %v4595 = vpop.f32.mrb[0].mxu0
        %4596 = vmatprep.mubr.bf16.mxu0 0
        %4597 = vmatmul.mubr.bf16.gmra.mrb[0].mxu0 %v4538
        %v4598 = vpop.f32.mrb[0].mxu0
        %v4599 = vadd.f32 0.0, %v4598
        %v4600 = vpop.f32.mrb[0].mxu0
        %v4601 = vpop.f32.mrb[0].mxu0
        %v4602 = vadd.f32 0.0, %v4601
        %v4603 = vpop.f32.mrb[0].mxu0
        %4604 = vdwg.mxu0
        %v4605 = vpack.c.bf16 %v4578, %v4575
        %v4606 = vpack.c.bf16 %v4586, %v4583
        %v4607 = vpack.c.bf16 %v4594, %v4591
        %v4608 = vpack.c.bf16 %v4602, %v4599
        %s4609 = scalar_lea.vmem %s49, 80
        %v4610 = vld [vmem:[%s4609] sm:$0xff]
        %v4611 = vld [vmem:[%s4609 + $0x8] sm:$0xff]
        %v4612 = vld [vmem:[%s4609 + $0x10] sm:$0xff]
        %v4613 = vld [vmem:[%s4609 + $0x18] sm:$0xff]
        %v4614 = vld [vmem:[%s4609 + $0x20] sm:$0xff]
        %v4620 = vunpack.c.l.b16 %v4610
        %v4621 = vunpack.c.h.b16 %v4610
        %v4622 = vunpack.c.l.b16 %v4611
        %v4623 = vunpack.c.h.b16 %v4611
        %v4624 = vunpack.c.l.b16 %v4612
        %v4625 = vunpack.c.h.b16 %v4612
        %v4626 = vunpack.c.l.b16 %v4613
        %v4627 = vunpack.c.h.b16 %v4613
        %v4628 = vunpack.c.l.b16 %v4614
        %v4629 = vunpack.c.h.b16 %v4614
        %v4630 = vpack.c.b16 %v4622, %v4620
        %v4631 = vpack.c.b16 %v4623, %v4621
        %v4632 = vpack.c.b16 %v4626, %v4624
        %v4633 = vpack.c.b16 %v4627, %v4625
        %v4634 = vpack.c.b16 %v4628, %v4628
        %v4635 = vpack.c.b16 %v4629, %v4629
        %v4641 = vsel %vm2611, %v4605, 0
        %v4644 = vsel %vm2611, %v4606, 0
        %v4647 = vsel %vm2611, %v4607, 0
        %v4650 = vsel %vm2611, %v4608, 0
        %v4653 = vsel %vm1501, %v4634, 0
        %v4656 = vsel %vm1501, %v4635, 0
        %4658 = vmatprep.subr.bf16.mxu0 %v4631
        %4659 = vmatpush1.bf16.msra.mxu0 %v4630
        %4660 = vmatprep.subr.bf16.mxu0 %v4633
        %4661 = vmatpush1.bf16.msra.mxu0 %v4632
        %4662 = vmatprep.subr.bf16.mxu0 %v4656
        %4663 = vmatpush1.bf16.msra.mxu0 %v4653
        %4664 = vmatprep.subr.bf16.mxu0 0
        %4665 = vmatpush1.bf16.msra.mxu0 0
        %4666 = vmatprep.subr.bf16.mxu0 0
        %4667 = vmatpush1.bf16.msra.mxu0 0
        %4668 = vmatprep.subr.bf16.mxu0 0
        %4669 = vmatpush1.bf16.msra.mxu0 0
        %4670 = vmatprep.subr.bf16.mxu0 0
        %4671 = vmatpush1.bf16.msra.mxu0 0
        %4672 = vmatprep.subr.bf16.mxu0 0
        %4673 = vmatpush1.bf16.msra.mxu0 0
        %4674 = vmatprep.subr.bf16.mxu0 0
        %4675 = vmatpush1.bf16.msra.mxu0 0
        %4676 = vmatprep.subr.bf16.mxu0 0
        %4677 = vmatpush1.bf16.msra.mxu0 0
        %4678 = vmatprep.subr.bf16.mxu0 0
        %4679 = vmatpush1.bf16.msra.mxu0 0
        %4680 = vmatprep.subr.bf16.mxu0 0
        %4681 = vmatpush1.bf16.msra.mxu0 0
        %4682 = vmatprep.subr.bf16.mxu0 0
        %4683 = vmatpush1.bf16.msra.mxu0 0
        %4684 = vmatprep.subr.bf16.mxu0 0
        %4685 = vmatpush1.bf16.msra.mxu0 0
        %4686 = vmatprep.subr.bf16.mxu0 0
        %4687 = vmatpush1.bf16.msra.mxu0 0
        %4688 = vmatprep.subr.bf16.mxu0 0
        %4689 = vmatpush1.bf16.msra.mxu0 0
        %4690 = vmatprep.mubr.bf16.mxu0 0
        %4691 = vmatmul.mubr.bf16.gmra.mrb[0].mxu0 %v4641
        %v4692 = vpop.f32.mrb[0].mxu0
        %v4693 = vadd.f32 0.0, %v4692
        %v4694 = vpop.f32.mrb[0].mxu0
        %v4695 = vadd.f32 0.0, %v4694
        %v4696 = vpop.f32.mrb[0].mxu0
        %v4697 = vadd.f32 0.0, %v4696
        %v4698 = vpop.f32.mrb[0].mxu0
        %v4699 = vadd.f32 0.0, %v4698
        %4700 = vmatprep.mubr.bf16.mxu0 0
        %4701 = vmatmul.mubr.bf16.gmra.mrb[0].mxu0 %v4644
        %v4702 = vpop.f32.mrb[0].mxu0
        %v4703 = vadd.f32 0.0, %v4702
        %v4704 = vpop.f32.mrb[0].mxu0
        %v4705 = vadd.f32 0.0, %v4704
        %v4706 = vpop.f32.mrb[0].mxu0
        %v4707 = vadd.f32 0.0, %v4706
        %v4708 = vpop.f32.mrb[0].mxu0
        %v4709 = vadd.f32 0.0, %v4708
        %4710 = vmatprep.mubr.bf16.mxu0 0
        %4711 = vmatmul.mubr.bf16.gmra.mrb[0].mxu0 %v4647
        %v4712 = vpop.f32.mrb[0].mxu0
        %v4713 = vadd.f32 0.0, %v4712
        %v4714 = vpop.f32.mrb[0].mxu0
        %v4715 = vadd.f32 0.0, %v4714
        %v4716 = vpop.f32.mrb[0].mxu0
        %v4717 = vadd.f32 0.0, %v4716
        %v4718 = vpop.f32.mrb[0].mxu0
        %v4719 = vadd.f32 0.0, %v4718
        %4720 = vmatprep.mubr.bf16.mxu0 0
        %4721 = vmatmul.mubr.bf16.gmra.mrb[0].mxu0 %v4650
        %v4722 = vpop.f32.mrb[0].mxu0
        %v4723 = vadd.f32 0.0, %v4722
        %v4724 = vpop.f32.mrb[0].mxu0
        %v4725 = vadd.f32 0.0, %v4724
        %v4726 = vpop.f32.mrb[0].mxu0
        %v4727 = vadd.f32 0.0, %v4726
        %v4728 = vpop.f32.mrb[0].mxu0
        %v4729 = vadd.f32 0.0, %v4728
        %4730 = vdwg.mxu0
        %v4731 = vadd.f32 %v3827, %v4693
        %v4732 = vadd.f32 %v3829, %v4695
        %v4733 = vadd.f32 %v3831, %v4697
        %v4734 = vadd.f32 %v3833, %v4699
        %v4735 = vadd.f32 %v3837, %v4703
        %v4736 = vadd.f32 %v3839, %v4705
        %v4737 = vadd.f32 %v3841, %v4707
        %v4738 = vadd.f32 %v3843, %v4709
        %v4739 = vadd.f32 %v3847, %v4713
        %v4740 = vadd.f32 %v3849, %v4715
        %v4741 = vadd.f32 %v3851, %v4717
        %v4742 = vadd.f32 %v3853, %v4719
        %v4743 = vadd.f32 %v3857, %v4723
        %v4744 = vadd.f32 %v3859, %v4725
        %v4745 = vadd.f32 %v3861, %v4727
        %v4746 = vadd.f32 %v3863, %v4729
        %s4747 = scalar_lea.vmem %s37, 240
        %v4748 = vld [vmem:[%s4747] sm:$0xf]
        %v4749 = vld [vmem:[%s4747 + $0x4] sm:$0xf]
        %v4750 = vld [vmem:[%s4747 + $0x8] sm:$0xf]
        %v4751 = vld [vmem:[%s4747 + $0xc] sm:$0xf]
        %v4752 = vld [vmem:[%s4747 + $0x10] sm:$0xf]
        %v4753 = vld [vmem:[%s4747 + $0x14] sm:$0xf]
        %v4754 = vld [vmem:[%s4747 + $0x18] sm:$0xf]
        %v4755 = vld [vmem:[%s4747 + $0x1c] sm:$0xf]
        %v4756 = vld [vmem:[%s4747 + $0x20] sm:$0xf]
        %v4757 = vld [vmem:[%s4747 + $0x24] sm:$0xf]
        %v4758 = vld [vmem:[%s4747 + $0x28] sm:$0xf]
        %v4759 = vld [vmem:[%s4747 + $0x2c] sm:$0xf]
        %v4760 = vld [vmem:[%s4747 + $0x30] sm:$0xf]
        %v4761 = vld [vmem:[%s4747 + $0x34] sm:$0xf]
        %v4762 = vld [vmem:[%s4747 + $0x38] sm:$0xf]
        %v4763 = vld [vmem:[%s4747 + $0x3c] sm:$0xf]
        %v4764 = vld [vmem:[%s4747 + $0x40] sm:$0xf]
        %v4765 = vld [vmem:[%s4747 + $0x44] sm:$0xf]
        %v4766 = vld [vmem:[%s4747 + $0x48] sm:$0xf]
        %v4767 = vld [vmem:[%s4747 + $0x4c] sm:$0xf]
        %s4768 = scalar_lea.vmem %s39, 3
        %v4769 = vld [vmem:[%s4768] sm:$0x1]
        %v4771 = vlaneseq
        %v4772 = vshrl.u32 %v4771, 7
        %v4773 = vsub.s32 0, %v4772
        %v4774 = vrot.slane %v4769, %v4773
        %v4796 = vunpack.c.l.b16 %v4748
        %v4797 = vunpack.c.l.b16 %v4749
        %v4798 = vunpack.c.l.b16 %v4750
        %v4799 = vunpack.c.l.b16 %v4751
        %v4800 = vunpack.c.l.b16 %v4752
        %v4801 = vunpack.c.l.b16 %v4753
        %v4802 = vunpack.c.l.b16 %v4754
        %v4803 = vunpack.c.l.b16 %v4755
        %v4804 = vunpack.c.l.b16 %v4756
        %v4805 = vunpack.c.l.b16 %v4757
        %v4806 = vunpack.c.l.b16 %v4758
        %v4807 = vunpack.c.l.b16 %v4759
        %v4808 = vunpack.c.l.b16 %v4760
        %v4809 = vunpack.c.l.b16 %v4761
        %v4810 = vunpack.c.l.b16 %v4762
        %v4811 = vunpack.c.l.b16 %v4763
        %v4812 = vunpack.c.l.b16 %v4764
        %v4813 = vunpack.c.l.b16 %v4765
        %v4814 = vunpack.c.l.b16 %v4766
        %v4815 = vunpack.c.l.b16 %v4767
        %v4816 = vpack.c.b16 %v4797, %v4796
        %v4817 = vpack.c.b16 %v4799, %v4798
        %v4818 = vpack.c.b16 %v4801, %v4800
        %v4819 = vpack.c.b16 %v4803, %v4802
        %v4820 = vpack.c.b16 %v4805, %v4804
        %v4821 = vpack.c.b16 %v4807, %v4806
        %v4822 = vpack.c.b16 %v4809, %v4808
        %v4823 = vpack.c.b16 %v4811, %v4810
        %v4824 = vpack.c.b16 %v4813, %v4812
        %v4825 = vpack.c.b16 %v4815, %v4814
        %4836 = vmatprep.subr.bf16.mxu0 0
        %4837 = vmatpush1.bf16.msra.mxu0 %v4816
        %4838 = vmatprep.subr.bf16.mxu0 0
        %4839 = vmatpush1.bf16.msra.mxu0 %v4817
        %4840 = vmatprep.subr.bf16.mxu0 0
        %4841 = vmatpush1.bf16.msra.mxu0 %v4818
        %4842 = vmatprep.subr.bf16.mxu0 0
        %4843 = vmatpush1.bf16.msra.mxu0 %v4819
        %4844 = vmatprep.subr.bf16.mxu0 0
        %4845 = vmatpush1.bf16.msra.mxu0 %v4820
        %4846 = vmatprep.subr.bf16.mxu0 0
        %4847 = vmatpush1.bf16.msra.mxu0 %v4821
        %4848 = vmatprep.subr.bf16.mxu0 0
        %4849 = vmatpush1.bf16.msra.mxu0 %v4822
        %4850 = vmatprep.subr.bf16.mxu0 0
        %4851 = vmatpush1.bf16.msra.mxu0 %v4823
        %4852 = vmatprep.subr.bf16.mxu0 0
        %4853 = vmatpush1.bf16.msra.mxu0 %v4824
        %4854 = vmatprep.subr.bf16.mxu0 0
        %4855 = vmatpush1.bf16.msra.mxu0 %v4825
        %4856 = vmatprep.subr.bf16.mxu0 0
        %4857 = vmatpush1.bf16.msra.mxu0 0
        %4858 = vmatprep.subr.bf16.mxu0 0
        %4859 = vmatpush1.bf16.msra.mxu0 0
        %4860 = vmatprep.subr.bf16.mxu0 0
        %4861 = vmatpush1.bf16.msra.mxu0 0
        %4862 = vmatprep.subr.bf16.mxu0 0
        %4863 = vmatpush1.bf16.msra.mxu0 0
        %4864 = vmatprep.subr.bf16.mxu0 0
        %4865 = vmatpush1.bf16.msra.mxu0 0
        %4866 = vmatprep.subr.bf16.mxu0 0
        %4867 = vmatpush1.bf16.msra.mxu0 0
        %4868 = vmatprep.mubr.bf16.mxu0 %v2215
        %4869 = vmatmul.mubr.bf16.gmra.mrb[0].mxu0 %v2111
        %v4870 = vpop.f32.mrb[0].mxu0
        %v4871 = vadd.f32 %v4774, %v4870
        %v4872 = vpop.f32.mrb[0].mxu0
        %v4873 = vpop.f32.mrb[0].mxu0
        %v4874 = vadd.f32 %v4774, %v4873
        %v4875 = vpop.f32.mrb[0].mxu0
        %4876 = vmatprep.mubr.bf16.mxu0 %v2218
        %4877 = vmatmul.mubr.bf16.gmra.mrb[0].mxu0 %v2113
        %v4878 = vpop.f32.mrb[0].mxu0
        %v4879 = vadd.f32 %v4774, %v4878
        %v4880 = vpop.f32.mrb[0].mxu0
        %v4881 = vpop.f32.mrb[0].mxu0
        %v4882 = vadd.f32 %v4774, %v4881
        %v4883 = vpop.f32.mrb[0].mxu0
        %4884 = vmatprep.mubr.bf16.mxu0 %v2221
        %4885 = vmatmul.mubr.bf16.gmra.mrb[0].mxu0 %v2115
        %v4886 = vpop.f32.mrb[0].mxu0
        %v4887 = vadd.f32 %v4774, %v4886
        %v4888 = vpop.f32.mrb[0].mxu0
        %v4889 = vpop.f32.mrb[0].mxu0
        %v4890 = vadd.f32 %v4774, %v4889
        %v4891 = vpop.f32.mrb[0].mxu0
        %4892 = vmatprep.mubr.bf16.mxu0 %v2224
        %4893 = vmatmul.mubr.bf16.gmra.mrb[0].mxu0 %v2117
        %v4894 = vpop.f32.mrb[0].mxu0
        %v4895 = vadd.f32 %v4774, %v4894
        %v4896 = vpop.f32.mrb[0].mxu0
        %v4897 = vpop.f32.mrb[0].mxu0
        %v4898 = vadd.f32 %v4774, %v4897
        %v4899 = vpop.f32.mrb[0].mxu0
        %4900 = vdwg.mxu0
        %v4901 = vmul.f32 %v4871, 0.15811388
        %v4902 = vmul.f32 %v4874, 0.15811388
        %v4903 = vmul.f32 %v4879, 0.15811388
        %v4904 = vmul.f32 %v4882, 0.15811388
        %v4905 = vmul.f32 %v4887, 0.15811388
        %v4906 = vmul.f32 %v4890, 0.15811388
        %v4907 = vmul.f32 %v4895, 0.15811388
        %v4908 = vmul.f32 %v4898, 0.15811388
        %s4909 = scalar_lea.vmem %s41, 240
        %v4910 = vld [vmem:[%s4909] sm:$0xf]
        %v4911 = vld [vmem:[%s4909 + $0x4] sm:$0xf]
        %v4912 = vld [vmem:[%s4909 + $0x8] sm:$0xf]
        %v4913 = vld [vmem:[%s4909 + $0xc] sm:$0xf]
        %v4914 = vld [vmem:[%s4909 + $0x10] sm:$0xf]
        %v4915 = vld [vmem:[%s4909 + $0x14] sm:$0xf]
        %v4916 = vld [vmem:[%s4909 + $0x18] sm:$0xf]
        %v4917 = vld [vmem:[%s4909 + $0x1c] sm:$0xf]
        %v4918 = vld [vmem:[%s4909 + $0x20] sm:$0xf]
        %v4919 = vld [vmem:[%s4909 + $0x24] sm:$0xf]
        %v4920 = vld [vmem:[%s4909 + $0x28] sm:$0xf]
        %v4921 = vld [vmem:[%s4909 + $0x2c] sm:$0xf]
        %v4922 = vld [vmem:[%s4909 + $0x30] sm:$0xf]
        %v4923 = vld [vmem:[%s4909 + $0x34] sm:$0xf]
        %v4924 = vld [vmem:[%s4909 + $0x38] sm:$0xf]
        %v4925 = vld [vmem:[%s4909 + $0x3c] sm:$0xf]
        %v4926 = vld [vmem:[%s4909 + $0x40] sm:$0xf]
        %v4927 = vld [vmem:[%s4909 + $0x44] sm:$0xf]
        %v4928 = vld [vmem:[%s4909 + $0x48] sm:$0xf]
        %v4929 = vld [vmem:[%s4909 + $0x4c] sm:$0xf]
        %s4930 = scalar_lea.vmem %s43, 3
        %v4931 = vld [vmem:[%s4930] sm:$0x1]
        %v4933 = vlaneseq
        %v4934 = vshrl.u32 %v4933, 7
        %v4935 = vsub.s32 0, %v4934
        %v4936 = vrot.slane %v4931, %v4935
        %v4958 = vunpack.c.l.b16 %v4910
        %v4959 = vunpack.c.l.b16 %v4911
        %v4960 = vunpack.c.l.b16 %v4912
        %v4961 = vunpack.c.l.b16 %v4913
        %v4962 = vunpack.c.l.b16 %v4914
        %v4963 = vunpack.c.l.b16 %v4915
        %v4964 = vunpack.c.l.b16 %v4916
        %v4965 = vunpack.c.l.b16 %v4917
        %v4966 = vunpack.c.l.b16 %v4918
        %v4967 = vunpack.c.l.b16 %v4919
        %v4968 = vunpack.c.l.b16 %v4920
        %v4969 = vunpack.c.l.b16 %v4921
        %v4970 = vunpack.c.l.b16 %v4922
        %v4971 = vunpack.c.l.b16 %v4923
        %v4972 = vunpack.c.l.b16 %v4924
        %v4973 = vunpack.c.l.b16 %v4925
        %v4974 = vunpack.c.l.b16 %v4926
        %v4975 = vunpack.c.l.b16 %v4927
        %v4976 = vunpack.c.l.b16 %v4928
        %v4977 = vunpack.c.l.b16 %v4929
        %v4978 = vpack.c.b16 %v4959, %v4958
        %v4979 = vpack.c.b16 %v4961, %v4960
        %v4980 = vpack.c.b16 %v4963, %v4962
        %v4981 = vpack.c.b16 %v4965, %v4964
        %v4982 = vpack.c.b16 %v4967, %v4966
        %v4983 = vpack.c.b16 %v4969, %v4968
        %v4984 = vpack.c.b16 %v4971, %v4970
        %v4985 = vpack.c.b16 %v4973, %v4972
        %v4986 = vpack.c.b16 %v4975, %v4974
        %v4987 = vpack.c.b16 %v4977, %v4976
        %4998 = vmatprep.subr.bf16.mxu0 0
        %4999 = vmatpush1.bf16.msra.mxu0 %v4978
        %5000 = vmatprep.subr.bf16.mxu0 0
        %5001 = vmatpush1.bf16.msra.mxu0 %v4979
        %5002 = vmatprep.subr.bf16.mxu0 0
        %5003 = vmatpush1.bf16.msra.mxu0 %v4980
        %5004 = vmatprep.subr.bf16.mxu0 0
        %5005 = vmatpush1.bf16.msra.mxu0 %v4981
        %5006 = vmatprep.subr.bf16.mxu0 0
        %5007 = vmatpush1.bf16.msra.mxu0 %v4982
        %5008 = vmatprep.subr.bf16.mxu0 0
        %5009 = vmatpush1.bf16.msra.mxu0 %v4983
        %5010 = vmatprep.subr.bf16.mxu0 0
        %5011 = vmatpush1.bf16.msra.mxu0 %v4984
        %5012 = vmatprep.subr.bf16.mxu0 0
        %5013 = vmatpush1.bf16.msra.mxu0 %v4985
        %5014 = vmatprep.subr.bf16.mxu0 0
        %5015 = vmatpush1.bf16.msra.mxu0 %v4986
        %5016 = vmatprep.subr.bf16.mxu0 0
        %5017 = vmatpush1.bf16.msra.mxu0 %v4987
        %5018 = vmatprep.subr.bf16.mxu0 0
        %5019 = vmatpush1.bf16.msra.mxu0 0
        %5020 = vmatprep.subr.bf16.mxu0 0
        %5021 = vmatpush1.bf16.msra.mxu0 0
        %5022 = vmatprep.subr.bf16.mxu0 0
        %5023 = vmatpush1.bf16.msra.mxu0 0
        %5024 = vmatprep.subr.bf16.mxu0 0
        %5025 = vmatpush1.bf16.msra.mxu0 0
        %5026 = vmatprep.subr.bf16.mxu0 0
        %5027 = vmatpush1.bf16.msra.mxu0 0
        %5028 = vmatprep.subr.bf16.mxu0 0
        %5029 = vmatpush1.bf16.msra.mxu0 0
        %5030 = vmatprep.mubr.bf16.mxu0 %v2215
        %5031 = vmatmul.mubr.bf16.gmra.mrb[0].mxu0 %v2111
        %v5032 = vpop.f32.mrb[0].mxu0
        %v5033 = vadd.f32 %v4936, %v5032
        %v5034 = vpop.f32.mrb[0].mxu0
        %v5035 = vpop.f32.mrb[0].mxu0
        %v5036 = vadd.f32 %v4936, %v5035
        %v5037 = vpop.f32.mrb[0].mxu0
        %5038 = vmatprep.mubr.bf16.mxu0 %v2218
        %5039 = vmatmul.mubr.bf16.gmra.mrb[0].mxu0 %v2113
        %v5040 = vpop.f32.mrb[0].mxu0
        %v5041 = vadd.f32 %v4936, %v5040
        %v5042 = vpop.f32.mrb[0].mxu0
        %v5043 = vpop.f32.mrb[0].mxu0
        %v5044 = vadd.f32 %v4936, %v5043
        %v5045 = vpop.f32.mrb[0].mxu0
        %5046 = vmatprep.mubr.bf16.mxu0 %v2221
        %5047 = vmatmul.mubr.bf16.gmra.mrb[0].mxu0 %v2115
        %v5048 = vpop.f32.mrb[0].mxu0
        %v5049 = vadd.f32 %v4936, %v5048
        %v5050 = vpop.f32.mrb[0].mxu0
        %v5051 = vpop.f32.mrb[0].mxu0
        %v5052 = vadd.f32 %v4936, %v5051
        %v5053 = vpop.f32.mrb[0].mxu0
        %5054 = vmatprep.mubr.bf16.mxu0 %v2224
        %5055 = vmatmul.mubr.bf16.gmra.mrb[0].mxu0 %v2117
        %v5056 = vpop.f32.mrb[0].mxu0
        %v5057 = vadd.f32 %v4936, %v5056
        %v5058 = vpop.f32.mrb[0].mxu0
        %v5059 = vpop.f32.mrb[0].mxu0
        %v5060 = vadd.f32 %v4936, %v5059
        %v5061 = vpop.f32.mrb[0].mxu0
        %5062 = vdwg.mxu0
        %s5063 = scalar_lea.vmem %s45, 240
        %v5064 = vld [vmem:[%s5063] sm:$0xf]
        %v5065 = vld [vmem:[%s5063 + $0x4] sm:$0xf]
        %v5066 = vld [vmem:[%s5063 + $0x8] sm:$0xf]
        %v5067 = vld [vmem:[%s5063 + $0xc] sm:$0xf]
        %v5068 = vld [vmem:[%s5063 + $0x10] sm:$0xf]
        %v5069 = vld [vmem:[%s5063 + $0x14] sm:$0xf]
        %v5070 = vld [vmem:[%s5063 + $0x18] sm:$0xf]
        %v5071 = vld [vmem:[%s5063 + $0x1c] sm:$0xf]
        %v5072 = vld [vmem:[%s5063 + $0x20] sm:$0xf]
        %v5073 = vld [vmem:[%s5063 + $0x24] sm:$0xf]
        %v5074 = vld [vmem:[%s5063 + $0x28] sm:$0xf]
        %v5075 = vld [vmem:[%s5063 + $0x2c] sm:$0xf]
        %v5076 = vld [vmem:[%s5063 + $0x30] sm:$0xf]
        %v5077 = vld [vmem:[%s5063 + $0x34] sm:$0xf]
        %v5078 = vld [vmem:[%s5063 + $0x38] sm:$0xf]
        %v5079 = vld [vmem:[%s5063 + $0x3c] sm:$0xf]
        %v5080 = vld [vmem:[%s5063 + $0x40] sm:$0xf]
        %v5081 = vld [vmem:[%s5063 + $0x44] sm:$0xf]
        %v5082 = vld [vmem:[%s5063 + $0x48] sm:$0xf]
        %v5083 = vld [vmem:[%s5063 + $0x4c] sm:$0xf]
        %s5084 = scalar_lea.vmem %s47, 3
        %v5085 = vld [vmem:[%s5084] sm:$0x1]
        %v5087 = vlaneseq
        %v5088 = vshrl.u32 %v5087, 7
        %v5089 = vsub.s32 0, %v5088
        %v5090 = vrot.slane %v5085, %v5089
        %v5112 = vunpack.c.l.b16 %v5064
        %v5113 = vunpack.c.l.b16 %v5065
        %v5114 = vunpack.c.l.b16 %v5066
        %v5115 = vunpack.c.l.b16 %v5067
        %v5116 = vunpack.c.l.b16 %v5068
        %v5117 = vunpack.c.l.b16 %v5069
        %v5118 = vunpack.c.l.b16 %v5070
        %v5119 = vunpack.c.l.b16 %v5071
        %v5120 = vunpack.c.l.b16 %v5072
        %v5121 = vunpack.c.l.b16 %v5073
        %v5122 = vunpack.c.l.b16 %v5074
        %v5123 = vunpack.c.l.b16 %v5075
        %v5124 = vunpack.c.l.b16 %v5076
        %v5125 = vunpack.c.l.b16 %v5077
        %v5126 = vunpack.c.l.b16 %v5078
        %v5127 = vunpack.c.l.b16 %v5079
        %v5128 = vunpack.c.l.b16 %v5080
        %v5129 = vunpack.c.l.b16 %v5081
        %v5130 = vunpack.c.l.b16 %v5082
        %v5131 = vunpack.c.l.b16 %v5083
        %v5132 = vpack.c.b16 %v5113, %v5112
        %v5133 = vpack.c.b16 %v5115, %v5114
        %v5134 = vpack.c.b16 %v5117, %v5116
        %v5135 = vpack.c.b16 %v5119, %v5118
        %v5136 = vpack.c.b16 %v5121, %v5120
        %v5137 = vpack.c.b16 %v5123, %v5122
        %v5138 = vpack.c.b16 %v5125, %v5124
        %v5139 = vpack.c.b16 %v5127, %v5126
        %v5140 = vpack.c.b16 %v5129, %v5128
        %v5141 = vpack.c.b16 %v5131, %v5130
        %5152 = vmatprep.subr.bf16.mxu0 0
        %5153 = vmatpush1.bf16.msra.mxu0 %v5132
        %5154 = vmatprep.subr.bf16.mxu0 0
        %5155 = vmatpush1.bf16.msra.mxu0 %v5133
        %5156 = vmatprep.subr.bf16.mxu0 0
        %5157 = vmatpush1.bf16.msra.mxu0 %v5134
        %5158 = vmatprep.subr.bf16.mxu0 0
        %5159 = vmatpush1.bf16.msra.mxu0 %v5135
        %5160 = vmatprep.subr.bf16.mxu0 0
        %5161 = vmatpush1.bf16.msra.mxu0 %v5136
        %5162 = vmatprep.subr.bf16.mxu0 0
        %5163 = vmatpush1.bf16.msra.mxu0 %v5137
        %5164 = vmatprep.subr.bf16.mxu0 0
        %5165 = vmatpush1.bf16.msra.mxu0 %v5138
        %5166 = vmatprep.subr.bf16.mxu0 0
        %5167 = vmatpush1.bf16.msra.mxu0 %v5139
        %5168 = vmatprep.subr.bf16.mxu0 0
        %5169 = vmatpush1.bf16.msra.mxu0 %v5140
        %5170 = vmatprep.subr.bf16.mxu0 0
        %5171 = vmatpush1.bf16.msra.mxu0 %v5141
        %5172 = vmatprep.subr.bf16.mxu0 0
        %5173 = vmatpush1.bf16.msra.mxu0 0
        %5174 = vmatprep.subr.bf16.mxu0 0
        %5175 = vmatpush1.bf16.msra.mxu0 0
        %5176 = vmatprep.subr.bf16.mxu0 0
        %5177 = vmatpush1.bf16.msra.mxu0 0
        %5178 = vmatprep.subr.bf16.mxu0 0
        %5179 = vmatpush1.bf16.msra.mxu0 0
        %5180 = vmatprep.subr.bf16.mxu0 0
        %5181 = vmatpush1.bf16.msra.mxu0 0
        %5182 = vmatprep.subr.bf16.mxu0 0
        %5183 = vmatpush1.bf16.msra.mxu0 0
        %5184 = vmatprep.mubr.bf16.mxu0 %v2215
        %5185 = vmatmul.mubr.bf16.gmra.mrb[0].mxu0 %v2111
        %v5186 = vpop.f32.mrb[0].mxu0
        %v5187 = vadd.f32 %v5090, %v5186
        %v5188 = vpop.f32.mrb[0].mxu0
        %v5189 = vpop.f32.mrb[0].mxu0
        %v5190 = vadd.f32 %v5090, %v5189
        %v5191 = vpop.f32.mrb[0].mxu0
        %5192 = vmatprep.mubr.bf16.mxu0 %v2218
        %5193 = vmatmul.mubr.bf16.gmra.mrb[0].mxu0 %v2113
        %v5194 = vpop.f32.mrb[0].mxu0
        %v5195 = vadd.f32 %v5090, %v5194
        %v5196 = vpop.f32.mrb[0].mxu0
        %v5197 = vpop.f32.mrb[0].mxu0
        %v5198 = vadd.f32 %v5090, %v5197
        %v5199 = vpop.f32.mrb[0].mxu0
        %5200 = vmatprep.mubr.bf16.mxu0 %v2221
        %5201 = vmatmul.mubr.bf16.gmra.mrb[0].mxu0 %v2115
        %v5202 = vpop.f32.mrb[0].mxu0
        %v5203 = vadd.f32 %v5090, %v5202
        %v5204 = vpop.f32.mrb[0].mxu0
        %v5205 = vpop.f32.mrb[0].mxu0
        %v5206 = vadd.f32 %v5090, %v5205
        %v5207 = vpop.f32.mrb[0].mxu0
        %5208 = vmatprep.mubr.bf16.mxu0 %v2224
        %5209 = vmatmul.mubr.bf16.gmra.mrb[0].mxu0 %v2117
        %v5210 = vpop.f32.mrb[0].mxu0
        %v5211 = vadd.f32 %v5090, %v5210
        %v5212 = vpop.f32.mrb[0].mxu0
        %v5213 = vpop.f32.mrb[0].mxu0
        %v5214 = vadd.f32 %v5090, %v5213
        %v5215 = vpop.f32.mrb[0].mxu0
        %5216 = vdwg.mxu0
        %v5217 = vpack.c.bf16 %v4902, %v4901
        %v5218 = vpack.c.bf16 %v4904, %v4903
        %v5219 = vpack.c.bf16 %v4906, %v4905
        %v5220 = vpack.c.bf16 %v4908, %v4907
        %v5221 = vpack.c.bf16 %v5036, %v5033
        %v5222 = vpack.c.bf16 %v5044, %v5041
        %v5223 = vpack.c.bf16 %v5052, %v5049
        %v5224 = vpack.c.bf16 %v5060, %v5057
        %v5226 = vsel %vm2611, %v5217, 0
        %v5229 = vsel %vm2611, %v5218, 0
        %v5232 = vsel %vm2611, %v5219, 0
        %v5235 = vsel %vm2611, %v5220, 0
        %v5238 = vsel %vm2611, %v5221, 0
        %v5241 = vsel %vm2611, %v5222, 0
        %v5244 = vsel %vm2611, %v5223, 0
        %v5247 = vsel %vm2611, %v5224, 0
        %5249 = vmatprep.subr.bf16.mxu0 0
        %5250 = vmatpush1.bf16.xpose.msra.mxu0 %v5238
        %5251 = vmatprep.subr.bf16.mxu0 0
        %5252 = vmatpush1.bf16.xpose.msra.mxu0 %v5241
        %5253 = vmatprep.subr.bf16.mxu0 0
        %5254 = vmatpush1.bf16.xpose.msra.mxu0 %v5244
        %5255 = vmatprep.subr.bf16.mxu0 0
        %5256 = vmatpush1.bf16.xpose.msra.mxu0 %v5247
        %5257 = vmatprep.subr.bf16.mxu0 0
        %5258 = vmatpush1.bf16.xpose.msra.mxu0 0
        %5259 = vmatprep.subr.bf16.mxu0 0
        %5260 = vmatpush1.bf16.xpose.msra.mxu0 0
        %5261 = vmatprep.subr.bf16.mxu0 0
        %5262 = vmatpush1.bf16.xpose.msra.mxu0 0
        %5263 = vmatprep.subr.bf16.mxu0 0
        %5264 = vmatpush1.bf16.xpose.msra.mxu0 0
        %5265 = vmatprep.subr.bf16.mxu0 0
        %5266 = vmatpush1.bf16.xpose.msra.mxu0 0
        %5267 = vmatprep.subr.bf16.mxu0 0
        %5268 = vmatpush1.bf16.xpose.msra.mxu0 0
        %5269 = vmatprep.subr.bf16.mxu0 0
        %5270 = vmatpush1.bf16.xpose.msra.mxu0 0
        %5271 = vmatprep.subr.bf16.mxu0 0
        %5272 = vmatpush1.bf16.xpose.msra.mxu0 0
        %5273 = vmatprep.subr.bf16.mxu0 0
        %5274 = vmatpush1.bf16.xpose.msra.mxu0 0
        %5275 = vmatprep.subr.bf16.mxu0 0
        %5276 = vmatpush1.bf16.xpose.msra.mxu0 0
        %5277 = vmatprep.subr.bf16.mxu0 0
        %5278 = vmatpush1.bf16.xpose.msra.mxu0 0
        %5279 = vmatprep.subr.bf16.mxu0 0
        %5280 = vmatpush1.bf16.xpose.msra.mxu0 0
        %5281 = vmatprep.mubr.bf16.mxu0 0
        %5282 = vmatmul.mubr.bf16.gmra.mrb[0].mxu0 %v5226
        %v5283 = vpop.f32.mrb[0].mxu0
        %v5284 = vadd.f32 %v2119, %v5283
        %v5285 = vpop.f32.mrb[0].mxu0
        %v5286 = vpop.f32.mrb[0].mxu0
        %v5287 = vadd.f32 %v2120, %v5286
        %v5288 = vpop.f32.mrb[0].mxu0
        %5289 = vmatprep.mubr.bf16.mxu0 0
        %5290 = vmatmul.mubr.bf16.gmra.mrb[0].mxu0 %v5229
        %v5291 = vpop.f32.mrb[0].mxu0
        %v5292 = vadd.f32 %v2121, %v5291
        %v5293 = vpop.f32.mrb[0].mxu0
        %v5294 = vpop.f32.mrb[0].mxu0
        %v5295 = vadd.f32 %v2122, %v5294
        %v5296 = vpop.f32.mrb[0].mxu0
        %5297 = vmatprep.mubr.bf16.mxu0 0
        %5298 = vmatmul.mubr.bf16.gmra.mrb[0].mxu0 %v5232
        %v5299 = vpop.f32.mrb[0].mxu0
        %v5300 = vadd.f32 %v2123, %v5299
        %v5301 = vpop.f32.mrb[0].mxu0
        %v5302 = vpop.f32.mrb[0].mxu0
        %v5303 = vadd.f32 %v2124, %v5302
        %v5304 = vpop.f32.mrb[0].mxu0
        %5305 = vmatprep.mubr.bf16.mxu0 0
        %5306 = vmatmul.mubr.bf16.gmra.mrb[0].mxu0 %v5235
        %v5307 = vpop.f32.mrb[0].mxu0
        %v5308 = vadd.f32 %v2125, %v5307
        %v5309 = vpop.f32.mrb[0].mxu0
        %v5310 = vpop.f32.mrb[0].mxu0
        %v5311 = vadd.f32 %v2126, %v5310
        %v5312 = vpop.f32.mrb[0].mxu0
        %5313 = vdwg.mxu0
        %v5314 = vsel %vm1390, %v5284, -inf
        %5315 = vmax.xlane.f32.xlu0 %v5314
        %v5316 = vpop.xlane.xlu0 %5315
        %v5317 = vsel %vm1390, %v5287, -inf
        %5318 = vmax.xlane.f32.xlu0 %v5317
        %v5319 = vpop.xlane.xlu0 %5318
        %v5320 = vsel %vm1390, %v5292, -inf
        %5321 = vmax.xlane.f32.xlu0 %v5320
        %v5322 = vpop.xlane.xlu0 %5321
        %v5323 = vsel %vm1390, %v5295, -inf
        %5324 = vmax.xlane.f32.xlu0 %v5323
        %v5325 = vpop.xlane.xlu0 %5324
        %v5326 = vsel %vm1390, %v5300, -inf
        %5327 = vmax.xlane.f32.xlu0 %v5326
        %v5328 = vpop.xlane.xlu0 %5327
        %v5329 = vsel %vm1390, %v5303, -inf
        %5330 = vmax.xlane.f32.xlu0 %v5329
        %v5331 = vpop.xlane.xlu0 %5330
        %v5332 = vsel %vm1390, %v5308, -inf
        %5333 = vmax.xlane.f32.xlu0 %v5332
        %v5334 = vpop.xlane.xlu0 %5333
        %v5335 = vsel %vm1390, %v5311, -inf
        %5336 = vmax.xlane.f32.xlu0 %v5335
        %v5337 = vpop.xlane.xlu0 %5336
        %v5338 = vsub.f32 %v5284, %v5316
        %v5339 = vsub.f32 %v5287, %v5319
        %v5340 = vsub.f32 %v5292, %v5322
        %v5341 = vsub.f32 %v5295, %v5325
        %v5342 = vsub.f32 %v5300, %v5328
        %v5343 = vsub.f32 %v5303, %v5331
        %v5344 = vsub.f32 %v5308, %v5334
        %v5345 = vsub.f32 %v5311, %v5337
        %v5346 = vmul.f32 %v5338, 1.442695
        %v5347 = vpow.pop %v5346
        %v5348 = vmul.f32 %v5339, 1.442695
        %v5349 = vpow.pop %v5348
        %v5350 = vmul.f32 %v5340, 1.442695
        %v5351 = vpow.pop %v5350
        %v5352 = vmul.f32 %v5341, 1.442695
        %v5353 = vpow.pop %v5352
        %v5354 = vmul.f32 %v5342, 1.442695
        %v5355 = vpow.pop %v5354
        %v5356 = vmul.f32 %v5343, 1.442695
        %v5357 = vpow.pop %v5356
        %v5358 = vmul.f32 %v5344, 1.442695
        %v5359 = vpow.pop %v5358
        %v5360 = vmul.f32 %v5345, 1.442695
        %v5361 = vpow.pop %v5360
        %v5362 = vsel %vm1390, %v5347, 0.0
        %5363 = vadd.xlane.f32.xlu0 %v5362
        %v5364 = vpop.xlane.xlu0 %5363
        %v5365 = vsel %vm1390, %v5349, 0.0
        %5366 = vadd.xlane.f32.xlu0 %v5365
        %v5367 = vpop.xlane.xlu0 %5366
        %v5368 = vsel %vm1390, %v5351, 0.0
        %5369 = vadd.xlane.f32.xlu0 %v5368
        %v5370 = vpop.xlane.xlu0 %5369
        %v5371 = vsel %vm1390, %v5353, 0.0
        %5372 = vadd.xlane.f32.xlu0 %v5371
        %v5373 = vpop.xlane.xlu0 %5372
        %v5374 = vsel %vm1390, %v5355, 0.0
        %5375 = vadd.xlane.f32.xlu0 %v5374
        %v5376 = vpop.xlane.xlu0 %5375
        %v5377 = vsel %vm1390, %v5357, 0.0
        %5378 = vadd.xlane.f32.xlu0 %v5377
        %v5379 = vpop.xlane.xlu0 %5378
        %v5380 = vsel %vm1390, %v5359, 0.0
        %5381 = vadd.xlane.f32.xlu0 %v5380
        %v5382 = vpop.xlane.xlu0 %5381
        %v5383 = vsel %vm1390, %v5361, 0.0
        %5384 = vadd.xlane.f32.xlu0 %v5383
        %v5385 = vpop.xlane.xlu0 %5384
        %v5386 = vrcp.pop %v5364
        %v5387 = vrcp.pop %v5367
        %v5388 = vrcp.pop %v5370
        %v5389 = vrcp.pop %v5373
        %v5390 = vrcp.pop %v5376
        %v5391 = vrcp.pop %v5379
        %v5392 = vrcp.pop %v5382
        %v5393 = vrcp.pop %v5385
        %v5394 = vmul.f32 %v5347, %v5386
        %v5395 = vmul.f32 %v5349, %v5387
        %v5396 = vmul.f32 %v5351, %v5388
        %v5397 = vmul.f32 %v5353, %v5389
        %v5398 = vmul.f32 %v5355, %v5390
        %v5399 = vmul.f32 %v5357, %v5391
        %v5400 = vmul.f32 %v5359, %v5392
        %v5401 = vmul.f32 %v5361, %v5393
        %v5402 = vpack.c.bf16 %v5395, %v5394
        %v5403 = vpack.c.bf16 %v5397, %v5396
        %v5404 = vpack.c.bf16 %v5399, %v5398
        %v5405 = vpack.c.bf16 %v5401, %v5400
        %v5406 = vpack.c.bf16 %v5190, %v5187
        %v5407 = vpack.c.bf16 %v5198, %v5195
        %v5408 = vpack.c.bf16 %v5206, %v5203
        %v5409 = vpack.c.bf16 %v5214, %v5211
        %v5411 = vsel %vm1390, %v5402, 0
        %v5414 = vsel %vm1390, %v5403, 0
        %v5417 = vsel %vm1390, %v5404, 0
        %v5420 = vsel %vm1390, %v5405, 0
        %5422 = vmatprep.subr.bf16.mxu0 0
        %5423 = vmatpush1.bf16.msra.mxu0 %v5406
        %5424 = vmatprep.subr.bf16.mxu0 0
        %5425 = vmatpush1.bf16.msra.mxu0 %v5407
        %5426 = vmatprep.subr.bf16.mxu0 0
        %5427 = vmatpush1.bf16.msra.mxu0 %v5408
        %5428 = vmatprep.subr.bf16.mxu0 0
        %5429 = vmatpush1.bf16.msra.mxu0 %v5409
        %5430 = vmatprep.subr.bf16.mxu0 0
        %5431 = vmatpush1.bf16.msra.mxu0 0
        %5432 = vmatprep.subr.bf16.mxu0 0
        %5433 = vmatpush1.bf16.msra.mxu0 0
        %5434 = vmatprep.subr.bf16.mxu0 0
        %5435 = vmatpush1.bf16.msra.mxu0 0
        %5436 = vmatprep.subr.bf16.mxu0 0
        %5437 = vmatpush1.bf16.msra.mxu0 0
        %5438 = vmatprep.subr.bf16.mxu0 0
        %5439 = vmatpush1.bf16.msra.mxu0 0
        %5440 = vmatprep.subr.bf16.mxu0 0
        %5441 = vmatpush1.bf16.msra.mxu0 0
        %5442 = vmatprep.subr.bf16.mxu0 0
        %5443 = vmatpush1.bf16.msra.mxu0 0
        %5444 = vmatprep.subr.bf16.mxu0 0
        %5445 = vmatpush1.bf16.msra.mxu0 0
        %5446 = vmatprep.subr.bf16.mxu0 0
        %5447 = vmatpush1.bf16.msra.mxu0 0
        %5448 = vmatprep.subr.bf16.mxu0 0
        %5449 = vmatpush1.bf16.msra.mxu0 0
        %5450 = vmatprep.subr.bf16.mxu0 0
        %5451 = vmatpush1.bf16.msra.mxu0 0
        %5452 = vmatprep.subr.bf16.mxu0 0
        %5453 = vmatpush1.bf16.msra.mxu0 0
        %5454 = vmatprep.mubr.bf16.mxu0 0
        %5455 = vmatmul.mubr.bf16.gmra.mrb[0].mxu0 %v5411
        %v5456 = vpop.f32.mrb[0].mxu0
        %v5457 = vadd.f32 0.0, %v5456
        %v5458 = vpop.f32.mrb[0].mxu0
        %v5459 = vpop.f32.mrb[0].mxu0
        %v5460 = vadd.f32 0.0, %v5459
        %v5461 = vpop.f32.mrb[0].mxu0
        %5462 = vmatprep.mubr.bf16.mxu0 0
        %5463 = vmatmul.mubr.bf16.gmra.mrb[0].mxu0 %v5414
        %v5464 = vpop.f32.mrb[0].mxu0
        %v5465 = vadd.f32 0.0, %v5464
        %v5466 = vpop.f32.mrb[0].mxu0
        %v5467 = vpop.f32.mrb[0].mxu0
        %v5468 = vadd.f32 0.0, %v5467
        %v5469 = vpop.f32.mrb[0].mxu0
        %5470 = vmatprep.mubr.bf16.mxu0 0
        %5471 = vmatmul.mubr.bf16.gmra.mrb[0].mxu0 %v5417
        %v5472 = vpop.f32.mrb[0].mxu0
        %v5473 = vadd.f32 0.0, %v5472
        %v5474 = vpop.f32.mrb[0].mxu0
        %v5475 = vpop.f32.mrb[0].mxu0
        %v5476 = vadd.f32 0.0, %v5475
        %v5477 = vpop.f32.mrb[0].mxu0
        %5478 = vmatprep.mubr.bf16.mxu0 0
        %5479 = vmatmul.mubr.bf16.gmra.mrb[0].mxu0 %v5420
        %v5480 = vpop.f32.mrb[0].mxu0
        %v5481 = vadd.f32 0.0, %v5480
        %v5482 = vpop.f32.mrb[0].mxu0
        %v5483 = vpop.f32.mrb[0].mxu0
        %v5484 = vadd.f32 0.0, %v5483
        %v5485 = vpop.f32.mrb[0].mxu0
        %5486 = vdwg.mxu0
        %v5487 = vpack.c.bf16 %v5460, %v5457
        %v5488 = vpack.c.bf16 %v5468, %v5465
        %v5489 = vpack.c.bf16 %v5476, %v5473
        %v5490 = vpack.c.bf16 %v5484, %v5481
        %s5491 = scalar_lea.vmem %s49, 120
        %v5492 = vld [vmem:[%s5491] sm:$0xff]
        %v5493 = vld [vmem:[%s5491 + $0x8] sm:$0xff]
        %v5494 = vld [vmem:[%s5491 + $0x10] sm:$0xff]
        %v5495 = vld [vmem:[%s5491 + $0x18] sm:$0xff]
        %v5496 = vld [vmem:[%s5491 + $0x20] sm:$0xff]
        %v5502 = vunpack.c.l.b16 %v5492
        %v5503 = vunpack.c.h.b16 %v5492
        %v5504 = vunpack.c.l.b16 %v5493
        %v5505 = vunpack.c.h.b16 %v5493
        %v5506 = vunpack.c.l.b16 %v5494
        %v5507 = vunpack.c.h.b16 %v5494
        %v5508 = vunpack.c.l.b16 %v5495
        %v5509 = vunpack.c.h.b16 %v5495
        %v5510 = vunpack.c.l.b16 %v5496
        %v5511 = vunpack.c.h.b16 %v5496
        %v5512 = vpack.c.b16 %v5504, %v5502
        %v5513 = vpack.c.b16 %v5505, %v5503
        %v5514 = vpack.c.b16 %v5508, %v5506
        %v5515 = vpack.c.b16 %v5509, %v5507
        %v5516 = vpack.c.b16 %v5510, %v5510
        %v5517 = vpack.c.b16 %v5511, %v5511
        %v5523 = vsel %vm2611, %v5487, 0
        %v5526 = vsel %vm2611, %v5488, 0
        %v5529 = vsel %vm2611, %v5489, 0
        %v5532 = vsel %vm2611, %v5490, 0
        %v5535 = vsel %vm1501, %v5516, 0
        %v5538 = vsel %vm1501, %v5517, 0
        %5540 = vmatprep.subr.bf16.mxu0 %v5513
        %5541 = vmatpush1.bf16.msra.mxu0 %v5512
        %5542 = vmatprep.subr.bf16.mxu0 %v5515
        %5543 = vmatpush1.bf16.msra.mxu0 %v5514
        %5544 = vmatprep.subr.bf16.mxu0 %v5538
        %5545 = vmatpush1.bf16.msra.mxu0 %v5535
        %5546 = vmatprep.subr.bf16.mxu0 0
        %5547 = vmatpush1.bf16.msra.mxu0 0
        %5548 = vmatprep.subr.bf16.mxu0 0
        %5549 = vmatpush1.bf16.msra.mxu0 0
        %5550 = vmatprep.subr.bf16.mxu0 0
        %5551 = vmatpush1.bf16.msra.mxu0 0
        %5552 = vmatprep.subr.bf16.mxu0 0
        %5553 = vmatpush1.bf16.msra.mxu0 0
        %5554 = vmatprep.subr.bf16.mxu0 0
        %5555 = vmatpush1.bf16.msra.mxu0 0
        %5556 = vmatprep.subr.bf16.mxu0 0
        %5557 = vmatpush1.bf16.msra.mxu0 0
        %5558 = vmatprep.subr.bf16.mxu0 0
        %5559 = vmatpush1.bf16.msra.mxu0 0
        %5560 = vmatprep.subr.bf16.mxu0 0
        %5561 = vmatpush1.bf16.msra.mxu0 0
        %5562 = vmatprep.subr.bf16.mxu0 0
        %5563 = vmatpush1.bf16.msra.mxu0 0
        %5564 = vmatprep.subr.bf16.mxu0 0
        %5565 = vmatpush1.bf16.msra.mxu0 0
        %5566 = vmatprep.subr.bf16.mxu0 0
        %5567 = vmatpush1.bf16.msra.mxu0 0
        %5568 = vmatprep.subr.bf16.mxu0 0
        %5569 = vmatpush1.bf16.msra.mxu0 0
        %5570 = vmatprep.subr.bf16.mxu0 0
        %5571 = vmatpush1.bf16.msra.mxu0 0
        %5572 = vmatprep.mubr.bf16.mxu0 0
        %5573 = vmatmul.mubr.bf16.gmra.mrb[0].mxu0 %v5523
        %v5574 = vpop.f32.mrb[0].mxu0
        %v5575 = vadd.f32 0.0, %v5574
        %v5576 = vpop.f32.mrb[0].mxu0
        %v5577 = vadd.f32 0.0, %v5576
        %v5578 = vpop.f32.mrb[0].mxu0
        %v5579 = vadd.f32 0.0, %v5578
        %v5580 = vpop.f32.mrb[0].mxu0
        %v5581 = vadd.f32 0.0, %v5580
        %5582 = vmatprep.mubr.bf16.mxu0 0
        %5583 = vmatmul.mubr.bf16.gmra.mrb[0].mxu0 %v5526
        %v5584 = vpop.f32.mrb[0].mxu0
        %v5585 = vadd.f32 0.0, %v5584
        %v5586 = vpop.f32.mrb[0].mxu0
        %v5587 = vadd.f32 0.0, %v5586
        %v5588 = vpop.f32.mrb[0].mxu0
        %v5589 = vadd.f32 0.0, %v5588
        %v5590 = vpop.f32.mrb[0].mxu0
        %v5591 = vadd.f32 0.0, %v5590
        %5592 = vmatprep.mubr.bf16.mxu0 0
        %5593 = vmatmul.mubr.bf16.gmra.mrb[0].mxu0 %v5529
        %v5594 = vpop.f32.mrb[0].mxu0
        %v5595 = vadd.f32 0.0, %v5594
        %v5596 = vpop.f32.mrb[0].mxu0
        %v5597 = vadd.f32 0.0, %v5596
        %v5598 = vpop.f32.mrb[0].mxu0
        %v5599 = vadd.f32 0.0, %v5598
        %v5600 = vpop.f32.mrb[0].mxu0
        %v5601 = vadd.f32 0.0, %v5600
        %5602 = vmatprep.mubr.bf16.mxu0 0
        %5603 = vmatmul.mubr.bf16.gmra.mrb[0].mxu0 %v5532
        %v5604 = vpop.f32.mrb[0].mxu0
        %v5605 = vadd.f32 0.0, %v5604
        %v5606 = vpop.f32.mrb[0].mxu0
        %v5607 = vadd.f32 0.0, %v5606
        %v5608 = vpop.f32.mrb[0].mxu0
        %v5609 = vadd.f32 0.0, %v5608
        %v5610 = vpop.f32.mrb[0].mxu0
        %v5611 = vadd.f32 0.0, %v5610
        %5612 = vdwg.mxu0
        %v5613 = vadd.f32 %v4731, %v5575
        %v5614 = vadd.f32 %v4732, %v5577
        %v5615 = vadd.f32 %v4733, %v5579
        %v5616 = vadd.f32 %v4734, %v5581
        %v5617 = vadd.f32 %v4735, %v5585
        %v5618 = vadd.f32 %v4736, %v5587
        %v5619 = vadd.f32 %v4737, %v5589
        %v5620 = vadd.f32 %v4738, %v5591
        %v5621 = vadd.f32 %v4739, %v5595
        %v5622 = vadd.f32 %v4740, %v5597
        %v5623 = vadd.f32 %v4741, %v5599
        %v5624 = vadd.f32 %v4742, %v5601
        %v5625 = vadd.f32 %v4743, %v5605
        %v5626 = vadd.f32 %v4744, %v5607
        %v5627 = vadd.f32 %v4745, %v5609
        %v5628 = vadd.f32 %v4746, %v5611
        %v5629 = vld [vmem:[%s51] sm:$0x3]
        %v5631 = vlaneseq
        %v5632 = vshrl.u32 %v5631, 7
        %v5633 = vsub.s32 0, %v5632
        %v5634 = vrot.slane %v5629, %v5633
        %v5635 = vlaneseq
        %v5636 = vshrl.u32 %v5635, 7
        %v5637 = vsub.s32 1, %v5636
        %v5638 = vrot.slane %v5629, %v5637
        %v5641 = vadd.f32 %v5613, %v5634
        %v5642 = vadd.f32 %v5614, %v5638
        %v5643 = vadd.f32 %v5615, %v5634
        %v5644 = vadd.f32 %v5616, %v5638
        %v5645 = vadd.f32 %v5617, %v5634
        %v5646 = vadd.f32 %v5618, %v5638
        %v5647 = vadd.f32 %v5619, %v5634
        %v5648 = vadd.f32 %v5620, %v5638
        %v5649 = vadd.f32 %v5621, %v5634
        %v5650 = vadd.f32 %v5622, %v5638
        %v5651 = vadd.f32 %v5623, %v5634
        %v5652 = vadd.f32 %v5624, %v5638
        %v5653 = vadd.f32 %v5625, %v5634
        %v5654 = vadd.f32 %v5626, %v5638
        %v5655 = vadd.f32 %v5627, %v5634
        %v5656 = vadd.f32 %v5628, %v5638
        %v5657 = vadd.f32 %v2095, %v5641
        %v5658 = vadd.f32 %v2096, %v5642
        %v5659 = vadd.f32 %v2097, %v5643
        %v5660 = vadd.f32 %v2098, %v5644
        %v5661 = vadd.f32 %v2099, %v5645
        %v5662 = vadd.f32 %v2100, %v5646
        %v5663 = vadd.f32 %v2101, %v5647
        %v5664 = vadd.f32 %v2102, %v5648
        %v5665 = vadd.f32 %v2103, %v5649
        %v5666 = vadd.f32 %v2104, %v5650
        %v5667 = vadd.f32 %v2105, %v5651
        %v5668 = vadd.f32 %v2106, %v5652
        %v5669 = vadd.f32 %v2107, %v5653
        %v5670 = vadd.f32 %v2108, %v5654
        %v5671 = vadd.f32 %v2109, %v5655
        %v5672 = vadd.f32 %v2110, %v5656
        %v5673 = vsel %vm1605, %v5658, 0.0
        %v5674 = vadd.f32 %v5657, %v5673
        %5675 = vadd.xlane.f32.xlu0 %v5674
        %v5676 = vpop.xlane.xlu0 %5675
        %v5677 = vsel %vm1605, %v5660, 0.0
        %v5678 = vadd.f32 %v5659, %v5677
        %5679 = vadd.xlane.f32.xlu0 %v5678
        %v5680 = vpop.xlane.xlu0 %5679
        %v5681 = vsel %vm1605, %v5662, 0.0
        %v5682 = vadd.f32 %v5661, %v5681
        %5683 = vadd.xlane.f32.xlu0 %v5682
        %v5684 = vpop.xlane.xlu0 %5683
        %v5685 = vsel %vm1605, %v5664, 0.0
        %v5686 = vadd.f32 %v5663, %v5685
        %5687 = vadd.xlane.f32.xlu0 %v5686
        %v5688 = vpop.xlane.xlu0 %5687
        %v5689 = vsel %vm1605, %v5666, 0.0
        %v5690 = vadd.f32 %v5665, %v5689
        %5691 = vadd.xlane.f32.xlu0 %v5690
        %v5692 = vpop.xlane.xlu0 %5691
        %v5693 = vsel %vm1605, %v5668, 0.0
        %v5694 = vadd.f32 %v5667, %v5693
        %5695 = vadd.xlane.f32.xlu0 %v5694
        %v5696 = vpop.xlane.xlu0 %5695
        %v5697 = vsel %vm1605, %v5670, 0.0
        %v5698 = vadd.f32 %v5669, %v5697
        %5699 = vadd.xlane.f32.xlu0 %v5698
        %v5700 = vpop.xlane.xlu0 %5699
        %v5701 = vsel %vm1605, %v5672, 0.0
        %v5702 = vadd.f32 %v5671, %v5701
        %5703 = vadd.xlane.f32.xlu0 %v5702
        %v5704 = vpop.xlane.xlu0 %5703
        %v5705 = vmul.f32 %v5676, %v1942
        %v5706 = vmul.f32 %v5680, %v1942
        %v5707 = vmul.f32 %v5684, %v1942
        %v5708 = vmul.f32 %v5688, %v1942
        %v5709 = vmul.f32 %v5692, %v1942
        %v5710 = vmul.f32 %v5696, %v1942
        %v5711 = vmul.f32 %v5700, %v1942
        %v5712 = vmul.f32 %v5704, %v1942
        %v5713 = vsub.f32 %v5657, %v5705
        %v5714 = vsub.f32 %v5658, %v5705
        %v5715 = vsub.f32 %v5659, %v5706
        %v5716 = vsub.f32 %v5660, %v5706
        %v5717 = vsub.f32 %v5661, %v5707
        %v5718 = vsub.f32 %v5662, %v5707
        %v5719 = vsub.f32 %v5663, %v5708
        %v5720 = vsub.f32 %v5664, %v5708
        %v5721 = vsub.f32 %v5665, %v5709
        %v5722 = vsub.f32 %v5666, %v5709
        %v5723 = vsub.f32 %v5667, %v5710
        %v5724 = vsub.f32 %v5668, %v5710
        %v5725 = vsub.f32 %v5669, %v5711
        %v5726 = vsub.f32 %v5670, %v5711
        %v5727 = vsub.f32 %v5671, %v5712
        %v5728 = vsub.f32 %v5672, %v5712
        %v5729 = vmul.f32 %v5713, %v5713
        %v5730 = vmul.f32 %v5714, %v5714
        %v5731 = vmul.f32 %v5715, %v5715
        %v5732 = vmul.f32 %v5716, %v5716
        %v5733 = vmul.f32 %v5717, %v5717
        %v5734 = vmul.f32 %v5718, %v5718
        %v5735 = vmul.f32 %v5719, %v5719
        %v5736 = vmul.f32 %v5720, %v5720
        %v5737 = vmul.f32 %v5721, %v5721
        %v5738 = vmul.f32 %v5722, %v5722
        %v5739 = vmul.f32 %v5723, %v5723
        %v5740 = vmul.f32 %v5724, %v5724
        %v5741 = vmul.f32 %v5725, %v5725
        %v5742 = vmul.f32 %v5726, %v5726
        %v5743 = vmul.f32 %v5727, %v5727
        %v5744 = vmul.f32 %v5728, %v5728
        %v5745 = vsel %vm1605, %v5730, 0.0
        %v5746 = vadd.f32 %v5729, %v5745
        %5747 = vadd.xlane.f32.xlu0 %v5746
        %v5748 = vpop.xlane.xlu0 %5747
        %v5749 = vsel %vm1605, %v5732, 0.0
        %v5750 = vadd.f32 %v5731, %v5749
        %5751 = vadd.xlane.f32.xlu0 %v5750
        %v5752 = vpop.xlane.xlu0 %5751
        %v5753 = vsel %vm1605, %v5734, 0.0
        %v5754 = vadd.f32 %v5733, %v5753
        %5755 = vadd.xlane.f32.xlu0 %v5754
        %v5756 = vpop.xlane.xlu0 %5755
        %v5757 = vsel %vm1605, %v5736, 0.0
        %v5758 = vadd.f32 %v5735, %v5757
        %5759 = vadd.xlane.f32.xlu0 %v5758
        %v5760 = vpop.xlane.xlu0 %5759
        %v5761 = vsel %vm1605, %v5738, 0.0
        %v5762 = vadd.f32 %v5737, %v5761
        %5763 = vadd.xlane.f32.xlu0 %v5762
        %v5764 = vpop.xlane.xlu0 %5763
        %v5765 = vsel %vm1605, %v5740, 0.0
        %v5766 = vadd.f32 %v5739, %v5765
        %5767 = vadd.xlane.f32.xlu0 %v5766
        %v5768 = vpop.xlane.xlu0 %5767
        %v5769 = vsel %vm1605, %v5742, 0.0
        %v5770 = vadd.f32 %v5741, %v5769
        %5771 = vadd.xlane.f32.xlu0 %v5770
        %v5772 = vpop.xlane.xlu0 %5771
        %v5773 = vsel %vm1605, %v5744, 0.0
        %v5774 = vadd.f32 %v5743, %v5773
        %5775 = vadd.xlane.f32.xlu0 %v5774
        %v5776 = vpop.xlane.xlu0 %5775
        %v5777 = vmul.f32 %v5748, %v1942
        %v5778 = vmul.f32 %v5752, %v1942
        %v5779 = vmul.f32 %v5756, %v1942
        %v5780 = vmul.f32 %v5760, %v1942
        %v5781 = vmul.f32 %v5764, %v1942
        %v5782 = vmul.f32 %v5768, %v1942
        %v5783 = vmul.f32 %v5772, %v1942
        %v5784 = vmul.f32 %v5776, %v1942
        %v5785 = vadd.f32 %v5777, 1e-05
        %v5786 = vadd.f32 %v5778, 1e-05
        %v5787 = vadd.f32 %v5779, 1e-05
        %v5788 = vadd.f32 %v5780, 1e-05
        %v5789 = vadd.f32 %v5781, 1e-05
        %v5790 = vadd.f32 %v5782, 1e-05
        %v5791 = vadd.f32 %v5783, 1e-05
        %v5792 = vadd.f32 %v5784, 1e-05
        %v5793 = vrsqrt.pop %v5785
        %v5794 = vrsqrt.pop %v5786
        %v5795 = vrsqrt.pop %v5787
        %v5796 = vrsqrt.pop %v5788
        %v5797 = vrsqrt.pop %v5789
        %v5798 = vrsqrt.pop %v5790
        %v5799 = vrsqrt.pop %v5791
        %v5800 = vrsqrt.pop %v5792
        %v5801 = vmul.f32 %v5713, %v5793
        %v5802 = vmul.f32 %v5714, %v5793
        %v5803 = vmul.f32 %v5715, %v5794
        %v5804 = vmul.f32 %v5716, %v5794
        %v5805 = vmul.f32 %v5717, %v5795
        %v5806 = vmul.f32 %v5718, %v5795
        %v5807 = vmul.f32 %v5719, %v5796
        %v5808 = vmul.f32 %v5720, %v5796
        %v5809 = vmul.f32 %v5721, %v5797
        %v5810 = vmul.f32 %v5722, %v5797
        %v5811 = vmul.f32 %v5723, %v5798
        %v5812 = vmul.f32 %v5724, %v5798
        %v5813 = vmul.f32 %v5725, %v5799
        %v5814 = vmul.f32 %v5726, %v5799
        %v5815 = vmul.f32 %v5727, %v5800
        %v5816 = vmul.f32 %v5728, %v5800
        %v5817 = vld [vmem:[%s53] sm:$0x3]
        %v5819 = vlaneseq
        %v5820 = vshrl.u32 %v5819, 7
        %v5821 = vsub.s32 0, %v5820
        %v5822 = vrot.slane %v5817, %v5821
        %v5823 = vlaneseq
        %v5824 = vshrl.u32 %v5823, 7
        %v5825 = vsub.s32 1, %v5824
        %v5826 = vrot.slane %v5817, %v5825
        %v5829 = vmul.f32 %v5801, %v5822
        %v5830 = vmul.f32 %v5802, %v5826
        %v5831 = vmul.f32 %v5803, %v5822
        %v5832 = vmul.f32 %v5804, %v5826
        %v5833 = vmul.f32 %v5805, %v5822
        %v5834 = vmul.f32 %v5806, %v5826
        %v5835 = vmul.f32 %v5807, %v5822
        %v5836 = vmul.f32 %v5808, %v5826
        %v5837 = vmul.f32 %v5809, %v5822
        %v5838 = vmul.f32 %v5810, %v5826
        %v5839 = vmul.f32 %v5811, %v5822
        %v5840 = vmul.f32 %v5812, %v5826
        %v5841 = vmul.f32 %v5813, %v5822
        %v5842 = vmul.f32 %v5814, %v5826
        %v5843 = vmul.f32 %v5815, %v5822
        %v5844 = vmul.f32 %v5816, %v5826
        %v5845 = vld [vmem:[%s55] sm:$0x3]
        %v5847 = vlaneseq
        %v5848 = vshrl.u32 %v5847, 7
        %v5849 = vsub.s32 0, %v5848
        %v5850 = vrot.slane %v5845, %v5849
        %v5851 = vlaneseq
        %v5852 = vshrl.u32 %v5851, 7
        %v5853 = vsub.s32 1, %v5852
        %v5854 = vrot.slane %v5845, %v5853
        %v5857 = vadd.f32 %v5829, %v5850
        %v5858 = vadd.f32 %v5830, %v5854
        %v5859 = vadd.f32 %v5831, %v5850
        %v5860 = vadd.f32 %v5832, %v5854
        %v5861 = vadd.f32 %v5833, %v5850
        %v5862 = vadd.f32 %v5834, %v5854
        %v5863 = vadd.f32 %v5835, %v5850
        %v5864 = vadd.f32 %v5836, %v5854
        %v5865 = vadd.f32 %v5837, %v5850
        %v5866 = vadd.f32 %v5838, %v5854
        %v5867 = vadd.f32 %v5839, %v5850
        %v5868 = vadd.f32 %v5840, %v5854
        %v5869 = vadd.f32 %v5841, %v5850
        %v5870 = vadd.f32 %v5842, %v5854
        %v5871 = vadd.f32 %v5843, %v5850
        %v5872 = vadd.f32 %v5844, %v5854
        %v5873 = vpack.c.bf16 %v5859, %v5857
        %v5874 = vpack.c.bf16 %v5860, %v5858
        %v5875 = vpack.c.bf16 %v5863, %v5861
        %v5876 = vpack.c.bf16 %v5864, %v5862
        %v5877 = vpack.c.bf16 %v5867, %v5865
        %v5878 = vpack.c.bf16 %v5868, %v5866
        %v5879 = vpack.c.bf16 %v5871, %v5869
        %v5880 = vpack.c.bf16 %v5872, %v5870
        %v5881 = vld [vmem:[%s57] sm:$0xff]
        %v5882 = vld [vmem:[%s57 + $0x8] sm:$0xff]
        %v5883 = vld [vmem:[%s57 + $0x40] sm:$0xff]
        %v5884 = vld [vmem:[%s57 + $0x48] sm:$0xff]
        %v5885 = vld [vmem:[%s57 + $0x80] sm:$0xff]
        %v5886 = vld [vmem:[%s57 + $0x88] sm:$0xff]
        %v5887 = vld [vmem:[%s57 + $0xc0] sm:$0xff]
        %v5888 = vld [vmem:[%s57 + $0xc8] sm:$0xff]
        %v5889 = vld [vmem:[%s57 + $0x100] sm:$0xff]
        %v5890 = vld [vmem:[%s57 + $0x108] sm:$0xff]
        %v5891 = vld [vmem:[%s57 + $0x140] sm:$0xff]
        %v5892 = vld [vmem:[%s57 + $0x148] sm:$0xff]
        %v5893 = vld [vmem:[%s57 + $0x180] sm:$0xff]
        %v5894 = vld [vmem:[%s57 + $0x188] sm:$0xff]
        %v5895 = vld [vmem:[%s57 + $0x1c0] sm:$0xff]
        %v5896 = vld [vmem:[%s57 + $0x1c8] sm:$0xff]
        %v5897 = vld [vmem:[%s57 + $0x200] sm:$0xff]
        %v5898 = vld [vmem:[%s57 + $0x208] sm:$0xff]
        %v5899 = vld [vmem:[%s57 + $0x240] sm:$0xff]
        %v5900 = vld [vmem:[%s57 + $0x248] sm:$0xff]
        %v5901 = vld [vmem:[%s57 + $0x280] sm:$0xff]
        %v5902 = vld [vmem:[%s57 + $0x288] sm:$0xff]
        %v5903 = vld [vmem:[%s57 + $0x2c0] sm:$0xff]
        %v5904 = vld [vmem:[%s57 + $0x2c8] sm:$0xff]
        %v5905 = vld [vmem:[%s57 + $0x300] sm:$0xff]
        %v5906 = vld [vmem:[%s57 + $0x308] sm:$0xff]
        %v5907 = vld [vmem:[%s57 + $0x340] sm:$0xff]
        %v5908 = vld [vmem:[%s57 + $0x348] sm:$0xff]
        %v5909 = vld [vmem:[%s57 + $0x380] sm:$0xff]
        %v5910 = vld [vmem:[%s57 + $0x388] sm:$0xff]
        %v5911 = vld [vmem:[%s57 + $0x3c0] sm:$0xff]
        %v5912 = vld [vmem:[%s57 + $0x3c8] sm:$0xff]
        %v5913 = vld [vmem:[%s57 + $0x400] sm:$0xff]
        %v5914 = vld [vmem:[%s57 + $0x408] sm:$0xff]
        %v5915 = vld [vmem:[%s57 + $0x440] sm:$0xff]
        %v5916 = vld [vmem:[%s57 + $0x448] sm:$0xff]
        %v5917 = vld [vmem:[%s57 + $0x480] sm:$0xff]
        %v5918 = vld [vmem:[%s57 + $0x488] sm:$0xff]
        %v5919 = vld [vmem:[%s57 + $0x4c0] sm:$0xff]
        %v5920 = vld [vmem:[%s57 + $0x4c8] sm:$0xff]
        %v5921 = vld [vmem:[%s59] sm:$0xf]
        %v5923 = vlaneseq
        %v5924 = vshrl.u32 %v5923, 7
        %v5925 = vsub.s32 0, %v5924
        %v5926 = vrot.slane %v5921, %v5925
        %v5927 = vlaneseq
        %v5928 = vshrl.u32 %v5927, 7
        %v5929 = vsub.s32 1, %v5928
        %v5930 = vrot.slane %v5921, %v5929
        %v5931 = vlaneseq
        %v5932 = vshrl.u32 %v5931, 7
        %v5933 = vsub.s32 2, %v5932
        %v5934 = vrot.slane %v5921, %v5933
        %v5935 = vlaneseq
        %v5936 = vshrl.u32 %v5935, 7
        %v5937 = vsub.s32 3, %v5936
        %v5938 = vrot.slane %v5921, %v5937
        %v5983 = vunpack.c.l.b16 %v5881
        %v5984 = vunpack.c.h.b16 %v5881
        %v5985 = vunpack.c.l.b16 %v5882
        %v5986 = vunpack.c.h.b16 %v5882
        %v5987 = vunpack.c.l.b16 %v5883
        %v5988 = vunpack.c.h.b16 %v5883
        %v5989 = vunpack.c.l.b16 %v5884
        %v5990 = vunpack.c.h.b16 %v5884
        %v5991 = vunpack.c.l.b16 %v5885
        %v5992 = vunpack.c.h.b16 %v5885
        %v5993 = vunpack.c.l.b16 %v5886
        %v5994 = vunpack.c.h.b16 %v5886
        %v5995 = vunpack.c.l.b16 %v5887
        %v5996 = vunpack.c.h.b16 %v5887
        %v5997 = vunpack.c.l.b16 %v5888
        %v5998 = vunpack.c.h.b16 %v5888
        %v5999 = vunpack.c.l.b16 %v5889
        %v6000 = vunpack.c.h.b16 %v5889
        %v6001 = vunpack.c.l.b16 %v5890
        %v6002 = vunpack.c.h.b16 %v5890
        %v6003 = vunpack.c.l.b16 %v5891
        %v6004 = vunpack.c.h.b16 %v5891
        %v6005 = vunpack.c.l.b16 %v5892
        %v6006 = vunpack.c.h.b16 %v5892
        %v6007 = vunpack.c.l.b16 %v5893
        %v6008 = vunpack.c.h.b16 %v5893
        %v6009 = vunpack.c.l.b16 %v5894
        %v6010 = vunpack.c.h.b16 %v5894
        %v6011 = vunpack.c.l.b16 %v5895
        %v6012 = vunpack.c.h.b16 %v5895
        %v6013 = vunpack.c.l.b16 %v5896
        %v6014 = vunpack.c.h.b16 %v5896
        %v6015 = vunpack.c.l.b16 %v5897
        %v6016 = vunpack.c.h.b16 %v5897
        %v6017 = vunpack.c.l.b16 %v5898
        %v6018 = vunpack.c.h.b16 %v5898
        %v6019 = vunpack.c.l.b16 %v5899
        %v6020 = vunpack.c.h.b16 %v5899
        %v6021 = vunpack.c.l.b16 %v5900
        %v6022 = vunpack.c.h.b16 %v5900
        %v6023 = vunpack.c.l.b16 %v5901
        %v6024 = vunpack.c.h.b16 %v5901
        %v6025 = vunpack.c.l.b16 %v5902
        %v6026 = vunpack.c.h.b16 %v5902
        %v6027 = vunpack.c.l.b16 %v5903
        %v6028 = vunpack.c.h.b16 %v5903
        %v6029 = vunpack.c.l.b16 %v5904
        %v6030 = vunpack.c.h.b16 %v5904
        %v6031 = vunpack.c.l.b16 %v5905
        %v6032 = vunpack.c.h.b16 %v5905
        %v6033 = vunpack.c.l.b16 %v5906
        %v6034 = vunpack.c.h.b16 %v5906
        %v6035 = vunpack.c.l.b16 %v5907
        %v6036 = vunpack.c.h.b16 %v5907
        %v6037 = vunpack.c.l.b16 %v5908
        %v6038 = vunpack.c.h.b16 %v5908
        %v6039 = vunpack.c.l.b16 %v5909
        %v6040 = vunpack.c.h.b16 %v5909
        %v6041 = vunpack.c.l.b16 %v5910
        %v6042 = vunpack.c.h.b16 %v5910
        %v6043 = vunpack.c.l.b16 %v5911
        %v6044 = vunpack.c.h.b16 %v5911
        %v6045 = vunpack.c.l.b16 %v5912
        %v6046 = vunpack.c.h.b16 %v5912
        %v6047 = vunpack.c.l.b16 %v5913
        %v6048 = vunpack.c.h.b16 %v5913
        %v6049 = vunpack.c.l.b16 %v5914
        %v6050 = vunpack.c.h.b16 %v5914
        %v6051 = vunpack.c.l.b16 %v5915
        %v6052 = vunpack.c.h.b16 %v5915
        %v6053 = vunpack.c.l.b16 %v5916
        %v6054 = vunpack.c.h.b16 %v5916
        %v6055 = vunpack.c.l.b16 %v5917
        %v6056 = vunpack.c.h.b16 %v5917
        %v6057 = vunpack.c.l.b16 %v5918
        %v6058 = vunpack.c.h.b16 %v5918
        %v6059 = vunpack.c.l.b16 %v5919
        %v6060 = vunpack.c.h.b16 %v5919
        %v6061 = vunpack.c.l.b16 %v5920
        %v6062 = vunpack.c.h.b16 %v5920
        %v6063 = vpack.c.b16 %v5987, %v5983
        %v6064 = vpack.c.b16 %v5988, %v5984
        %v6065 = vpack.c.b16 %v5989, %v5985
        %v6066 = vpack.c.b16 %v5990, %v5986
        %v6067 = vpack.c.b16 %v5995, %v5991
        %v6068 = vpack.c.b16 %v5996, %v5992
        %v6069 = vpack.c.b16 %v5997, %v5993
        %v6070 = vpack.c.b16 %v5998, %v5994
        %v6071 = vpack.c.b16 %v6003, %v5999
        %v6072 = vpack.c.b16 %v6004, %v6000
        %v6073 = vpack.c.b16 %v6005, %v6001
        %v6074 = vpack.c.b16 %v6006, %v6002
        %v6075 = vpack.c.b16 %v6011, %v6007
        %v6076 = vpack.c.b16 %v6012, %v6008
        %v6077 = vpack.c.b16 %v6013, %v6009
        %v6078 = vpack.c.b16 %v6014, %v6010
        %v6079 = vpack.c.b16 %v6019, %v6015
        %v6080 = vpack.c.b16 %v6020, %v6016
        %v6081 = vpack.c.b16 %v6021, %v6017
        %v6082 = vpack.c.b16 %v6022, %v6018
        %v6083 = vpack.c.b16 %v6027, %v6023
        %v6084 = vpack.c.b16 %v6028, %v6024
        %v6085 = vpack.c.b16 %v6029, %v6025
        %v6086 = vpack.c.b16 %v6030, %v6026
        %v6087 = vpack.c.b16 %v6035, %v6031
        %v6088 = vpack.c.b16 %v6036, %v6032
        %v6089 = vpack.c.b16 %v6037, %v6033
        %v6090 = vpack.c.b16 %v6038, %v6034
        %v6091 = vpack.c.b16 %v6043, %v6039
        %v6092 = vpack.c.b16 %v6044, %v6040
        %v6093 = vpack.c.b16 %v6045, %v6041
        %v6094 = vpack.c.b16 %v6046, %v6042
        %v6095 = vpack.c.b16 %v6051, %v6047
        %v6096 = vpack.c.b16 %v6052, %v6048
        %v6097 = vpack.c.b16 %v6053, %v6049
        %v6098 = vpack.c.b16 %v6054, %v6050
        %v6099 = vpack.c.b16 %v6059, %v6055
        %v6100 = vpack.c.b16 %v6060, %v6056
        %v6101 = vpack.c.b16 %v6061, %v6057
        %v6102 = vpack.c.b16 %v6062, %v6058
        %v6144 = vsel %vm1605, %v5874, 0
        %v6147 = vsel %vm1605, %v5876, 0
        %v6150 = vsel %vm1605, %v5878, 0
        %v6153 = vsel %vm1605, %v5880, 0
        %6155 = vmatprep.subr.bf16.mxu0 %v6064
        %6156 = vmatpush1.bf16.msra.mxu0 %v6063
        %6157 = vmatprep.subr.bf16.mxu0 %v6068
        %6158 = vmatpush1.bf16.msra.mxu0 %v6067
        %6159 = vmatprep.subr.bf16.mxu0 %v6072
        %6160 = vmatpush1.bf16.msra.mxu0 %v6071
        %6161 = vmatprep.subr.bf16.mxu0 %v6076
        %6162 = vmatpush1.bf16.msra.mxu0 %v6075
        %6163 = vmatprep.subr.bf16.mxu0 %v6080
        %6164 = vmatpush1.bf16.msra.mxu0 %v6079
        %6165 = vmatprep.subr.bf16.mxu0 %v6084
        %6166 = vmatpush1.bf16.msra.mxu0 %v6083
        %6167 = vmatprep.subr.bf16.mxu0 %v6088
        %6168 = vmatpush1.bf16.msra.mxu0 %v6087
        %6169 = vmatprep.subr.bf16.mxu0 %v6092
        %6170 = vmatpush1.bf16.msra.mxu0 %v6091
        %6171 = vmatprep.subr.bf16.mxu0 %v6096
        %6172 = vmatpush1.bf16.msra.mxu0 %v6095
        %6173 = vmatprep.subr.bf16.mxu0 %v6100
        %6174 = vmatpush1.bf16.msra.mxu0 %v6099
        %6175 = vmatprep.subr.bf16.mxu0 0
        %6176 = vmatpush1.bf16.msra.mxu0 0
        %6177 = vmatprep.subr.bf16.mxu0 0
        %6178 = vmatpush1.bf16.msra.mxu0 0
        %6179 = vmatprep.subr.bf16.mxu0 0
        %6180 = vmatpush1.bf16.msra.mxu0 0
        %6181 = vmatprep.subr.bf16.mxu0 0
        %6182 = vmatpush1.bf16.msra.mxu0 0
        %6183 = vmatprep.subr.bf16.mxu0 0
        %6184 = vmatpush1.bf16.msra.mxu0 0
        %6185 = vmatprep.subr.bf16.mxu0 0
        %6186 = vmatpush1.bf16.msra.mxu0 0
        %6187 = vmatprep.mubr.bf16.mxu0 %v6144
        %6188 = vmatmul.mubr.bf16.gmra.mrb[0].mxu0 %v5873
        %v6189 = vpop.f32.mrb[0].mxu0
        %v6190 = vadd.f32 %v5926, %v6189
        %v6191 = vpop.f32.mrb[0].mxu0
        %v6192 = vadd.f32 %v5930, %v6191
        %v6193 = vpop.f32.mrb[0].mxu0
        %v6194 = vadd.f32 %v5926, %v6193
        %v6195 = vpop.f32.mrb[0].mxu0
        %v6196 = vadd.f32 %v5930, %v6195
        %6197 = vmatprep.mubr.bf16.mxu0 %v6147
        %6198 = vmatmul.mubr.bf16.gmra.mrb[0].mxu0 %v5875
        %v6199 = vpop.f32.mrb[0].mxu0
        %v6200 = vadd.f32 %v5926, %v6199
        %v6201 = vpop.f32.mrb[0].mxu0
        %v6202 = vadd.f32 %v5930, %v6201
        %v6203 = vpop.f32.mrb[0].mxu0
        %v6204 = vadd.f32 %v5926, %v6203
        %v6205 = vpop.f32.mrb[0].mxu0
        %v6206 = vadd.f32 %v5930, %v6205
        %6207 = vmatprep.mubr.bf16.mxu0 %v6150
        %6208 = vmatmul.mubr.bf16.gmra.mrb[0].mxu0 %v5877
        %v6209 = vpop.f32.mrb[0].mxu0
        %v6210 = vadd.f32 %v5926, %v6209
        %v6211 = vpop.f32.mrb[0].mxu0
        %v6212 = vadd.f32 %v5930, %v6211
        %v6213 = vpop.f32.mrb[0].mxu0
        %v6214 = vadd.f32 %v5926, %v6213
        %v6215 = vpop.f32.mrb[0].mxu0
        %v6216 = vadd.f32 %v5930, %v6215
        %6217 = vmatprep.mubr.bf16.mxu0 %v6153
        %6218 = vmatmul.mubr.bf16.gmra.mrb[0].mxu0 %v5879
        %v6219 = vpop.f32.mrb[0].mxu0
        %v6220 = vadd.f32 %v5926, %v6219
        %v6221 = vpop.f32.mrb[0].mxu0
        %v6222 = vadd.f32 %v5930, %v6221
        %v6223 = vpop.f32.mrb[0].mxu0
        %v6224 = vadd.f32 %v5926, %v6223
        %v6225 = vpop.f32.mrb[0].mxu0
        %v6226 = vadd.f32 %v5930, %v6225
        %6227 = vdwg.mxu0
        %6228 = vmatprep.subr.bf16.mxu0 %v6066
        %6229 = vmatpush1.bf16.msra.mxu0 %v6065
        %6230 = vmatprep.subr.bf16.mxu0 %v6070
        %6231 = vmatpush1.bf16.msra.mxu0 %v6069
        %6232 = vmatprep.subr.bf16.mxu0 %v6074
        %6233 = vmatpush1.bf16.msra.mxu0 %v6073
        %6234 = vmatprep.subr.bf16.mxu0 %v6078
        %6235 = vmatpush1.bf16.msra.mxu0 %v6077
        %6236 = vmatprep.subr.bf16.mxu0 %v6082
        %6237 = vmatpush1.bf16.msra.mxu0 %v6081
        %6238 = vmatprep.subr.bf16.mxu0 %v6086
        %6239 = vmatpush1.bf16.msra.mxu0 %v6085
        %6240 = vmatprep.subr.bf16.mxu0 %v6090
        %6241 = vmatpush1.bf16.msra.mxu0 %v6089
        %6242 = vmatprep.subr.bf16.mxu0 %v6094
        %6243 = vmatpush1.bf16.msra.mxu0 %v6093
        %6244 = vmatprep.subr.bf16.mxu0 %v6098
        %6245 = vmatpush1.bf16.msra.mxu0 %v6097
        %6246 = vmatprep.subr.bf16.mxu0 %v6102
        %6247 = vmatpush1.bf16.msra.mxu0 %v6101
        %6248 = vmatprep.subr.bf16.mxu0 0
        %6249 = vmatpush1.bf16.msra.mxu0 0
        %6250 = vmatprep.subr.bf16.mxu0 0
        %6251 = vmatpush1.bf16.msra.mxu0 0
        %6252 = vmatprep.subr.bf16.mxu0 0
        %6253 = vmatpush1.bf16.msra.mxu0 0
        %6254 = vmatprep.subr.bf16.mxu0 0
        %6255 = vmatpush1.bf16.msra.mxu0 0
        %6256 = vmatprep.subr.bf16.mxu0 0
        %6257 = vmatpush1.bf16.msra.mxu0 0
        %6258 = vmatprep.subr.bf16.mxu0 0
        %6259 = vmatpush1.bf16.msra.mxu0 0
        %6260 = vmatprep.mubr.bf16.mxu0 %v6144
        %6261 = vmatmul.mubr.bf16.gmra.mrb[0].mxu0 %v5873
        %v6262 = vpop.f32.mrb[0].mxu0
        %v6263 = vadd.f32 %v5934, %v6262
        %v6264 = vpop.f32.mrb[0].mxu0
        %v6265 = vadd.f32 %v5938, %v6264
        %v6266 = vpop.f32.mrb[0].mxu0
        %v6267 = vadd.f32 %v5934, %v6266
        %v6268 = vpop.f32.mrb[0].mxu0
        %v6269 = vadd.f32 %v5938, %v6268
        %6270 = vmatprep.mubr.bf16.mxu0 %v6147
        %6271 = vmatmul.mubr.bf16.gmra.mrb[0].mxu0 %v5875
        %v6272 = vpop.f32.mrb[0].mxu0
        %v6273 = vadd.f32 %v5934, %v6272
        %v6274 = vpop.f32.mrb[0].mxu0
        %v6275 = vadd.f32 %v5938, %v6274
        %v6276 = vpop.f32.mrb[0].mxu0
        %v6277 = vadd.f32 %v5934, %v6276
        %v6278 = vpop.f32.mrb[0].mxu0
        %v6279 = vadd.f32 %v5938, %v6278
        %6280 = vmatprep.mubr.bf16.mxu0 %v6150
        %6281 = vmatmul.mubr.bf16.gmra.mrb[0].mxu0 %v5877
        %v6282 = vpop.f32.mrb[0].mxu0
        %v6283 = vadd.f32 %v5934, %v6282
        %v6284 = vpop.f32.mrb[0].mxu0
        %v6285 = vadd.f32 %v5938, %v6284
        %v6286 = vpop.f32.mrb[0].mxu0
        %v6287 = vadd.f32 %v5934, %v6286
        %v6288 = vpop.f32.mrb[0].mxu0
        %v6289 = vadd.f32 %v5938, %v6288
        %6290 = vmatprep.mubr.bf16.mxu0 %v6153
        %6291 = vmatmul.mubr.bf16.gmra.mrb[0].mxu0 %v5879
        %v6292 = vpop.f32.mrb[0].mxu0
        %v6293 = vadd.f32 %v5934, %v6292
        %v6294 = vpop.f32.mrb[0].mxu0
        %v6295 = vadd.f32 %v5938, %v6294
        %v6296 = vpop.f32.mrb[0].mxu0
        %v6297 = vadd.f32 %v5934, %v6296
        %v6298 = vpop.f32.mrb[0].mxu0
        %v6299 = vadd.f32 %v5938, %v6298
        %6300 = vdwg.mxu0
        %v6301 = vmax.f32 %v6190, 0.0
        %v6302 = vmax.f32 %v6192, 0.0
        %v6303 = vmax.f32 %v6263, 0.0
        %v6304 = vmax.f32 %v6265, 0.0
        %v6305 = vmax.f32 %v6194, 0.0
        %v6306 = vmax.f32 %v6196, 0.0
        %v6307 = vmax.f32 %v6267, 0.0
        %v6308 = vmax.f32 %v6269, 0.0
        %v6309 = vmax.f32 %v6200, 0.0
        %v6310 = vmax.f32 %v6202, 0.0
        %v6311 = vmax.f32 %v6273, 0.0
        %v6312 = vmax.f32 %v6275, 0.0
        %v6313 = vmax.f32 %v6204, 0.0
        %v6314 = vmax.f32 %v6206, 0.0
        %v6315 = vmax.f32 %v6277, 0.0
        %v6316 = vmax.f32 %v6279, 0.0
        %v6317 = vmax.f32 %v6210, 0.0
        %v6318 = vmax.f32 %v6212, 0.0
        %v6319 = vmax.f32 %v6283, 0.0
        %v6320 = vmax.f32 %v6285, 0.0
        %v6321 = vmax.f32 %v6214, 0.0
        %v6322 = vmax.f32 %v6216, 0.0
        %v6323 = vmax.f32 %v6287, 0.0
        %v6324 = vmax.f32 %v6289, 0.0
        %v6325 = vmax.f32 %v6220, 0.0
        %v6326 = vmax.f32 %v6222, 0.0
        %v6327 = vmax.f32 %v6293, 0.0
        %v6328 = vmax.f32 %v6295, 0.0
        %v6329 = vmax.f32 %v6224, 0.0
        %v6330 = vmax.f32 %v6226, 0.0
        %v6331 = vmax.f32 %v6297, 0.0
        %v6332 = vmax.f32 %v6299, 0.0
        %v6333 = vpack.c.bf16 %v6305, %v6301
        %v6334 = vpack.c.bf16 %v6306, %v6302
        %v6335 = vpack.c.bf16 %v6307, %v6303
        %v6336 = vpack.c.bf16 %v6308, %v6304
        %v6337 = vpack.c.bf16 %v6313, %v6309
        %v6338 = vpack.c.bf16 %v6314, %v6310
        %v6339 = vpack.c.bf16 %v6315, %v6311
        %v6340 = vpack.c.bf16 %v6316, %v6312
        %v6341 = vpack.c.bf16 %v6321, %v6317
        %v6342 = vpack.c.bf16 %v6322, %v6318
        %v6343 = vpack.c.bf16 %v6323, %v6319
        %v6344 = vpack.c.bf16 %v6324, %v6320
        %v6345 = vpack.c.bf16 %v6329, %v6325
        %v6346 = vpack.c.bf16 %v6330, %v6326
        %v6347 = vpack.c.bf16 %v6331, %v6327
        %v6348 = vpack.c.bf16 %v6332, %v6328
        %v6349 = vld [vmem:[%s61] sm:$0xff]
        %v6350 = vld [vmem:[%s61 + $0x8] sm:$0xff]
        %v6351 = vld [vmem:[%s61 + $0x10] sm:$0xff]
        %v6352 = vld [vmem:[%s61 + $0x18] sm:$0xff]
        %v6353 = vld [vmem:[%s61 + $0x20] sm:$0xff]
        %v6354 = vld [vmem:[%s61 + $0x28] sm:$0xff]
        %v6355 = vld [vmem:[%s61 + $0x30] sm:$0xff]
        %v6356 = vld [vmem:[%s61 + $0x38] sm:$0xff]
        %v6357 = vld [vmem:[%s61 + $0x40] sm:$0xff]
        %v6358 = vld [vmem:[%s61 + $0x48] sm:$0xff]
        %v6359 = vld [vmem:[%s61 + $0x50] sm:$0xff]
        %v6360 = vld [vmem:[%s61 + $0x58] sm:$0xff]
        %v6361 = vld [vmem:[%s61 + $0x60] sm:$0xff]
        %v6362 = vld [vmem:[%s61 + $0x68] sm:$0xff]
        %v6363 = vld [vmem:[%s61 + $0x70] sm:$0xff]
        %v6364 = vld [vmem:[%s61 + $0x78] sm:$0xff]
        %v6365 = vld [vmem:[%s61 + $0x80] sm:$0xff]
        %v6366 = vld [vmem:[%s61 + $0x88] sm:$0xff]
        %v6367 = vld [vmem:[%s61 + $0x90] sm:$0xff]
        %v6368 = vld [vmem:[%s61 + $0x98] sm:$0xff]
        %v6369 = vld [vmem:[%s61 + $0xa0] sm:$0xff]
        %v6370 = vld [vmem:[%s61 + $0xa8] sm:$0xff]
        %v6371 = vld [vmem:[%s61 + $0xb0] sm:$0xff]
        %v6372 = vld [vmem:[%s61 + $0xb8] sm:$0xff]
        %v6373 = vld [vmem:[%s61 + $0xc0] sm:$0xff]
        %v6374 = vld [vmem:[%s61 + $0xc8] sm:$0xff]
        %v6375 = vld [vmem:[%s61 + $0xd0] sm:$0xff]
        %v6376 = vld [vmem:[%s61 + $0xd8] sm:$0xff]
        %v6377 = vld [vmem:[%s61 + $0xe0] sm:$0xff]
        %v6378 = vld [vmem:[%s61 + $0xe8] sm:$0xff]
        %v6379 = vld [vmem:[%s61 + $0xf0] sm:$0xff]
        %v6380 = vld [vmem:[%s61 + $0xf8] sm:$0xff]
        %v6381 = vld [vmem:[%s61 + $0x100] sm:$0xff]
        %v6382 = vld [vmem:[%s61 + $0x108] sm:$0xff]
        %v6383 = vld [vmem:[%s61 + $0x110] sm:$0xff]
        %v6384 = vld [vmem:[%s61 + $0x118] sm:$0xff]
        %v6385 = vld [vmem:[%s61 + $0x120] sm:$0xff]
        %v6386 = vld [vmem:[%s61 + $0x128] sm:$0xff]
        %v6387 = vld [vmem:[%s61 + $0x130] sm:$0xff]
        %v6388 = vld [vmem:[%s61 + $0x138] sm:$0xff]
        %v6389 = vld [vmem:[%s61 + $0x140] sm:$0xff]
        %v6390 = vld [vmem:[%s61 + $0x148] sm:$0xff]
        %v6391 = vld [vmem:[%s61 + $0x150] sm:$0xff]
        %v6392 = vld [vmem:[%s61 + $0x158] sm:$0xff]
        %v6393 = vld [vmem:[%s61 + $0x160] sm:$0xff]
        %v6394 = vld [vmem:[%s61 + $0x168] sm:$0xff]
        %v6395 = vld [vmem:[%s61 + $0x170] sm:$0xff]
        %v6396 = vld [vmem:[%s61 + $0x178] sm:$0xff]
        %v6397 = vld [vmem:[%s61 + $0x180] sm:$0xff]
        %v6398 = vld [vmem:[%s61 + $0x188] sm:$0xff]
        %v6399 = vld [vmem:[%s61 + $0x190] sm:$0xff]
        %v6400 = vld [vmem:[%s61 + $0x198] sm:$0xff]
        %v6401 = vld [vmem:[%s61 + $0x1a0] sm:$0xff]
        %v6402 = vld [vmem:[%s61 + $0x1a8] sm:$0xff]
        %v6403 = vld [vmem:[%s61 + $0x1b0] sm:$0xff]
        %v6404 = vld [vmem:[%s61 + $0x1b8] sm:$0xff]
        %v6405 = vld [vmem:[%s61 + $0x1c0] sm:$0xff]
        %v6406 = vld [vmem:[%s61 + $0x1c8] sm:$0xff]
        %v6407 = vld [vmem:[%s61 + $0x1d0] sm:$0xff]
        %v6408 = vld [vmem:[%s61 + $0x1d8] sm:$0xff]
        %v6409 = vld [vmem:[%s61 + $0x1e0] sm:$0xff]
        %v6410 = vld [vmem:[%s61 + $0x1e8] sm:$0xff]
        %v6411 = vld [vmem:[%s61 + $0x1f0] sm:$0xff]
        %v6412 = vld [vmem:[%s61 + $0x1f8] sm:$0xff]
        %v6413 = vld [vmem:[%s57 + $0x10] sm:$0xff]
        %v6414 = vld [vmem:[%s57 + $0x18] sm:$0xff]
        %v6415 = vld [vmem:[%s57 + $0x50] sm:$0xff]
        %v6416 = vld [vmem:[%s57 + $0x58] sm:$0xff]
        %v6417 = vld [vmem:[%s57 + $0x90] sm:$0xff]
        %v6418 = vld [vmem:[%s57 + $0x98] sm:$0xff]
        %v6419 = vld [vmem:[%s57 + $0xd0] sm:$0xff]
        %v6420 = vld [vmem:[%s57 + $0xd8] sm:$0xff]
        %v6421 = vld [vmem:[%s57 + $0x110] sm:$0xff]
        %v6422 = vld [vmem:[%s57 + $0x118] sm:$0xff]
        %v6423 = vld [vmem:[%s57 + $0x150] sm:$0xff]
        %v6424 = vld [vmem:[%s57 + $0x158] sm:$0xff]
        %v6425 = vld [vmem:[%s57 + $0x190] sm:$0xff]
        %v6426 = vld [vmem:[%s57 + $0x198] sm:$0xff]
        %v6427 = vld [vmem:[%s57 + $0x1d0] sm:$0xff]
        %v6428 = vld [vmem:[%s57 + $0x1d8] sm:$0xff]
        %v6429 = vld [vmem:[%s57 + $0x210] sm:$0xff]
        %v6430 = vld [vmem:[%s57 + $0x218] sm:$0xff]
        %v6431 = vld [vmem:[%s57 + $0x250] sm:$0xff]
        %v6432 = vld [vmem:[%s57 + $0x258] sm:$0xff]
        %v6433 = vld [vmem:[%s57 + $0x290] sm:$0xff]
        %v6434 = vld [vmem:[%s57 + $0x298] sm:$0xff]
        %v6435 = vld [vmem:[%s57 + $0x2d0] sm:$0xff]
        %v6436 = vld [vmem:[%s57 + $0x2d8] sm:$0xff]
        %v6437 = vld [vmem:[%s57 + $0x310] sm:$0xff]
        %v6438 = vld [vmem:[%s57 + $0x318] sm:$0xff]
        %v6439 = vld [vmem:[%s57 + $0x350] sm:$0xff]
        %v6440 = vld [vmem:[%s57 + $0x358] sm:$0xff]
        %v6441 = vld [vmem:[%s57 + $0x390] sm:$0xff]
        %v6442 = vld [vmem:[%s57 + $0x398] sm:$0xff]
        %v6443 = vld [vmem:[%s57 + $0x3d0] sm:$0xff]
        %v6444 = vld [vmem:[%s57 + $0x3d8] sm:$0xff]
        %v6445 = vld [vmem:[%s57 + $0x410] sm:$0xff]
        %v6446 = vld [vmem:[%s57 + $0x418] sm:$0xff]
        %v6447 = vld [vmem:[%s57 + $0x450] sm:$0xff]
        %v6448 = vld [vmem:[%s57 + $0x458] sm:$0xff]
        %v6449 = vld [vmem:[%s57 + $0x490] sm:$0xff]
        %v6450 = vld [vmem:[%s57 + $0x498] sm:$0xff]
        %v6451 = vld [vmem:[%s57 + $0x4d0] sm:$0xff]
        %v6452 = vld [vmem:[%s57 + $0x4d8] sm:$0xff]
        %v6453 = vld [vmem:[%s59 + $0x4] sm:$0xf]
        %v6455 = vlaneseq
        %v6456 = vshrl.u32 %v6455, 7
        %v6457 = vsub.s32 0, %v6456
        %v6458 = vrot.slane %v6453, %v6457
        %v6459 = vlaneseq
        %v6460 = vshrl.u32 %v6459, 7
        %v6461 = vsub.s32 1, %v6460
        %v6462 = vrot.slane %v6453, %v6461
        %v6463 = vlaneseq
        %v6464 = vshrl.u32 %v6463, 7
        %v6465 = vsub.s32 2, %v6464
        %v6466 = vrot.slane %v6453, %v6465
        %v6467 = vlaneseq
        %v6468 = vshrl.u32 %v6467, 7
        %v6469 = vsub.s32 3, %v6468
        %v6470 = vrot.slane %v6453, %v6469
        %v6515 = vunpack.c.l.b16 %v6413
        %v6516 = vunpack.c.h.b16 %v6413
        %v6517 = vunpack.c.l.b16 %v6414
        %v6518 = vunpack.c.h.b16 %v6414
        %v6519 = vunpack.c.l.b16 %v6415
        %v6520 = vunpack.c.h.b16 %v6415
        %v6521 = vunpack.c.l.b16 %v6416
        %v6522 = vunpack.c.h.b16 %v6416
        %v6523 = vunpack.c.l.b16 %v6417
        %v6524 = vunpack.c.h.b16 %v6417
        %v6525 = vunpack.c.l.b16 %v6418
        %v6526 = vunpack.c.h.b16 %v6418
        %v6527 = vunpack.c.l.b16 %v6419
        %v6528 = vunpack.c.h.b16 %v6419
        %v6529 = vunpack.c.l.b16 %v6420
        %v6530 = vunpack.c.h.b16 %v6420
        %v6531 = vunpack.c.l.b16 %v6421
        %v6532 = vunpack.c.h.b16 %v6421
        %v6533 = vunpack.c.l.b16 %v6422
        %v6534 = vunpack.c.h.b16 %v6422
        %v6535 = vunpack.c.l.b16 %v6423
        %v6536 = vunpack.c.h.b16 %v6423
        %v6537 = vunpack.c.l.b16 %v6424
        %v6538 = vunpack.c.h.b16 %v6424
        %v6539 = vunpack.c.l.b16 %v6425
        %v6540 = vunpack.c.h.b16 %v6425
        %v6541 = vunpack.c.l.b16 %v6426
        %v6542 = vunpack.c.h.b16 %v6426
        %v6543 = vunpack.c.l.b16 %v6427
        %v6544 = vunpack.c.h.b16 %v6427
        %v6545 = vunpack.c.l.b16 %v6428
        %v6546 = vunpack.c.h.b16 %v6428
        %v6547 = vunpack.c.l.b16 %v6429
        %v6548 = vunpack.c.h.b16 %v6429
        %v6549 = vunpack.c.l.b16 %v6430
        %v6550 = vunpack.c.h.b16 %v6430
        %v6551 = vunpack.c.l.b16 %v6431
        %v6552 = vunpack.c.h.b16 %v6431
        %v6553 = vunpack.c.l.b16 %v6432
        %v6554 = vunpack.c.h.b16 %v6432
        %v6555 = vunpack.c.l.b16 %v6433
        %v6556 = vunpack.c.h.b16 %v6433
        %v6557 = vunpack.c.l.b16 %v6434
        %v6558 = vunpack.c.h.b16 %v6434
        %v6559 = vunpack.c.l.b16 %v6435
        %v6560 = vunpack.c.h.b16 %v6435
        %v6561 = vunpack.c.l.b16 %v6436
        %v6562 = vunpack.c.h.b16 %v6436
        %v6563 = vunpack.c.l.b16 %v6437
        %v6564 = vunpack.c.h.b16 %v6437
        %v6565 = vunpack.c.l.b16 %v6438
        %v6566 = vunpack.c.h.b16 %v6438
        %v6567 = vunpack.c.l.b16 %v6439
        %v6568 = vunpack.c.h.b16 %v6439
        %v6569 = vunpack.c.l.b16 %v6440
        %v6570 = vunpack.c.h.b16 %v6440
        %v6571 = vunpack.c.l.b16 %v6441
        %v6572 = vunpack.c.h.b16 %v6441
        %v6573 = vunpack.c.l.b16 %v6442
        %v6574 = vunpack.c.h.b16 %v6442
        %v6575 = vunpack.c.l.b16 %v6443
        %v6576 = vunpack.c.h.b16 %v6443
        %v6577 = vunpack.c.l.b16 %v6444
        %v6578 = vunpack.c.h.b16 %v6444
        %v6579 = vunpack.c.l.b16 %v6445
        %v6580 = vunpack.c.h.b16 %v6445
        %v6581 = vunpack.c.l.b16 %v6446
        %v6582 = vunpack.c.h.b16 %v6446
        %v6583 = vunpack.c.l.b16 %v6447
        %v6584 = vunpack.c.h.b16 %v6447
        %v6585 = vunpack.c.l.b16 %v6448
        %v6586 = vunpack.c.h.b16 %v6448
        %v6587 = vunpack.c.l.b16 %v6449
        %v6588 = vunpack.c.h.b16 %v6449
        %v6589 = vunpack.c.l.b16 %v6450
        %v6590 = vunpack.c.h.b16 %v6450
        %v6591 = vunpack.c.l.b16 %v6451
        %v6592 = vunpack.c.h.b16 %v6451
        %v6593 = vunpack.c.l.b16 %v6452
        %v6594 = vunpack.c.h.b16 %v6452
        %v6595 = vpack.c.b16 %v6519, %v6515
        %v6596 = vpack.c.b16 %v6520, %v6516
        %v6597 = vpack.c.b16 %v6521, %v6517
        %v6598 = vpack.c.b16 %v6522, %v6518
        %v6599 = vpack.c.b16 %v6527, %v6523
        %v6600 = vpack.c.b16 %v6528, %v6524
        %v6601 = vpack.c.b16 %v6529, %v6525
        %v6602 = vpack.c.b16 %v6530, %v6526
        %v6603 = vpack.c.b16 %v6535, %v6531
        %v6604 = vpack.c.b16 %v6536, %v6532
        %v6605 = vpack.c.b16 %v6537, %v6533
        %v6606 = vpack.c.b16 %v6538, %v6534
        %v6607 = vpack.c.b16 %v6543, %v6539
        %v6608 = vpack.c.b16 %v6544, %v6540
        %v6609 = vpack.c.b16 %v6545, %v6541
        %v6610 = vpack.c.b16 %v6546, %v6542
        %v6611 = vpack.c.b16 %v6551, %v6547
        %v6612 = vpack.c.b16 %v6552, %v6548
        %v6613 = vpack.c.b16 %v6553, %v6549
        %v6614 = vpack.c.b16 %v6554, %v6550
        %v6615 = vpack.c.b16 %v6559, %v6555
        %v6616 = vpack.c.b16 %v6560, %v6556
        %v6617 = vpack.c.b16 %v6561, %v6557
        %v6618 = vpack.c.b16 %v6562, %v6558
        %v6619 = vpack.c.b16 %v6567, %v6563
        %v6620 = vpack.c.b16 %v6568, %v6564
        %v6621 = vpack.c.b16 %v6569, %v6565
        %v6622 = vpack.c.b16 %v6570, %v6566
        %v6623 = vpack.c.b16 %v6575, %v6571
        %v6624 = vpack.c.b16 %v6576, %v6572
        %v6625 = vpack.c.b16 %v6577, %v6573
        %v6626 = vpack.c.b16 %v6578, %v6574
        %v6627 = vpack.c.b16 %v6583, %v6579
        %v6628 = vpack.c.b16 %v6584, %v6580
        %v6629 = vpack.c.b16 %v6585, %v6581
        %v6630 = vpack.c.b16 %v6586, %v6582
        %v6631 = vpack.c.b16 %v6591, %v6587
        %v6632 = vpack.c.b16 %v6592, %v6588
        %v6633 = vpack.c.b16 %v6593, %v6589
        %v6634 = vpack.c.b16 %v6594, %v6590
        %6675 = vmatprep.subr.bf16.mxu0 %v6596
        %6676 = vmatpush1.bf16.msra.mxu0 %v6595
        %6677 = vmatprep.subr.bf16.mxu0 %v6600
        %6678 = vmatpush1.bf16.msra.mxu0 %v6599
        %6679 = vmatprep.subr.bf16.mxu0 %v6604
        %6680 = vmatpush1.bf16.msra.mxu0 %v6603
        %6681 = vmatprep.subr.bf16.mxu0 %v6608
        %6682 = vmatpush1.bf16.msra.mxu0 %v6607
        %6683 = vmatprep.subr.bf16.mxu0 %v6612
        %6684 = vmatpush1.bf16.msra.mxu0 %v6611
        %6685 = vmatprep.subr.bf16.mxu0 %v6616
        %6686 = vmatpush1.bf16.msra.mxu0 %v6615
        %6687 = vmatprep.subr.bf16.mxu0 %v6620
        %6688 = vmatpush1.bf16.msra.mxu0 %v6619
        %6689 = vmatprep.subr.bf16.mxu0 %v6624
        %6690 = vmatpush1.bf16.msra.mxu0 %v6623
        %6691 = vmatprep.subr.bf16.mxu0 %v6628
        %6692 = vmatpush1.bf16.msra.mxu0 %v6627
        %6693 = vmatprep.subr.bf16.mxu0 %v6632
        %6694 = vmatpush1.bf16.msra.mxu0 %v6631
        %6695 = vmatprep.subr.bf16.mxu0 0
        %6696 = vmatpush1.bf16.msra.mxu0 0
        %6697 = vmatprep.subr.bf16.mxu0 0
        %6698 = vmatpush1.bf16.msra.mxu0 0
        %6699 = vmatprep.subr.bf16.mxu0 0
        %6700 = vmatpush1.bf16.msra.mxu0 0
        %6701 = vmatprep.subr.bf16.mxu0 0
        %6702 = vmatpush1.bf16.msra.mxu0 0
        %6703 = vmatprep.subr.bf16.mxu0 0
        %6704 = vmatpush1.bf16.msra.mxu0 0
        %6705 = vmatprep.subr.bf16.mxu0 0
        %6706 = vmatpush1.bf16.msra.mxu0 0
        %6707 = vmatprep.mubr.bf16.mxu0 %v6144
        %6708 = vmatmul.mubr.bf16.gmra.mrb[0].mxu0 %v5873
        %v6709 = vpop.f32.mrb[0].mxu0
        %v6710 = vadd.f32 %v6458, %v6709
        %v6711 = vpop.f32.mrb[0].mxu0
        %v6712 = vadd.f32 %v6462, %v6711
        %v6713 = vpop.f32.mrb[0].mxu0
        %v6714 = vadd.f32 %v6458, %v6713
        %v6715 = vpop.f32.mrb[0].mxu0
        %v6716 = vadd.f32 %v6462, %v6715
        %6717 = vmatprep.mubr.bf16.mxu0 %v6147
        %6718 = vmatmul.mubr.bf16.gmra.mrb[0].mxu0 %v5875
        %v6719 = vpop.f32.mrb[0].mxu0
        %v6720 = vadd.f32 %v6458, %v6719
        %v6721 = vpop.f32.mrb[0].mxu0
        %v6722 = vadd.f32 %v6462, %v6721
        %v6723 = vpop.f32.mrb[0].mxu0
        %v6724 = vadd.f32 %v6458, %v6723
        %v6725 = vpop.f32.mrb[0].mxu0
        %v6726 = vadd.f32 %v6462, %v6725
        %6727 = vmatprep.mubr.bf16.mxu0 %v6150
        %6728 = vmatmul.mubr.bf16.gmra.mrb[0].mxu0 %v5877
        %v6729 = vpop.f32.mrb[0].mxu0
        %v6730 = vadd.f32 %v6458, %v6729
        %v6731 = vpop.f32.mrb[0].mxu0
        %v6732 = vadd.f32 %v6462, %v6731
        %v6733 = vpop.f32.mrb[0].mxu0
        %v6734 = vadd.f32 %v6458, %v6733
        %v6735 = vpop.f32.mrb[0].mxu0
        %v6736 = vadd.f32 %v6462, %v6735
        %6737 = vmatprep.mubr.bf16.mxu0 %v6153
        %6738 = vmatmul.mubr.bf16.gmra.mrb[0].mxu0 %v5879
        %v6739 = vpop.f32.mrb[0].mxu0
        %v6740 = vadd.f32 %v6458, %v6739
        %v6741 = vpop.f32.mrb[0].mxu0
        %v6742 = vadd.f32 %v6462, %v6741
        %v6743 = vpop.f32.mrb[0].mxu0
        %v6744 = vadd.f32 %v6458, %v6743
        %v6745 = vpop.f32.mrb[0].mxu0
        %v6746 = vadd.f32 %v6462, %v6745
        %6747 = vdwg.mxu0
        %6748 = vmatprep.subr.bf16.mxu0 %v6598
        %6749 = vmatpush1.bf16.msra.mxu0 %v6597
        %6750 = vmatprep.subr.bf16.mxu0 %v6602
        %6751 = vmatpush1.bf16.msra.mxu0 %v6601
        %6752 = vmatprep.subr.bf16.mxu0 %v6606
        %6753 = vmatpush1.bf16.msra.mxu0 %v6605
        %6754 = vmatprep.subr.bf16.mxu0 %v6610
        %6755 = vmatpush1.bf16.msra.mxu0 %v6609
        %6756 = vmatprep.subr.bf16.mxu0 %v6614
        %6757 = vmatpush1.bf16.msra.mxu0 %v6613
        %6758 = vmatprep.subr.bf16.mxu0 %v6618
        %6759 = vmatpush1.bf16.msra.mxu0 %v6617
        %6760 = vmatprep.subr.bf16.mxu0 %v6622
        %6761 = vmatpush1.bf16.msra.mxu0 %v6621
        %6762 = vmatprep.subr.bf16.mxu0 %v6626
        %6763 = vmatpush1.bf16.msra.mxu0 %v6625
        %6764 = vmatprep.subr.bf16.mxu0 %v6630
        %6765 = vmatpush1.bf16.msra.mxu0 %v6629
        %6766 = vmatprep.subr.bf16.mxu0 %v6634
        %6767 = vmatpush1.bf16.msra.mxu0 %v6633
        %6768 = vmatprep.subr.bf16.mxu0 0
        %6769 = vmatpush1.bf16.msra.mxu0 0
        %6770 = vmatprep.subr.bf16.mxu0 0
        %6771 = vmatpush1.bf16.msra.mxu0 0
        %6772 = vmatprep.subr.bf16.mxu0 0
        %6773 = vmatpush1.bf16.msra.mxu0 0
        %6774 = vmatprep.subr.bf16.mxu0 0
        %6775 = vmatpush1.bf16.msra.mxu0 0
        %6776 = vmatprep.subr.bf16.mxu0 0
        %6777 = vmatpush1.bf16.msra.mxu0 0
        %6778 = vmatprep.subr.bf16.mxu0 0
        %6779 = vmatpush1.bf16.msra.mxu0 0
        %6780 = vmatprep.mubr.bf16.mxu0 %v6144
        %6781 = vmatmul.mubr.bf16.gmra.mrb[0].mxu0 %v5873
        %v6782 = vpop.f32.mrb[0].mxu0
        %v6783 = vadd.f32 %v6466, %v6782
        %v6784 = vpop.f32.mrb[0].mxu0
        %v6785 = vadd.f32 %v6470, %v6784
        %v6786 = vpop.f32.mrb[0].mxu0
        %v6787 = vadd.f32 %v6466, %v6786
        %v6788 = vpop.f32.mrb[0].mxu0
        %v6789 = vadd.f32 %v6470, %v6788
        %6790 = vmatprep.mubr.bf16.mxu0 %v6147
        %6791 = vmatmul.mubr.bf16.gmra.mrb[0].mxu0 %v5875
        %v6792 = vpop.f32.mrb[0].mxu0
        %v6793 = vadd.f32 %v6466, %v6792
        %v6794 = vpop.f32.mrb[0].mxu0
        %v6795 = vadd.f32 %v6470, %v6794
        %v6796 = vpop.f32.mrb[0].mxu0
        %v6797 = vadd.f32 %v6466, %v6796
        %v6798 = vpop.f32.mrb[0].mxu0
        %v6799 = vadd.f32 %v6470, %v6798
        %6800 = vmatprep.mubr.bf16.mxu0 %v6150
        %6801 = vmatmul.mubr.bf16.gmra.mrb[0].mxu0 %v5877
        %v6802 = vpop.f32.mrb[0].mxu0
        %v6803 = vadd.f32 %v6466, %v6802
        %v6804 = vpop.f32.mrb[0].mxu0
        %v6805 = vadd.f32 %v6470, %v6804
        %v6806 = vpop.f32.mrb[0].mxu0
        %v6807 = vadd.f32 %v6466, %v6806
        %v6808 = vpop.f32.mrb[0].mxu0
        %v6809 = vadd.f32 %v6470, %v6808
        %6810 = vmatprep.mubr.bf16.mxu0 %v6153
        %6811 = vmatmul.mubr.bf16.gmra.mrb[0].mxu0 %v5879
        %v6812 = vpop.f32.mrb[0].mxu0
        %v6813 = vadd.f32 %v6466, %v6812
        %v6814 = vpop.f32.mrb[0].mxu0
        %v6815 = vadd.f32 %v6470, %v6814
        %v6816 = vpop.f32.mrb[0].mxu0
        %v6817 = vadd.f32 %v6466, %v6816
        %v6818 = vpop.f32.mrb[0].mxu0
        %v6819 = vadd.f32 %v6470, %v6818
        %6820 = vdwg.mxu0
        %v6821 = vmax.f32 %v6710, 0.0
        %v6822 = vmax.f32 %v6712, 0.0
        %v6823 = vmax.f32 %v6783, 0.0
        %v6824 = vmax.f32 %v6785, 0.0
        %v6825 = vmax.f32 %v6714, 0.0
        %v6826 = vmax.f32 %v6716, 0.0
        %v6827 = vmax.f32 %v6787, 0.0
        %v6828 = vmax.f32 %v6789, 0.0
        %v6829 = vmax.f32 %v6720, 0.0
        %v6830 = vmax.f32 %v6722, 0.0
        %v6831 = vmax.f32 %v6793, 0.0
        %v6832 = vmax.f32 %v6795, 0.0
        %v6833 = vmax.f32 %v6724, 0.0
        %v6834 = vmax.f32 %v6726, 0.0
        %v6835 = vmax.f32 %v6797, 0.0
        %v6836 = vmax.f32 %v6799, 0.0
        %v6837 = vmax.f32 %v6730, 0.0
        %v6838 = vmax.f32 %v6732, 0.0
        %v6839 = vmax.f32 %v6803, 0.0
        %v6840 = vmax.f32 %v6805, 0.0
        %v6841 = vmax.f32 %v6734, 0.0
        %v6842 = vmax.f32 %v6736, 0.0
        %v6843 = vmax.f32 %v6807, 0.0
        %v6844 = vmax.f32 %v6809, 0.0
        %v6845 = vmax.f32 %v6740, 0.0
        %v6846 = vmax.f32 %v6742, 0.0
        %v6847 = vmax.f32 %v6813, 0.0
        %v6848 = vmax.f32 %v6815, 0.0
        %v6849 = vmax.f32 %v6744, 0.0
        %v6850 = vmax.f32 %v6746, 0.0
        %v6851 = vmax.f32 %v6817, 0.0
        %v6852 = vmax.f32 %v6819, 0.0
        %v6853 = vpack.c.bf16 %v6825, %v6821
        %v6854 = vpack.c.bf16 %v6826, %v6822
        %v6855 = vpack.c.bf16 %v6827, %v6823
        %v6856 = vpack.c.bf16 %v6828, %v6824
        %v6857 = vpack.c.bf16 %v6833, %v6829
        %v6858 = vpack.c.bf16 %v6834, %v6830
        %v6859 = vpack.c.bf16 %v6835, %v6831
        %v6860 = vpack.c.bf16 %v6836, %v6832
        %v6861 = vpack.c.bf16 %v6841, %v6837
        %v6862 = vpack.c.bf16 %v6842, %v6838
        %v6863 = vpack.c.bf16 %v6843, %v6839
        %v6864 = vpack.c.bf16 %v6844, %v6840
        %v6865 = vpack.c.bf16 %v6849, %v6845
        %v6866 = vpack.c.bf16 %v6850, %v6846
        %v6867 = vpack.c.bf16 %v6851, %v6847
        %v6868 = vpack.c.bf16 %v6852, %v6848
        %v6869 = vld [vmem:[%s61 + $0x200] sm:$0xff]
        %v6870 = vld [vmem:[%s61 + $0x208] sm:$0xff]
        %v6871 = vld [vmem:[%s61 + $0x210] sm:$0xff]
        %v6872 = vld [vmem:[%s61 + $0x218] sm:$0xff]
        %v6873 = vld [vmem:[%s61 + $0x220] sm:$0xff]
        %v6874 = vld [vmem:[%s61 + $0x228] sm:$0xff]
        %v6875 = vld [vmem:[%s61 + $0x230] sm:$0xff]
        %v6876 = vld [vmem:[%s61 + $0x238] sm:$0xff]
        %v6877 = vld [vmem:[%s61 + $0x240] sm:$0xff]
        %v6878 = vld [vmem:[%s61 + $0x248] sm:$0xff]
        %v6879 = vld [vmem:[%s61 + $0x250] sm:$0xff]
        %v6880 = vld [vmem:[%s61 + $0x258] sm:$0xff]
        %v6881 = vld [vmem:[%s61 + $0x260] sm:$0xff]
        %v6882 = vld [vmem:[%s61 + $0x268] sm:$0xff]
        %v6883 = vld [vmem:[%s61 + $0x270] sm:$0xff]
        %v6884 = vld [vmem:[%s61 + $0x278] sm:$0xff]
        %v6885 = vld [vmem:[%s61 + $0x280] sm:$0xff]
        %v6886 = vld [vmem:[%s61 + $0x288] sm:$0xff]
        %v6887 = vld [vmem:[%s61 + $0x290] sm:$0xff]
        %v6888 = vld [vmem:[%s61 + $0x298] sm:$0xff]
        %v6889 = vld [vmem:[%s61 + $0x2a0] sm:$0xff]
        %v6890 = vld [vmem:[%s61 + $0x2a8] sm:$0xff]
        %v6891 = vld [vmem:[%s61 + $0x2b0] sm:$0xff]
        %v6892 = vld [vmem:[%s61 + $0x2b8] sm:$0xff]
        %v6893 = vld [vmem:[%s61 + $0x2c0] sm:$0xff]
        %v6894 = vld [vmem:[%s61 + $0x2c8] sm:$0xff]
        %v6895 = vld [vmem:[%s61 + $0x2d0] sm:$0xff]
        %v6896 = vld [vmem:[%s61 + $0x2d8] sm:$0xff]
        %v6897 = vld [vmem:[%s61 + $0x2e0] sm:$0xff]
        %v6898 = vld [vmem:[%s61 + $0x2e8] sm:$0xff]
        %v6899 = vld [vmem:[%s61 + $0x2f0] sm:$0xff]
        %v6900 = vld [vmem:[%s61 + $0x2f8] sm:$0xff]
        %v6901 = vld [vmem:[%s61 + $0x300] sm:$0xff]
        %v6902 = vld [vmem:[%s61 + $0x308] sm:$0xff]
        %v6903 = vld [vmem:[%s61 + $0x310] sm:$0xff]
        %v6904 = vld [vmem:[%s61 + $0x318] sm:$0xff]
        %v6905 = vld [vmem:[%s61 + $0x320] sm:$0xff]
        %v6906 = vld [vmem:[%s61 + $0x328] sm:$0xff]
        %v6907 = vld [vmem:[%s61 + $0x330] sm:$0xff]
        %v6908 = vld [vmem:[%s61 + $0x338] sm:$0xff]
        %v6909 = vld [vmem:[%s61 + $0x340] sm:$0xff]
        %v6910 = vld [vmem:[%s61 + $0x348] sm:$0xff]
        %v6911 = vld [vmem:[%s61 + $0x350] sm:$0xff]
        %v6912 = vld [vmem:[%s61 + $0x358] sm:$0xff]
        %v6913 = vld [vmem:[%s61 + $0x360] sm:$0xff]
        %v6914 = vld [vmem:[%s61 + $0x368] sm:$0xff]
        %v6915 = vld [vmem:[%s61 + $0x370] sm:$0xff]
        %v6916 = vld [vmem:[%s61 + $0x378] sm:$0xff]
        %v6917 = vld [vmem:[%s61 + $0x380] sm:$0xff]
        %v6918 = vld [vmem:[%s61 + $0x388] sm:$0xff]
        %v6919 = vld [vmem:[%s61 + $0x390] sm:$0xff]
        %v6920 = vld [vmem:[%s61 + $0x398] sm:$0xff]
        %v6921 = vld [vmem:[%s61 + $0x3a0] sm:$0xff]
        %v6922 = vld [vmem:[%s61 + $0x3a8] sm:$0xff]
        %v6923 = vld [vmem:[%s61 + $0x3b0] sm:$0xff]
        %v6924 = vld [vmem:[%s61 + $0x3b8] sm:$0xff]
        %v6925 = vld [vmem:[%s61 + $0x3c0] sm:$0xff]
        %v6926 = vld [vmem:[%s61 + $0x3c8] sm:$0xff]
        %v6927 = vld [vmem:[%s61 + $0x3d0] sm:$0xff]
        %v6928 = vld [vmem:[%s61 + $0x3d8] sm:$0xff]
        %v6929 = vld [vmem:[%s61 + $0x3e0] sm:$0xff]
        %v6930 = vld [vmem:[%s61 + $0x3e8] sm:$0xff]
        %v6931 = vld [vmem:[%s61 + $0x3f0] sm:$0xff]
        %v6932 = vld [vmem:[%s61 + $0x3f8] sm:$0xff]
        %v6997 = vunpack.c.l.b16 %v6869
        %v6998 = vunpack.c.h.b16 %v6869
        %v6999 = vunpack.c.l.b16 %v6870
        %v7000 = vunpack.c.h.b16 %v6870
        %v7001 = vunpack.c.l.b16 %v6871
        %v7002 = vunpack.c.h.b16 %v6871
        %v7003 = vunpack.c.l.b16 %v6872
        %v7004 = vunpack.c.h.b16 %v6872
        %v7005 = vunpack.c.l.b16 %v6873
        %v7006 = vunpack.c.h.b16 %v6873
        %v7007 = vunpack.c.l.b16 %v6874
        %v7008 = vunpack.c.h.b16 %v6874
        %v7009 = vunpack.c.l.b16 %v6875
        %v7010 = vunpack.c.h.b16 %v6875
        %v7011 = vunpack.c.l.b16 %v6876
        %v7012 = vunpack.c.h.b16 %v6876
        %v7013 = vunpack.c.l.b16 %v6877
        %v7014 = vunpack.c.h.b16 %v6877
        %v7015 = vunpack.c.l.b16 %v6878
        %v7016 = vunpack.c.h.b16 %v6878
        %v7017 = vunpack.c.l.b16 %v6879
        %v7018 = vunpack.c.h.b16 %v6879
        %v7019 = vunpack.c.l.b16 %v6880
        %v7020 = vunpack.c.h.b16 %v6880
        %v7021 = vunpack.c.l.b16 %v6881
        %v7022 = vunpack.c.h.b16 %v6881
        %v7023 = vunpack.c.l.b16 %v6882
        %v7024 = vunpack.c.h.b16 %v6882
        %v7025 = vunpack.c.l.b16 %v6883
        %v7026 = vunpack.c.h.b16 %v6883
        %v7027 = vunpack.c.l.b16 %v6884
        %v7028 = vunpack.c.h.b16 %v6884
        %v7029 = vunpack.c.l.b16 %v6885
        %v7030 = vunpack.c.h.b16 %v6885
        %v7031 = vunpack.c.l.b16 %v6886
        %v7032 = vunpack.c.h.b16 %v6886
        %v7033 = vunpack.c.l.b16 %v6887
        %v7034 = vunpack.c.h.b16 %v6887
        %v7035 = vunpack.c.l.b16 %v6888
        %v7036 = vunpack.c.h.b16 %v6888
        %v7037 = vunpack.c.l.b16 %v6889
        %v7038 = vunpack.c.h.b16 %v6889
        %v7039 = vunpack.c.l.b16 %v6890
        %v7040 = vunpack.c.h.b16 %v6890
        %v7041 = vunpack.c.l.b16 %v6891
        %v7042 = vunpack.c.h.b16 %v6891
        %v7043 = vunpack.c.l.b16 %v6892
        %v7044 = vunpack.c.h.b16 %v6892
        %v7045 = vunpack.c.l.b16 %v6893
        %v7046 = vunpack.c.h.b16 %v6893
        %v7047 = vunpack.c.l.b16 %v6894
        %v7048 = vunpack.c.h.b16 %v6894
        %v7049 = vunpack.c.l.b16 %v6895
        %v7050 = vunpack.c.h.b16 %v6895
        %v7051 = vunpack.c.l.b16 %v6896
        %v7052 = vunpack.c.h.b16 %v6896
        %v7053 = vunpack.c.l.b16 %v6897
        %v7054 = vunpack.c.h.b16 %v6897
        %v7055 = vunpack.c.l.b16 %v6898
        %v7056 = vunpack.c.h.b16 %v6898
        %v7057 = vunpack.c.l.b16 %v6899
        %v7058 = vunpack.c.h.b16 %v6899
        %v7059 = vunpack.c.l.b16 %v6900
        %v7060 = vunpack.c.h.b16 %v6900
        %v7061 = vunpack.c.l.b16 %v6901
        %v7062 = vunpack.c.h.b16 %v6901
        %v7063 = vunpack.c.l.b16 %v6902
        %v7064 = vunpack.c.h.b16 %v6902
        %v7065 = vunpack.c.l.b16 %v6903
        %v7066 = vunpack.c.h.b16 %v6903
        %v7067 = vunpack.c.l.b16 %v6904
        %v7068 = vunpack.c.h.b16 %v6904
        %v7069 = vunpack.c.l.b16 %v6905
        %v7070 = vunpack.c.h.b16 %v6905
        %v7071 = vunpack.c.l.b16 %v6906
        %v7072 = vunpack.c.h.b16 %v6906
        %v7073 = vunpack.c.l.b16 %v6907
        %v7074 = vunpack.c.h.b16 %v6907
        %v7075 = vunpack.c.l.b16 %v6908
        %v7076 = vunpack.c.h.b16 %v6908
        %v7077 = vunpack.c.l.b16 %v6909
        %v7078 = vunpack.c.h.b16 %v6909
        %v7079 = vunpack.c.l.b16 %v6910
        %v7080 = vunpack.c.h.b16 %v6910
        %v7081 = vunpack.c.l.b16 %v6911
        %v7082 = vunpack.c.h.b16 %v6911
        %v7083 = vunpack.c.l.b16 %v6912
        %v7084 = vunpack.c.h.b16 %v6912
        %v7085 = vunpack.c.l.b16 %v6913
        %v7086 = vunpack.c.h.b16 %v6913
        %v7087 = vunpack.c.l.b16 %v6914
        %v7088 = vunpack.c.h.b16 %v6914
        %v7089 = vunpack.c.l.b16 %v6915
        %v7090 = vunpack.c.h.b16 %v6915
        %v7091 = vunpack.c.l.b16 %v6916
        %v7092 = vunpack.c.h.b16 %v6916
        %v7093 = vunpack.c.l.b16 %v6917
        %v7094 = vunpack.c.h.b16 %v6917
        %v7095 = vunpack.c.l.b16 %v6918
        %v7096 = vunpack.c.h.b16 %v6918
        %v7097 = vunpack.c.l.b16 %v6919
        %v7098 = vunpack.c.h.b16 %v6919
        %v7099 = vunpack.c.l.b16 %v6920
        %v7100 = vunpack.c.h.b16 %v6920
        %v7101 = vunpack.c.l.b16 %v6921
        %v7102 = vunpack.c.h.b16 %v6921
        %v7103 = vunpack.c.l.b16 %v6922
        %v7104 = vunpack.c.h.b16 %v6922
        %v7105 = vunpack.c.l.b16 %v6923
        %v7106 = vunpack.c.h.b16 %v6923
        %v7107 = vunpack.c.l.b16 %v6924
        %v7108 = vunpack.c.h.b16 %v6924
        %v7109 = vunpack.c.l.b16 %v6925
        %v7110 = vunpack.c.h.b16 %v6925
        %v7111 = vunpack.c.l.b16 %v6926
        %v7112 = vunpack.c.h.b16 %v6926
        %v7113 = vunpack.c.l.b16 %v6927
        %v7114 = vunpack.c.h.b16 %v6927
        %v7115 = vunpack.c.l.b16 %v6928
        %v7116 = vunpack.c.h.b16 %v6928
        %v7117 = vunpack.c.l.b16 %v6929
        %v7118 = vunpack.c.h.b16 %v6929
        %v7119 = vunpack.c.l.b16 %v6930
        %v7120 = vunpack.c.h.b16 %v6930
        %v7121 = vunpack.c.l.b16 %v6931
        %v7122 = vunpack.c.h.b16 %v6931
        %v7123 = vunpack.c.l.b16 %v6932
        %v7124 = vunpack.c.h.b16 %v6932
        %v7125 = vpack.c.b16 %v6999, %v6997
        %v7126 = vpack.c.b16 %v7000, %v6998
        %v7127 = vpack.c.b16 %v7003, %v7001
        %v7128 = vpack.c.b16 %v7004, %v7002
        %v7129 = vpack.c.b16 %v7007, %v7005
        %v7130 = vpack.c.b16 %v7008, %v7006
        %v7131 = vpack.c.b16 %v7011, %v7009
        %v7132 = vpack.c.b16 %v7012, %v7010
        %v7133 = vpack.c.b16 %v7015, %v7013
        %v7134 = vpack.c.b16 %v7016, %v7014
        %v7135 = vpack.c.b16 %v7019, %v7017
        %v7136 = vpack.c.b16 %v7020, %v7018
        %v7137 = vpack.c.b16 %v7023, %v7021
        %v7138 = vpack.c.b16 %v7024, %v7022
        %v7139 = vpack.c.b16 %v7027, %v7025
        %v7140 = vpack.c.b16 %v7028, %v7026
        %v7141 = vpack.c.b16 %v7031, %v7029
        %v7142 = vpack.c.b16 %v7032, %v7030
        %v7143 = vpack.c.b16 %v7035, %v7033
        %v7144 = vpack.c.b16 %v7036, %v7034
        %v7145 = vpack.c.b16 %v7039, %v7037
        %v7146 = vpack.c.b16 %v7040, %v7038
        %v7147 = vpack.c.b16 %v7043, %v7041
        %v7148 = vpack.c.b16 %v7044, %v7042
        %v7149 = vpack.c.b16 %v7047, %v7045
        %v7150 = vpack.c.b16 %v7048, %v7046
        %v7151 = vpack.c.b16 %v7051, %v7049
        %v7152 = vpack.c.b16 %v7052, %v7050
        %v7153 = vpack.c.b16 %v7055, %v7053
        %v7154 = vpack.c.b16 %v7056, %v7054
        %v7155 = vpack.c.b16 %v7059, %v7057
        %v7156 = vpack.c.b16 %v7060, %v7058
        %v7157 = vpack.c.b16 %v7063, %v7061
        %v7158 = vpack.c.b16 %v7064, %v7062
        %v7159 = vpack.c.b16 %v7067, %v7065
        %v7160 = vpack.c.b16 %v7068, %v7066
        %v7161 = vpack.c.b16 %v7071, %v7069
        %v7162 = vpack.c.b16 %v7072, %v7070
        %v7163 = vpack.c.b16 %v7075, %v7073
        %v7164 = vpack.c.b16 %v7076, %v7074
        %v7165 = vpack.c.b16 %v7079, %v7077
        %v7166 = vpack.c.b16 %v7080, %v7078
        %v7167 = vpack.c.b16 %v7083, %v7081
        %v7168 = vpack.c.b16 %v7084, %v7082
        %v7169 = vpack.c.b16 %v7087, %v7085
        %v7170 = vpack.c.b16 %v7088, %v7086
        %v7171 = vpack.c.b16 %v7091, %v7089
        %v7172 = vpack.c.b16 %v7092, %v7090
        %v7173 = vpack.c.b16 %v7095, %v7093
        %v7174 = vpack.c.b16 %v7096, %v7094
        %v7175 = vpack.c.b16 %v7099, %v7097
        %v7176 = vpack.c.b16 %v7100, %v7098
        %v7177 = vpack.c.b16 %v7103, %v7101
        %v7178 = vpack.c.b16 %v7104, %v7102
        %v7179 = vpack.c.b16 %v7107, %v7105
        %v7180 = vpack.c.b16 %v7108, %v7106
        %v7181 = vpack.c.b16 %v7111, %v7109
        %v7182 = vpack.c.b16 %v7112, %v7110
        %v7183 = vpack.c.b16 %v7115, %v7113
        %v7184 = vpack.c.b16 %v7116, %v7114
        %v7185 = vpack.c.b16 %v7119, %v7117
        %v7186 = vpack.c.b16 %v7120, %v7118
        %v7187 = vpack.c.b16 %v7123, %v7121
        %v7188 = vpack.c.b16 %v7124, %v7122
        %7253 = vmatprep.subr.bf16.mxu0 %v7126
        %7254 = vmatpush1.bf16.msra.mxu0 %v7125
        %7255 = vmatprep.subr.bf16.mxu0 %v7128
        %7256 = vmatpush1.bf16.msra.mxu0 %v7127
        %7257 = vmatprep.subr.bf16.mxu0 %v7130
        %7258 = vmatpush1.bf16.msra.mxu0 %v7129
        %7259 = vmatprep.subr.bf16.mxu0 %v7132
        %7260 = vmatpush1.bf16.msra.mxu0 %v7131
        %7261 = vmatprep.subr.bf16.mxu0 %v7134
        %7262 = vmatpush1.bf16.msra.mxu0 %v7133
        %7263 = vmatprep.subr.bf16.mxu0 %v7136
        %7264 = vmatpush1.bf16.msra.mxu0 %v7135
        %7265 = vmatprep.subr.bf16.mxu0 %v7138
        %7266 = vmatpush1.bf16.msra.mxu0 %v7137
        %7267 = vmatprep.subr.bf16.mxu0 %v7140
        %7268 = vmatpush1.bf16.msra.mxu0 %v7139
        %7269 = vmatprep.subr.bf16.mxu0 %v7142
        %7270 = vmatpush1.bf16.msra.mxu0 %v7141
        %7271 = vmatprep.subr.bf16.mxu0 %v7144
        %7272 = vmatpush1.bf16.msra.mxu0 %v7143
        %7273 = vmatprep.subr.bf16.mxu0 %v7146
        %7274 = vmatpush1.bf16.msra.mxu0 %v7145
        %7275 = vmatprep.subr.bf16.mxu0 %v7148
        %7276 = vmatpush1.bf16.msra.mxu0 %v7147
        %7277 = vmatprep.subr.bf16.mxu0 %v7150
        %7278 = vmatpush1.bf16.msra.mxu0 %v7149
        %7279 = vmatprep.subr.bf16.mxu0 %v7152
        %7280 = vmatpush1.bf16.msra.mxu0 %v7151
        %7281 = vmatprep.subr.bf16.mxu0 %v7154
        %7282 = vmatpush1.bf16.msra.mxu0 %v7153
        %7283 = vmatprep.subr.bf16.mxu0 %v7156
        %7284 = vmatpush1.bf16.msra.mxu0 %v7155
        %7285 = vmatprep.mubr.bf16.mxu0 %v6854
        %7286 = vmatmul.mubr.bf16.gmra.mrb[0].mxu0 %v6853
        %v7287 = vpop.f32.mrb[0].mxu0
        %v7288 = vadd.f32 0.0, %v7287
        %v7289 = vpop.f32.mrb[0].mxu0
        %v7290 = vadd.f32 0.0, %v7289
        %v7291 = vpop.f32.mrb[0].mxu0
        %v7292 = vadd.f32 0.0, %v7291
        %v7293 = vpop.f32.mrb[0].mxu0
        %v7294 = vadd.f32 0.0, %v7293
        %7295 = vmatprep.mubr.bf16.mxu0 %v6858
        %7296 = vmatmul.mubr.bf16.gmra.mrb[0].mxu0 %v6857
        %v7297 = vpop.f32.mrb[0].mxu0
        %v7298 = vadd.f32 0.0, %v7297
        %v7299 = vpop.f32.mrb[0].mxu0
        %v7300 = vadd.f32 0.0, %v7299
        %v7301 = vpop.f32.mrb[0].mxu0
        %v7302 = vadd.f32 0.0, %v7301
        %v7303 = vpop.f32.mrb[0].mxu0
        %v7304 = vadd.f32 0.0, %v7303
        %7305 = vmatprep.mubr.bf16.mxu0 %v6862
        %7306 = vmatmul.mubr.bf16.gmra.mrb[0].mxu0 %v6861
        %v7307 = vpop.f32.mrb[0].mxu0
        %v7308 = vadd.f32 0.0, %v7307
        %v7309 = vpop.f32.mrb[0].mxu0
        %v7310 = vadd.f32 0.0, %v7309
        %v7311 = vpop.f32.mrb[0].mxu0
        %v7312 = vadd.f32 0.0, %v7311
        %v7313 = vpop.f32.mrb[0].mxu0
        %v7314 = vadd.f32 0.0, %v7313
        %7315 = vmatprep.mubr.bf16.mxu0 %v6866
        %7316 = vmatmul.mubr.bf16.gmra.mrb[0].mxu0 %v6865
        %v7317 = vpop.f32.mrb[0].mxu0
        %v7318 = vadd.f32 0.0, %v7317
        %v7319 = vpop.f32.mrb[0].mxu0
        %v7320 = vadd.f32 0.0, %v7319
        %v7321 = vpop.f32.mrb[0].mxu0
        %v7322 = vadd.f32 0.0, %v7321
        %v7323 = vpop.f32.mrb[0].mxu0
        %v7324 = vadd.f32 0.0, %v7323
        %7325 = vdwg.mxu0
        %7326 = vmatprep.subr.bf16.mxu0 %v7158
        %7327 = vmatpush1.bf16.msra.mxu0 %v7157
        %7328 = vmatprep.subr.bf16.mxu0 %v7160
        %7329 = vmatpush1.bf16.msra.mxu0 %v7159
        %7330 = vmatprep.subr.bf16.mxu0 %v7162
        %7331 = vmatpush1.bf16.msra.mxu0 %v7161
        %7332 = vmatprep.subr.bf16.mxu0 %v7164
        %7333 = vmatpush1.bf16.msra.mxu0 %v7163
        %7334 = vmatprep.subr.bf16.mxu0 %v7166
        %7335 = vmatpush1.bf16.msra.mxu0 %v7165
        %7336 = vmatprep.subr.bf16.mxu0 %v7168
        %7337 = vmatpush1.bf16.msra.mxu0 %v7167
        %7338 = vmatprep.subr.bf16.mxu0 %v7170
        %7339 = vmatpush1.bf16.msra.mxu0 %v7169
        %7340 = vmatprep.subr.bf16.mxu0 %v7172
        %7341 = vmatpush1.bf16.msra.mxu0 %v7171
        %7342 = vmatprep.subr.bf16.mxu0 %v7174
        %7343 = vmatpush1.bf16.msra.mxu0 %v7173
        %7344 = vmatprep.subr.bf16.mxu0 %v7176
        %7345 = vmatpush1.bf16.msra.mxu0 %v7175
        %7346 = vmatprep.subr.bf16.mxu0 %v7178
        %7347 = vmatpush1.bf16.msra.mxu0 %v7177
        %7348 = vmatprep.subr.bf16.mxu0 %v7180
        %7349 = vmatpush1.bf16.msra.mxu0 %v7179
        %7350 = vmatprep.subr.bf16.mxu0 %v7182
        %7351 = vmatpush1.bf16.msra.mxu0 %v7181
        %7352 = vmatprep.subr.bf16.mxu0 %v7184
        %7353 = vmatpush1.bf16.msra.mxu0 %v7183
        %7354 = vmatprep.subr.bf16.mxu0 %v7186
        %7355 = vmatpush1.bf16.msra.mxu0 %v7185
        %7356 = vmatprep.subr.bf16.mxu0 %v7188
        %7357 = vmatpush1.bf16.msra.mxu0 %v7187
        %7358 = vmatprep.mubr.bf16.mxu0 %v6856
        %7359 = vmatmul.mubr.bf16.gmra.mrb[0].mxu0 %v6855
        %v7360 = vpop.f32.mrb[0].mxu0
        %v7361 = vadd.f32 %v7288, %v7360
        %v7362 = vpop.f32.mrb[0].mxu0
        %v7363 = vadd.f32 %v7290, %v7362
        %v7364 = vpop.f32.mrb[0].mxu0
        %v7365 = vadd.f32 %v7292, %v7364
        %v7366 = vpop.f32.mrb[0].mxu0
        %v7367 = vadd.f32 %v7294, %v7366
        %7368 = vmatprep.mubr.bf16.mxu0 %v6860
        %7369 = vmatmul.mubr.bf16.gmra.mrb[0].mxu0 %v6859
        %v7370 = vpop.f32.mrb[0].mxu0
        %v7371 = vadd.f32 %v7298, %v7370
        %v7372 = vpop.f32.mrb[0].mxu0
        %v7373 = vadd.f32 %v7300, %v7372
        %v7374 = vpop.f32.mrb[0].mxu0
        %v7375 = vadd.f32 %v7302, %v7374
        %v7376 = vpop.f32.mrb[0].mxu0
        %v7377 = vadd.f32 %v7304, %v7376
        %7378 = vmatprep.mubr.bf16.mxu0 %v6864
        %7379 = vmatmul.mubr.bf16.gmra.mrb[0].mxu0 %v6863
        %v7380 = vpop.f32.mrb[0].mxu0
        %v7381 = vadd.f32 %v7308, %v7380
        %v7382 = vpop.f32.mrb[0].mxu0
        %v7383 = vadd.f32 %v7310, %v7382
        %v7384 = vpop.f32.mrb[0].mxu0
        %v7385 = vadd.f32 %v7312, %v7384
        %v7386 = vpop.f32.mrb[0].mxu0
        %v7387 = vadd.f32 %v7314, %v7386
        %7388 = vmatprep.mubr.bf16.mxu0 %v6868
        %7389 = vmatmul.mubr.bf16.gmra.mrb[0].mxu0 %v6867
        %v7390 = vpop.f32.mrb[0].mxu0
        %v7391 = vadd.f32 %v7318, %v7390
        %v7392 = vpop.f32.mrb[0].mxu0
        %v7393 = vadd.f32 %v7320, %v7392
        %v7394 = vpop.f32.mrb[0].mxu0
        %v7395 = vadd.f32 %v7322, %v7394
        %v7396 = vpop.f32.mrb[0].mxu0
        %v7397 = vadd.f32 %v7324, %v7396
        %7398 = vdwg.mxu0
        %v7463 = vunpack.c.l.b16 %v6349
        %v7464 = vunpack.c.h.b16 %v6349
        %v7465 = vunpack.c.l.b16 %v6350
        %v7466 = vunpack.c.h.b16 %v6350
        %v7467 = vunpack.c.l.b16 %v6351
        %v7468 = vunpack.c.h.b16 %v6351
        %v7469 = vunpack.c.l.b16 %v6352
        %v7470 = vunpack.c.h.b16 %v6352
        %v7471 = vunpack.c.l.b16 %v6353
        %v7472 = vunpack.c.h.b16 %v6353
        %v7473 = vunpack.c.l.b16 %v6354
        %v7474 = vunpack.c.h.b16 %v6354
        %v7475 = vunpack.c.l.b16 %v6355
        %v7476 = vunpack.c.h.b16 %v6355
        %v7477 = vunpack.c.l.b16 %v6356
        %v7478 = vunpack.c.h.b16 %v6356
        %v7479 = vunpack.c.l.b16 %v6357
        %v7480 = vunpack.c.h.b16 %v6357
        %v7481 = vunpack.c.l.b16 %v6358
        %v7482 = vunpack.c.h.b16 %v6358
        %v7483 = vunpack.c.l.b16 %v6359
        %v7484 = vunpack.c.h.b16 %v6359
        %v7485 = vunpack.c.l.b16 %v6360
        %v7486 = vunpack.c.h.b16 %v6360
        %v7487 = vunpack.c.l.b16 %v6361
        %v7488 = vunpack.c.h.b16 %v6361
        %v7489 = vunpack.c.l.b16 %v6362
        %v7490 = vunpack.c.h.b16 %v6362
        %v7491 = vunpack.c.l.b16 %v6363
        %v7492 = vunpack.c.h.b16 %v6363
        %v7493 = vunpack.c.l.b16 %v6364
        %v7494 = vunpack.c.h.b16 %v6364
        %v7495 = vunpack.c.l.b16 %v6365
        %v7496 = vunpack.c.h.b16 %v6365
        %v7497 = vunpack.c.l.b16 %v6366
        %v7498 = vunpack.c.h.b16 %v6366
        %v7499 = vunpack.c.l.b16 %v6367
        %v7500 = vunpack.c.h.b16 %v6367
        %v7501 = vunpack.c.l.b16 %v6368
        %v7502 = vunpack.c.h.b16 %v6368
        %v7503 = vunpack.c.l.b16 %v6369
        %v7504 = vunpack.c.h.b16 %v6369
        %v7505 = vunpack.c.l.b16 %v6370
        %v7506 = vunpack.c.h.b16 %v6370
        %v7507 = vunpack.c.l.b16 %v6371
        %v7508 = vunpack.c.h.b16 %v6371
        %v7509 = vunpack.c.l.b16 %v6372
        %v7510 = vunpack.c.h.b16 %v6372
        %v7511 = vunpack.c.l.b16 %v6373
        %v7512 = vunpack.c.h.b16 %v6373
        %v7513 = vunpack.c.l.b16 %v6374
        %v7514 = vunpack.c.h.b16 %v6374
        %v7515 = vunpack.c.l.b16 %v6375
        %v7516 = vunpack.c.h.b16 %v6375
        %v7517 = vunpack.c.l.b16 %v6376
        %v7518 = vunpack.c.h.b16 %v6376
        %v7519 = vunpack.c.l.b16 %v6377
        %v7520 = vunpack.c.h.b16 %v6377
        %v7521 = vunpack.c.l.b16 %v6378
        %v7522 = vunpack.c.h.b16 %v6378
        %v7523 = vunpack.c.l.b16 %v6379
        %v7524 = vunpack.c.h.b16 %v6379
        %v7525 = vunpack.c.l.b16 %v6380
        %v7526 = vunpack.c.h.b16 %v6380
        %v7527 = vunpack.c.l.b16 %v6381
        %v7528 = vunpack.c.h.b16 %v6381
        %v7529 = vunpack.c.l.b16 %v6382
        %v7530 = vunpack.c.h.b16 %v6382
        %v7531 = vunpack.c.l.b16 %v6383
        %v7532 = vunpack.c.h.b16 %v6383
        %v7533 = vunpack.c.l.b16 %v6384
        %v7534 = vunpack.c.h.b16 %v6384
        %v7535 = vunpack.c.l.b16 %v6385
        %v7536 = vunpack.c.h.b16 %v6385
        %v7537 = vunpack.c.l.b16 %v6386
        %v7538 = vunpack.c.h.b16 %v6386
        %v7539 = vunpack.c.l.b16 %v6387
        %v7540 = vunpack.c.h.b16 %v6387
        %v7541 = vunpack.c.l.b16 %v6388
        %v7542 = vunpack.c.h.b16 %v6388
        %v7543 = vunpack.c.l.b16 %v6389
        %v7544 = vunpack.c.h.b16 %v6389
        %v7545 = vunpack.c.l.b16 %v6390
        %v7546 = vunpack.c.h.b16 %v6390
        %v7547 = vunpack.c.l.b16 %v6391
        %v7548 = vunpack.c.h.b16 %v6391
        %v7549 = vunpack.c.l.b16 %v6392
        %v7550 = vunpack.c.h.b16 %v6392
        %v7551 = vunpack.c.l.b16 %v6393
        %v7552 = vunpack.c.h.b16 %v6393
        %v7553 = vunpack.c.l.b16 %v6394
        %v7554 = vunpack.c.h.b16 %v6394
        %v7555 = vunpack.c.l.b16 %v6395
        %v7556 = vunpack.c.h.b16 %v6395
        %v7557 = vunpack.c.l.b16 %v6396
        %v7558 = vunpack.c.h.b16 %v6396
        %v7559 = vunpack.c.l.b16 %v6397
        %v7560 = vunpack.c.h.b16 %v6397
        %v7561 = vunpack.c.l.b16 %v6398
        %v7562 = vunpack.c.h.b16 %v6398
        %v7563 = vunpack.c.l.b16 %v6399
        %v7564 = vunpack.c.h.b16 %v6399
        %v7565 = vunpack.c.l.b16 %v6400
        %v7566 = vunpack.c.h.b16 %v6400
        %v7567 = vunpack.c.l.b16 %v6401
        %v7568 = vunpack.c.h.b16 %v6401
        %v7569 = vunpack.c.l.b16 %v6402
        %v7570 = vunpack.c.h.b16 %v6402
        %v7571 = vunpack.c.l.b16 %v6403
        %v7572 = vunpack.c.h.b16 %v6403
        %v7573 = vunpack.c.l.b16 %v6404
        %v7574 = vunpack.c.h.b16 %v6404
        %v7575 = vunpack.c.l.b16 %v6405
        %v7576 = vunpack.c.h.b16 %v6405
        %v7577 = vunpack.c.l.b16 %v6406
        %v7578 = vunpack.c.h.b16 %v6406
        %v7579 = vunpack.c.l.b16 %v6407
        %v7580 = vunpack.c.h.b16 %v6407
        %v7581 = vunpack.c.l.b16 %v6408
        %v7582 = vunpack.c.h.b16 %v6408
        %v7583 = vunpack.c.l.b16 %v6409
        %v7584 = vunpack.c.h.b16 %v6409
        %v7585 = vunpack.c.l.b16 %v6410
        %v7586 = vunpack.c.h.b16 %v6410
        %v7587 = vunpack.c.l.b16 %v6411
        %v7588 = vunpack.c.h.b16 %v6411
        %v7589 = vunpack.c.l.b16 %v6412
        %v7590 = vunpack.c.h.b16 %v6412
        %v7591 = vpack.c.b16 %v7465, %v7463
        %v7592 = vpack.c.b16 %v7466, %v7464
        %v7593 = vpack.c.b16 %v7469, %v7467
        %v7594 = vpack.c.b16 %v7470, %v7468
        %v7595 = vpack.c.b16 %v7473, %v7471
        %v7596 = vpack.c.b16 %v7474, %v7472
        %v7597 = vpack.c.b16 %v7477, %v7475
        %v7598 = vpack.c.b16 %v7478, %v7476
        %v7599 = vpack.c.b16 %v7481, %v7479
        %v7600 = vpack.c.b16 %v7482, %v7480
        %v7601 = vpack.c.b16 %v7485, %v7483
        %v7602 = vpack.c.b16 %v7486, %v7484
        %v7603 = vpack.c.b16 %v7489, %v7487
        %v7604 = vpack.c.b16 %v7490, %v7488
        %v7605 = vpack.c.b16 %v7493, %v7491
        %v7606 = vpack.c.b16 %v7494, %v7492
        %v7607 = vpack.c.b16 %v7497, %v7495
        %v7608 = vpack.c.b16 %v7498, %v7496
        %v7609 = vpack.c.b16 %v7501, %v7499
        %v7610 = vpack.c.b16 %v7502, %v7500
        %v7611 = vpack.c.b16 %v7505, %v7503
        %v7612 = vpack.c.b16 %v7506, %v7504
        %v7613 = vpack.c.b16 %v7509, %v7507
        %v7614 = vpack.c.b16 %v7510, %v7508
        %v7615 = vpack.c.b16 %v7513, %v7511
        %v7616 = vpack.c.b16 %v7514, %v7512
        %v7617 = vpack.c.b16 %v7517, %v7515
        %v7618 = vpack.c.b16 %v7518, %v7516
        %v7619 = vpack.c.b16 %v7521, %v7519
        %v7620 = vpack.c.b16 %v7522, %v7520
        %v7621 = vpack.c.b16 %v7525, %v7523
        %v7622 = vpack.c.b16 %v7526, %v7524
        %v7623 = vpack.c.b16 %v7529, %v7527
        %v7624 = vpack.c.b16 %v7530, %v7528
        %v7625 = vpack.c.b16 %v7533, %v7531
        %v7626 = vpack.c.b16 %v7534, %v7532
        %v7627 = vpack.c.b16 %v7537, %v7535
        %v7628 = vpack.c.b16 %v7538, %v7536
        %v7629 = vpack.c.b16 %v7541, %v7539
        %v7630 = vpack.c.b16 %v7542, %v7540
        %v7631 = vpack.c.b16 %v7545, %v7543
        %v7632 = vpack.c.b16 %v7546, %v7544
        %v7633 = vpack.c.b16 %v7549, %v7547
        %v7634 = vpack.c.b16 %v7550, %v7548
        %v7635 = vpack.c.b16 %v7553, %v7551
        %v7636 = vpack.c.b16 %v7554, %v7552
        %v7637 = vpack.c.b16 %v7557, %v7555
        %v7638 = vpack.c.b16 %v7558, %v7556
        %v7639 = vpack.c.b16 %v7561, %v7559
        %v7640 = vpack.c.b16 %v7562, %v7560
        %v7641 = vpack.c.b16 %v7565, %v7563
        %v7642 = vpack.c.b16 %v7566, %v7564
        %v7643 = vpack.c.b16 %v7569, %v7567
        %v7644 = vpack.c.b16 %v7570, %v7568
        %v7645 = vpack.c.b16 %v7573, %v7571
        %v7646 = vpack.c.b16 %v7574, %v7572
        %v7647 = vpack.c.b16 %v7577, %v7575
        %v7648 = vpack.c.b16 %v7578, %v7576
        %v7649 = vpack.c.b16 %v7581, %v7579
        %v7650 = vpack.c.b16 %v7582, %v7580
        %v7651 = vpack.c.b16 %v7585, %v7583
        %v7652 = vpack.c.b16 %v7586, %v7584
        %v7653 = vpack.c.b16 %v7589, %v7587
        %v7654 = vpack.c.b16 %v7590, %v7588
        %7719 = vmatprep.subr.bf16.mxu0 %v7592
        %7720 = vmatpush1.bf16.msra.mxu0 %v7591
        %7721 = vmatprep.subr.bf16.mxu0 %v7594
        %7722 = vmatpush1.bf16.msra.mxu0 %v7593
        %7723 = vmatprep.subr.bf16.mxu0 %v7596
        %7724 = vmatpush1.bf16.msra.mxu0 %v7595
        %7725 = vmatprep.subr.bf16.mxu0 %v7598
        %7726 = vmatpush1.bf16.msra.mxu0 %v7597
        %7727 = vmatprep.subr.bf16.mxu0 %v7600
        %7728 = vmatpush1.bf16.msra.mxu0 %v7599
        %7729 = vmatprep.subr.bf16.mxu0 %v7602
        %7730 = vmatpush1.bf16.msra.mxu0 %v7601
        %7731 = vmatprep.subr.bf16.mxu0 %v7604
        %7732 = vmatpush1.bf16.msra.mxu0 %v7603
        %7733 = vmatprep.subr.bf16.mxu0 %v7606
        %7734 = vmatpush1.bf16.msra.mxu0 %v7605
        %7735 = vmatprep.subr.bf16.mxu0 %v7608
        %7736 = vmatpush1.bf16.msra.mxu0 %v7607
        %7737 = vmatprep.subr.bf16.mxu0 %v7610
        %7738 = vmatpush1.bf16.msra.mxu0 %v7609
        %7739 = vmatprep.subr.bf16.mxu0 %v7612
        %7740 = vmatpush1.bf16.msra.mxu0 %v7611
        %7741 = vmatprep.subr.bf16.mxu0 %v7614
        %7742 = vmatpush1.bf16.msra.mxu0 %v7613
        %7743 = vmatprep.subr.bf16.mxu0 %v7616
        %7744 = vmatpush1.bf16.msra.mxu0 %v7615
        %7745 = vmatprep.subr.bf16.mxu0 %v7618
        %7746 = vmatpush1.bf16.msra.mxu0 %v7617
        %7747 = vmatprep.subr.bf16.mxu0 %v7620
        %7748 = vmatpush1.bf16.msra.mxu0 %v7619
        %7749 = vmatprep.subr.bf16.mxu0 %v7622
        %7750 = vmatpush1.bf16.msra.mxu0 %v7621
        %7751 = vmatprep.mubr.bf16.mxu0 %v6334
        %7752 = vmatmul.mubr.bf16.gmra.mrb[0].mxu0 %v6333
        %v7753 = vpop.f32.mrb[0].mxu0
        %v7754 = vadd.f32 %v7361, %v7753
        %v7755 = vpop.f32.mrb[0].mxu0
        %v7756 = vadd.f32 %v7363, %v7755
        %v7757 = vpop.f32.mrb[0].mxu0
        %v7758 = vadd.f32 %v7365, %v7757
        %v7759 = vpop.f32.mrb[0].mxu0
        %v7760 = vadd.f32 %v7367, %v7759
        %7761 = vmatprep.mubr.bf16.mxu0 %v6338
        %7762 = vmatmul.mubr.bf16.gmra.mrb[0].mxu0 %v6337
        %v7763 = vpop.f32.mrb[0].mxu0
        %v7764 = vadd.f32 %v7371, %v7763
        %v7765 = vpop.f32.mrb[0].mxu0
        %v7766 = vadd.f32 %v7373, %v7765
        %v7767 = vpop.f32.mrb[0].mxu0
        %v7768 = vadd.f32 %v7375, %v7767
        %v7769 = vpop.f32.mrb[0].mxu0
        %v7770 = vadd.f32 %v7377, %v7769
        %7771 = vmatprep.mubr.bf16.mxu0 %v6342
        %7772 = vmatmul.mubr.bf16.gmra.mrb[0].mxu0 %v6341
        %v7773 = vpop.f32.mrb[0].mxu0
        %v7774 = vadd.f32 %v7381, %v7773
        %v7775 = vpop.f32.mrb[0].mxu0
        %v7776 = vadd.f32 %v7383, %v7775
        %v7777 = vpop.f32.mrb[0].mxu0
        %v7778 = vadd.f32 %v7385, %v7777
        %v7779 = vpop.f32.mrb[0].mxu0
        %v7780 = vadd.f32 %v7387, %v7779
        %7781 = vmatprep.mubr.bf16.mxu0 %v6346
        %7782 = vmatmul.mubr.bf16.gmra.mrb[0].mxu0 %v6345
        %v7783 = vpop.f32.mrb[0].mxu0
        %v7784 = vadd.f32 %v7391, %v7783
        %v7785 = vpop.f32.mrb[0].mxu0
        %v7786 = vadd.f32 %v7393, %v7785
        %v7787 = vpop.f32.mrb[0].mxu0
        %v7788 = vadd.f32 %v7395, %v7787
        %v7789 = vpop.f32.mrb[0].mxu0
        %v7790 = vadd.f32 %v7397, %v7789
        %7791 = vdwg.mxu0
        %7792 = vmatprep.subr.bf16.mxu0 %v7624
        %7793 = vmatpush1.bf16.msra.mxu0 %v7623
        %7794 = vmatprep.subr.bf16.mxu0 %v7626
        %7795 = vmatpush1.bf16.msra.mxu0 %v7625
        %7796 = vmatprep.subr.bf16.mxu0 %v7628
        %7797 = vmatpush1.bf16.msra.mxu0 %v7627
        %7798 = vmatprep.subr.bf16.mxu0 %v7630
        %7799 = vmatpush1.bf16.msra.mxu0 %v7629
        %7800 = vmatprep.subr.bf16.mxu0 %v7632
        %7801 = vmatpush1.bf16.msra.mxu0 %v7631
        %7802 = vmatprep.subr.bf16.mxu0 %v7634
        %7803 = vmatpush1.bf16.msra.mxu0 %v7633
        %7804 = vmatprep.subr.bf16.mxu0 %v7636
        %7805 = vmatpush1.bf16.msra.mxu0 %v7635
        %7806 = vmatprep.subr.bf16.mxu0 %v7638
        %7807 = vmatpush1.bf16.msra.mxu0 %v7637
        %7808 = vmatprep.subr.bf16.mxu0 %v7640
        %7809 = vmatpush1.bf16.msra.mxu0 %v7639
        %7810 = vmatprep.subr.bf16.mxu0 %v7642
        %7811 = vmatpush1.bf16.msra.mxu0 %v7641
        %7812 = vmatprep.subr.bf16.mxu0 %v7644
        %7813 = vmatpush1.bf16.msra.mxu0 %v7643
        %7814 = vmatprep.subr.bf16.mxu0 %v7646
        %7815 = vmatpush1.bf16.msra.mxu0 %v7645
        %7816 = vmatprep.subr.bf16.mxu0 %v7648
        %7817 = vmatpush1.bf16.msra.mxu0 %v7647
        %7818 = vmatprep.subr.bf16.mxu0 %v7650
        %7819 = vmatpush1.bf16.msra.mxu0 %v7649
        %7820 = vmatprep.subr.bf16.mxu0 %v7652
        %7821 = vmatpush1.bf16.msra.mxu0 %v7651
        %7822 = vmatprep.subr.bf16.mxu0 %v7654
        %7823 = vmatpush1.bf16.msra.mxu0 %v7653
        %7824 = vmatprep.mubr.bf16.mxu0 %v6336
        %7825 = vmatmul.mubr.bf16.gmra.mrb[0].mxu0 %v6335
        %v7826 = vpop.f32.mrb[0].mxu0
        %v7827 = vadd.f32 %v7754, %v7826
        %v7828 = vpop.f32.mrb[0].mxu0
        %v7829 = vadd.f32 %v7756, %v7828
        %v7830 = vpop.f32.mrb[0].mxu0
        %v7831 = vadd.f32 %v7758, %v7830
        %v7832 = vpop.f32.mrb[0].mxu0
        %v7833 = vadd.f32 %v7760, %v7832
        %7834 = vmatprep.mubr.bf16.mxu0 %v6340
        %7835 = vmatmul.mubr.bf16.gmra.mrb[0].mxu0 %v6339
        %v7836 = vpop.f32.mrb[0].mxu0
        %v7837 = vadd.f32 %v7764, %v7836
        %v7838 = vpop.f32.mrb[0].mxu0
        %v7839 = vadd.f32 %v7766, %v7838
        %v7840 = vpop.f32.mrb[0].mxu0
        %v7841 = vadd.f32 %v7768, %v7840
        %v7842 = vpop.f32.mrb[0].mxu0
        %v7843 = vadd.f32 %v7770, %v7842
        %7844 = vmatprep.mubr.bf16.mxu0 %v6344
        %7845 = vmatmul.mubr.bf16.gmra.mrb[0].mxu0 %v6343
        %v7846 = vpop.f32.mrb[0].mxu0
        %v7847 = vadd.f32 %v7774, %v7846
        %v7848 = vpop.f32.mrb[0].mxu0
        %v7849 = vadd.f32 %v7776, %v7848
        %v7850 = vpop.f32.mrb[0].mxu0
        %v7851 = vadd.f32 %v7778, %v7850
        %v7852 = vpop.f32.mrb[0].mxu0
        %v7853 = vadd.f32 %v7780, %v7852
        %7854 = vmatprep.mubr.bf16.mxu0 %v6348
        %7855 = vmatmul.mubr.bf16.gmra.mrb[0].mxu0 %v6347
        %v7856 = vpop.f32.mrb[0].mxu0
        %v7857 = vadd.f32 %v7784, %v7856
        %v7858 = vpop.f32.mrb[0].mxu0
        %v7859 = vadd.f32 %v7786, %v7858
        %v7860 = vpop.f32.mrb[0].mxu0
        %v7861 = vadd.f32 %v7788, %v7860
        %v7862 = vpop.f32.mrb[0].mxu0
        %v7863 = vadd.f32 %v7790, %v7862
        %7864 = vdwg.mxu0
        %v7865 = vld [vmem:[%s57 + $0x20] sm:$0xff]
        %v7866 = vld [vmem:[%s57 + $0x28] sm:$0xff]
        %v7867 = vld [vmem:[%s57 + $0x60] sm:$0xff]
        %v7868 = vld [vmem:[%s57 + $0x68] sm:$0xff]
        %v7869 = vld [vmem:[%s57 + $0xa0] sm:$0xff]
        %v7870 = vld [vmem:[%s57 + $0xa8] sm:$0xff]
        %v7871 = vld [vmem:[%s57 + $0xe0] sm:$0xff]
        %v7872 = vld [vmem:[%s57 + $0xe8] sm:$0xff]
        %v7873 = vld [vmem:[%s57 + $0x120] sm:$0xff]
        %v7874 = vld [vmem:[%s57 + $0x128] sm:$0xff]
        %v7875 = vld [vmem:[%s57 + $0x160] sm:$0xff]
        %v7876 = vld [vmem:[%s57 + $0x168] sm:$0xff]
        %v7877 = vld [vmem:[%s57 + $0x1a0] sm:$0xff]
        %v7878 = vld [vmem:[%s57 + $0x1a8] sm:$0xff]
        %v7879 = vld [vmem:[%s57 + $0x1e0] sm:$0xff]
        %v7880 = vld [vmem:[%s57 + $0x1e8] sm:$0xff]
        %v7881 = vld [vmem:[%s57 + $0x220] sm:$0xff]
        %v7882 = vld [vmem:[%s57 + $0x228] sm:$0xff]
        %v7883 = vld [vmem:[%s57 + $0x260] sm:$0xff]
        %v7884 = vld [vmem:[%s57 + $0x268] sm:$0xff]
        %v7885 = vld [vmem:[%s57 + $0x2a0] sm:$0xff]
        %v7886 = vld [vmem:[%s57 + $0x2a8] sm:$0xff]
        %v7887 = vld [vmem:[%s57 + $0x2e0] sm:$0xff]
        %v7888 = vld [vmem:[%s57 + $0x2e8] sm:$0xff]
        %v7889 = vld [vmem:[%s57 + $0x320] sm:$0xff]
        %v7890 = vld [vmem:[%s57 + $0x328] sm:$0xff]
        %v7891 = vld [vmem:[%s57 + $0x360] sm:$0xff]
        %v7892 = vld [vmem:[%s57 + $0x368] sm:$0xff]
        %v7893 = vld [vmem:[%s57 + $0x3a0] sm:$0xff]
        %v7894 = vld [vmem:[%s57 + $0x3a8] sm:$0xff]
        %v7895 = vld [vmem:[%s57 + $0x3e0] sm:$0xff]
        %v7896 = vld [vmem:[%s57 + $0x3e8] sm:$0xff]
        %v7897 = vld [vmem:[%s57 + $0x420] sm:$0xff]
        %v7898 = vld [vmem:[%s57 + $0x428] sm:$0xff]
        %v7899 = vld [vmem:[%s57 + $0x460] sm:$0xff]
        %v7900 = vld [vmem:[%s57 + $0x468] sm:$0xff]
        %v7901 = vld [vmem:[%s57 + $0x4a0] sm:$0xff]
        %v7902 = vld [vmem:[%s57 + $0x4a8] sm:$0xff]
        %v7903 = vld [vmem:[%s57 + $0x4e0] sm:$0xff]
        %v7904 = vld [vmem:[%s57 + $0x4e8] sm:$0xff]
        %v7905 = vld [vmem:[%s59 + $0x8] sm:$0xf]
        %v7907 = vlaneseq
        %v7908 = vshrl.u32 %v7907, 7
        %v7909 = vsub.s32 0, %v7908
        %v7910 = vrot.slane %v7905, %v7909
        %v7911 = vlaneseq
        %v7912 = vshrl.u32 %v7911, 7
        %v7913 = vsub.s32 1, %v7912
        %v7914 = vrot.slane %v7905, %v7913
        %v7915 = vlaneseq
        %v7916 = vshrl.u32 %v7915, 7
        %v7917 = vsub.s32 2, %v7916
        %v7918 = vrot.slane %v7905, %v7917
        %v7919 = vlaneseq
        %v7920 = vshrl.u32 %v7919, 7
        %v7921 = vsub.s32 3, %v7920
        %v7922 = vrot.slane %v7905, %v7921
        %v7967 = vunpack.c.l.b16 %v7865
        %v7968 = vunpack.c.h.b16 %v7865
        %v7969 = vunpack.c.l.b16 %v7866
        %v7970 = vunpack.c.h.b16 %v7866
        %v7971 = vunpack.c.l.b16 %v7867
        %v7972 = vunpack.c.h.b16 %v7867
        %v7973 = vunpack.c.l.b16 %v7868
        %v7974 = vunpack.c.h.b16 %v7868
        %v7975 = vunpack.c.l.b16 %v7869
        %v7976 = vunpack.c.h.b16 %v7869
        %v7977 = vunpack.c.l.b16 %v7870
        %v7978 = vunpack.c.h.b16 %v7870
        %v7979 = vunpack.c.l.b16 %v7871
        %v7980 = vunpack.c.h.b16 %v7871
        %v7981 = vunpack.c.l.b16 %v7872
        %v7982 = vunpack.c.h.b16 %v7872
        %v7983 = vunpack.c.l.b16 %v7873
        %v7984 = vunpack.c.h.b16 %v7873
        %v7985 = vunpack.c.l.b16 %v7874
        %v7986 = vunpack.c.h.b16 %v7874
        %v7987 = vunpack.c.l.b16 %v7875
        %v7988 = vunpack.c.h.b16 %v7875
        %v7989 = vunpack.c.l.b16 %v7876
        %v7990 = vunpack.c.h.b16 %v7876
        %v7991 = vunpack.c.l.b16 %v7877
        %v7992 = vunpack.c.h.b16 %v7877
        %v7993 = vunpack.c.l.b16 %v7878
        %v7994 = vunpack.c.h.b16 %v7878
        %v7995 = vunpack.c.l.b16 %v7879
        %v7996 = vunpack.c.h.b16 %v7879
        %v7997 = vunpack.c.l.b16 %v7880
        %v7998 = vunpack.c.h.b16 %v7880
        %v7999 = vunpack.c.l.b16 %v7881
        %v8000 = vunpack.c.h.b16 %v7881
        %v8001 = vunpack.c.l.b16 %v7882
        %v8002 = vunpack.c.h.b16 %v7882
        %v8003 = vunpack.c.l.b16 %v7883
        %v8004 = vunpack.c.h.b16 %v7883
        %v8005 = vunpack.c.l.b16 %v7884
        %v8006 = vunpack.c.h.b16 %v7884
        %v8007 = vunpack.c.l.b16 %v7885
        %v8008 = vunpack.c.h.b16 %v7885
        %v8009 = vunpack.c.l.b16 %v7886
        %v8010 = vunpack.c.h.b16 %v7886
        %v8011 = vunpack.c.l.b16 %v7887
        %v8012 = vunpack.c.h.b16 %v7887
        %v8013 = vunpack.c.l.b16 %v7888
        %v8014 = vunpack.c.h.b16 %v7888
        %v8015 = vunpack.c.l.b16 %v7889
        %v8016 = vunpack.c.h.b16 %v7889
        %v8017 = vunpack.c.l.b16 %v7890
        %v8018 = vunpack.c.h.b16 %v7890
        %v8019 = vunpack.c.l.b16 %v7891
        %v8020 = vunpack.c.h.b16 %v7891
        %v8021 = vunpack.c.l.b16 %v7892
        %v8022 = vunpack.c.h.b16 %v7892
        %v8023 = vunpack.c.l.b16 %v7893
        %v8024 = vunpack.c.h.b16 %v7893
        %v8025 = vunpack.c.l.b16 %v7894
        %v8026 = vunpack.c.h.b16 %v7894
        %v8027 = vunpack.c.l.b16 %v7895
        %v8028 = vunpack.c.h.b16 %v7895
        %v8029 = vunpack.c.l.b16 %v7896
        %v8030 = vunpack.c.h.b16 %v7896
        %v8031 = vunpack.c.l.b16 %v7897
        %v8032 = vunpack.c.h.b16 %v7897
        %v8033 = vunpack.c.l.b16 %v7898
        %v8034 = vunpack.c.h.b16 %v7898
        %v8035 = vunpack.c.l.b16 %v7899
        %v8036 = vunpack.c.h.b16 %v7899
        %v8037 = vunpack.c.l.b16 %v7900
        %v8038 = vunpack.c.h.b16 %v7900
        %v8039 = vunpack.c.l.b16 %v7901
        %v8040 = vunpack.c.h.b16 %v7901
        %v8041 = vunpack.c.l.b16 %v7902
        %v8042 = vunpack.c.h.b16 %v7902
        %v8043 = vunpack.c.l.b16 %v7903
        %v8044 = vunpack.c.h.b16 %v7903
        %v8045 = vunpack.c.l.b16 %v7904
        %v8046 = vunpack.c.h.b16 %v7904
        %v8047 = vpack.c.b16 %v7971, %v7967
        %v8048 = vpack.c.b16 %v7972, %v7968
        %v8049 = vpack.c.b16 %v7973, %v7969
        %v8050 = vpack.c.b16 %v7974, %v7970
        %v8051 = vpack.c.b16 %v7979, %v7975
        %v8052 = vpack.c.b16 %v7980, %v7976
        %v8053 = vpack.c.b16 %v7981, %v7977
        %v8054 = vpack.c.b16 %v7982, %v7978
        %v8055 = vpack.c.b16 %v7987, %v7983
        %v8056 = vpack.c.b16 %v7988, %v7984
        %v8057 = vpack.c.b16 %v7989, %v7985
        %v8058 = vpack.c.b16 %v7990, %v7986
        %v8059 = vpack.c.b16 %v7995, %v7991
        %v8060 = vpack.c.b16 %v7996, %v7992
        %v8061 = vpack.c.b16 %v7997, %v7993
        %v8062 = vpack.c.b16 %v7998, %v7994
        %v8063 = vpack.c.b16 %v8003, %v7999
        %v8064 = vpack.c.b16 %v8004, %v8000
        %v8065 = vpack.c.b16 %v8005, %v8001
        %v8066 = vpack.c.b16 %v8006, %v8002
        %v8067 = vpack.c.b16 %v8011, %v8007
        %v8068 = vpack.c.b16 %v8012, %v8008
        %v8069 = vpack.c.b16 %v8013, %v8009
        %v8070 = vpack.c.b16 %v8014, %v8010
        %v8071 = vpack.c.b16 %v8019, %v8015
        %v8072 = vpack.c.b16 %v8020, %v8016
        %v8073 = vpack.c.b16 %v8021, %v8017
        %v8074 = vpack.c.b16 %v8022, %v8018
        %v8075 = vpack.c.b16 %v8027, %v8023
        %v8076 = vpack.c.b16 %v8028, %v8024
        %v8077 = vpack.c.b16 %v8029, %v8025
        %v8078 = vpack.c.b16 %v8030, %v8026
        %v8079 = vpack.c.b16 %v8035, %v8031
        %v8080 = vpack.c.b16 %v8036, %v8032
        %v8081 = vpack.c.b16 %v8037, %v8033
        %v8082 = vpack.c.b16 %v8038, %v8034
        %v8083 = vpack.c.b16 %v8043, %v8039
        %v8084 = vpack.c.b16 %v8044, %v8040
        %v8085 = vpack.c.b16 %v8045, %v8041
        %v8086 = vpack.c.b16 %v8046, %v8042
        %8127 = vmatprep.subr.bf16.mxu0 %v8048
        %8128 = vmatpush1.bf16.msra.mxu0 %v8047
        %8129 = vmatprep.subr.bf16.mxu0 %v8052
        %8130 = vmatpush1.bf16.msra.mxu0 %v8051
        %8131 = vmatprep.subr.bf16.mxu0 %v8056
        %8132 = vmatpush1.bf16.msra.mxu0 %v8055
        %8133 = vmatprep.subr.bf16.mxu0 %v8060
        %8134 = vmatpush1.bf16.msra.mxu0 %v8059
        %8135 = vmatprep.subr.bf16.mxu0 %v8064
        %8136 = vmatpush1.bf16.msra.mxu0 %v8063
        %8137 = vmatprep.subr.bf16.mxu0 %v8068
        %8138 = vmatpush1.bf16.msra.mxu0 %v8067
        %8139 = vmatprep.subr.bf16.mxu0 %v8072
        %8140 = vmatpush1.bf16.msra.mxu0 %v8071
        %8141 = vmatprep.subr.bf16.mxu0 %v8076
        %8142 = vmatpush1.bf16.msra.mxu0 %v8075
        %8143 = vmatprep.subr.bf16.mxu0 %v8080
        %8144 = vmatpush1.bf16.msra.mxu0 %v8079
        %8145 = vmatprep.subr.bf16.mxu0 %v8084
        %8146 = vmatpush1.bf16.msra.mxu0 %v8083
        %8147 = vmatprep.subr.bf16.mxu0 0
        %8148 = vmatpush1.bf16.msra.mxu0 0
        %8149 = vmatprep.subr.bf16.mxu0 0
        %8150 = vmatpush1.bf16.msra.mxu0 0
        %8151 = vmatprep.subr.bf16.mxu0 0
        %8152 = vmatpush1.bf16.msra.mxu0 0
        %8153 = vmatprep.subr.bf16.mxu0 0
        %8154 = vmatpush1.bf16.msra.mxu0 0
        %8155 = vmatprep.subr.bf16.mxu0 0
        %8156 = vmatpush1.bf16.msra.mxu0 0
        %8157 = vmatprep.subr.bf16.mxu0 0
        %8158 = vmatpush1.bf16.msra.mxu0 0
        %8159 = vmatprep.mubr.bf16.mxu0 %v6144
        %8160 = vmatmul.mubr.bf16.gmra.mrb[0].mxu0 %v5873
        %v8161 = vpop.f32.mrb[0].mxu0
        %v8162 = vadd.f32 %v7910, %v8161
        %v8163 = vpop.f32.mrb[0].mxu0
        %v8164 = vadd.f32 %v7914, %v8163
        %v8165 = vpop.f32.mrb[0].mxu0
        %v8166 = vadd.f32 %v7910, %v8165
        %v8167 = vpop.f32.mrb[0].mxu0
        %v8168 = vadd.f32 %v7914, %v8167
        %8169 = vmatprep.mubr.bf16.mxu0 %v6147
        %8170 = vmatmul.mubr.bf16.gmra.mrb[0].mxu0 %v5875
        %v8171 = vpop.f32.mrb[0].mxu0
        %v8172 = vadd.f32 %v7910, %v8171
        %v8173 = vpop.f32.mrb[0].mxu0
        %v8174 = vadd.f32 %v7914, %v8173
        %v8175 = vpop.f32.mrb[0].mxu0
        %v8176 = vadd.f32 %v7910, %v8175
        %v8177 = vpop.f32.mrb[0].mxu0
        %v8178 = vadd.f32 %v7914, %v8177
        %8179 = vmatprep.mubr.bf16.mxu0 %v6150
        %8180 = vmatmul.mubr.bf16.gmra.mrb[0].mxu0 %v5877
        %v8181 = vpop.f32.mrb[0].mxu0
        %v8182 = vadd.f32 %v7910, %v8181
        %v8183 = vpop.f32.mrb[0].mxu0
        %v8184 = vadd.f32 %v7914, %v8183
        %v8185 = vpop.f32.mrb[0].mxu0
        %v8186 = vadd.f32 %v7910, %v8185
        %v8187 = vpop.f32.mrb[0].mxu0
        %v8188 = vadd.f32 %v7914, %v8187
        %8189 = vmatprep.mubr.bf16.mxu0 %v6153
        %8190 = vmatmul.mubr.bf16.gmra.mrb[0].mxu0 %v5879
        %v8191 = vpop.f32.mrb[0].mxu0
        %v8192 = vadd.f32 %v7910, %v8191
        %v8193 = vpop.f32.mrb[0].mxu0
        %v8194 = vadd.f32 %v7914, %v8193
        %v8195 = vpop.f32.mrb[0].mxu0
        %v8196 = vadd.f32 %v7910, %v8195
        %v8197 = vpop.f32.mrb[0].mxu0
        %v8198 = vadd.f32 %v7914, %v8197
        %8199 = vdwg.mxu0
        %8200 = vmatprep.subr.bf16.mxu0 %v8050
        %8201 = vmatpush1.bf16.msra.mxu0 %v8049
        %8202 = vmatprep.subr.bf16.mxu0 %v8054
        %8203 = vmatpush1.bf16.msra.mxu0 %v8053
        %8204 = vmatprep.subr.bf16.mxu0 %v8058
        %8205 = vmatpush1.bf16.msra.mxu0 %v8057
        %8206 = vmatprep.subr.bf16.mxu0 %v8062
        %8207 = vmatpush1.bf16.msra.mxu0 %v8061
        %8208 = vmatprep.subr.bf16.mxu0 %v8066
        %8209 = vmatpush1.bf16.msra.mxu0 %v8065
        %8210 = vmatprep.subr.bf16.mxu0 %v8070
        %8211 = vmatpush1.bf16.msra.mxu0 %v8069
        %8212 = vmatprep.subr.bf16.mxu0 %v8074
        %8213 = vmatpush1.bf16.msra.mxu0 %v8073
        %8214 = vmatprep.subr.bf16.mxu0 %v8078
        %8215 = vmatpush1.bf16.msra.mxu0 %v8077
        %8216 = vmatprep.subr.bf16.mxu0 %v8082
        %8217 = vmatpush1.bf16.msra.mxu0 %v8081
        %8218 = vmatprep.subr.bf16.mxu0 %v8086
        %8219 = vmatpush1.bf16.msra.mxu0 %v8085
        %8220 = vmatprep.subr.bf16.mxu0 0
        %8221 = vmatpush1.bf16.msra.mxu0 0
        %8222 = vmatprep.subr.bf16.mxu0 0
        %8223 = vmatpush1.bf16.msra.mxu0 0
        %8224 = vmatprep.subr.bf16.mxu0 0
        %8225 = vmatpush1.bf16.msra.mxu0 0
        %8226 = vmatprep.subr.bf16.mxu0 0
        %8227 = vmatpush1.bf16.msra.mxu0 0
        %8228 = vmatprep.subr.bf16.mxu0 0
        %8229 = vmatpush1.bf16.msra.mxu0 0
        %8230 = vmatprep.subr.bf16.mxu0 0
        %8231 = vmatpush1.bf16.msra.mxu0 0
        %8232 = vmatprep.mubr.bf16.mxu0 %v6144
        %8233 = vmatmul.mubr.bf16.gmra.mrb[0].mxu0 %v5873
        %v8234 = vpop.f32.mrb[0].mxu0
        %v8235 = vadd.f32 %v7918, %v8234
        %v8236 = vpop.f32.mrb[0].mxu0
        %v8237 = vadd.f32 %v7922, %v8236
        %v8238 = vpop.f32.mrb[0].mxu0
        %v8239 = vadd.f32 %v7918, %v8238
        %v8240 = vpop.f32.mrb[0].mxu0
        %v8241 = vadd.f32 %v7922, %v8240
        %8242 = vmatprep.mubr.bf16.mxu0 %v6147
        %8243 = vmatmul.mubr.bf16.gmra.mrb[0].mxu0 %v5875
        %v8244 = vpop.f32.mrb[0].mxu0
        %v8245 = vadd.f32 %v7918, %v8244
        %v8246 = vpop.f32.mrb[0].mxu0
        %v8247 = vadd.f32 %v7922, %v8246
        %v8248 = vpop.f32.mrb[0].mxu0
        %v8249 = vadd.f32 %v7918, %v8248
        %v8250 = vpop.f32.mrb[0].mxu0
        %v8251 = vadd.f32 %v7922, %v8250
        %8252 = vmatprep.mubr.bf16.mxu0 %v6150
        %8253 = vmatmul.mubr.bf16.gmra.mrb[0].mxu0 %v5877
        %v8254 = vpop.f32.mrb[0].mxu0
        %v8255 = vadd.f32 %v7918, %v8254
        %v8256 = vpop.f32.mrb[0].mxu0
        %v8257 = vadd.f32 %v7922, %v8256
        %v8258 = vpop.f32.mrb[0].mxu0
        %v8259 = vadd.f32 %v7918, %v8258
        %v8260 = vpop.f32.mrb[0].mxu0
        %v8261 = vadd.f32 %v7922, %v8260
        %8262 = vmatprep.mubr.bf16.mxu0 %v6153
        %8263 = vmatmul.mubr.bf16.gmra.mrb[0].mxu0 %v5879
        %v8264 = vpop.f32.mrb[0].mxu0
        %v8265 = vadd.f32 %v7918, %v8264
        %v8266 = vpop.f32.mrb[0].mxu0
        %v8267 = vadd.f32 %v7922, %v8266
        %v8268 = vpop.f32.mrb[0].mxu0
        %v8269 = vadd.f32 %v7918, %v8268
        %v8270 = vpop.f32.mrb[0].mxu0
        %v8271 = vadd.f32 %v7922, %v8270
        %8272 = vdwg.mxu0
        %v8273 = vmax.f32 %v8162, 0.0
        %v8274 = vmax.f32 %v8164, 0.0
        %v8275 = vmax.f32 %v8235, 0.0
        %v8276 = vmax.f32 %v8237, 0.0
        %v8277 = vmax.f32 %v8166, 0.0
        %v8278 = vmax.f32 %v8168, 0.0
        %v8279 = vmax.f32 %v8239, 0.0
        %v8280 = vmax.f32 %v8241, 0.0
        %v8281 = vmax.f32 %v8172, 0.0
        %v8282 = vmax.f32 %v8174, 0.0
        %v8283 = vmax.f32 %v8245, 0.0
        %v8284 = vmax.f32 %v8247, 0.0
        %v8285 = vmax.f32 %v8176, 0.0
        %v8286 = vmax.f32 %v8178, 0.0
        %v8287 = vmax.f32 %v8249, 0.0
        %v8288 = vmax.f32 %v8251, 0.0
        %v8289 = vmax.f32 %v8182, 0.0
        %v8290 = vmax.f32 %v8184, 0.0
        %v8291 = vmax.f32 %v8255, 0.0
        %v8292 = vmax.f32 %v8257, 0.0
        %v8293 = vmax.f32 %v8186, 0.0
        %v8294 = vmax.f32 %v8188, 0.0
        %v8295 = vmax.f32 %v8259, 0.0
        %v8296 = vmax.f32 %v8261, 0.0
        %v8297 = vmax.f32 %v8192, 0.0
        %v8298 = vmax.f32 %v8194, 0.0
        %v8299 = vmax.f32 %v8265, 0.0
        %v8300 = vmax.f32 %v8267, 0.0
        %v8301 = vmax.f32 %v8196, 0.0
        %v8302 = vmax.f32 %v8198, 0.0
        %v8303 = vmax.f32 %v8269, 0.0
        %v8304 = vmax.f32 %v8271, 0.0
        %v8305 = vpack.c.bf16 %v8277, %v8273
        %v8306 = vpack.c.bf16 %v8278, %v8274
        %v8307 = vpack.c.bf16 %v8279, %v8275
        %v8308 = vpack.c.bf16 %v8280, %v8276
        %v8309 = vpack.c.bf16 %v8285, %v8281
        %v8310 = vpack.c.bf16 %v8286, %v8282
        %v8311 = vpack.c.bf16 %v8287, %v8283
        %v8312 = vpack.c.bf16 %v8288, %v8284
        %v8313 = vpack.c.bf16 %v8293, %v8289
        %v8314 = vpack.c.bf16 %v8294, %v8290
        %v8315 = vpack.c.bf16 %v8295, %v8291
        %v8316 = vpack.c.bf16 %v8296, %v8292
        %v8317 = vpack.c.bf16 %v8301, %v8297
        %v8318 = vpack.c.bf16 %v8302, %v8298
        %v8319 = vpack.c.bf16 %v8303, %v8299
        %v8320 = vpack.c.bf16 %v8304, %v8300
        %v8321 = vld [vmem:[%s61 + $0x400] sm:$0xff]
        %v8322 = vld [vmem:[%s61 + $0x408] sm:$0xff]
        %v8323 = vld [vmem:[%s61 + $0x410] sm:$0xff]
        %v8324 = vld [vmem:[%s61 + $0x418] sm:$0xff]
        %v8325 = vld [vmem:[%s61 + $0x420] sm:$0xff]
        %v8326 = vld [vmem:[%s61 + $0x428] sm:$0xff]
        %v8327 = vld [vmem:[%s61 + $0x430] sm:$0xff]
        %v8328 = vld [vmem:[%s61 + $0x438] sm:$0xff]
        %v8329 = vld [vmem:[%s61 + $0x440] sm:$0xff]
        %v8330 = vld [vmem:[%s61 + $0x448] sm:$0xff]
        %v8331 = vld [vmem:[%s61 + $0x450] sm:$0xff]
        %v8332 = vld [vmem:[%s61 + $0x458] sm:$0xff]
        %v8333 = vld [vmem:[%s61 + $0x460] sm:$0xff]
        %v8334 = vld [vmem:[%s61 + $0x468] sm:$0xff]
        %v8335 = vld [vmem:[%s61 + $0x470] sm:$0xff]
        %v8336 = vld [vmem:[%s61 + $0x478] sm:$0xff]
        %v8337 = vld [vmem:[%s61 + $0x480] sm:$0xff]
        %v8338 = vld [vmem:[%s61 + $0x488] sm:$0xff]
        %v8339 = vld [vmem:[%s61 + $0x490] sm:$0xff]
        %v8340 = vld [vmem:[%s61 + $0x498] sm:$0xff]
        %v8341 = vld [vmem:[%s61 + $0x4a0] sm:$0xff]
        %v8342 = vld [vmem:[%s61 + $0x4a8] sm:$0xff]
        %v8343 = vld [vmem:[%s61 + $0x4b0] sm:$0xff]
        %v8344 = vld [vmem:[%s61 + $0x4b8] sm:$0xff]
        %v8345 = vld [vmem:[%s61 + $0x4c0] sm:$0xff]
        %v8346 = vld [vmem:[%s61 + $0x4c8] sm:$0xff]
        %v8347 = vld [vmem:[%s61 + $0x4d0] sm:$0xff]
        %v8348 = vld [vmem:[%s61 + $0x4d8] sm:$0xff]
        %v8349 = vld [vmem:[%s61 + $0x4e0] sm:$0xff]
        %v8350 = vld [vmem:[%s61 + $0x4e8] sm:$0xff]
        %v8351 = vld [vmem:[%s61 + $0x4f0] sm:$0xff]
        %v8352 = vld [vmem:[%s61 + $0x4f8] sm:$0xff]
        %v8353 = vld [vmem:[%s61 + $0x500] sm:$0xff]
        %v8354 = vld [vmem:[%s61 + $0x508] sm:$0xff]
        %v8355 = vld [vmem:[%s61 + $0x510] sm:$0xff]
        %v8356 = vld [vmem:[%s61 + $0x518] sm:$0xff]
        %v8357 = vld [vmem:[%s61 + $0x520] sm:$0xff]
        %v8358 = vld [vmem:[%s61 + $0x528] sm:$0xff]
        %v8359 = vld [vmem:[%s61 + $0x530] sm:$0xff]
        %v8360 = vld [vmem:[%s61 + $0x538] sm:$0xff]
        %v8361 = vld [vmem:[%s61 + $0x540] sm:$0xff]
        %v8362 = vld [vmem:[%s61 + $0x548] sm:$0xff]
        %v8363 = vld [vmem:[%s61 + $0x550] sm:$0xff]
        %v8364 = vld [vmem:[%s61 + $0x558] sm:$0xff]
        %v8365 = vld [vmem:[%s61 + $0x560] sm:$0xff]
        %v8366 = vld [vmem:[%s61 + $0x568] sm:$0xff]
        %v8367 = vld [vmem:[%s61 + $0x570] sm:$0xff]
        %v8368 = vld [vmem:[%s61 + $0x578] sm:$0xff]
        %v8369 = vld [vmem:[%s61 + $0x580] sm:$0xff]
        %v8370 = vld [vmem:[%s61 + $0x588] sm:$0xff]
        %v8371 = vld [vmem:[%s61 + $0x590] sm:$0xff]
        %v8372 = vld [vmem:[%s61 + $0x598] sm:$0xff]
        %v8373 = vld [vmem:[%s61 + $0x5a0] sm:$0xff]
        %v8374 = vld [vmem:[%s61 + $0x5a8] sm:$0xff]
        %v8375 = vld [vmem:[%s61 + $0x5b0] sm:$0xff]
        %v8376 = vld [vmem:[%s61 + $0x5b8] sm:$0xff]
        %v8377 = vld [vmem:[%s61 + $0x5c0] sm:$0xff]
        %v8378 = vld [vmem:[%s61 + $0x5c8] sm:$0xff]
        %v8379 = vld [vmem:[%s61 + $0x5d0] sm:$0xff]
        %v8380 = vld [vmem:[%s61 + $0x5d8] sm:$0xff]
        %v8381 = vld [vmem:[%s61 + $0x5e0] sm:$0xff]
        %v8382 = vld [vmem:[%s61 + $0x5e8] sm:$0xff]
        %v8383 = vld [vmem:[%s61 + $0x5f0] sm:$0xff]
        %v8384 = vld [vmem:[%s61 + $0x5f8] sm:$0xff]
        %v8449 = vunpack.c.l.b16 %v8321
        %v8450 = vunpack.c.h.b16 %v8321
        %v8451 = vunpack.c.l.b16 %v8322
        %v8452 = vunpack.c.h.b16 %v8322
        %v8453 = vunpack.c.l.b16 %v8323
        %v8454 = vunpack.c.h.b16 %v8323
        %v8455 = vunpack.c.l.b16 %v8324
        %v8456 = vunpack.c.h.b16 %v8324
        %v8457 = vunpack.c.l.b16 %v8325
        %v8458 = vunpack.c.h.b16 %v8325
        %v8459 = vunpack.c.l.b16 %v8326
        %v8460 = vunpack.c.h.b16 %v8326
        %v8461 = vunpack.c.l.b16 %v8327
        %v8462 = vunpack.c.h.b16 %v8327
        %v8463 = vunpack.c.l.b16 %v8328
        %v8464 = vunpack.c.h.b16 %v8328
        %v8465 = vunpack.c.l.b16 %v8329
        %v8466 = vunpack.c.h.b16 %v8329
        %v8467 = vunpack.c.l.b16 %v8330
        %v8468 = vunpack.c.h.b16 %v8330
        %v8469 = vunpack.c.l.b16 %v8331
        %v8470 = vunpack.c.h.b16 %v8331
        %v8471 = vunpack.c.l.b16 %v8332
        %v8472 = vunpack.c.h.b16 %v8332
        %v8473 = vunpack.c.l.b16 %v8333
        %v8474 = vunpack.c.h.b16 %v8333
        %v8475 = vunpack.c.l.b16 %v8334
        %v8476 = vunpack.c.h.b16 %v8334
        %v8477 = vunpack.c.l.b16 %v8335
        %v8478 = vunpack.c.h.b16 %v8335
        %v8479 = vunpack.c.l.b16 %v8336
        %v8480 = vunpack.c.h.b16 %v8336
        %v8481 = vunpack.c.l.b16 %v8337
        %v8482 = vunpack.c.h.b16 %v8337
        %v8483 = vunpack.c.l.b16 %v8338
        %v8484 = vunpack.c.h.b16 %v8338
        %v8485 = vunpack.c.l.b16 %v8339
        %v8486 = vunpack.c.h.b16 %v8339
        %v8487 = vunpack.c.l.b16 %v8340
        %v8488 = vunpack.c.h.b16 %v8340
        %v8489 = vunpack.c.l.b16 %v8341
        %v8490 = vunpack.c.h.b16 %v8341
        %v8491 = vunpack.c.l.b16 %v8342
        %v8492 = vunpack.c.h.b16 %v8342
        %v8493 = vunpack.c.l.b16 %v8343
        %v8494 = vunpack.c.h.b16 %v8343
        %v8495 = vunpack.c.l.b16 %v8344
        %v8496 = vunpack.c.h.b16 %v8344
        %v8497 = vunpack.c.l.b16 %v8345
        %v8498 = vunpack.c.h.b16 %v8345
        %v8499 = vunpack.c.l.b16 %v8346
        %v8500 = vunpack.c.h.b16 %v8346
        %v8501 = vunpack.c.l.b16 %v8347
        %v8502 = vunpack.c.h.b16 %v8347
        %v8503 = vunpack.c.l.b16 %v8348
        %v8504 = vunpack.c.h.b16 %v8348
        %v8505 = vunpack.c.l.b16 %v8349
        %v8506 = vunpack.c.h.b16 %v8349
        %v8507 = vunpack.c.l.b16 %v8350
        %v8508 = vunpack.c.h.b16 %v8350
        %v8509 = vunpack.c.l.b16 %v8351
        %v8510 = vunpack.c.h.b16 %v8351
        %v8511 = vunpack.c.l.b16 %v8352
        %v8512 = vunpack.c.h.b16 %v8352
        %v8513 = vunpack.c.l.b16 %v8353
        %v8514 = vunpack.c.h.b16 %v8353
        %v8515 = vunpack.c.l.b16 %v8354
        %v8516 = vunpack.c.h.b16 %v8354
        %v8517 = vunpack.c.l.b16 %v8355
        %v8518 = vunpack.c.h.b16 %v8355
        %v8519 = vunpack.c.l.b16 %v8356
        %v8520 = vunpack.c.h.b16 %v8356
        %v8521 = vunpack.c.l.b16 %v8357
        %v8522 = vunpack.c.h.b16 %v8357
        %v8523 = vunpack.c.l.b16 %v8358
        %v8524 = vunpack.c.h.b16 %v8358
        %v8525 = vunpack.c.l.b16 %v8359
        %v8526 = vunpack.c.h.b16 %v8359
        %v8527 = vunpack.c.l.b16 %v8360
        %v8528 = vunpack.c.h.b16 %v8360
        %v8529 = vunpack.c.l.b16 %v8361
        %v8530 = vunpack.c.h.b16 %v8361
        %v8531 = vunpack.c.l.b16 %v8362
        %v8532 = vunpack.c.h.b16 %v8362
        %v8533 = vunpack.c.l.b16 %v8363
        %v8534 = vunpack.c.h.b16 %v8363
        %v8535 = vunpack.c.l.b16 %v8364
        %v8536 = vunpack.c.h.b16 %v8364
        %v8537 = vunpack.c.l.b16 %v8365
        %v8538 = vunpack.c.h.b16 %v8365
        %v8539 = vunpack.c.l.b16 %v8366
        %v8540 = vunpack.c.h.b16 %v8366
        %v8541 = vunpack.c.l.b16 %v8367
        %v8542 = vunpack.c.h.b16 %v8367
        %v8543 = vunpack.c.l.b16 %v8368
        %v8544 = vunpack.c.h.b16 %v8368
        %v8545 = vunpack.c.l.b16 %v8369
        %v8546 = vunpack.c.h.b16 %v8369
        %v8547 = vunpack.c.l.b16 %v8370
        %v8548 = vunpack.c.h.b16 %v8370
        %v8549 = vunpack.c.l.b16 %v8371
        %v8550 = vunpack.c.h.b16 %v8371
        %v8551 = vunpack.c.l.b16 %v8372
        %v8552 = vunpack.c.h.b16 %v8372
        %v8553 = vunpack.c.l.b16 %v8373
        %v8554 = vunpack.c.h.b16 %v8373
        %v8555 = vunpack.c.l.b16 %v8374
        %v8556 = vunpack.c.h.b16 %v8374
        %v8557 = vunpack.c.l.b16 %v8375
        %v8558 = vunpack.c.h.b16 %v8375
        %v8559 = vunpack.c.l.b16 %v8376
        %v8560 = vunpack.c.h.b16 %v8376
        %v8561 = vunpack.c.l.b16 %v8377
        %v8562 = vunpack.c.h.b16 %v8377
        %v8563 = vunpack.c.l.b16 %v8378
        %v8564 = vunpack.c.h.b16 %v8378
        %v8565 = vunpack.c.l.b16 %v8379
        %v8566 = vunpack.c.h.b16 %v8379
        %v8567 = vunpack.c.l.b16 %v8380
        %v8568 = vunpack.c.h.b16 %v8380
        %v8569 = vunpack.c.l.b16 %v8381
        %v8570 = vunpack.c.h.b16 %v8381
        %v8571 = vunpack.c.l.b16 %v8382
        %v8572 = vunpack.c.h.b16 %v8382
        %v8573 = vunpack.c.l.b16 %v8383
        %v8574 = vunpack.c.h.b16 %v8383
        %v8575 = vunpack.c.l.b16 %v8384
        %v8576 = vunpack.c.h.b16 %v8384
        %v8577 = vpack.c.b16 %v8451, %v8449
        %v8578 = vpack.c.b16 %v8452, %v8450
        %v8579 = vpack.c.b16 %v8455, %v8453
        %v8580 = vpack.c.b16 %v8456, %v8454
        %v8581 = vpack.c.b16 %v8459, %v8457
        %v8582 = vpack.c.b16 %v8460, %v8458
        %v8583 = vpack.c.b16 %v8463, %v8461
        %v8584 = vpack.c.b16 %v8464, %v8462
        %v8585 = vpack.c.b16 %v8467, %v8465
        %v8586 = vpack.c.b16 %v8468, %v8466
        %v8587 = vpack.c.b16 %v8471, %v8469
        %v8588 = vpack.c.b16 %v8472, %v8470
        %v8589 = vpack.c.b16 %v8475, %v8473
        %v8590 = vpack.c.b16 %v8476, %v8474
        %v8591 = vpack.c.b16 %v8479, %v8477
        %v8592 = vpack.c.b16 %v8480, %v8478
        %v8593 = vpack.c.b16 %v8483, %v8481
        %v8594 = vpack.c.b16 %v8484, %v8482
        %v8595 = vpack.c.b16 %v8487, %v8485
        %v8596 = vpack.c.b16 %v8488, %v8486
        %v8597 = vpack.c.b16 %v8491, %v8489
        %v8598 = vpack.c.b16 %v8492, %v8490
        %v8599 = vpack.c.b16 %v8495, %v8493
        %v8600 = vpack.c.b16 %v8496, %v8494
        %v8601 = vpack.c.b16 %v8499, %v8497
        %v8602 = vpack.c.b16 %v8500, %v8498
        %v8603 = vpack.c.b16 %v8503, %v8501
        %v8604 = vpack.c.b16 %v8504, %v8502
        %v8605 = vpack.c.b16 %v8507, %v8505
        %v8606 = vpack.c.b16 %v8508, %v8506
        %v8607 = vpack.c.b16 %v8511, %v8509
        %v8608 = vpack.c.b16 %v8512, %v8510
        %v8609 = vpack.c.b16 %v8515, %v8513
        %v8610 = vpack.c.b16 %v8516, %v8514
        %v8611 = vpack.c.b16 %v8519, %v8517
        %v8612 = vpack.c.b16 %v8520, %v8518
        %v8613 = vpack.c.b16 %v8523, %v8521
        %v8614 = vpack.c.b16 %v8524, %v8522
        %v8615 = vpack.c.b16 %v8527, %v8525
        %v8616 = vpack.c.b16 %v8528, %v8526
        %v8617 = vpack.c.b16 %v8531, %v8529
        %v8618 = vpack.c.b16 %v8532, %v8530
        %v8619 = vpack.c.b16 %v8535, %v8533
        %v8620 = vpack.c.b16 %v8536, %v8534
        %v8621 = vpack.c.b16 %v8539, %v8537
        %v8622 = vpack.c.b16 %v8540, %v8538
        %v8623 = vpack.c.b16 %v8543, %v8541
        %v8624 = vpack.c.b16 %v8544, %v8542
        %v8625 = vpack.c.b16 %v8547, %v8545
        %v8626 = vpack.c.b16 %v8548, %v8546
        %v8627 = vpack.c.b16 %v8551, %v8549
        %v8628 = vpack.c.b16 %v8552, %v8550
        %v8629 = vpack.c.b16 %v8555, %v8553
        %v8630 = vpack.c.b16 %v8556, %v8554
        %v8631 = vpack.c.b16 %v8559, %v8557
        %v8632 = vpack.c.b16 %v8560, %v8558
        %v8633 = vpack.c.b16 %v8563, %v8561
        %v8634 = vpack.c.b16 %v8564, %v8562
        %v8635 = vpack.c.b16 %v8567, %v8565
        %v8636 = vpack.c.b16 %v8568, %v8566
        %v8637 = vpack.c.b16 %v8571, %v8569
        %v8638 = vpack.c.b16 %v8572, %v8570
        %v8639 = vpack.c.b16 %v8575, %v8573
        %v8640 = vpack.c.b16 %v8576, %v8574
        %8705 = vmatprep.subr.bf16.mxu0 %v8578
        %8706 = vmatpush1.bf16.msra.mxu0 %v8577
        %8707 = vmatprep.subr.bf16.mxu0 %v8580
        %8708 = vmatpush1.bf16.msra.mxu0 %v8579
        %8709 = vmatprep.subr.bf16.mxu0 %v8582
        %8710 = vmatpush1.bf16.msra.mxu0 %v8581
        %8711 = vmatprep.subr.bf16.mxu0 %v8584
        %8712 = vmatpush1.bf16.msra.mxu0 %v8583
        %8713 = vmatprep.subr.bf16.mxu0 %v8586
        %8714 = vmatpush1.bf16.msra.mxu0 %v8585
        %8715 = vmatprep.subr.bf16.mxu0 %v8588
        %8716 = vmatpush1.bf16.msra.mxu0 %v8587
        %8717 = vmatprep.subr.bf16.mxu0 %v8590
        %8718 = vmatpush1.bf16.msra.mxu0 %v8589
        %8719 = vmatprep.subr.bf16.mxu0 %v8592
        %8720 = vmatpush1.bf16.msra.mxu0 %v8591
        %8721 = vmatprep.subr.bf16.mxu0 %v8594
        %8722 = vmatpush1.bf16.msra.mxu0 %v8593
        %8723 = vmatprep.subr.bf16.mxu0 %v8596
        %8724 = vmatpush1.bf16.msra.mxu0 %v8595
        %8725 = vmatprep.subr.bf16.mxu0 %v8598
        %8726 = vmatpush1.bf16.msra.mxu0 %v8597
        %8727 = vmatprep.subr.bf16.mxu0 %v8600
        %8728 = vmatpush1.bf16.msra.mxu0 %v8599
        %8729 = vmatprep.subr.bf16.mxu0 %v8602
        %8730 = vmatpush1.bf16.msra.mxu0 %v8601
        %8731 = vmatprep.subr.bf16.mxu0 %v8604
        %8732 = vmatpush1.bf16.msra.mxu0 %v8603
        %8733 = vmatprep.subr.bf16.mxu0 %v8606
        %8734 = vmatpush1.bf16.msra.mxu0 %v8605
        %8735 = vmatprep.subr.bf16.mxu0 %v8608
        %8736 = vmatpush1.bf16.msra.mxu0 %v8607
        %8737 = vmatprep.mubr.bf16.mxu0 %v8306
        %8738 = vmatmul.mubr.bf16.gmra.mrb[0].mxu0 %v8305
        %v8739 = vpop.f32.mrb[0].mxu0
        %v8740 = vadd.f32 0.0, %v8739
        %v8741 = vpop.f32.mrb[0].mxu0
        %v8742 = vadd.f32 0.0, %v8741
        %v8743 = vpop.f32.mrb[0].mxu0
        %v8744 = vadd.f32 0.0, %v8743
        %v8745 = vpop.f32.mrb[0].mxu0
        %v8746 = vadd.f32 0.0, %v8745
        %8747 = vmatprep.mubr.bf16.mxu0 %v8310
        %8748 = vmatmul.mubr.bf16.gmra.mrb[0].mxu0 %v8309
        %v8749 = vpop.f32.mrb[0].mxu0
        %v8750 = vadd.f32 0.0, %v8749
        %v8751 = vpop.f32.mrb[0].mxu0
        %v8752 = vadd.f32 0.0, %v8751
        %v8753 = vpop.f32.mrb[0].mxu0
        %v8754 = vadd.f32 0.0, %v8753
        %v8755 = vpop.f32.mrb[0].mxu0
        %v8756 = vadd.f32 0.0, %v8755
        %8757 = vmatprep.mubr.bf16.mxu0 %v8314
        %8758 = vmatmul.mubr.bf16.gmra.mrb[0].mxu0 %v8313
        %v8759 = vpop.f32.mrb[0].mxu0
        %v8760 = vadd.f32 0.0, %v8759
        %v8761 = vpop.f32.mrb[0].mxu0
        %v8762 = vadd.f32 0.0, %v8761
        %v8763 = vpop.f32.mrb[0].mxu0
        %v8764 = vadd.f32 0.0, %v8763
        %v8765 = vpop.f32.mrb[0].mxu0
        %v8766 = vadd.f32 0.0, %v8765
        %8767 = vmatprep.mubr.bf16.mxu0 %v8318
        %8768 = vmatmul.mubr.bf16.gmra.mrb[0].mxu0 %v8317
        %v8769 = vpop.f32.mrb[0].mxu0
        %v8770 = vadd.f32 0.0, %v8769
        %v8771 = vpop.f32.mrb[0].mxu0
        %v8772 = vadd.f32 0.0, %v8771
        %v8773 = vpop.f32.mrb[0].mxu0
        %v8774 = vadd.f32 0.0, %v8773
        %v8775 = vpop.f32.mrb[0].mxu0
        %v8776 = vadd.f32 0.0, %v8775
        %8777 = vdwg.mxu0
        %8778 = vmatprep.subr.bf16.mxu0 %v8610
        %8779 = vmatpush1.bf16.msra.mxu0 %v8609
        %8780 = vmatprep.subr.bf16.mxu0 %v8612
        %8781 = vmatpush1.bf16.msra.mxu0 %v8611
        %8782 = vmatprep.subr.bf16.mxu0 %v8614
        %8783 = vmatpush1.bf16.msra.mxu0 %v8613
        %8784 = vmatprep.subr.bf16.mxu0 %v8616
        %8785 = vmatpush1.bf16.msra.mxu0 %v8615
        %8786 = vmatprep.subr.bf16.mxu0 %v8618
        %8787 = vmatpush1.bf16.msra.mxu0 %v8617
        %8788 = vmatprep.subr.bf16.mxu0 %v8620
        %8789 = vmatpush1.bf16.msra.mxu0 %v8619
        %8790 = vmatprep.subr.bf16.mxu0 %v8622
        %8791 = vmatpush1.bf16.msra.mxu0 %v8621
        %8792 = vmatprep.subr.bf16.mxu0 %v8624
        %8793 = vmatpush1.bf16.msra.mxu0 %v8623
        %8794 = vmatprep.subr.bf16.mxu0 %v8626
        %8795 = vmatpush1.bf16.msra.mxu0 %v8625
        %8796 = vmatprep.subr.bf16.mxu0 %v8628
        %8797 = vmatpush1.bf16.msra.mxu0 %v8627
        %8798 = vmatprep.subr.bf16.mxu0 %v8630
        %8799 = vmatpush1.bf16.msra.mxu0 %v8629
        %8800 = vmatprep.subr.bf16.mxu0 %v8632
        %8801 = vmatpush1.bf16.msra.mxu0 %v8631
        %8802 = vmatprep.subr.bf16.mxu0 %v8634
        %8803 = vmatpush1.bf16.msra.mxu0 %v8633
        %8804 = vmatprep.subr.bf16.mxu0 %v8636
        %8805 = vmatpush1.bf16.msra.mxu0 %v8635
        %8806 = vmatprep.subr.bf16.mxu0 %v8638
        %8807 = vmatpush1.bf16.msra.mxu0 %v8637
        %8808 = vmatprep.subr.bf16.mxu0 %v8640
        %8809 = vmatpush1.bf16.msra.mxu0 %v8639
        %8810 = vmatprep.mubr.bf16.mxu0 %v8308
        %8811 = vmatmul.mubr.bf16.gmra.mrb[0].mxu0 %v8307
        %v8812 = vpop.f32.mrb[0].mxu0
        %v8813 = vadd.f32 %v8740, %v8812
        %v8814 = vpop.f32.mrb[0].mxu0
        %v8815 = vadd.f32 %v8742, %v8814
        %v8816 = vpop.f32.mrb[0].mxu0
        %v8817 = vadd.f32 %v8744, %v8816
        %v8818 = vpop.f32.mrb[0].mxu0
        %v8819 = vadd.f32 %v8746, %v8818
        %8820 = vmatprep.mubr.bf16.mxu0 %v8312
        %8821 = vmatmul.mubr.bf16.gmra.mrb[0].mxu0 %v8311
        %v8822 = vpop.f32.mrb[0].mxu0
        %v8823 = vadd.f32 %v8750, %v8822
        %v8824 = vpop.f32.mrb[0].mxu0
        %v8825 = vadd.f32 %v8752, %v8824
        %v8826 = vpop.f32.mrb[0].mxu0
        %v8827 = vadd.f32 %v8754, %v8826
        %v8828 = vpop.f32.mrb[0].mxu0
        %v8829 = vadd.f32 %v8756, %v8828
        %8830 = vmatprep.mubr.bf16.mxu0 %v8316
        %8831 = vmatmul.mubr.bf16.gmra.mrb[0].mxu0 %v8315
        %v8832 = vpop.f32.mrb[0].mxu0
        %v8833 = vadd.f32 %v8760, %v8832
        %v8834 = vpop.f32.mrb[0].mxu0
        %v8835 = vadd.f32 %v8762, %v8834
        %v8836 = vpop.f32.mrb[0].mxu0
        %v8837 = vadd.f32 %v8764, %v8836
        %v8838 = vpop.f32.mrb[0].mxu0
        %v8839 = vadd.f32 %v8766, %v8838
        %8840 = vmatprep.mubr.bf16.mxu0 %v8320
        %8841 = vmatmul.mubr.bf16.gmra.mrb[0].mxu0 %v8319
        %v8842 = vpop.f32.mrb[0].mxu0
        %v8843 = vadd.f32 %v8770, %v8842
        %v8844 = vpop.f32.mrb[0].mxu0
        %v8845 = vadd.f32 %v8772, %v8844
        %v8846 = vpop.f32.mrb[0].mxu0
        %v8847 = vadd.f32 %v8774, %v8846
        %v8848 = vpop.f32.mrb[0].mxu0
        %v8849 = vadd.f32 %v8776, %v8848
        %8850 = vdwg.mxu0
        %v8851 = vadd.f32 %v7827, %v8813
        %v8852 = vadd.f32 %v7829, %v8815
        %v8853 = vadd.f32 %v7831, %v8817
        %v8854 = vadd.f32 %v7833, %v8819
        %v8855 = vadd.f32 %v7837, %v8823
        %v8856 = vadd.f32 %v7839, %v8825
        %v8857 = vadd.f32 %v7841, %v8827
        %v8858 = vadd.f32 %v7843, %v8829
        %v8859 = vadd.f32 %v7847, %v8833
        %v8860 = vadd.f32 %v7849, %v8835
        %v8861 = vadd.f32 %v7851, %v8837
        %v8862 = vadd.f32 %v7853, %v8839
        %v8863 = vadd.f32 %v7857, %v8843
        %v8864 = vadd.f32 %v7859, %v8845
        %v8865 = vadd.f32 %v7861, %v8847
        %v8866 = vadd.f32 %v7863, %v8849
        %v8867 = vld [vmem:[%s57 + $0x30] sm:$0xff]
        %v8868 = vld [vmem:[%s57 + $0x38] sm:$0xff]
        %v8869 = vld [vmem:[%s57 + $0x70] sm:$0xff]
        %v8870 = vld [vmem:[%s57 + $0x78] sm:$0xff]
        %v8871 = vld [vmem:[%s57 + $0xb0] sm:$0xff]
        %v8872 = vld [vmem:[%s57 + $0xb8] sm:$0xff]
        %v8873 = vld [vmem:[%s57 + $0xf0] sm:$0xff]
        %v8874 = vld [vmem:[%s57 + $0xf8] sm:$0xff]
        %v8875 = vld [vmem:[%s57 + $0x130] sm:$0xff]
        %v8876 = vld [vmem:[%s57 + $0x138] sm:$0xff]
        %v8877 = vld [vmem:[%s57 + $0x170] sm:$0xff]
        %v8878 = vld [vmem:[%s57 + $0x178] sm:$0xff]
        %v8879 = vld [vmem:[%s57 + $0x1b0] sm:$0xff]
        %v8880 = vld [vmem:[%s57 + $0x1b8] sm:$0xff]
        %v8881 = vld [vmem:[%s57 + $0x1f0] sm:$0xff]
        %v8882 = vld [vmem:[%s57 + $0x1f8] sm:$0xff]
        %v8883 = vld [vmem:[%s57 + $0x230] sm:$0xff]
        %v8884 = vld [vmem:[%s57 + $0x238] sm:$0xff]
        %v8885 = vld [vmem:[%s57 + $0x270] sm:$0xff]
        %v8886 = vld [vmem:[%s57 + $0x278] sm:$0xff]
        %v8887 = vld [vmem:[%s57 + $0x2b0] sm:$0xff]
        %v8888 = vld [vmem:[%s57 + $0x2b8] sm:$0xff]
        %v8889 = vld [vmem:[%s57 + $0x2f0] sm:$0xff]
        %v8890 = vld [vmem:[%s57 + $0x2f8] sm:$0xff]
        %v8891 = vld [vmem:[%s57 + $0x330] sm:$0xff]
        %v8892 = vld [vmem:[%s57 + $0x338] sm:$0xff]
        %v8893 = vld [vmem:[%s57 + $0x370] sm:$0xff]
        %v8894 = vld [vmem:[%s57 + $0x378] sm:$0xff]
        %v8895 = vld [vmem:[%s57 + $0x3b0] sm:$0xff]
        %v8896 = vld [vmem:[%s57 + $0x3b8] sm:$0xff]
        %v8897 = vld [vmem:[%s57 + $0x3f0] sm:$0xff]
        %v8898 = vld [vmem:[%s57 + $0x3f8] sm:$0xff]
        %v8899 = vld [vmem:[%s57 + $0x430] sm:$0xff]
        %v8900 = vld [vmem:[%s57 + $0x438] sm:$0xff]
        %v8901 = vld [vmem:[%s57 + $0x470] sm:$0xff]
        %v8902 = vld [vmem:[%s57 + $0x478] sm:$0xff]
        %v8903 = vld [vmem:[%s57 + $0x4b0] sm:$0xff]
        %v8904 = vld [vmem:[%s57 + $0x4b8] sm:$0xff]
        %v8905 = vld [vmem:[%s57 + $0x4f0] sm:$0xff]
        %v8906 = vld [vmem:[%s57 + $0x4f8] sm:$0xff]
        %v8907 = vld [vmem:[%s59 + $0xc] sm:$0xf]
        %v8909 = vlaneseq
        %v8910 = vshrl.u32 %v8909, 7
        %v8911 = vsub.s32 0, %v8910
        %v8912 = vrot.slane %v8907, %v8911
        %v8913 = vlaneseq
        %v8914 = vshrl.u32 %v8913, 7
        %v8915 = vsub.s32 1, %v8914
        %v8916 = vrot.slane %v8907, %v8915
        %v8917 = vlaneseq
        %v8918 = vshrl.u32 %v8917, 7
        %v8919 = vsub.s32 2, %v8918
        %v8920 = vrot.slane %v8907, %v8919
        %v8921 = vlaneseq
        %v8922 = vshrl.u32 %v8921, 7
        %v8923 = vsub.s32 3, %v8922
        %v8924 = vrot.slane %v8907, %v8923
        %v8969 = vunpack.c.l.b16 %v8867
        %v8970 = vunpack.c.h.b16 %v8867
        %v8971 = vunpack.c.l.b16 %v8868
        %v8972 = vunpack.c.h.b16 %v8868
        %v8973 = vunpack.c.l.b16 %v8869
        %v8974 = vunpack.c.h.b16 %v8869
        %v8975 = vunpack.c.l.b16 %v8870
        %v8976 = vunpack.c.h.b16 %v8870
        %v8977 = vunpack.c.l.b16 %v8871
        %v8978 = vunpack.c.h.b16 %v8871
        %v8979 = vunpack.c.l.b16 %v8872
        %v8980 = vunpack.c.h.b16 %v8872
        %v8981 = vunpack.c.l.b16 %v8873
        %v8982 = vunpack.c.h.b16 %v8873
        %v8983 = vunpack.c.l.b16 %v8874
        %v8984 = vunpack.c.h.b16 %v8874
        %v8985 = vunpack.c.l.b16 %v8875
        %v8986 = vunpack.c.h.b16 %v8875
        %v8987 = vunpack.c.l.b16 %v8876
        %v8988 = vunpack.c.h.b16 %v8876
        %v8989 = vunpack.c.l.b16 %v8877
        %v8990 = vunpack.c.h.b16 %v8877
        %v8991 = vunpack.c.l.b16 %v8878
        %v8992 = vunpack.c.h.b16 %v8878
        %v8993 = vunpack.c.l.b16 %v8879
        %v8994 = vunpack.c.h.b16 %v8879
        %v8995 = vunpack.c.l.b16 %v8880
        %v8996 = vunpack.c.h.b16 %v8880
        %v8997 = vunpack.c.l.b16 %v8881
        %v8998 = vunpack.c.h.b16 %v8881
        %v8999 = vunpack.c.l.b16 %v8882
        %v9000 = vunpack.c.h.b16 %v8882
        %v9001 = vunpack.c.l.b16 %v8883
        %v9002 = vunpack.c.h.b16 %v8883
        %v9003 = vunpack.c.l.b16 %v8884
        %v9004 = vunpack.c.h.b16 %v8884
        %v9005 = vunpack.c.l.b16 %v8885
        %v9006 = vunpack.c.h.b16 %v8885
        %v9007 = vunpack.c.l.b16 %v8886
        %v9008 = vunpack.c.h.b16 %v8886
        %v9009 = vunpack.c.l.b16 %v8887
        %v9010 = vunpack.c.h.b16 %v8887
        %v9011 = vunpack.c.l.b16 %v8888
        %v9012 = vunpack.c.h.b16 %v8888
        %v9013 = vunpack.c.l.b16 %v8889
        %v9014 = vunpack.c.h.b16 %v8889
        %v9015 = vunpack.c.l.b16 %v8890
        %v9016 = vunpack.c.h.b16 %v8890
        %v9017 = vunpack.c.l.b16 %v8891
        %v9018 = vunpack.c.h.b16 %v8891
        %v9019 = vunpack.c.l.b16 %v8892
        %v9020 = vunpack.c.h.b16 %v8892
        %v9021 = vunpack.c.l.b16 %v8893
        %v9022 = vunpack.c.h.b16 %v8893
        %v9023 = vunpack.c.l.b16 %v8894
        %v9024 = vunpack.c.h.b16 %v8894
        %v9025 = vunpack.c.l.b16 %v8895
        %v9026 = vunpack.c.h.b16 %v8895
        %v9027 = vunpack.c.l.b16 %v8896
        %v9028 = vunpack.c.h.b16 %v8896
        %v9029 = vunpack.c.l.b16 %v8897
        %v9030 = vunpack.c.h.b16 %v8897
        %v9031 = vunpack.c.l.b16 %v8898
        %v9032 = vunpack.c.h.b16 %v8898
        %v9033 = vunpack.c.l.b16 %v8899
        %v9034 = vunpack.c.h.b16 %v8899
        %v9035 = vunpack.c.l.b16 %v8900
        %v9036 = vunpack.c.h.b16 %v8900
        %v9037 = vunpack.c.l.b16 %v8901
        %v9038 = vunpack.c.h.b16 %v8901
        %v9039 = vunpack.c.l.b16 %v8902
        %v9040 = vunpack.c.h.b16 %v8902
        %v9041 = vunpack.c.l.b16 %v8903
        %v9042 = vunpack.c.h.b16 %v8903
        %v9043 = vunpack.c.l.b16 %v8904
        %v9044 = vunpack.c.h.b16 %v8904
        %v9045 = vunpack.c.l.b16 %v8905
        %v9046 = vunpack.c.h.b16 %v8905
        %v9047 = vunpack.c.l.b16 %v8906
        %v9048 = vunpack.c.h.b16 %v8906
        %v9049 = vpack.c.b16 %v8973, %v8969
        %v9050 = vpack.c.b16 %v8974, %v8970
        %v9051 = vpack.c.b16 %v8975, %v8971
        %v9052 = vpack.c.b16 %v8976, %v8972
        %v9053 = vpack.c.b16 %v8981, %v8977
        %v9054 = vpack.c.b16 %v8982, %v8978
        %v9055 = vpack.c.b16 %v8983, %v8979
        %v9056 = vpack.c.b16 %v8984, %v8980
        %v9057 = vpack.c.b16 %v8989, %v8985
        %v9058 = vpack.c.b16 %v8990, %v8986
        %v9059 = vpack.c.b16 %v8991, %v8987
        %v9060 = vpack.c.b16 %v8992, %v8988
        %v9061 = vpack.c.b16 %v8997, %v8993
        %v9062 = vpack.c.b16 %v8998, %v8994
        %v9063 = vpack.c.b16 %v8999, %v8995
        %v9064 = vpack.c.b16 %v9000, %v8996
        %v9065 = vpack.c.b16 %v9005, %v9001
        %v9066 = vpack.c.b16 %v9006, %v9002
        %v9067 = vpack.c.b16 %v9007, %v9003
        %v9068 = vpack.c.b16 %v9008, %v9004
        %v9069 = vpack.c.b16 %v9013, %v9009
        %v9070 = vpack.c.b16 %v9014, %v9010
        %v9071 = vpack.c.b16 %v9015, %v9011
        %v9072 = vpack.c.b16 %v9016, %v9012
        %v9073 = vpack.c.b16 %v9021, %v9017
        %v9074 = vpack.c.b16 %v9022, %v9018
        %v9075 = vpack.c.b16 %v9023, %v9019
        %v9076 = vpack.c.b16 %v9024, %v9020
        %v9077 = vpack.c.b16 %v9029, %v9025
        %v9078 = vpack.c.b16 %v9030, %v9026
        %v9079 = vpack.c.b16 %v9031, %v9027
        %v9080 = vpack.c.b16 %v9032, %v9028
        %v9081 = vpack.c.b16 %v9037, %v9033
        %v9082 = vpack.c.b16 %v9038, %v9034
        %v9083 = vpack.c.b16 %v9039, %v9035
        %v9084 = vpack.c.b16 %v9040, %v9036
        %v9085 = vpack.c.b16 %v9045, %v9041
        %v9086 = vpack.c.b16 %v9046, %v9042
        %v9087 = vpack.c.b16 %v9047, %v9043
        %v9088 = vpack.c.b16 %v9048, %v9044
        %9129 = vmatprep.subr.bf16.mxu0 %v9050
        %9130 = vmatpush1.bf16.msra.mxu0 %v9049
        %9131 = vmatprep.subr.bf16.mxu0 %v9054
        %9132 = vmatpush1.bf16.msra.mxu0 %v9053
        %9133 = vmatprep.subr.bf16.mxu0 %v9058
        %9134 = vmatpush1.bf16.msra.mxu0 %v9057
        %9135 = vmatprep.subr.bf16.mxu0 %v9062
        %9136 = vmatpush1.bf16.msra.mxu0 %v9061
        %9137 = vmatprep.subr.bf16.mxu0 %v9066
        %9138 = vmatpush1.bf16.msra.mxu0 %v9065
        %9139 = vmatprep.subr.bf16.mxu0 %v9070
        %9140 = vmatpush1.bf16.msra.mxu0 %v9069
        %9141 = vmatprep.subr.bf16.mxu0 %v9074
        %9142 = vmatpush1.bf16.msra.mxu0 %v9073
        %9143 = vmatprep.subr.bf16.mxu0 %v9078
        %9144 = vmatpush1.bf16.msra.mxu0 %v9077
        %9145 = vmatprep.subr.bf16.mxu0 %v9082
        %9146 = vmatpush1.bf16.msra.mxu0 %v9081
        %9147 = vmatprep.subr.bf16.mxu0 %v9086
        %9148 = vmatpush1.bf16.msra.mxu0 %v9085
        %9149 = vmatprep.subr.bf16.mxu0 0
        %9150 = vmatpush1.bf16.msra.mxu0 0
        %9151 = vmatprep.subr.bf16.mxu0 0
        %9152 = vmatpush1.bf16.msra.mxu0 0
        %9153 = vmatprep.subr.bf16.mxu0 0
        %9154 = vmatpush1.bf16.msra.mxu0 0
        %9155 = vmatprep.subr.bf16.mxu0 0
        %9156 = vmatpush1.bf16.msra.mxu0 0
        %9157 = vmatprep.subr.bf16.mxu0 0
        %9158 = vmatpush1.bf16.msra.mxu0 0
        %9159 = vmatprep.subr.bf16.mxu0 0
        %9160 = vmatpush1.bf16.msra.mxu0 0
        %9161 = vmatprep.mubr.bf16.mxu0 %v6144
        %9162 = vmatmul.mubr.bf16.gmra.mrb[0].mxu0 %v5873
        %v9163 = vpop.f32.mrb[0].mxu0
        %v9164 = vadd.f32 %v8912, %v9163
        %v9165 = vpop.f32.mrb[0].mxu0
        %v9166 = vadd.f32 %v8916, %v9165
        %v9167 = vpop.f32.mrb[0].mxu0
        %v9168 = vadd.f32 %v8912, %v9167
        %v9169 = vpop.f32.mrb[0].mxu0
        %v9170 = vadd.f32 %v8916, %v9169
        %9171 = vmatprep.mubr.bf16.mxu0 %v6147
        %9172 = vmatmul.mubr.bf16.gmra.mrb[0].mxu0 %v5875
        %v9173 = vpop.f32.mrb[0].mxu0
        %v9174 = vadd.f32 %v8912, %v9173
        %v9175 = vpop.f32.mrb[0].mxu0
        %v9176 = vadd.f32 %v8916, %v9175
        %v9177 = vpop.f32.mrb[0].mxu0
        %v9178 = vadd.f32 %v8912, %v9177
        %v9179 = vpop.f32.mrb[0].mxu0
        %v9180 = vadd.f32 %v8916, %v9179
        %9181 = vmatprep.mubr.bf16.mxu0 %v6150
        %9182 = vmatmul.mubr.bf16.gmra.mrb[0].mxu0 %v5877
        %v9183 = vpop.f32.mrb[0].mxu0
        %v9184 = vadd.f32 %v8912, %v9183
        %v9185 = vpop.f32.mrb[0].mxu0
        %v9186 = vadd.f32 %v8916, %v9185
        %v9187 = vpop.f32.mrb[0].mxu0
        %v9188 = vadd.f32 %v8912, %v9187
        %v9189 = vpop.f32.mrb[0].mxu0
        %v9190 = vadd.f32 %v8916, %v9189
        %9191 = vmatprep.mubr.bf16.mxu0 %v6153
        %9192 = vmatmul.mubr.bf16.gmra.mrb[0].mxu0 %v5879
        %v9193 = vpop.f32.mrb[0].mxu0
        %v9194 = vadd.f32 %v8912, %v9193
        %v9195 = vpop.f32.mrb[0].mxu0
        %v9196 = vadd.f32 %v8916, %v9195
        %v9197 = vpop.f32.mrb[0].mxu0
        %v9198 = vadd.f32 %v8912, %v9197
        %v9199 = vpop.f32.mrb[0].mxu0
        %v9200 = vadd.f32 %v8916, %v9199
        %9201 = vdwg.mxu0
        %9202 = vmatprep.subr.bf16.mxu0 %v9052
        %9203 = vmatpush1.bf16.msra.mxu0 %v9051
        %9204 = vmatprep.subr.bf16.mxu0 %v9056
        %9205 = vmatpush1.bf16.msra.mxu0 %v9055
        %9206 = vmatprep.subr.bf16.mxu0 %v9060
        %9207 = vmatpush1.bf16.msra.mxu0 %v9059
        %9208 = vmatprep.subr.bf16.mxu0 %v9064
        %9209 = vmatpush1.bf16.msra.mxu0 %v9063
        %9210 = vmatprep.subr.bf16.mxu0 %v9068
        %9211 = vmatpush1.bf16.msra.mxu0 %v9067
        %9212 = vmatprep.subr.bf16.mxu0 %v9072
        %9213 = vmatpush1.bf16.msra.mxu0 %v9071
        %9214 = vmatprep.subr.bf16.mxu0 %v9076
        %9215 = vmatpush1.bf16.msra.mxu0 %v9075
        %9216 = vmatprep.subr.bf16.mxu0 %v9080
        %9217 = vmatpush1.bf16.msra.mxu0 %v9079
        %9218 = vmatprep.subr.bf16.mxu0 %v9084
        %9219 = vmatpush1.bf16.msra.mxu0 %v9083
        %9220 = vmatprep.subr.bf16.mxu0 %v9088
        %9221 = vmatpush1.bf16.msra.mxu0 %v9087
        %9222 = vmatprep.subr.bf16.mxu0 0
        %9223 = vmatpush1.bf16.msra.mxu0 0
        %9224 = vmatprep.subr.bf16.mxu0 0
        %9225 = vmatpush1.bf16.msra.mxu0 0
        %9226 = vmatprep.subr.bf16.mxu0 0
        %9227 = vmatpush1.bf16.msra.mxu0 0
        %9228 = vmatprep.subr.bf16.mxu0 0
        %9229 = vmatpush1.bf16.msra.mxu0 0
        %9230 = vmatprep.subr.bf16.mxu0 0
        %9231 = vmatpush1.bf16.msra.mxu0 0
        %9232 = vmatprep.subr.bf16.mxu0 0
        %9233 = vmatpush1.bf16.msra.mxu0 0
        %9234 = vmatprep.mubr.bf16.mxu0 %v6144
        %9235 = vmatmul.mubr.bf16.gmra.mrb[0].mxu0 %v5873
        %v9236 = vpop.f32.mrb[0].mxu0
        %v9237 = vadd.f32 %v8920, %v9236
        %v9238 = vpop.f32.mrb[0].mxu0
        %v9239 = vadd.f32 %v8924, %v9238
        %v9240 = vpop.f32.mrb[0].mxu0
        %v9241 = vadd.f32 %v8920, %v9240
        %v9242 = vpop.f32.mrb[0].mxu0
        %v9243 = vadd.f32 %v8924, %v9242
        %9244 = vmatprep.mubr.bf16.mxu0 %v6147
        %9245 = vmatmul.mubr.bf16.gmra.mrb[0].mxu0 %v5875
        %v9246 = vpop.f32.mrb[0].mxu0
        %v9247 = vadd.f32 %v8920, %v9246
        %v9248 = vpop.f32.mrb[0].mxu0
        %v9249 = vadd.f32 %v8924, %v9248
        %v9250 = vpop.f32.mrb[0].mxu0
        %v9251 = vadd.f32 %v8920, %v9250
        %v9252 = vpop.f32.mrb[0].mxu0
        %v9253 = vadd.f32 %v8924, %v9252
        %9254 = vmatprep.mubr.bf16.mxu0 %v6150
        %9255 = vmatmul.mubr.bf16.gmra.mrb[0].mxu0 %v5877
        %v9256 = vpop.f32.mrb[0].mxu0
        %v9257 = vadd.f32 %v8920, %v9256
        %v9258 = vpop.f32.mrb[0].mxu0
        %v9259 = vadd.f32 %v8924, %v9258
        %v9260 = vpop.f32.mrb[0].mxu0
        %v9261 = vadd.f32 %v8920, %v9260
        %v9262 = vpop.f32.mrb[0].mxu0
        %v9263 = vadd.f32 %v8924, %v9262
        %9264 = vmatprep.mubr.bf16.mxu0 %v6153
        %9265 = vmatmul.mubr.bf16.gmra.mrb[0].mxu0 %v5879
        %v9266 = vpop.f32.mrb[0].mxu0
        %v9267 = vadd.f32 %v8920, %v9266
        %v9268 = vpop.f32.mrb[0].mxu0
        %v9269 = vadd.f32 %v8924, %v9268
        %v9270 = vpop.f32.mrb[0].mxu0
        %v9271 = vadd.f32 %v8920, %v9270
        %v9272 = vpop.f32.mrb[0].mxu0
        %v9273 = vadd.f32 %v8924, %v9272
        %9274 = vdwg.mxu0
        %v9275 = vmax.f32 %v9164, 0.0
        %v9276 = vmax.f32 %v9166, 0.0
        %v9277 = vmax.f32 %v9237, 0.0
        %v9278 = vmax.f32 %v9239, 0.0
        %v9279 = vmax.f32 %v9168, 0.0
        %v9280 = vmax.f32 %v9170, 0.0
        %v9281 = vmax.f32 %v9241, 0.0
        %v9282 = vmax.f32 %v9243, 0.0
        %v9283 = vmax.f32 %v9174, 0.0
        %v9284 = vmax.f32 %v9176, 0.0
        %v9285 = vmax.f32 %v9247, 0.0
        %v9286 = vmax.f32 %v9249, 0.0
        %v9287 = vmax.f32 %v9178, 0.0
        %v9288 = vmax.f32 %v9180, 0.0
        %v9289 = vmax.f32 %v9251, 0.0
        %v9290 = vmax.f32 %v9253, 0.0
        %v9291 = vmax.f32 %v9184, 0.0
        %v9292 = vmax.f32 %v9186, 0.0
        %v9293 = vmax.f32 %v9257, 0.0
        %v9294 = vmax.f32 %v9259, 0.0
        %v9295 = vmax.f32 %v9188, 0.0
        %v9296 = vmax.f32 %v9190, 0.0
        %v9297 = vmax.f32 %v9261, 0.0
        %v9298 = vmax.f32 %v9263, 0.0
        %v9299 = vmax.f32 %v9194, 0.0
        %v9300 = vmax.f32 %v9196, 0.0
        %v9301 = vmax.f32 %v9267, 0.0
        %v9302 = vmax.f32 %v9269, 0.0
        %v9303 = vmax.f32 %v9198, 0.0
        %v9304 = vmax.f32 %v9200, 0.0
        %v9305 = vmax.f32 %v9271, 0.0
        %v9306 = vmax.f32 %v9273, 0.0
        %v9307 = vpack.c.bf16 %v9279, %v9275
        %v9308 = vpack.c.bf16 %v9280, %v9276
        %v9309 = vpack.c.bf16 %v9281, %v9277
        %v9310 = vpack.c.bf16 %v9282, %v9278
        %v9311 = vpack.c.bf16 %v9287, %v9283
        %v9312 = vpack.c.bf16 %v9288, %v9284
        %v9313 = vpack.c.bf16 %v9289, %v9285
        %v9314 = vpack.c.bf16 %v9290, %v9286
        %v9315 = vpack.c.bf16 %v9295, %v9291
        %v9316 = vpack.c.bf16 %v9296, %v9292
        %v9317 = vpack.c.bf16 %v9297, %v9293
        %v9318 = vpack.c.bf16 %v9298, %v9294
        %v9319 = vpack.c.bf16 %v9303, %v9299
        %v9320 = vpack.c.bf16 %v9304, %v9300
        %v9321 = vpack.c.bf16 %v9305, %v9301
        %v9322 = vpack.c.bf16 %v9306, %v9302
        %v9323 = vld [vmem:[%s61 + $0x600] sm:$0xff]
        %v9324 = vld [vmem:[%s61 + $0x608] sm:$0xff]
        %v9325 = vld [vmem:[%s61 + $0x610] sm:$0xff]
        %v9326 = vld [vmem:[%s61 + $0x618] sm:$0xff]
        %v9327 = vld [vmem:[%s61 + $0x620] sm:$0xff]
        %v9328 = vld [vmem:[%s61 + $0x628] sm:$0xff]
        %v9329 = vld [vmem:[%s61 + $0x630] sm:$0xff]
        %v9330 = vld [vmem:[%s61 + $0x638] sm:$0xff]
        %v9331 = vld [vmem:[%s61 + $0x640] sm:$0xff]
        %v9332 = vld [vmem:[%s61 + $0x648] sm:$0xff]
        %v9333 = vld [vmem:[%s61 + $0x650] sm:$0xff]
        %v9334 = vld [vmem:[%s61 + $0x658] sm:$0xff]
        %v9335 = vld [vmem:[%s61 + $0x660] sm:$0xff]
        %v9336 = vld [vmem:[%s61 + $0x668] sm:$0xff]
        %v9337 = vld [vmem:[%s61 + $0x670] sm:$0xff]
        %v9338 = vld [vmem:[%s61 + $0x678] sm:$0xff]
        %v9339 = vld [vmem:[%s61 + $0x680] sm:$0xff]
        %v9340 = vld [vmem:[%s61 + $0x688] sm:$0xff]
        %v9341 = vld [vmem:[%s61 + $0x690] sm:$0xff]
        %v9342 = vld [vmem:[%s61 + $0x698] sm:$0xff]
        %v9343 = vld [vmem:[%s61 + $0x6a0] sm:$0xff]
        %v9344 = vld [vmem:[%s61 + $0x6a8] sm:$0xff]
        %v9345 = vld [vmem:[%s61 + $0x6b0] sm:$0xff]
        %v9346 = vld [vmem:[%s61 + $0x6b8] sm:$0xff]
        %v9347 = vld [vmem:[%s61 + $0x6c0] sm:$0xff]
        %v9348 = vld [vmem:[%s61 + $0x6c8] sm:$0xff]
        %v9349 = vld [vmem:[%s61 + $0x6d0] sm:$0xff]
        %v9350 = vld [vmem:[%s61 + $0x6d8] sm:$0xff]
        %v9351 = vld [vmem:[%s61 + $0x6e0] sm:$0xff]
        %v9352 = vld [vmem:[%s61 + $0x6e8] sm:$0xff]
        %v9353 = vld [vmem:[%s61 + $0x6f0] sm:$0xff]
        %v9354 = vld [vmem:[%s61 + $0x6f8] sm:$0xff]
        %v9355 = vld [vmem:[%s61 + $0x700] sm:$0xff]
        %v9356 = vld [vmem:[%s61 + $0x708] sm:$0xff]
        %v9357 = vld [vmem:[%s61 + $0x710] sm:$0xff]
        %v9358 = vld [vmem:[%s61 + $0x718] sm:$0xff]
        %v9359 = vld [vmem:[%s61 + $0x720] sm:$0xff]
        %v9360 = vld [vmem:[%s61 + $0x728] sm:$0xff]
        %v9361 = vld [vmem:[%s61 + $0x730] sm:$0xff]
        %v9362 = vld [vmem:[%s61 + $0x738] sm:$0xff]
        %v9363 = vld [vmem:[%s61 + $0x740] sm:$0xff]
        %v9364 = vld [vmem:[%s61 + $0x748] sm:$0xff]
        %v9365 = vld [vmem:[%s61 + $0x750] sm:$0xff]
        %v9366 = vld [vmem:[%s61 + $0x758] sm:$0xff]
        %v9367 = vld [vmem:[%s61 + $0x760] sm:$0xff]
        %v9368 = vld [vmem:[%s61 + $0x768] sm:$0xff]
        %v9369 = vld [vmem:[%s61 + $0x770] sm:$0xff]
        %v9370 = vld [vmem:[%s61 + $0x778] sm:$0xff]
        %v9371 = vld [vmem:[%s61 + $0x780] sm:$0xff]
        %v9372 = vld [vmem:[%s61 + $0x788] sm:$0xff]
        %v9373 = vld [vmem:[%s61 + $0x790] sm:$0xff]
        %v9374 = vld [vmem:[%s61 + $0x798] sm:$0xff]
        %v9375 = vld [vmem:[%s61 + $0x7a0] sm:$0xff]
        %v9376 = vld [vmem:[%s61 + $0x7a8] sm:$0xff]
        %v9377 = vld [vmem:[%s61 + $0x7b0] sm:$0xff]
        %v9378 = vld [vmem:[%s61 + $0x7b8] sm:$0xff]
        %v9379 = vld [vmem:[%s61 + $0x7c0] sm:$0xff]
        %v9380 = vld [vmem:[%s61 + $0x7c8] sm:$0xff]
        %v9381 = vld [vmem:[%s61 + $0x7d0] sm:$0xff]
        %v9382 = vld [vmem:[%s61 + $0x7d8] sm:$0xff]
        %v9383 = vld [vmem:[%s61 + $0x7e0] sm:$0xff]
        %v9384 = vld [vmem:[%s61 + $0x7e8] sm:$0xff]
        %v9385 = vld [vmem:[%s61 + $0x7f0] sm:$0xff]
        %v9386 = vld [vmem:[%s61 + $0x7f8] sm:$0xff]
        %v9451 = vunpack.c.l.b16 %v9323
        %v9452 = vunpack.c.h.b16 %v9323
        %v9453 = vunpack.c.l.b16 %v9324
        %v9454 = vunpack.c.h.b16 %v9324
        %v9455 = vunpack.c.l.b16 %v9325
        %v9456 = vunpack.c.h.b16 %v9325
        %v9457 = vunpack.c.l.b16 %v9326
        %v9458 = vunpack.c.h.b16 %v9326
        %v9459 = vunpack.c.l.b16 %v9327
        %v9460 = vunpack.c.h.b16 %v9327
        %v9461 = vunpack.c.l.b16 %v9328
        %v9462 = vunpack.c.h.b16 %v9328
        %v9463 = vunpack.c.l.b16 %v9329
        %v9464 = vunpack.c.h.b16 %v9329
        %v9465 = vunpack.c.l.b16 %v9330
        %v9466 = vunpack.c.h.b16 %v9330
        %v9467 = vunpack.c.l.b16 %v9331
        %v9468 = vunpack.c.h.b16 %v9331
        %v9469 = vunpack.c.l.b16 %v9332
        %v9470 = vunpack.c.h.b16 %v9332
        %v9471 = vunpack.c.l.b16 %v9333
        %v9472 = vunpack.c.h.b16 %v9333
        %v9473 = vunpack.c.l.b16 %v9334
        %v9474 = vunpack.c.h.b16 %v9334
        %v9475 = vunpack.c.l.b16 %v9335
        %v9476 = vunpack.c.h.b16 %v9335
        %v9477 = vunpack.c.l.b16 %v9336
        %v9478 = vunpack.c.h.b16 %v9336
        %v9479 = vunpack.c.l.b16 %v9337
        %v9480 = vunpack.c.h.b16 %v9337
        %v9481 = vunpack.c.l.b16 %v9338
        %v9482 = vunpack.c.h.b16 %v9338
        %v9483 = vunpack.c.l.b16 %v9339
        %v9484 = vunpack.c.h.b16 %v9339
        %v9485 = vunpack.c.l.b16 %v9340
        %v9486 = vunpack.c.h.b16 %v9340
        %v9487 = vunpack.c.l.b16 %v9341
        %v9488 = vunpack.c.h.b16 %v9341
        %v9489 = vunpack.c.l.b16 %v9342
        %v9490 = vunpack.c.h.b16 %v9342
        %v9491 = vunpack.c.l.b16 %v9343
        %v9492 = vunpack.c.h.b16 %v9343
        %v9493 = vunpack.c.l.b16 %v9344
        %v9494 = vunpack.c.h.b16 %v9344
        %v9495 = vunpack.c.l.b16 %v9345
        %v9496 = vunpack.c.h.b16 %v9345
        %v9497 = vunpack.c.l.b16 %v9346
        %v9498 = vunpack.c.h.b16 %v9346
        %v9499 = vunpack.c.l.b16 %v9347
        %v9500 = vunpack.c.h.b16 %v9347
        %v9501 = vunpack.c.l.b16 %v9348
        %v9502 = vunpack.c.h.b16 %v9348
        %v9503 = vunpack.c.l.b16 %v9349
        %v9504 = vunpack.c.h.b16 %v9349
        %v9505 = vunpack.c.l.b16 %v9350
        %v9506 = vunpack.c.h.b16 %v9350
        %v9507 = vunpack.c.l.b16 %v9351
        %v9508 = vunpack.c.h.b16 %v9351
        %v9509 = vunpack.c.l.b16 %v9352
        %v9510 = vunpack.c.h.b16 %v9352
        %v9511 = vunpack.c.l.b16 %v9353
        %v9512 = vunpack.c.h.b16 %v9353
        %v9513 = vunpack.c.l.b16 %v9354
        %v9514 = vunpack.c.h.b16 %v9354
        %v9515 = vunpack.c.l.b16 %v9355
        %v9516 = vunpack.c.h.b16 %v9355
        %v9517 = vunpack.c.l.b16 %v9356
        %v9518 = vunpack.c.h.b16 %v9356
        %v9519 = vunpack.c.l.b16 %v9357
        %v9520 = vunpack.c.h.b16 %v9357
        %v9521 = vunpack.c.l.b16 %v9358
        %v9522 = vunpack.c.h.b16 %v9358
        %v9523 = vunpack.c.l.b16 %v9359
        %v9524 = vunpack.c.h.b16 %v9359
        %v9525 = vunpack.c.l.b16 %v9360
        %v9526 = vunpack.c.h.b16 %v9360
        %v9527 = vunpack.c.l.b16 %v9361
        %v9528 = vunpack.c.h.b16 %v9361
        %v9529 = vunpack.c.l.b16 %v9362
        %v9530 = vunpack.c.h.b16 %v9362
        %v9531 = vunpack.c.l.b16 %v9363
        %v9532 = vunpack.c.h.b16 %v9363
        %v9533 = vunpack.c.l.b16 %v9364
        %v9534 = vunpack.c.h.b16 %v9364
        %v9535 = vunpack.c.l.b16 %v9365
        %v9536 = vunpack.c.h.b16 %v9365
        %v9537 = vunpack.c.l.b16 %v9366
        %v9538 = vunpack.c.h.b16 %v9366
        %v9539 = vunpack.c.l.b16 %v9367
        %v9540 = vunpack.c.h.b16 %v9367
        %v9541 = vunpack.c.l.b16 %v9368
        %v9542 = vunpack.c.h.b16 %v9368
        %v9543 = vunpack.c.l.b16 %v9369
        %v9544 = vunpack.c.h.b16 %v9369
        %v9545 = vunpack.c.l.b16 %v9370
        %v9546 = vunpack.c.h.b16 %v9370
        %v9547 = vunpack.c.l.b16 %v9371
        %v9548 = vunpack.c.h.b16 %v9371
        %v9549 = vunpack.c.l.b16 %v9372
        %v9550 = vunpack.c.h.b16 %v9372
        %v9551 = vunpack.c.l.b16 %v9373
        %v9552 = vunpack.c.h.b16 %v9373
        %v9553 = vunpack.c.l.b16 %v9374
        %v9554 = vunpack.c.h.b16 %v9374
        %v9555 = vunpack.c.l.b16 %v9375
        %v9556 = vunpack.c.h.b16 %v9375
        %v9557 = vunpack.c.l.b16 %v9376
        %v9558 = vunpack.c.h.b16 %v9376
        %v9559 = vunpack.c.l.b16 %v9377
        %v9560 = vunpack.c.h.b16 %v9377
        %v9561 = vunpack.c.l.b16 %v9378
        %v9562 = vunpack.c.h.b16 %v9378
        %v9563 = vunpack.c.l.b16 %v9379
        %v9564 = vunpack.c.h.b16 %v9379
        %v9565 = vunpack.c.l.b16 %v9380
        %v9566 = vunpack.c.h.b16 %v9380
        %v9567 = vunpack.c.l.b16 %v9381
        %v9568 = vunpack.c.h.b16 %v9381
        %v9569 = vunpack.c.l.b16 %v9382
        %v9570 = vunpack.c.h.b16 %v9382
        %v9571 = vunpack.c.l.b16 %v9383
        %v9572 = vunpack.c.h.b16 %v9383
        %v9573 = vunpack.c.l.b16 %v9384
        %v9574 = vunpack.c.h.b16 %v9384
        %v9575 = vunpack.c.l.b16 %v9385
        %v9576 = vunpack.c.h.b16 %v9385
        %v9577 = vunpack.c.l.b16 %v9386
        %v9578 = vunpack.c.h.b16 %v9386
        %v9579 = vpack.c.b16 %v9453, %v9451
        %v9580 = vpack.c.b16 %v9454, %v9452
        %v9581 = vpack.c.b16 %v9457, %v9455
        %v9582 = vpack.c.b16 %v9458, %v9456
        %v9583 = vpack.c.b16 %v9461, %v9459
        %v9584 = vpack.c.b16 %v9462, %v9460
        %v9585 = vpack.c.b16 %v9465, %v9463
        %v9586 = vpack.c.b16 %v9466, %v9464
        %v9587 = vpack.c.b16 %v9469, %v9467
        %v9588 = vpack.c.b16 %v9470, %v9468
        %v9589 = vpack.c.b16 %v9473, %v9471
        %v9590 = vpack.c.b16 %v9474, %v9472
        %v9591 = vpack.c.b16 %v9477, %v9475
        %v9592 = vpack.c.b16 %v9478, %v9476
        %v9593 = vpack.c.b16 %v9481, %v9479
        %v9594 = vpack.c.b16 %v9482, %v9480
        %v9595 = vpack.c.b16 %v9485, %v9483
        %v9596 = vpack.c.b16 %v9486, %v9484
        %v9597 = vpack.c.b16 %v9489, %v9487
        %v9598 = vpack.c.b16 %v9490, %v9488
        %v9599 = vpack.c.b16 %v9493, %v9491
        %v9600 = vpack.c.b16 %v9494, %v9492
        %v9601 = vpack.c.b16 %v9497, %v9495
        %v9602 = vpack.c.b16 %v9498, %v9496
        %v9603 = vpack.c.b16 %v9501, %v9499
        %v9604 = vpack.c.b16 %v9502, %v9500
        %v9605 = vpack.c.b16 %v9505, %v9503
        %v9606 = vpack.c.b16 %v9506, %v9504
        %v9607 = vpack.c.b16 %v9509, %v9507
        %v9608 = vpack.c.b16 %v9510, %v9508
        %v9609 = vpack.c.b16 %v9513, %v9511
        %v9610 = vpack.c.b16 %v9514, %v9512
        %v9611 = vpack.c.b16 %v9517, %v9515
        %v9612 = vpack.c.b16 %v9518, %v9516
        %v9613 = vpack.c.b16 %v9521, %v9519
        %v9614 = vpack.c.b16 %v9522, %v9520
        %v9615 = vpack.c.b16 %v9525, %v9523
        %v9616 = vpack.c.b16 %v9526, %v9524
        %v9617 = vpack.c.b16 %v9529, %v9527
        %v9618 = vpack.c.b16 %v9530, %v9528
        %v9619 = vpack.c.b16 %v9533, %v9531
        %v9620 = vpack.c.b16 %v9534, %v9532
        %v9621 = vpack.c.b16 %v9537, %v9535
        %v9622 = vpack.c.b16 %v9538, %v9536
        %v9623 = vpack.c.b16 %v9541, %v9539
        %v9624 = vpack.c.b16 %v9542, %v9540
        %v9625 = vpack.c.b16 %v9545, %v9543
        %v9626 = vpack.c.b16 %v9546, %v9544
        %v9627 = vpack.c.b16 %v9549, %v9547
        %v9628 = vpack.c.b16 %v9550, %v9548
        %v9629 = vpack.c.b16 %v9553, %v9551
        %v9630 = vpack.c.b16 %v9554, %v9552
        %v9631 = vpack.c.b16 %v9557, %v9555
        %v9632 = vpack.c.b16 %v9558, %v9556
        %v9633 = vpack.c.b16 %v9561, %v9559
        %v9634 = vpack.c.b16 %v9562, %v9560
        %v9635 = vpack.c.b16 %v9565, %v9563
        %v9636 = vpack.c.b16 %v9566, %v9564
        %v9637 = vpack.c.b16 %v9569, %v9567
        %v9638 = vpack.c.b16 %v9570, %v9568
        %v9639 = vpack.c.b16 %v9573, %v9571
        %v9640 = vpack.c.b16 %v9574, %v9572
        %v9641 = vpack.c.b16 %v9577, %v9575
        %v9642 = vpack.c.b16 %v9578, %v9576
        %9707 = vmatprep.subr.bf16.mxu0 %v9580
        %9708 = vmatpush1.bf16.msra.mxu0 %v9579
        %9709 = vmatprep.subr.bf16.mxu0 %v9582
        %9710 = vmatpush1.bf16.msra.mxu0 %v9581
        %9711 = vmatprep.subr.bf16.mxu0 %v9584
        %9712 = vmatpush1.bf16.msra.mxu0 %v9583
        %9713 = vmatprep.subr.bf16.mxu0 %v9586
        %9714 = vmatpush1.bf16.msra.mxu0 %v9585
        %9715 = vmatprep.subr.bf16.mxu0 %v9588
        %9716 = vmatpush1.bf16.msra.mxu0 %v9587
        %9717 = vmatprep.subr.bf16.mxu0 %v9590
        %9718 = vmatpush1.bf16.msra.mxu0 %v9589
        %9719 = vmatprep.subr.bf16.mxu0 %v9592
        %9720 = vmatpush1.bf16.msra.mxu0 %v9591
        %9721 = vmatprep.subr.bf16.mxu0 %v9594
        %9722 = vmatpush1.bf16.msra.mxu0 %v9593
        %9723 = vmatprep.subr.bf16.mxu0 %v9596
        %9724 = vmatpush1.bf16.msra.mxu0 %v9595
        %9725 = vmatprep.subr.bf16.mxu0 %v9598
        %9726 = vmatpush1.bf16.msra.mxu0 %v9597
        %9727 = vmatprep.subr.bf16.mxu0 %v9600
        %9728 = vmatpush1.bf16.msra.mxu0 %v9599
        %9729 = vmatprep.subr.bf16.mxu0 %v9602
        %9730 = vmatpush1.bf16.msra.mxu0 %v9601
        %9731 = vmatprep.subr.bf16.mxu0 %v9604
        %9732 = vmatpush1.bf16.msra.mxu0 %v9603
        %9733 = vmatprep.subr.bf16.mxu0 %v9606
        %9734 = vmatpush1.bf16.msra.mxu0 %v9605
        %9735 = vmatprep.subr.bf16.mxu0 %v9608
        %9736 = vmatpush1.bf16.msra.mxu0 %v9607
        %9737 = vmatprep.subr.bf16.mxu0 %v9610
        %9738 = vmatpush1.bf16.msra.mxu0 %v9609
        %9739 = vmatprep.mubr.bf16.mxu0 %v9308
        %9740 = vmatmul.mubr.bf16.gmra.mrb[0].mxu0 %v9307
        %v9741 = vpop.f32.mrb[0].mxu0
        %v9742 = vadd.f32 0.0, %v9741
        %v9743 = vpop.f32.mrb[0].mxu0
        %v9744 = vadd.f32 0.0, %v9743
        %v9745 = vpop.f32.mrb[0].mxu0
        %v9746 = vadd.f32 0.0, %v9745
        %v9747 = vpop.f32.mrb[0].mxu0
        %v9748 = vadd.f32 0.0, %v9747
        %9749 = vmatprep.mubr.bf16.mxu0 %v9312
        %9750 = vmatmul.mubr.bf16.gmra.mrb[0].mxu0 %v9311
        %v9751 = vpop.f32.mrb[0].mxu0
        %v9752 = vadd.f32 0.0, %v9751
        %v9753 = vpop.f32.mrb[0].mxu0
        %v9754 = vadd.f32 0.0, %v9753
        %v9755 = vpop.f32.mrb[0].mxu0
        %v9756 = vadd.f32 0.0, %v9755
        %v9757 = vpop.f32.mrb[0].mxu0
        %v9758 = vadd.f32 0.0, %v9757
        %9759 = vmatprep.mubr.bf16.mxu0 %v9316
        %9760 = vmatmul.mubr.bf16.gmra.mrb[0].mxu0 %v9315
        %v9761 = vpop.f32.mrb[0].mxu0
        %v9762 = vadd.f32 0.0, %v9761
        %v9763 = vpop.f32.mrb[0].mxu0
        %v9764 = vadd.f32 0.0, %v9763
        %v9765 = vpop.f32.mrb[0].mxu0
        %v9766 = vadd.f32 0.0, %v9765
        %v9767 = vpop.f32.mrb[0].mxu0
        %v9768 = vadd.f32 0.0, %v9767
        %9769 = vmatprep.mubr.bf16.mxu0 %v9320
        %9770 = vmatmul.mubr.bf16.gmra.mrb[0].mxu0 %v9319
        %v9771 = vpop.f32.mrb[0].mxu0
        %v9772 = vadd.f32 0.0, %v9771
        %v9773 = vpop.f32.mrb[0].mxu0
        %v9774 = vadd.f32 0.0, %v9773
        %v9775 = vpop.f32.mrb[0].mxu0
        %v9776 = vadd.f32 0.0, %v9775
        %v9777 = vpop.f32.mrb[0].mxu0
        %v9778 = vadd.f32 0.0, %v9777
        %9779 = vdwg.mxu0
        %9780 = vmatprep.subr.bf16.mxu0 %v9612
        %9781 = vmatpush1.bf16.msra.mxu0 %v9611
        %9782 = vmatprep.subr.bf16.mxu0 %v9614
        %9783 = vmatpush1.bf16.msra.mxu0 %v9613
        %9784 = vmatprep.subr.bf16.mxu0 %v9616
        %9785 = vmatpush1.bf16.msra.mxu0 %v9615
        %9786 = vmatprep.subr.bf16.mxu0 %v9618
        %9787 = vmatpush1.bf16.msra.mxu0 %v9617
        %9788 = vmatprep.subr.bf16.mxu0 %v9620
        %9789 = vmatpush1.bf16.msra.mxu0 %v9619
        %9790 = vmatprep.subr.bf16.mxu0 %v9622
        %9791 = vmatpush1.bf16.msra.mxu0 %v9621
        %9792 = vmatprep.subr.bf16.mxu0 %v9624
        %9793 = vmatpush1.bf16.msra.mxu0 %v9623
        %9794 = vmatprep.subr.bf16.mxu0 %v9626
        %9795 = vmatpush1.bf16.msra.mxu0 %v9625
        %9796 = vmatprep.subr.bf16.mxu0 %v9628
        %9797 = vmatpush1.bf16.msra.mxu0 %v9627
        %9798 = vmatprep.subr.bf16.mxu0 %v9630
        %9799 = vmatpush1.bf16.msra.mxu0 %v9629
        %9800 = vmatprep.subr.bf16.mxu0 %v9632
        %9801 = vmatpush1.bf16.msra.mxu0 %v9631
        %9802 = vmatprep.subr.bf16.mxu0 %v9634
        %9803 = vmatpush1.bf16.msra.mxu0 %v9633
        %9804 = vmatprep.subr.bf16.mxu0 %v9636
        %9805 = vmatpush1.bf16.msra.mxu0 %v9635
        %9806 = vmatprep.subr.bf16.mxu0 %v9638
        %9807 = vmatpush1.bf16.msra.mxu0 %v9637
        %9808 = vmatprep.subr.bf16.mxu0 %v9640
        %9809 = vmatpush1.bf16.msra.mxu0 %v9639
        %9810 = vmatprep.subr.bf16.mxu0 %v9642
        %9811 = vmatpush1.bf16.msra.mxu0 %v9641
        %9812 = vmatprep.mubr.bf16.mxu0 %v9310
        %9813 = vmatmul.mubr.bf16.gmra.mrb[0].mxu0 %v9309
        %v9814 = vpop.f32.mrb[0].mxu0
        %v9815 = vadd.f32 %v9742, %v9814
        %v9816 = vpop.f32.mrb[0].mxu0
        %v9817 = vadd.f32 %v9744, %v9816
        %v9818 = vpop.f32.mrb[0].mxu0
        %v9819 = vadd.f32 %v9746, %v9818
        %v9820 = vpop.f32.mrb[0].mxu0
        %v9821 = vadd.f32 %v9748, %v9820
        %9822 = vmatprep.mubr.bf16.mxu0 %v9314
        %9823 = vmatmul.mubr.bf16.gmra.mrb[0].mxu0 %v9313
        %v9824 = vpop.f32.mrb[0].mxu0
        %v9825 = vadd.f32 %v9752, %v9824
        %v9826 = vpop.f32.mrb[0].mxu0
        %v9827 = vadd.f32 %v9754, %v9826
        %v9828 = vpop.f32.mrb[0].mxu0
        %v9829 = vadd.f32 %v9756, %v9828
        %v9830 = vpop.f32.mrb[0].mxu0
        %v9831 = vadd.f32 %v9758, %v9830
        %9832 = vmatprep.mubr.bf16.mxu0 %v9318
        %9833 = vmatmul.mubr.bf16.gmra.mrb[0].mxu0 %v9317
        %v9834 = vpop.f32.mrb[0].mxu0
        %v9835 = vadd.f32 %v9762, %v9834
        %v9836 = vpop.f32.mrb[0].mxu0
        %v9837 = vadd.f32 %v9764, %v9836
        %v9838 = vpop.f32.mrb[0].mxu0
        %v9839 = vadd.f32 %v9766, %v9838
        %v9840 = vpop.f32.mrb[0].mxu0
        %v9841 = vadd.f32 %v9768, %v9840
        %9842 = vmatprep.mubr.bf16.mxu0 %v9322
        %9843 = vmatmul.mubr.bf16.gmra.mrb[0].mxu0 %v9321
        %v9844 = vpop.f32.mrb[0].mxu0
        %v9845 = vadd.f32 %v9772, %v9844
        %v9846 = vpop.f32.mrb[0].mxu0
        %v9847 = vadd.f32 %v9774, %v9846
        %v9848 = vpop.f32.mrb[0].mxu0
        %v9849 = vadd.f32 %v9776, %v9848
        %v9850 = vpop.f32.mrb[0].mxu0
        %v9851 = vadd.f32 %v9778, %v9850
        %9852 = vdwg.mxu0
        %v9853 = vadd.f32 %v8851, %v9815
        %v9854 = vadd.f32 %v8852, %v9817
        %v9855 = vadd.f32 %v8853, %v9819
        %v9856 = vadd.f32 %v8854, %v9821
        %v9857 = vadd.f32 %v8855, %v9825
        %v9858 = vadd.f32 %v8856, %v9827
        %v9859 = vadd.f32 %v8857, %v9829
        %v9860 = vadd.f32 %v8858, %v9831
        %v9861 = vadd.f32 %v8859, %v9835
        %v9862 = vadd.f32 %v8860, %v9837
        %v9863 = vadd.f32 %v8861, %v9839
        %v9864 = vadd.f32 %v8862, %v9841
        %v9865 = vadd.f32 %v8863, %v9845
        %v9866 = vadd.f32 %v8864, %v9847
        %v9867 = vadd.f32 %v8865, %v9849
        %v9868 = vadd.f32 %v8866, %v9851
        %v9869 = vld [vmem:[%s63] sm:$0x3]
        %v9871 = vlaneseq
        %v9872 = vshrl.u32 %v9871, 7
        %v9873 = vsub.s32 0, %v9872
        %v9874 = vrot.slane %v9869, %v9873
        %v9875 = vlaneseq
        %v9876 = vshrl.u32 %v9875, 7
        %v9877 = vsub.s32 1, %v9876
        %v9878 = vrot.slane %v9869, %v9877
        %v9881 = vadd.f32 %v9853, %v9874
        %v9882 = vadd.f32 %v9854, %v9878
        %v9883 = vadd.f32 %v9855, %v9874
        %v9884 = vadd.f32 %v9856, %v9878
        %v9885 = vadd.f32 %v9857, %v9874
        %v9886 = vadd.f32 %v9858, %v9878
        %v9887 = vadd.f32 %v9859, %v9874
        %v9888 = vadd.f32 %v9860, %v9878
        %v9889 = vadd.f32 %v9861, %v9874
        %v9890 = vadd.f32 %v9862, %v9878
        %v9891 = vadd.f32 %v9863, %v9874
        %v9892 = vadd.f32 %v9864, %v9878
        %v9893 = vadd.f32 %v9865, %v9874
        %v9894 = vadd.f32 %v9866, %v9878
        %v9895 = vadd.f32 %v9867, %v9874
        %v9896 = vadd.f32 %v9868, %v9878
        %v9897 = vadd.f32 %v5857, %v9881
        %v9898 = vadd.f32 %v5858, %v9882
        %v9899 = vadd.f32 %v5859, %v9883
        %v9900 = vadd.f32 %v5860, %v9884
        %v9901 = vadd.f32 %v5861, %v9885
        %v9902 = vadd.f32 %v5862, %v9886
        %v9903 = vadd.f32 %v5863, %v9887
        %v9904 = vadd.f32 %v5864, %v9888
        %v9905 = vadd.f32 %v5865, %v9889
        %v9906 = vadd.f32 %v5866, %v9890
        %v9907 = vadd.f32 %v5867, %v9891
        %v9908 = vadd.f32 %v5868, %v9892
        %v9909 = vadd.f32 %v5869, %v9893
        %v9910 = vadd.f32 %v5870, %v9894
        %v9911 = vadd.f32 %v5871, %v9895
        %v9912 = vadd.f32 %v5872, %v9896
        %v9913 = vsel %vm1605, %v9898, 0.0
        %v9914 = vadd.f32 %v9897, %v9913
        %9915 = vadd.xlane.f32.xlu0 %v9914
        %v9916 = vpop.xlane.xlu0 %9915
        %v9917 = vsel %vm1605, %v9900, 0.0
        %v9918 = vadd.f32 %v9899, %v9917
        %9919 = vadd.xlane.f32.xlu0 %v9918
        %v9920 = vpop.xlane.xlu0 %9919
        %v9921 = vsel %vm1605, %v9902, 0.0
        %v9922 = vadd.f32 %v9901, %v9921
        %9923 = vadd.xlane.f32.xlu0 %v9922
        %v9924 = vpop.xlane.xlu0 %9923
        %v9925 = vsel %vm1605, %v9904, 0.0
        %v9926 = vadd.f32 %v9903, %v9925
        %9927 = vadd.xlane.f32.xlu0 %v9926
        %v9928 = vpop.xlane.xlu0 %9927
        %v9929 = vsel %vm1605, %v9906, 0.0
        %v9930 = vadd.f32 %v9905, %v9929
        %9931 = vadd.xlane.f32.xlu0 %v9930
        %v9932 = vpop.xlane.xlu0 %9931
        %v9933 = vsel %vm1605, %v9908, 0.0
        %v9934 = vadd.f32 %v9907, %v9933
        %9935 = vadd.xlane.f32.xlu0 %v9934
        %v9936 = vpop.xlane.xlu0 %9935
        %v9937 = vsel %vm1605, %v9910, 0.0
        %v9938 = vadd.f32 %v9909, %v9937
        %9939 = vadd.xlane.f32.xlu0 %v9938
        %v9940 = vpop.xlane.xlu0 %9939
        %v9941 = vsel %vm1605, %v9912, 0.0
        %v9942 = vadd.f32 %v9911, %v9941
        %9943 = vadd.xlane.f32.xlu0 %v9942
        %v9944 = vpop.xlane.xlu0 %9943
        %v9945 = vmul.f32 %v9916, %v1942
        %v9946 = vmul.f32 %v9920, %v1942
        %v9947 = vmul.f32 %v9924, %v1942
        %v9948 = vmul.f32 %v9928, %v1942
        %v9949 = vmul.f32 %v9932, %v1942
        %v9950 = vmul.f32 %v9936, %v1942
        %v9951 = vmul.f32 %v9940, %v1942
        %v9952 = vmul.f32 %v9944, %v1942
        %v9953 = vsub.f32 %v9897, %v9945
        %v9954 = vsub.f32 %v9898, %v9945
        %v9955 = vsub.f32 %v9899, %v9946
        %v9956 = vsub.f32 %v9900, %v9946
        %v9957 = vsub.f32 %v9901, %v9947
        %v9958 = vsub.f32 %v9902, %v9947
        %v9959 = vsub.f32 %v9903, %v9948
        %v9960 = vsub.f32 %v9904, %v9948
        %v9961 = vsub.f32 %v9905, %v9949
        %v9962 = vsub.f32 %v9906, %v9949
        %v9963 = vsub.f32 %v9907, %v9950
        %v9964 = vsub.f32 %v9908, %v9950
        %v9965 = vsub.f32 %v9909, %v9951
        %v9966 = vsub.f32 %v9910, %v9951
        %v9967 = vsub.f32 %v9911, %v9952
        %v9968 = vsub.f32 %v9912, %v9952
        %v9969 = vmul.f32 %v9953, %v9953
        %v9970 = vmul.f32 %v9954, %v9954
        %v9971 = vmul.f32 %v9955, %v9955
        %v9972 = vmul.f32 %v9956, %v9956
        %v9973 = vmul.f32 %v9957, %v9957
        %v9974 = vmul.f32 %v9958, %v9958
        %v9975 = vmul.f32 %v9959, %v9959
        %v9976 = vmul.f32 %v9960, %v9960
        %v9977 = vmul.f32 %v9961, %v9961
        %v9978 = vmul.f32 %v9962, %v9962
        %v9979 = vmul.f32 %v9963, %v9963
        %v9980 = vmul.f32 %v9964, %v9964
        %v9981 = vmul.f32 %v9965, %v9965
        %v9982 = vmul.f32 %v9966, %v9966
        %v9983 = vmul.f32 %v9967, %v9967
        %v9984 = vmul.f32 %v9968, %v9968
        %v9985 = vsel %vm1605, %v9970, 0.0
        %v9986 = vadd.f32 %v9969, %v9985
        %9987 = vadd.xlane.f32.xlu0 %v9986
        %v9988 = vpop.xlane.xlu0 %9987
        %v9989 = vsel %vm1605, %v9972, 0.0
        %v9990 = vadd.f32 %v9971, %v9989
        %9991 = vadd.xlane.f32.xlu0 %v9990
        %v9992 = vpop.xlane.xlu0 %9991
        %v9993 = vsel %vm1605, %v9974, 0.0
        %v9994 = vadd.f32 %v9973, %v9993
        %9995 = vadd.xlane.f32.xlu0 %v9994
        %v9996 = vpop.xlane.xlu0 %9995
        %v9997 = vsel %vm1605, %v9976, 0.0
        %v9998 = vadd.f32 %v9975, %v9997
        %9999 = vadd.xlane.f32.xlu0 %v9998
        %v10000 = vpop.xlane.xlu0 %9999
        %v10001 = vsel %vm1605, %v9978, 0.0
        %v10002 = vadd.f32 %v9977, %v10001
        %10003 = vadd.xlane.f32.xlu0 %v10002
        %v10004 = vpop.xlane.xlu0 %10003
        %v10005 = vsel %vm1605, %v9980, 0.0
        %v10006 = vadd.f32 %v9979, %v10005
        %10007 = vadd.xlane.f32.xlu0 %v10006
        %v10008 = vpop.xlane.xlu0 %10007
        %v10009 = vsel %vm1605, %v9982, 0.0
        %v10010 = vadd.f32 %v9981, %v10009
        %10011 = vadd.xlane.f32.xlu0 %v10010
        %v10012 = vpop.xlane.xlu0 %10011
        %v10013 = vsel %vm1605, %v9984, 0.0
        %v10014 = vadd.f32 %v9983, %v10013
        %10015 = vadd.xlane.f32.xlu0 %v10014
        %v10016 = vpop.xlane.xlu0 %10015
        %v10017 = vmul.f32 %v9988, %v1942
        %v10018 = vmul.f32 %v9992, %v1942
        %v10019 = vmul.f32 %v9996, %v1942
        %v10020 = vmul.f32 %v10000, %v1942
        %v10021 = vmul.f32 %v10004, %v1942
        %v10022 = vmul.f32 %v10008, %v1942
        %v10023 = vmul.f32 %v10012, %v1942
        %v10024 = vmul.f32 %v10016, %v1942
        %v10025 = vadd.f32 %v10017, 1e-05
        %v10026 = vadd.f32 %v10018, 1e-05
        %v10027 = vadd.f32 %v10019, 1e-05
        %v10028 = vadd.f32 %v10020, 1e-05
        %v10029 = vadd.f32 %v10021, 1e-05
        %v10030 = vadd.f32 %v10022, 1e-05
        %v10031 = vadd.f32 %v10023, 1e-05
        %v10032 = vadd.f32 %v10024, 1e-05
        %v10033 = vrsqrt.pop %v10025
        %v10034 = vrsqrt.pop %v10026
        %v10035 = vrsqrt.pop %v10027
        %v10036 = vrsqrt.pop %v10028
        %v10037 = vrsqrt.pop %v10029
        %v10038 = vrsqrt.pop %v10030
        %v10039 = vrsqrt.pop %v10031
        %v10040 = vrsqrt.pop %v10032
        %v10041 = vmul.f32 %v9953, %v10033
        %v10042 = vmul.f32 %v9954, %v10033
        %v10043 = vmul.f32 %v9955, %v10034
        %v10044 = vmul.f32 %v9956, %v10034
        %v10045 = vmul.f32 %v9957, %v10035
        %v10046 = vmul.f32 %v9958, %v10035
        %v10047 = vmul.f32 %v9959, %v10036
        %v10048 = vmul.f32 %v9960, %v10036
        %v10049 = vmul.f32 %v9961, %v10037
        %v10050 = vmul.f32 %v9962, %v10037
        %v10051 = vmul.f32 %v9963, %v10038
        %v10052 = vmul.f32 %v9964, %v10038
        %v10053 = vmul.f32 %v9965, %v10039
        %v10054 = vmul.f32 %v9966, %v10039
        %v10055 = vmul.f32 %v9967, %v10040
        %v10056 = vmul.f32 %v9968, %v10040
        %v10057 = vld [vmem:[%s65] sm:$0x3]
        %v10059 = vlaneseq
        %v10060 = vshrl.u32 %v10059, 7
        %v10061 = vsub.s32 0, %v10060
        %v10062 = vrot.slane %v10057, %v10061
        %v10063 = vlaneseq
        %v10064 = vshrl.u32 %v10063, 7
        %v10065 = vsub.s32 1, %v10064
        %v10066 = vrot.slane %v10057, %v10065
        %v10069 = vmul.f32 %v10041, %v10062
        %v10070 = vmul.f32 %v10042, %v10066
        %v10071 = vmul.f32 %v10043, %v10062
        %v10072 = vmul.f32 %v10044, %v10066
        %v10073 = vmul.f32 %v10045, %v10062
        %v10074 = vmul.f32 %v10046, %v10066
        %v10075 = vmul.f32 %v10047, %v10062
        %v10076 = vmul.f32 %v10048, %v10066
        %v10077 = vmul.f32 %v10049, %v10062
        %v10078 = vmul.f32 %v10050, %v10066
        %v10079 = vmul.f32 %v10051, %v10062
        %v10080 = vmul.f32 %v10052, %v10066
        %v10081 = vmul.f32 %v10053, %v10062
        %v10082 = vmul.f32 %v10054, %v10066
        %v10083 = vmul.f32 %v10055, %v10062
        %v10084 = vmul.f32 %v10056, %v10066
        %v10085 = vld [vmem:[%s67] sm:$0x3]
        %v10087 = vlaneseq
        %v10088 = vshrl.u32 %v10087, 7
        %v10089 = vsub.s32 0, %v10088
        %v10090 = vrot.slane %v10085, %v10089
        %v10091 = vlaneseq
        %v10092 = vshrl.u32 %v10091, 7
        %v10093 = vsub.s32 1, %v10092
        %v10094 = vrot.slane %v10085, %v10093
        %v10097 = vadd.f32 %v10069, %v10090
        %v10098 = vadd.f32 %v10070, %v10094
        %v10099 = vadd.f32 %v10071, %v10090
        %v10100 = vadd.f32 %v10072, %v10094
        %v10101 = vadd.f32 %v10073, %v10090
        %v10102 = vadd.f32 %v10074, %v10094
        %v10103 = vadd.f32 %v10075, %v10090
        %v10104 = vadd.f32 %v10076, %v10094
        %v10105 = vadd.f32 %v10077, %v10090
        %v10106 = vadd.f32 %v10078, %v10094
        %v10107 = vadd.f32 %v10079, %v10090
        %v10108 = vadd.f32 %v10080, %v10094
        %v10109 = vadd.f32 %v10081, %v10090
        %v10110 = vadd.f32 %v10082, %v10094
        %v10111 = vadd.f32 %v10083, %v10090
        %v10112 = vadd.f32 %v10084, %v10094
        %v10113 = vrot.slane %v10097, 4
        %v10114 = vadd.f32 %v10097, %v10113
        %v10115 = vrot.slane %v10114, 2
        %v10116 = vadd.f32 %v10114, %v10115
        %v10117 = vrot.slane %v10116, 1
        %v10118 = vadd.f32 %v10116, %v10117
        %v10119 = vsel %vm1605, %v10098, 0.0
        %v10120 = vrot.slane %v10119, 4
        %v10121 = vadd.f32 %v10119, %v10120
        %v10122 = vrot.slane %v10121, 2
        %v10123 = vadd.f32 %v10121, %v10122
        %v10124 = vrot.slane %v10123, 1
        %v10125 = vadd.f32 %v10123, %v10124
        %v10126 = vrot.slane %v10099, 4
        %v10127 = vadd.f32 %v10099, %v10126
        %v10128 = vrot.slane %v10127, 2
        %v10129 = vadd.f32 %v10127, %v10128
        %v10130 = vrot.slane %v10129, 1
        %v10131 = vadd.f32 %v10129, %v10130
        %v10132 = vsel %vm1605, %v10100, 0.0
        %v10133 = vrot.slane %v10132, 4
        %v10134 = vadd.f32 %v10132, %v10133
        %v10135 = vrot.slane %v10134, 2
        %v10136 = vadd.f32 %v10134, %v10135
        %v10137 = vrot.slane %v10136, 1
        %v10138 = vadd.f32 %v10136, %v10137
        %v10139 = vrot.slane %v10101, 4
        %v10140 = vadd.f32 %v10101, %v10139
        %v10141 = vrot.slane %v10140, 2
        %v10142 = vadd.f32 %v10140, %v10141
        %v10143 = vrot.slane %v10142, 1
        %v10144 = vadd.f32 %v10142, %v10143
        %v10145 = vsel %vm1605, %v10102, 0.0
        %v10146 = vrot.slane %v10145, 4
        %v10147 = vadd.f32 %v10145, %v10146
        %v10148 = vrot.slane %v10147, 2
        %v10149 = vadd.f32 %v10147, %v10148
        %v10150 = vrot.slane %v10149, 1
        %v10151 = vadd.f32 %v10149, %v10150
        %v10152 = vrot.slane %v10103, 4
        %v10153 = vadd.f32 %v10103, %v10152
        %v10154 = vrot.slane %v10153, 2
        %v10155 = vadd.f32 %v10153, %v10154
        %v10156 = vrot.slane %v10155, 1
        %v10157 = vadd.f32 %v10155, %v10156
        %v10158 = vsel %vm1605, %v10104, 0.0
        %v10159 = vrot.slane %v10158, 4
        %v10160 = vadd.f32 %v10158, %v10159
        %v10161 = vrot.slane %v10160, 2
        %v10162 = vadd.f32 %v10160, %v10161
        %v10163 = vrot.slane %v10162, 1
        %v10164 = vadd.f32 %v10162, %v10163
        %v10165 = vrot.slane %v10105, 4
        %v10166 = vadd.f32 %v10105, %v10165
        %v10167 = vrot.slane %v10166, 2
        %v10168 = vadd.f32 %v10166, %v10167
        %v10169 = vrot.slane %v10168, 1
        %v10170 = vadd.f32 %v10168, %v10169
        %v10171 = vsel %vm1605, %v10106, 0.0
        %v10172 = vrot.slane %v10171, 4
        %v10173 = vadd.f32 %v10171, %v10172
        %v10174 = vrot.slane %v10173, 2
        %v10175 = vadd.f32 %v10173, %v10174
        %v10176 = vrot.slane %v10175, 1
        %v10177 = vadd.f32 %v10175, %v10176
        %v10178 = vrot.slane %v10107, 4
        %v10179 = vadd.f32 %v10107, %v10178
        %v10180 = vrot.slane %v10179, 2
        %v10181 = vadd.f32 %v10179, %v10180
        %v10182 = vrot.slane %v10181, 1
        %v10183 = vadd.f32 %v10181, %v10182
        %v10184 = vsel %vm1605, %v10108, 0.0
        %v10185 = vrot.slane %v10184, 4
        %v10186 = vadd.f32 %v10184, %v10185
        %v10187 = vrot.slane %v10186, 2
        %v10188 = vadd.f32 %v10186, %v10187
        %v10189 = vrot.slane %v10188, 1
        %v10190 = vadd.f32 %v10188, %v10189
        %v10191 = vrot.slane %v10109, 4
        %v10192 = vadd.f32 %v10109, %v10191
        %v10193 = vrot.slane %v10192, 2
        %v10194 = vadd.f32 %v10192, %v10193
        %v10195 = vrot.slane %v10194, 1
        %v10196 = vadd.f32 %v10194, %v10195
        %v10197 = vsel %vm1605, %v10110, 0.0
        %v10198 = vrot.slane %v10197, 4
        %v10199 = vadd.f32 %v10197, %v10198
        %v10200 = vrot.slane %v10199, 2
        %v10201 = vadd.f32 %v10199, %v10200
        %v10202 = vrot.slane %v10201, 1
        %v10203 = vadd.f32 %v10201, %v10202
        %v10204 = vrot.slane %v10111, 4
        %v10205 = vadd.f32 %v10111, %v10204
        %v10206 = vrot.slane %v10205, 2
        %v10207 = vadd.f32 %v10205, %v10206
        %v10208 = vrot.slane %v10207, 1
        %v10209 = vadd.f32 %v10207, %v10208
        %v10210 = vsel %vm1605, %v10112, 0.0
        %v10211 = vrot.slane %v10210, 4
        %v10212 = vadd.f32 %v10210, %v10211
        %v10213 = vrot.slane %v10212, 2
        %v10214 = vadd.f32 %v10212, %v10213
        %v10215 = vrot.slane %v10214, 1
        %v10216 = vadd.f32 %v10214, %v10215
        %v10217 = vrcp.pop 8.0
        %v10218 = vmul.f32 %v10118, %v10217
        %v10219 = vmul.f32 %v10125, %v10217
        %v10220 = vmul.f32 %v10131, %v10217
        %v10221 = vmul.f32 %v10138, %v10217
        %v10222 = vmul.f32 %v10144, %v10217
        %v10223 = vmul.f32 %v10151, %v10217
        %v10224 = vmul.f32 %v10157, %v10217
        %v10225 = vmul.f32 %v10164, %v10217
        %v10226 = vmul.f32 %v10170, %v10217
        %v10227 = vmul.f32 %v10177, %v10217
        %v10228 = vmul.f32 %v10183, %v10217
        %v10229 = vmul.f32 %v10190, %v10217
        %v10230 = vmul.f32 %v10196, %v10217
        %v10231 = vmul.f32 %v10203, %v10217
        %v10232 = vmul.f32 %v10209, %v10217
        %v10233 = vmul.f32 %v10216, %v10217
        %vm10250 = vcmask 1041409
        %v10251 = vsel %vm10250, %v10220, %v10218
        %vm10252 = vcmask 1042434
        %v10253 = vsel %vm10252, %v10222, %v10251
        %vm10254 = vcmask 1043459
        %v10255 = vsel %vm10254, %v10224, %v10253
        %vm10256 = vcmask 1044484
        %v10257 = vsel %vm10256, %v10226, %v10255
        %vm10258 = vcmask 1045509
        %v10259 = vsel %vm10258, %v10228, %v10257
        %vm10260 = vcmask 1046534
        %v10261 = vsel %vm10260, %v10230, %v10259
        %vm10262 = vcmask 1047559
        %v10263 = vsel %vm10262, %v10232, %v10261
        %v10264 = vsel %vm10250, %v10221, %v10219
        %v10265 = vsel %vm10252, %v10223, %v10264
        %v10266 = vsel %vm10254, %v10225, %v10265
        %v10267 = vsel %vm10256, %v10227, %v10266
        %v10268 = vsel %vm10258, %v10229, %v10267
        %v10269 = vsel %vm10260, %v10231, %v10268
        %v10270 = vsel %vm10262, %v10233, %v10269
        %10273 = vst [vmem:[%s1070] sm:$0xff] %v10263
        %10274 = vst.msk [vmem:[%s1070 + $0x8] sm:$0xff] %vm1605, %v10270
        %s10275 = sand.u32 %s820, 1
        %s10276 = scalar_lea.sflag [#allocation3], %s10275
        %s10277 = sand.u32 %s820, 1
        %s10278 = smul.addr %s10277, 16
        %s10279 = scalar_lea.vmem [#allocation2], %s10278
        // Predicated region
        $region157: #{mask_time_series_forward.1} parent=155 // pred_check
          %p10280 = pneg %p830
        $region158: #{mask_time_series_forward.1} parent=155 // pred_check_branch
          %10282 = sbr.rel (%p10280) target = $region160
        $region159: #{mask_time_series_forward.1} parent=155 // pred_region
          %s10284 = ssub.s32 256, 256
          %10285 = vsyncadd %s10276, %s10284
          %s10286 = smul.addr %s83, 2
          %s10287 = smul.addr %s10286, 128
          %s10288 = scalar_lea.hbm %s69, %s10287
          %s10290 = sshll.u32 %s10279, 4
          %s10291 = int_to_ptr.vmem [resolvable:$true] %s10290
          %10293 = dma.vmem_to_hbm [thread:$0]  %s10291, 256, %s10288, %s10276
        $region160: #{mask_time_series_forward.1} parent=155 // pred_fallthru
          _
      $region156: #{mask_time_series_forward.1} parent=5 // pred_fallthru
        _
      %p10294 = scmp.le.s32.totalorder 2, %s78
      // Predicated region
      $region161: #{mask_time_series_forward.1} parent=5 // pred_check
        %p10295 = pneg %p10294
      $region162: #{mask_time_series_forward.1} parent=5 // pred_check_branch
        %10297 = sbr.rel (%p10295) target = $region164
      $region163: #{mask_time_series_forward.1} parent=5 // pred_region
        %s10298 = ssub.s32 %s78, 2
        // Predicated region
        $region165: #{mask_time_series_forward.1} parent=163 // pred_check
          %p10299 = pneg %p836
        $region166: #{mask_time_series_forward.1} parent=163 // pred_check_branch
          %10301 = sbr.rel (%p10299) target = $region168
        $region167: #{mask_time_series_forward.1} parent=163 // pred_region
          %s10302 = sand.u32 %s821, 1
          %s10303 = scalar_lea.sflag [#allocation3], %s10302
          %s10304 = sand.u32 %s821, 1
          %s10305 = smul.addr %s10304, 16
          %s10306 = scalar_lea.vmem [#allocation2], %s10305
          %10307 = dma.done %s10303, 256
        $region168: #{mask_time_series_forward.1} parent=163 // pred_fallthru
          _
      $region164: #{mask_time_series_forward.1} parent=5 // pred_fallthru
        _
    $region6: #{mask_time_series_forward.1} parent=1 // loop_footer
      %s82 = sadd.s32 1, %s78
    $region7: #{mask_time_series_forward.1} parent=1 // loop_footer_branch
      %77 = sbr.rel target = $region3
    $region8: #{mask_time_series_forward.1} parent=1 // loop_exit
      _
    %10308 = vsyncpa [#allocation3], 1
    %s10309 = scalar_lea.sflag [#allocation3], 1
    %10310 = vsyncpa %s10309, 1

</llo_original>
